<compile_context>
chip_gen: v7x
topology: tpu7x:2x2x1
jax: 0.10.0
libtpu: 0.0.40
codegen_flags: <defaults>
</compile_context>

<pallas_src>
import functools

import jax
import jax.numpy as jnp
import numpy as np
from jax.experimental import pallas as pl
from jax.experimental.pallas import tpu as pltpu

_LANE = 128  # TPU lane width; slab columns are kept lane-aligned.


def _round_up(n, m):
    return (n + m - 1) // m * m


# ---------------------------------------------------------------------------
# Pallas kernel: fused 3x3 conv (+ folded-BN bias) (+ shortcut) (+ ReLU)
# ---------------------------------------------------------------------------
def _fused_conv3x3_kernel(*refs, num_phases, taps, out_hw, relu, shortcut,
                          sc_off):
    """refs = [phase_0..phase_{P-1}, w, bias, (sc_x)?, out, slab].

    phase_p : (N, Hp, Wp, cin)   bf16  stride-phase of the padded input
    w       : (K, cout)          bf16  BN scale folded; rows tap-major
                                       (K = 9*cin [+ csc for proj shortcut])
    bias    : (1, cout)          f32   folded-BN bias (+ shortcut BN bias)
    sc_x    : (N, Hs, Ws, csc)   bf16  shortcut source (phase of block input)
    out     : (N*Ho*Wo, cout)    bf16  lane/sublane-dense output slab
    slab    : (N*Ho*Wo, K)       bf16  VMEM scratch (concatenated activations)
    """
    slab_ref = refs[-1]
    o_ref = refs[-2]
    phase_refs = refs[:num_phases]
    w_ref = refs[num_phases]
    b_ref = refs[num_phases + 1]
    sc_ref = refs[num_phases + 2] if shortcut != "none" else None

    Ho, Wo = out_hw
    N = phase_refs[0].shape[0]
    cin = phase_refs[0].shape[-1]
    cout = o_ref.shape[-1]
    M = N * Ho * Wo
    soh, sow = sc_off

    # Build the (M, K) activation slab once in VMEM: the 9 shifted, stride-1
    # windows of the padded input laid side by side along K (tap-major so the
    # packed weight rows line up), plus -- for the projection shortcut -- the
    # strided block-input slab appended at the end.  Channels are lane-padded
    # in the wrapper, so every column offset is a multiple of 128 and every
    # store below is an aligned, unmasked vector store.
    for t, (p, oh, ow) in enumerate(taps):
        slab_ref[:, t * cin:(t + 1) * cin] = (
            phase_refs[p][:, oh:oh + Ho, ow:ow + Wo, :].reshape(M, cin))
    if shortcut == "proj":
        csc = sc_ref.shape[-1]
        base = len(taps) * cin
        slab_ref[:, base:base + csc] = (
            sc_ref[:, soh:soh + Ho, sow:sow + Wo, :].reshape(M, csc))

    # ONE long-K MXU matmul with f32 accumulation; the folded-BN bias rides in
    # the same epilogue pass.
    acc = jnp.dot(slab_ref[...], w_ref[...],
                  preferred_element_type=jnp.float32) + b_ref[...]

    if shortcut == "identity":                 # plain residual add
        acc = acc + sc_ref[:, soh:soh + Ho, sow:sow + Wo, :cout].reshape(
            M, cout).astype(jnp.float32)

    if relu:
        acc = jnp.maximum(acc, 0.0)
    o_ref[...] = acc.astype(o_ref.dtype)


# ---------------------------------------------------------------------------
# Pallas wrapper
# ---------------------------------------------------------------------------
def _fused_conv3x3(phases, taps, out_hw, w_mat, bias, *, relu,
                   shortcut_kind="none", sc_phase=None, sc_off=(0, 0),
                   sc_w=None):
    N = phases[0].shape[0]
    Ho, Wo = out_hw
    cin = phases[0].shape[-1]
    cout = w_mat.shape[-1]
    M = N * Ho * Wo

    if shortcut_kind == "proj":
        w_full = jnp.concatenate([w_mat, sc_w], axis=0)   # stack 1x1 under 3x3
    else:
        w_full = w_mat
    K = w_full.shape[0]
    expected_k = 9 * cin + (sc_phase.shape[-1] if shortcut_kind == "proj"
                            else 0)
    assert K == expected_k, (K, expected_k)

    inputs = list(phases) + [w_full, bias.reshape(1, cout).astype(jnp.float32)]
    in_specs = [pl.BlockSpec(tuple(p.shape), lambda i: (0, 0, 0, 0))
                for p in phases]
    in_specs += [pl.BlockSpec((K, cout), lambda i: (0, 0)),
                 pl.BlockSpec((1, cout), lambda i: (0, 0))]

    if shortcut_kind != "none":
        assert sc_off[0] + Ho <= sc_phase.shape[1]
        assert sc_off[1] + Wo <= sc_phase.shape[2]
        inputs.append(sc_phase)
        in_specs.append(pl.BlockSpec(tuple(sc_phase.shape),
                                     lambda i: (0, 0, 0, 0)))

    flops = 2 * M * K * cout
    bytes_accessed = int(sum(a.size * a.dtype.itemsize for a in inputs)
                         + M * cout * 2)

    kernel = functools.partial(
        _fused_conv3x3_kernel, num_phases=len(phases), taps=tuple(taps),
        out_hw=(Ho, Wo), relu=relu, shortcut=shortcut_kind,
        sc_off=tuple(sc_off))

    out = pl.pallas_call(
        kernel,
        grid=(1,),                               # batch folded into matmul M
        in_specs=in_specs,
        out_specs=pl.BlockSpec((M, cout), lambda i: (0, 0)),
        out_shape=jax.ShapeDtypeStruct((M, cout), jnp.bfloat16),
        scratch_shapes=[pltpu.VMEM((M, K), jnp.bfloat16)],
        compiler_params=pltpu.CompilerParams(
            dimension_semantics=("arbitrary",)),
        cost_estimate=pl.CostEstimate(flops=flops, transcendentals=0,
                                      bytes_accessed=bytes_accessed),
    )(*inputs)
    return out.reshape(N, Ho, Wo, cout)


# ---------------------------------------------------------------------------
# JAX glue: pad + stride-phase decomposition (data rearrangement only)
# ---------------------------------------------------------------------------
def _pad_and_phase(x, stride):
    """Pad NHWC x spatially by 1, lane-pad channels, split into stride-phases.

    Tap (kh, kw) of a 3x3/pad-1/stride-s conv reads, for output (i, j),
    xp[i*s + kh, j*s + kw] = phase[kh % s, kw % s][i + kh//s, j + kw//s],
    so every in-kernel slice is a static, stride-1 window.
    """
    N, H, W, C = x.shape
    Ho = (H + 2 - 3) // stride + 1
    Wo = (W + 2 - 3) // stride + 1
    c_pad = (-C) % _LANE                       # lane-align slab columns
    xp = jnp.pad(x, ((0, 0), (1, 1), (1, 1), (0, c_pad)))
    if stride == 1:                            # no phase machinery needed
        phases = [xp]
    else:
        phases = [xp[:, ph::stride, pw::stride, :]
                  for ph in range(stride) for pw in range(stride)]
    taps = []
    for kh in range(3):
        for kw in range(3):
            p = (kh % stride) * stride + (kw % stride)
            oh, ow = kh // stride, kw // stride
            assert oh + Ho <= phases[p].shape[1], "tap out of bounds (H)"
            assert ow + Wo <= phases[p].shape[2], "tap out of bounds (W)"
            taps.append((p, oh, ow))
    return phases, taps, Ho, Wo


# ---------------------------------------------------------------------------
# Residual BasicBlock / NetworkBlock forward (Pallas path)
# ---------------------------------------------------------------------------
def basic_block_forward(x, blk):
    """x: (N, H, W, Cin) bf16 NHWC -> (N, Ho, Wo, planes) bf16."""
    s = blk["stride"]
    N, H, W, cin = x.shape
    planes = blk["w1"].shape[-1]

    # conv1 (3x3, stride s) + bn1 + relu, fully fused in one pallas_call.
    phases1, taps1, Ho, Wo = _pad_and_phase(x, s)
    out1 = _fused_conv3x3(phases1, taps1, (Ho, Wo), blk["w1"], blk["b1"],
                          relu=True)

    # Shortcut source x[:, ::s, ::s, :] == phase(1%s, 1%s) of padded x,
    # cropped at (1//s, 1//s): reuse conv1's phases, no extra HBM array.
    sc_phase = phases1[(1 % s) * s + (1 % s)]
    sc_off = (1 // s, 1 // s)

    # conv2 (3x3, stride 1) + bn2 + shortcut + relu, fused in ONE kernel; the
    # 1x1 projection is folded into the same long-K dot (weights stacked).
    phases2, taps2, Ho2, Wo2 = _pad_and_phase(out1, 1)
    if "ws" in blk:
        out = _fused_conv3x3(phases2, taps2, (Ho2, Wo2), blk["w2"],
                             blk["b2"] + blk["bs"], relu=True,
                             shortcut_kind="proj", sc_phase=sc_phase,
                             sc_off=sc_off, sc_w=blk["ws"])
    else:
        assert s == 1 and cin == planes, \
            "identity shortcut requires stride 1 and matching channels"
        out = _fused_conv3x3(phases2, taps2, (Ho2, Wo2), blk["w2"],
                             blk["b2"], relu=True,
                             shortcut_kind="identity", sc_phase=sc_phase,
                             sc_off=sc_off)
    return out


def network_block_forward(params, x_nchw):
    # TODO(synk): dropRate > 0 (F.dropout) is not implemented; inference with
    # dropRate = 0.0 is assumed (dropout is then the identity).
    x = jnp.transpose(x_nchw, (0, 2, 3, 1)).astype(jnp.bfloat16)  # NCHW->NHWC
    for blk in params:
        x = basic_block_forward(x, blk)
    return jnp.transpose(x.astype(jnp.float32), (0, 3, 1, 2))     # ->NCHW


# ---------------------------------------------------------------------------
# Parameters (deterministic, synthetic); BN scale folded into packed weights
# ---------------------------------------------------------------------------
def _fold_bn(gamma, beta, mean, var, eps=1e-5):
    scale = gamma / jnp.sqrt(var + eps)
    bias = beta - mean * scale
    return scale, bias


def _bn_params(key, c):
    k1, k2 = jax.random.split(key)
    gamma = 1.0 + 0.1 * jax.random.normal(k1, (c,), jnp.float32)
    beta = 0.1 * jax.random.normal(k2, (c,), jnp.float32)
    # TODO(synk): BatchNorm is inference-mode (running stats mean=0, var=1
    # folded to a per-channel affine), not training-mode batch statistics.
    return _fold_bn(gamma, beta, jnp.zeros((c,), jnp.float32),
                    jnp.ones((c,), jnp.float32))


def _conv_w(key, cout, cin, k):
    std = np.sqrt(2.0 / (cin * k * k))       # He init, conv bias=False
    return jax.random.normal(key, (cout, cin, k, k), jnp.float32) * std  # OIHW


def _pack3x3(w_oihw, bn_scale, c_pad_to):
    """(O,I,3,3) -> (9*c_pad_to, O) bf16, tap-major rows, BN scale folded,
    input channels zero-padded to the lane-aligned width."""
    O, I = w_oihw.shape[:2]
    w = w_oihw * bn_scale[:, None, None, None]
    w = jnp.transpose(w, (2, 3, 1, 0))                       # (3,3,I,O)
    w = jnp.pad(w, ((0, 0), (0, 0), (0, c_pad_to - I), (0, 0)))
    return w.reshape(9 * c_pad_to, O).astype(jnp.bfloat16)


def _pack1x1(w_oihw, bn_scale, c_pad_to):
    """(O,I,1,1) -> (c_pad_to, O) bf16 with BN scale folded, rows zero-padded."""
    O, I = w_oihw.shape[:2]
    w = (w_oihw[:, :, 0, 0] * bn_scale[:, None]).T           # (I, O)
    w = jnp.pad(w, ((0, c_pad_to - I), (0, 0)))
    return w.astype(jnp.bfloat16)


def init_network_block_params(key, nb_layers, in_planes, out_planes, stride):
    # TODO(synk): the spec passes `block` as a constructor argument; a
    # post-activation residual BasicBlock (conv-bn-relu, conv-bn, +shortcut,
    # relu) is assumed.
    keys = iter(jax.random.split(key, 6 * nb_layers + 2))
    blocks = []
    cin = in_planes
    for i in range(nb_layers):
        s = stride if i == 0 else 1
        blk = {"stride": s}

        w1 = _conv_w(next(keys), out_planes, cin, 3)
        s1, b1 = _bn_params(next(keys), out_planes)
        blk["w1_oihw"], blk["bn1"] = w1, (s1, b1)
        blk["w1"] = _pack3x3(w1, s1, _round_up(cin, _LANE))
        blk["b1"] = b1.astype(jnp.float32)

        w2 = _conv_w(next(keys), out_planes, out_planes, 3)
        s2, b2 = _bn_params(next(keys), out_planes)
        blk["w2_oihw"], blk["bn2"] = w2, (s2, b2)
        blk["w2"] = _pack3x3(w2, s2, _round_up(out_planes, _LANE))
        blk["b2"] = b2.astype(jnp.float32)

        if s != 1 or cin != out_planes:      # BasicBlock expansion == 1
            ws = _conv_w(next(keys), out_planes, cin, 1)
            ss, bs = _bn_params(next(keys), out_planes)
            blk["ws_oihw"], blk["bns"] = ws, (ss, bs)
            blk["ws"] = _pack1x1(ws, ss, _round_up(cin, _LANE))
            blk["bs"] = bs.astype(jnp.float32)
        blocks.append(blk)
        cin = out_planes
    return blocks


# ---------------------------------------------------------------------------
# Pure-JAX reference (f32) for a sanity check
# ---------------------------------------------------------------------------
def _ref_conv(x, w_oihw, stride, pad):
    return jax.lax.conv_general_dilated(
        x, jnp.transpose(w_oihw, (2, 3, 1, 0)),
        window_strides=(stride, stride),
        padding=((pad, pad), (pad, pad)),
        dimension_numbers=("NHWC", "HWIO", "NHWC"),
        precision=jax.lax.Precision.HIGHEST)


def network_block_reference(params, x_nchw):
    x = jnp.transpose(x_nchw, (0, 2, 3, 1))
    for blk in params:
        s = blk["stride"]
        s1, b1 = blk["bn1"]
        s2, b2 = blk["bn2"]
        o1 = jnp.maximum(_ref_conv(x, blk["w1_oihw"], s, 1) * s1 + b1, 0.0)
        o2 = _ref_conv(o1, blk["w2_oihw"], 1, 1) * s2 + b2
        if "ws_oihw" in blk:
            ss, bs = blk["bns"]
            sc = _ref_conv(x, blk["ws_oihw"], s, 0) * ss + bs
        else:
            sc = x
        x = jnp.maximum(o2 + sc, 0.0)
    return jnp.transpose(x, (0, 3, 1, 2))


# ---------------------------------------------------------------------------
if __name__ == "__main__":
    key = jax.random.PRNGKey(0)
    kp, kx = jax.random.split(key)

    # NetworkBlock(nb_layers=2, in_planes=64, out_planes=128, block=BasicBlock,
    #              stride=2, dropRate=0.0)
    NB_LAYERS, IN_PLANES, OUT_PLANES, STRIDE = 2, 64, 128, 2
    params = init_network_block_params(kp, NB_LAYERS, IN_PLANES, OUT_PLANES,
                                       STRIDE)
    x = jax.random.normal(kx, (2, IN_PLANES, 16, 16), jnp.float32)  # NCHW

    fwd = jax.jit(lambda inp: network_block_forward(params, inp))
    out = jax.block_until_ready(fwd(x))
    assert out.shape == (2, OUT_PLANES, 8, 8), out.shape

    ref = jax.block_until_ready(network_block_reference(params, x))
    np.testing.assert_allclose(np.asarray(out), np.asarray(ref),
                               rtol=5e-2, atol=5e-2)
    print("KERNEL_OK")
</pallas_src>

<mosaic_0001>
module attributes {stable_mosaic.version = 11 : i64} {
  func.func @_fused_conv3x3_kernel(%arg0: i32, %arg1: memref<2x9x9x128xbf16, #tpu.memory_space<vmem>>, %arg2: memref<2x9x9x128xbf16, #tpu.memory_space<vmem>>, %arg3: memref<2x9x9x128xbf16, #tpu.memory_space<vmem>>, %arg4: memref<2x9x9x128xbf16, #tpu.memory_space<vmem>>, %arg5: memref<1152x128xbf16, #tpu.memory_space<vmem>>, %arg6: memref<1x128xf32, #tpu.memory_space<vmem>>, %arg7: memref<128x128xbf16, #tpu.memory_space<vmem>>, %arg8: memref<128x1152xbf16, #tpu.memory_space<vmem>>) attributes {dimension_semantics = [#tpu.dimension_semantics<arbitrary>], iteration_bounds = array<i64: 1>, scalar_prefetch = 0 : i64, scratch_operands = 1 : i64, tpu.core_type = #tpu.core_type<tc>, window_params = [{pipeline_mode = #tpu.pipeline_mode<synchronous>, transform_indices = @transform_0, window_bounds = array<i64: 2, 9, 9, 128>}, {pipeline_mode = #tpu.pipeline_mode<synchronous>, transform_indices = @transform_1, window_bounds = array<i64: 2, 9, 9, 128>}, {pipeline_mode = #tpu.pipeline_mode<synchronous>, transform_indices = @transform_2, window_bounds = array<i64: 2, 9, 9, 128>}, {pipeline_mode = #tpu.pipeline_mode<synchronous>, transform_indices = @transform_3, window_bounds = array<i64: 2, 9, 9, 128>}, {pipeline_mode = #tpu.pipeline_mode<synchronous>, transform_indices = @transform_4, window_bounds = array<i64: 1152, 128>}, {pipeline_mode = #tpu.pipeline_mode<synchronous>, transform_indices = @transform_5, window_bounds = array<i64: 1, 128>}, {pipeline_mode = #tpu.pipeline_mode<synchronous>, transform_indices = @transform_6, window_bounds = array<i64: 128, 128>}]} {
    %c0 = arith.constant 0 : index
    %c0_0 = arith.constant 0 : index
    %c0_1 = arith.constant 0 : index
    %c0_2 = arith.constant 0 : index
    %0 = vector.load %arg1[%c0, %c0_0, %c0_1, %c0_2] : memref<2x9x9x128xbf16, #tpu.memory_space<vmem>>, vector<2x8x8x128xbf16>
    %1 = vector.shape_cast %0 : vector<2x8x8x128xbf16> to vector<128x128xbf16>
    %c0_3 = arith.constant 0 : index
    %c0_4 = arith.constant 0 : index
    %2 = vector.load %arg8[%c0_3, %c0_4] : memref<128x1152xbf16, #tpu.memory_space<vmem>>, vector<128x128xbf16>
    tpu.vector_store %arg8[%c0_3, %c0_4], %1 {strides = array<i32>} : memref<128x1152xbf16, #tpu.memory_space<vmem>>, vector<128x128xbf16>,
    %c0_5 = arith.constant 0 : index
    %c0_6 = arith.constant 0 : index
    %c0_7 = arith.constant 0 : index
    %c0_8 = arith.constant 0 : index
    %3 = vector.load %arg2[%c0_5, %c0_6, %c0_7, %c0_8] : memref<2x9x9x128xbf16, #tpu.memory_space<vmem>>, vector<2x8x8x128xbf16>
    %4 = vector.shape_cast %3 : vector<2x8x8x128xbf16> to vector<128x128xbf16>
    %c0_9 = arith.constant 0 : index
    %c128 = arith.constant 128 : index
    %5 = vector.load %arg8[%c0_9, %c128] : memref<128x1152xbf16, #tpu.memory_space<vmem>>, vector<128x128xbf16>
    tpu.vector_store %arg8[%c0_9, %c128], %4 {strides = array<i32>} : memref<128x1152xbf16, #tpu.memory_space<vmem>>, vector<128x128xbf16>,
    %c0_10 = arith.constant 0 : index
    %c0_11 = arith.constant 0 : index
    %c1 = arith.constant 1 : index
    %c0_12 = arith.constant 0 : index
    %6 = vector.load %arg1[%c0_10, %c0_11, %c1, %c0_12] : memref<2x9x9x128xbf16, #tpu.memory_space<vmem>>, vector<2x8x8x128xbf16>
    %7 = vector.shape_cast %6 : vector<2x8x8x128xbf16> to vector<128x128xbf16>
    %c0_13 = arith.constant 0 : index
    %c256 = arith.constant 256 : index
    %8 = vector.load %arg8[%c0_13, %c256] : memref<128x1152xbf16, #tpu.memory_space<vmem>>, vector<128x128xbf16>
    tpu.vector_store %arg8[%c0_13, %c256], %7 {strides = array<i32>} : memref<128x1152xbf16, #tpu.memory_space<vmem>>, vector<128x128xbf16>,
    %c0_14 = arith.constant 0 : index
    %c0_15 = arith.constant 0 : index
    %c0_16 = arith.constant 0 : index
    %c0_17 = arith.constant 0 : index
    %9 = vector.load %arg3[%c0_14, %c0_15, %c0_16, %c0_17] : memref<2x9x9x128xbf16, #tpu.memory_space<vmem>>, vector<2x8x8x128xbf16>
    %10 = vector.shape_cast %9 : vector<2x8x8x128xbf16> to vector<128x128xbf16>
    %c0_18 = arith.constant 0 : index
    %c384 = arith.constant 384 : index
    %11 = vector.load %arg8[%c0_18, %c384] : memref<128x1152xbf16, #tpu.memory_space<vmem>>, vector<128x128xbf16>
    tpu.vector_store %arg8[%c0_18, %c384], %10 {strides = array<i32>} : memref<128x1152xbf16, #tpu.memory_space<vmem>>, vector<128x128xbf16>,
    %c0_19 = arith.constant 0 : index
    %c0_20 = arith.constant 0 : index
    %c0_21 = arith.constant 0 : index
    %c0_22 = arith.constant 0 : index
    %12 = vector.load %arg4[%c0_19, %c0_20, %c0_21, %c0_22] : memref<2x9x9x128xbf16, #tpu.memory_space<vmem>>, vector<2x8x8x128xbf16>
    %13 = vector.shape_cast %12 : vector<2x8x8x128xbf16> to vector<128x128xbf16>
    %c0_23 = arith.constant 0 : index
    %c512 = arith.constant 512 : index
    %14 = vector.load %arg8[%c0_23, %c512] : memref<128x1152xbf16, #tpu.memory_space<vmem>>, vector<128x128xbf16>
    tpu.vector_store %arg8[%c0_23, %c512], %13 {strides = array<i32>} : memref<128x1152xbf16, #tpu.memory_space<vmem>>, vector<128x128xbf16>,
    %c0_24 = arith.constant 0 : index
    %c0_25 = arith.constant 0 : index
    %c1_26 = arith.constant 1 : index
    %c0_27 = arith.constant 0 : index
    %15 = vector.load %arg3[%c0_24, %c0_25, %c1_26, %c0_27] : memref<2x9x9x128xbf16, #tpu.memory_space<vmem>>, vector<2x8x8x128xbf16>
    %16 = vector.shape_cast %15 : vector<2x8x8x128xbf16> to vector<128x128xbf16>
    %c0_28 = arith.constant 0 : index
    %c640 = arith.constant 640 : index
    %17 = vector.load %arg8[%c0_28, %c640] : memref<128x1152xbf16, #tpu.memory_space<vmem>>, vector<128x128xbf16>
    tpu.vector_store %arg8[%c0_28, %c640], %16 {strides = array<i32>} : memref<128x1152xbf16, #tpu.memory_space<vmem>>, vector<128x128xbf16>,
    %c0_29 = arith.constant 0 : index
    %c1_30 = arith.constant 1 : index
    %c0_31 = arith.constant 0 : index
    %c0_32 = arith.constant 0 : index
    %18 = vector.load %arg1[%c0_29, %c1_30, %c0_31, %c0_32] : memref<2x9x9x128xbf16, #tpu.memory_space<vmem>>, vector<2x8x8x128xbf16>
    %19 = vector.shape_cast %18 : vector<2x8x8x128xbf16> to vector<128x128xbf16>
    %c0_33 = arith.constant 0 : index
    %c768 = arith.constant 768 : index
    %20 = vector.load %arg8[%c0_33, %c768] : memref<128x1152xbf16, #tpu.memory_space<vmem>>, vector<128x128xbf16>
    tpu.vector_store %arg8[%c0_33, %c768], %19 {strides = array<i32>} : memref<128x1152xbf16, #tpu.memory_space<vmem>>, vector<128x128xbf16>,
    %c0_34 = arith.constant 0 : index
    %c1_35 = arith.constant 1 : index
    %c0_36 = arith.constant 0 : index
    %c0_37 = arith.constant 0 : index
    %21 = vector.load %arg2[%c0_34, %c1_35, %c0_36, %c0_37] : memref<2x9x9x128xbf16, #tpu.memory_space<vmem>>, vector<2x8x8x128xbf16>
    %22 = vector.shape_cast %21 : vector<2x8x8x128xbf16> to vector<128x128xbf16>
    %c0_38 = arith.constant 0 : index
    %c896 = arith.constant 896 : index
    %23 = vector.load %arg8[%c0_38, %c896] : memref<128x1152xbf16, #tpu.memory_space<vmem>>, vector<128x128xbf16>
    tpu.vector_store %arg8[%c0_38, %c896], %22 {strides = array<i32>} : memref<128x1152xbf16, #tpu.memory_space<vmem>>, vector<128x128xbf16>,
    %c0_39 = arith.constant 0 : index
    %c1_40 = arith.constant 1 : index
    %c1_41 = arith.constant 1 : index
    %c0_42 = arith.constant 0 : index
    %24 = vector.load %arg1[%c0_39, %c1_40, %c1_41, %c0_42] : memref<2x9x9x128xbf16, #tpu.memory_space<vmem>>, vector<2x8x8x128xbf16>
    %25 = vector.shape_cast %24 : vector<2x8x8x128xbf16> to vector<128x128xbf16>
    %c0_43 = arith.constant 0 : index
    %c1024 = arith.constant 1024 : index
    %26 = vector.load %arg8[%c0_43, %c1024] : memref<128x1152xbf16, #tpu.memory_space<vmem>>, vector<128x128xbf16>
    tpu.vector_store %arg8[%c0_43, %c1024], %25 {strides = array<i32>} : memref<128x1152xbf16, #tpu.memory_space<vmem>>, vector<128x128xbf16>,
    %c0_44 = arith.constant 0 : index
    %c0_45 = arith.constant 0 : index
    %27 = vector.load %arg8[%c0_44, %c0_45] : memref<128x1152xbf16, #tpu.memory_space<vmem>>, vector<128x1152xbf16>
    %c0_46 = arith.constant 0 : index
    %c0_47 = arith.constant 0 : index
    %28 = vector.load %arg5[%c0_46, %c0_47] : memref<1152x128xbf16, #tpu.memory_space<vmem>>, vector<1152x128xbf16>
    %cst = arith.constant dense<0.000000e+00> : vector<128x128xf32>
    %29 = tpu.matmul %27, %28, %cst {dimension_numbers = #tpu.dot_dimension_numbers<[1], [0], [0], [1], [0, 0, 1, 1], [], []>} : vector<128x1152xbf16>, vector<1152x128xbf16>, vector<128x128xf32> -> vector<128x128xf32>
    %c0_48 = arith.constant 0 : index
    %c0_49 = arith.constant 0 : index
    %30 = vector.load %arg6[%c0_48, %c0_49] : memref<1x128xf32, #tpu.memory_space<vmem>>, vector<1x128xf32>
    %31 = vector.broadcast %30 : vector<1x128xf32> to vector<128x128xf32>
    %32 = arith.addf %29, %31 : vector<128x128xf32>
    %cst_50 = arith.constant 0.000000e+00 : f32
    %33 = vector.broadcast %cst_50 : f32 to vector<128x128xf32>
    %34 = arith.maximumf %32, %33 : vector<128x128xf32>
    %35 = arith.truncf %34 : vector<128x128xf32> to vector<128x128xbf16>
    %c0_51 = arith.constant 0 : index
    %c0_52 = arith.constant 0 : index
    %36 = vector.load %arg7[%c0_51, %c0_52] : memref<128x128xbf16, #tpu.memory_space<vmem>>, vector<128x128xbf16>
    tpu.vector_store %arg7[%c0_51, %c0_52], %35 {strides = array<i32>} : memref<128x128xbf16, #tpu.memory_space<vmem>>, vector<128x128xbf16>,
    return
  }
  func.func @transform_0(%arg0: i32) -> (i32, i32, i32, i32) {
    %c0_i32 = arith.constant 0 : i32
    %c0_i32_0 = arith.constant 0 : i32
    %c0_i32_1 = arith.constant 0 : i32
    %c0_i32_2 = arith.constant 0 : i32
    %c0_i32_3 = arith.constant 0 : i32
    return %c0_i32, %c0_i32_0, %c0_i32_1, %c0_i32_2 : i32, i32, i32, i32
  }
  func.func @transform_1(%arg0: i32) -> (i32, i32, i32, i32) {
    %c0_i32 = arith.constant 0 : i32
    %c0_i32_0 = arith.constant 0 : i32
    %c0_i32_1 = arith.constant 0 : i32
    %c0_i32_2 = arith.constant 0 : i32
    %c0_i32_3 = arith.constant 0 : i32
    return %c0_i32, %c0_i32_0, %c0_i32_1, %c0_i32_2 : i32, i32, i32, i32
  }
  func.func @transform_2(%arg0: i32) -> (i32, i32, i32, i32) {
    %c0_i32 = arith.constant 0 : i32
    %c0_i32_0 = arith.constant 0 : i32
    %c0_i32_1 = arith.constant 0 : i32
    %c0_i32_2 = arith.constant 0 : i32
    %c0_i32_3 = arith.constant 0 : i32
    return %c0_i32, %c0_i32_0, %c0_i32_1, %c0_i32_2 : i32, i32, i32, i32
  }
  func.func @transform_3(%arg0: i32) -> (i32, i32, i32, i32) {
    %c0_i32 = arith.constant 0 : i32
    %c0_i32_0 = arith.constant 0 : i32
    %c0_i32_1 = arith.constant 0 : i32
    %c0_i32_2 = arith.constant 0 : i32
    %c0_i32_3 = arith.constant 0 : i32
    return %c0_i32, %c0_i32_0, %c0_i32_1, %c0_i32_2 : i32, i32, i32, i32
  }
  func.func @transform_4(%arg0: i32) -> (i32, i32) {
    %c0_i32 = arith.constant 0 : i32
    %c0_i32_0 = arith.constant 0 : i32
    %c0_i32_1 = arith.constant 0 : i32
    return %c0_i32, %c0_i32_0 : i32, i32
  }
  func.func @transform_5(%arg0: i32) -> (i32, i32) {
    %c0_i32 = arith.constant 0 : i32
    %c0_i32_0 = arith.constant 0 : i32
    %c0_i32_1 = arith.constant 0 : i32
    return %c0_i32, %c0_i32_0 : i32, i32
  }
  func.func @transform_6(%arg0: i32) -> (i32, i32) {
    %c0_i32 = arith.constant 0 : i32
    %c0_i32_0 = arith.constant 0 : i32
    %c0_i32_1 = arith.constant 0 : i32
    return %c0_i32, %c0_i32_0 : i32, i32
  }
}

module attributes {stable_mosaic.version = 11 : i64} {
  func.func @_fused_conv3x3_kernel(%arg0: i32, %arg1: memref<2x10x10x128xbf16, #tpu.memory_space<vmem>>, %arg2: memref<1280x128xbf16, #tpu.memory_space<vmem>>, %arg3: memref<1x128xf32, #tpu.memory_space<vmem>>, %arg4: memref<2x9x9x128xbf16, #tpu.memory_space<vmem>>, %arg5: memref<128x128xbf16, #tpu.memory_space<vmem>>, %arg6: memref<128x1280xbf16, #tpu.memory_space<vmem>>) attributes {dimension_semantics = [#tpu.dimension_semantics<arbitrary>], iteration_bounds = array<i64: 1>, scalar_prefetch = 0 : i64, scratch_operands = 1 : i64, tpu.core_type = #tpu.core_type<tc>, window_params = [{pipeline_mode = #tpu.pipeline_mode<synchronous>, transform_indices = @transform_0, window_bounds = array<i64: 2, 10, 10, 128>}, {pipeline_mode = #tpu.pipeline_mode<synchronous>, transform_indices = @transform_1, window_bounds = array<i64: 1280, 128>}, {pipeline_mode = #tpu.pipeline_mode<synchronous>, transform_indices = @transform_2, window_bounds = array<i64: 1, 128>}, {pipeline_mode = #tpu.pipeline_mode<synchronous>, transform_indices = @transform_3, window_bounds = array<i64: 2, 9, 9, 128>}, {pipeline_mode = #tpu.pipeline_mode<synchronous>, transform_indices = @transform_4, window_bounds = array<i64: 128, 128>}]} {
    %c0 = arith.constant 0 : index
    %c0_0 = arith.constant 0 : index
    %c0_1 = arith.constant 0 : index
    %c0_2 = arith.constant 0 : index
    %0 = vector.load %arg1[%c0, %c0_0, %c0_1, %c0_2] : memref<2x10x10x128xbf16, #tpu.memory_space<vmem>>, vector<2x8x8x128xbf16>
    %1 = vector.shape_cast %0 : vector<2x8x8x128xbf16> to vector<128x128xbf16>
    %c0_3 = arith.constant 0 : index
    %c0_4 = arith.constant 0 : index
    %2 = vector.load %arg6[%c0_3, %c0_4] : memref<128x1280xbf16, #tpu.memory_space<vmem>>, vector<128x128xbf16>
    tpu.vector_store %arg6[%c0_3, %c0_4], %1 {strides = array<i32>} : memref<128x1280xbf16, #tpu.memory_space<vmem>>, vector<128x128xbf16>,
    %c0_5 = arith.constant 0 : index
    %c0_6 = arith.constant 0 : index
    %c1 = arith.constant 1 : index
    %c0_7 = arith.constant 0 : index
    %3 = vector.load %arg1[%c0_5, %c0_6, %c1, %c0_7] : memref<2x10x10x128xbf16, #tpu.memory_space<vmem>>, vector<2x8x8x128xbf16>
    %4 = vector.shape_cast %3 : vector<2x8x8x128xbf16> to vector<128x128xbf16>
    %c0_8 = arith.constant 0 : index
    %c128 = arith.constant 128 : index
    %5 = vector.load %arg6[%c0_8, %c128] : memref<128x1280xbf16, #tpu.memory_space<vmem>>, vector<128x128xbf16>
    tpu.vector_store %arg6[%c0_8, %c128], %4 {strides = array<i32>} : memref<128x1280xbf16, #tpu.memory_space<vmem>>, vector<128x128xbf16>,
    %c0_9 = arith.constant 0 : index
    %c0_10 = arith.constant 0 : index
    %c2 = arith.constant 2 : index
    %c0_11 = arith.constant 0 : index
    %6 = vector.load %arg1[%c0_9, %c0_10, %c2, %c0_11] : memref<2x10x10x128xbf16, #tpu.memory_space<vmem>>, vector<2x8x8x128xbf16>
    %7 = vector.shape_cast %6 : vector<2x8x8x128xbf16> to vector<128x128xbf16>
    %c0_12 = arith.constant 0 : index
    %c256 = arith.constant 256 : index
    %8 = vector.load %arg6[%c0_12, %c256] : memref<128x1280xbf16, #tpu.memory_space<vmem>>, vector<128x128xbf16>
    tpu.vector_store %arg6[%c0_12, %c256], %7 {strides = array<i32>} : memref<128x1280xbf16, #tpu.memory_space<vmem>>, vector<128x128xbf16>,
    %c0_13 = arith.constant 0 : index
    %c1_14 = arith.constant 1 : index
    %c0_15 = arith.constant 0 : index
    %c0_16 = arith.constant 0 : index
    %9 = vector.load %arg1[%c0_13, %c1_14, %c0_15, %c0_16] : memref<2x10x10x128xbf16, #tpu.memory_space<vmem>>, vector<2x8x8x128xbf16>
    %10 = vector.shape_cast %9 : vector<2x8x8x128xbf16> to vector<128x128xbf16>
    %c0_17 = arith.constant 0 : index
    %c384 = arith.constant 384 : index
    %11 = vector.load %arg6[%c0_17, %c384] : memref<128x1280xbf16, #tpu.memory_space<vmem>>, vector<128x128xbf16>
    tpu.vector_store %arg6[%c0_17, %c384], %10 {strides = array<i32>} : memref<128x1280xbf16, #tpu.memory_space<vmem>>, vector<128x128xbf16>,
    %c0_18 = arith.constant 0 : index
    %c1_19 = arith.constant 1 : index
    %c1_20 = arith.constant 1 : index
    %c0_21 = arith.constant 0 : index
    %12 = vector.load %arg1[%c0_18, %c1_19, %c1_20, %c0_21] : memref<2x10x10x128xbf16, #tpu.memory_space<vmem>>, vector<2x8x8x128xbf16>
    %13 = vector.shape_cast %12 : vector<2x8x8x128xbf16> to vector<128x128xbf16>
    %c0_22 = arith.constant 0 : index
    %c512 = arith.constant 512 : index
    %14 = vector.load %arg6[%c0_22, %c512] : memref<128x1280xbf16, #tpu.memory_space<vmem>>, vector<128x128xbf16>
    tpu.vector_store %arg6[%c0_22, %c512], %13 {strides = array<i32>} : memref<128x1280xbf16, #tpu.memory_space<vmem>>, vector<128x128xbf16>,
    %c0_23 = arith.constant 0 : index
    %c1_24 = arith.constant 1 : index
    %c2_25 = arith.constant 2 : index
    %c0_26 = arith.constant 0 : index
    %15 = vector.load %arg1[%c0_23, %c1_24, %c2_25, %c0_26] : memref<2x10x10x128xbf16, #tpu.memory_space<vmem>>, vector<2x8x8x128xbf16>
    %16 = vector.shape_cast %15 : vector<2x8x8x128xbf16> to vector<128x128xbf16>
    %c0_27 = arith.constant 0 : index
    %c640 = arith.constant 640 : index
    %17 = vector.load %arg6[%c0_27, %c640] : memref<128x1280xbf16, #tpu.memory_space<vmem>>, vector<128x128xbf16>
    tpu.vector_store %arg6[%c0_27, %c640], %16 {strides = array<i32>} : memref<128x1280xbf16, #tpu.memory_space<vmem>>, vector<128x128xbf16>,
    %c0_28 = arith.constant 0 : index
    %c2_29 = arith.constant 2 : index
    %c0_30 = arith.constant 0 : index
    %c0_31 = arith.constant 0 : index
    %18 = vector.load %arg1[%c0_28, %c2_29, %c0_30, %c0_31] : memref<2x10x10x128xbf16, #tpu.memory_space<vmem>>, vector<2x8x8x128xbf16>
    %19 = vector.shape_cast %18 : vector<2x8x8x128xbf16> to vector<128x128xbf16>
    %c0_32 = arith.constant 0 : index
    %c768 = arith.constant 768 : index
    %20 = vector.load %arg6[%c0_32, %c768] : memref<128x1280xbf16, #tpu.memory_space<vmem>>, vector<128x128xbf16>
    tpu.vector_store %arg6[%c0_32, %c768], %19 {strides = array<i32>} : memref<128x1280xbf16, #tpu.memory_space<vmem>>, vector<128x128xbf16>,
    %c0_33 = arith.constant 0 : index
    %c2_34 = arith.constant 2 : index
    %c1_35 = arith.constant 1 : index
    %c0_36 = arith.constant 0 : index
    %21 = vector.load %arg1[%c0_33, %c2_34, %c1_35, %c0_36] : memref<2x10x10x128xbf16, #tpu.memory_space<vmem>>, vector<2x8x8x128xbf16>
    %22 = vector.shape_cast %21 : vector<2x8x8x128xbf16> to vector<128x128xbf16>
    %c0_37 = arith.constant 0 : index
    %c896 = arith.constant 896 : index
    %23 = vector.load %arg6[%c0_37, %c896] : memref<128x1280xbf16, #tpu.memory_space<vmem>>, vector<128x128xbf16>
    tpu.vector_store %arg6[%c0_37, %c896], %22 {strides = array<i32>} : memref<128x1280xbf16, #tpu.memory_space<vmem>>, vector<128x128xbf16>,
    %c0_38 = arith.constant 0 : index
    %c2_39 = arith.constant 2 : index
    %c2_40 = arith.constant 2 : index
    %c0_41 = arith.constant 0 : index
    %24 = vector.load %arg1[%c0_38, %c2_39, %c2_40, %c0_41] : memref<2x10x10x128xbf16, #tpu.memory_space<vmem>>, vector<2x8x8x128xbf16>
    %25 = vector.shape_cast %24 : vector<2x8x8x128xbf16> to vector<128x128xbf16>
    %c0_42 = arith.constant 0 : index
    %c1024 = arith.constant 1024 : index
    %26 = vector.load %arg6[%c0_42, %c1024] : memref<128x1280xbf16, #tpu.memory_space<vmem>>, vector<128x128xbf16>
    tpu.vector_store %arg6[%c0_42, %c1024], %25 {strides = array<i32>} : memref<128x1280xbf16, #tpu.memory_space<vmem>>, vector<128x128xbf16>,
    %c0_43 = arith.constant 0 : index
    %c0_44 = arith.constant 0 : index
    %c0_45 = arith.constant 0 : index
    %c0_46 = arith.constant 0 : index
    %27 = vector.load %arg4[%c0_43, %c0_44, %c0_45, %c0_46] : memref<2x9x9x128xbf16, #tpu.memory_space<vmem>>, vector<2x8x8x128xbf16>
    %28 = vector.shape_cast %27 : vector<2x8x8x128xbf16> to vector<128x128xbf16>
    %c0_47 = arith.constant 0 : index
    %c1152 = arith.constant 1152 : index
    %29 = vector.load %arg6[%c0_47, %c1152] : memref<128x1280xbf16, #tpu.memory_space<vmem>>, vector<128x128xbf16>
    tpu.vector_store %arg6[%c0_47, %c1152], %28 {strides = array<i32>} : memref<128x1280xbf16, #tpu.memory_space<vmem>>, vector<128x128xbf16>,
    %c0_48 = arith.constant 0 : index
    %c0_49 = arith.constant 0 : index
    %30 = vector.load %arg6[%c0_48, %c0_49] : memref<128x1280xbf16, #tpu.memory_space<vmem>>, vector<128x1280xbf16>
    %c0_50 = arith.constant 0 : index
    %c0_51 = arith.constant 0 : index
    %31 = vector.load %arg2[%c0_50, %c0_51] : memref<1280x128xbf16, #tpu.memory_space<vmem>>, vector<1280x128xbf16>
    %cst = arith.constant dense<0.000000e+00> : vector<128x128xf32>
    %32 = tpu.matmul %30, %31, %cst {dimension_numbers = #tpu.dot_dimension_numbers<[1], [0], [0], [1], [0, 0, 1, 1], [], []>} : vector<128x1280xbf16>, vector<1280x128xbf16>, vector<128x128xf32> -> vector<128x128xf32>
    %c0_52 = arith.constant 0 : index
    %c0_53 = arith.constant 0 : index
    %33 = vector.load %arg3[%c0_52, %c0_53] : memref<1x128xf32, #tpu.memory_space<vmem>>, vector<1x128xf32>
    %34 = vector.broadcast %33 : vector<1x128xf32> to vector<128x128xf32>
    %35 = arith.addf %32, %34 : vector<128x128xf32>
    %cst_54 = arith.constant 0.000000e+00 : f32
    %36 = vector.broadcast %cst_54 : f32 to vector<128x128xf32>
    %37 = arith.maximumf %35, %36 : vector<128x128xf32>
    %38 = arith.truncf %37 : vector<128x128xf32> to vector<128x128xbf16>
    %c0_55 = arith.constant 0 : index
    %c0_56 = arith.constant 0 : index
    %39 = vector.load %arg5[%c0_55, %c0_56] : memref<128x128xbf16, #tpu.memory_space<vmem>>, vector<128x128xbf16>
    tpu.vector_store %arg5[%c0_55, %c0_56], %38 {strides = array<i32>} : memref<128x128xbf16, #tpu.memory_space<vmem>>, vector<128x128xbf16>,
    return
  }
  func.func @transform_0(%arg0: i32) -> (i32, i32, i32, i32) {
    %c0_i32 = arith.constant 0 : i32
    %c0_i32_0 = arith.constant 0 : i32
    %c0_i32_1 = arith.constant 0 : i32
    %c0_i32_2 = arith.constant 0 : i32
    %c0_i32_3 = arith.constant 0 : i32
    return %c0_i32, %c0_i32_0, %c0_i32_1, %c0_i32_2 : i32, i32, i32, i32
  }
  func.func @transform_1(%arg0: i32) -> (i32, i32) {
    %c0_i32 = arith.constant 0 : i32
    %c0_i32_0 = arith.constant 0 : i32
    %c0_i32_1 = arith.constant 0 : i32
    return %c0_i32, %c0_i32_0 : i32, i32
  }
  func.func @transform_2(%arg0: i32) -> (i32, i32) {
    %c0_i32 = arith.constant 0 : i32
    %c0_i32_0 = arith.constant 0 : i32
    %c0_i32_1 = arith.constant 0 : i32
    return %c0_i32, %c0_i32_0 : i32, i32
  }
  func.func @transform_3(%arg0: i32) -> (i32, i32, i32, i32) {
    %c0_i32 = arith.constant 0 : i32
    %c0_i32_0 = arith.constant 0 : i32
    %c0_i32_1 = arith.constant 0 : i32
    %c0_i32_2 = arith.constant 0 : i32
    %c0_i32_3 = arith.constant 0 : i32
    return %c0_i32, %c0_i32_0, %c0_i32_1, %c0_i32_2 : i32, i32, i32, i32
  }
  func.func @transform_4(%arg0: i32) -> (i32, i32) {
    %c0_i32 = arith.constant 0 : i32
    %c0_i32_0 = arith.constant 0 : i32
    %c0_i32_1 = arith.constant 0 : i32
    return %c0_i32, %c0_i32_0 : i32, i32
  }
}

module attributes {stable_mosaic.version = 11 : i64} {
  func.func @_fused_conv3x3_kernel(%arg0: i32, %arg1: memref<2x10x10x128xbf16, #tpu.memory_space<vmem>>, %arg2: memref<1152x128xbf16, #tpu.memory_space<vmem>>, %arg3: memref<1x128xf32, #tpu.memory_space<vmem>>, %arg4: memref<128x128xbf16, #tpu.memory_space<vmem>>, %arg5: memref<128x1152xbf16, #tpu.memory_space<vmem>>) attributes {dimension_semantics = [#tpu.dimension_semantics<arbitrary>], iteration_bounds = array<i64: 1>, scalar_prefetch = 0 : i64, scratch_operands = 1 : i64, tpu.core_type = #tpu.core_type<tc>, window_params = [{pipeline_mode = #tpu.pipeline_mode<synchronous>, transform_indices = @transform_0, window_bounds = array<i64: 2, 10, 10, 128>}, {pipeline_mode = #tpu.pipeline_mode<synchronous>, transform_indices = @transform_1, window_bounds = array<i64: 1152, 128>}, {pipeline_mode = #tpu.pipeline_mode<synchronous>, transform_indices = @transform_2, window_bounds = array<i64: 1, 128>}, {pipeline_mode = #tpu.pipeline_mode<synchronous>, transform_indices = @transform_3, window_bounds = array<i64: 128, 128>}]} {
    %c0 = arith.constant 0 : index
    %c0_0 = arith.constant 0 : index
    %c0_1 = arith.constant 0 : index
    %c0_2 = arith.constant 0 : index
    %0 = vector.load %arg1[%c0, %c0_0, %c0_1, %c0_2] : memref<2x10x10x128xbf16, #tpu.memory_space<vmem>>, vector<2x8x8x128xbf16>
    %1 = vector.shape_cast %0 : vector<2x8x8x128xbf16> to vector<128x128xbf16>
    %c0_3 = arith.constant 0 : index
    %c0_4 = arith.constant 0 : index
    %2 = vector.load %arg5[%c0_3, %c0_4] : memref<128x1152xbf16, #tpu.memory_space<vmem>>, vector<128x128xbf16>
    tpu.vector_store %arg5[%c0_3, %c0_4], %1 {strides = array<i32>} : memref<128x1152xbf16, #tpu.memory_space<vmem>>, vector<128x128xbf16>,
    %c0_5 = arith.constant 0 : index
    %c0_6 = arith.constant 0 : index
    %c1 = arith.constant 1 : index
    %c0_7 = arith.constant 0 : index
    %3 = vector.load %arg1[%c0_5, %c0_6, %c1, %c0_7] : memref<2x10x10x128xbf16, #tpu.memory_space<vmem>>, vector<2x8x8x128xbf16>
    %4 = vector.shape_cast %3 : vector<2x8x8x128xbf16> to vector<128x128xbf16>
    %c0_8 = arith.constant 0 : index
    %c128 = arith.constant 128 : index
    %5 = vector.load %arg5[%c0_8, %c128] : memref<128x1152xbf16, #tpu.memory_space<vmem>>, vector<128x128xbf16>
    tpu.vector_store %arg5[%c0_8, %c128], %4 {strides = array<i32>} : memref<128x1152xbf16, #tpu.memory_space<vmem>>, vector<128x128xbf16>,
    %c0_9 = arith.constant 0 : index
    %c0_10 = arith.constant 0 : index
    %c2 = arith.constant 2 : index
    %c0_11 = arith.constant 0 : index
    %6 = vector.load %arg1[%c0_9, %c0_10, %c2, %c0_11] : memref<2x10x10x128xbf16, #tpu.memory_space<vmem>>, vector<2x8x8x128xbf16>
    %7 = vector.shape_cast %6 : vector<2x8x8x128xbf16> to vector<128x128xbf16>
    %c0_12 = arith.constant 0 : index
    %c256 = arith.constant 256 : index
    %8 = vector.load %arg5[%c0_12, %c256] : memref<128x1152xbf16, #tpu.memory_space<vmem>>, vector<128x128xbf16>
    tpu.vector_store %arg5[%c0_12, %c256], %7 {strides = array<i32>} : memref<128x1152xbf16, #tpu.memory_space<vmem>>, vector<128x128xbf16>,
    %c0_13 = arith.constant 0 : index
    %c1_14 = arith.constant 1 : index
    %c0_15 = arith.constant 0 : index
    %c0_16 = arith.constant 0 : index
    %9 = vector.load %arg1[%c0_13, %c1_14, %c0_15, %c0_16] : memref<2x10x10x128xbf16, #tpu.memory_space<vmem>>, vector<2x8x8x128xbf16>
    %10 = vector.shape_cast %9 : vector<2x8x8x128xbf16> to vector<128x128xbf16>
    %c0_17 = arith.constant 0 : index
    %c384 = arith.constant 384 : index
    %11 = vector.load %arg5[%c0_17, %c384] : memref<128x1152xbf16, #tpu.memory_space<vmem>>, vector<128x128xbf16>
    tpu.vector_store %arg5[%c0_17, %c384], %10 {strides = array<i32>} : memref<128x1152xbf16, #tpu.memory_space<vmem>>, vector<128x128xbf16>,
    %c0_18 = arith.constant 0 : index
    %c1_19 = arith.constant 1 : index
    %c1_20 = arith.constant 1 : index
    %c0_21 = arith.constant 0 : index
    %12 = vector.load %arg1[%c0_18, %c1_19, %c1_20, %c0_21] : memref<2x10x10x128xbf16, #tpu.memory_space<vmem>>, vector<2x8x8x128xbf16>
    %13 = vector.shape_cast %12 : vector<2x8x8x128xbf16> to vector<128x128xbf16>
    %c0_22 = arith.constant 0 : index
    %c512 = arith.constant 512 : index
    %14 = vector.load %arg5[%c0_22, %c512] : memref<128x1152xbf16, #tpu.memory_space<vmem>>, vector<128x128xbf16>
    tpu.vector_store %arg5[%c0_22, %c512], %13 {strides = array<i32>} : memref<128x1152xbf16, #tpu.memory_space<vmem>>, vector<128x128xbf16>,
    %c0_23 = arith.constant 0 : index
    %c1_24 = arith.constant 1 : index
    %c2_25 = arith.constant 2 : index
    %c0_26 = arith.constant 0 : index
    %15 = vector.load %arg1[%c0_23, %c1_24, %c2_25, %c0_26] : memref<2x10x10x128xbf16, #tpu.memory_space<vmem>>, vector<2x8x8x128xbf16>
    %16 = vector.shape_cast %15 : vector<2x8x8x128xbf16> to vector<128x128xbf16>
    %c0_27 = arith.constant 0 : index
    %c640 = arith.constant 640 : index
    %17 = vector.load %arg5[%c0_27, %c640] : memref<128x1152xbf16, #tpu.memory_space<vmem>>, vector<128x128xbf16>
    tpu.vector_store %arg5[%c0_27, %c640], %16 {strides = array<i32>} : memref<128x1152xbf16, #tpu.memory_space<vmem>>, vector<128x128xbf16>,
    %c0_28 = arith.constant 0 : index
    %c2_29 = arith.constant 2 : index
    %c0_30 = arith.constant 0 : index
    %c0_31 = arith.constant 0 : index
    %18 = vector.load %arg1[%c0_28, %c2_29, %c0_30, %c0_31] : memref<2x10x10x128xbf16, #tpu.memory_space<vmem>>, vector<2x8x8x128xbf16>
    %19 = vector.shape_cast %18 : vector<2x8x8x128xbf16> to vector<128x128xbf16>
    %c0_32 = arith.constant 0 : index
    %c768 = arith.constant 768 : index
    %20 = vector.load %arg5[%c0_32, %c768] : memref<128x1152xbf16, #tpu.memory_space<vmem>>, vector<128x128xbf16>
    tpu.vector_store %arg5[%c0_32, %c768], %19 {strides = array<i32>} : memref<128x1152xbf16, #tpu.memory_space<vmem>>, vector<128x128xbf16>,
    %c0_33 = arith.constant 0 : index
    %c2_34 = arith.constant 2 : index
    %c1_35 = arith.constant 1 : index
    %c0_36 = arith.constant 0 : index
    %21 = vector.load %arg1[%c0_33, %c2_34, %c1_35, %c0_36] : memref<2x10x10x128xbf16, #tpu.memory_space<vmem>>, vector<2x8x8x128xbf16>
    %22 = vector.shape_cast %21 : vector<2x8x8x128xbf16> to vector<128x128xbf16>
    %c0_37 = arith.constant 0 : index
    %c896 = arith.constant 896 : index
    %23 = vector.load %arg5[%c0_37, %c896] : memref<128x1152xbf16, #tpu.memory_space<vmem>>, vector<128x128xbf16>
    tpu.vector_store %arg5[%c0_37, %c896], %22 {strides = array<i32>} : memref<128x1152xbf16, #tpu.memory_space<vmem>>, vector<128x128xbf16>,
    %c0_38 = arith.constant 0 : index
    %c2_39 = arith.constant 2 : index
    %c2_40 = arith.constant 2 : index
    %c0_41 = arith.constant 0 : index
    %24 = vector.load %arg1[%c0_38, %c2_39, %c2_40, %c0_41] : memref<2x10x10x128xbf16, #tpu.memory_space<vmem>>, vector<2x8x8x128xbf16>
    %25 = vector.shape_cast %24 : vector<2x8x8x128xbf16> to vector<128x128xbf16>
    %c0_42 = arith.constant 0 : index
    %c1024 = arith.constant 1024 : index
    %26 = vector.load %arg5[%c0_42, %c1024] : memref<128x1152xbf16, #tpu.memory_space<vmem>>, vector<128x128xbf16>
    tpu.vector_store %arg5[%c0_42, %c1024], %25 {strides = array<i32>} : memref<128x1152xbf16, #tpu.memory_space<vmem>>, vector<128x128xbf16>,
    %c0_43 = arith.constant 0 : index
    %c0_44 = arith.constant 0 : index
    %27 = vector.load %arg5[%c0_43, %c0_44] : memref<128x1152xbf16, #tpu.memory_space<vmem>>, vector<128x1152xbf16>
    %c0_45 = arith.constant 0 : index
    %c0_46 = arith.constant 0 : index
    %28 = vector.load %arg2[%c0_45, %c0_46] : memref<1152x128xbf16, #tpu.memory_space<vmem>>, vector<1152x128xbf16>
    %cst = arith.constant dense<0.000000e+00> : vector<128x128xf32>
    %29 = tpu.matmul %27, %28, %cst {dimension_numbers = #tpu.dot_dimension_numbers<[1], [0], [0], [1], [0, 0, 1, 1], [], []>} : vector<128x1152xbf16>, vector<1152x128xbf16>, vector<128x128xf32> -> vector<128x128xf32>
    %c0_47 = arith.constant 0 : index
    %c0_48 = arith.constant 0 : index
    %30 = vector.load %arg3[%c0_47, %c0_48] : memref<1x128xf32, #tpu.memory_space<vmem>>, vector<1x128xf32>
    %31 = vector.broadcast %30 : vector<1x128xf32> to vector<128x128xf32>
    %32 = arith.addf %29, %31 : vector<128x128xf32>
    %cst_49 = arith.constant 0.000000e+00 : f32
    %33 = vector.broadcast %cst_49 : f32 to vector<128x128xf32>
    %34 = arith.maximumf %32, %33 : vector<128x128xf32>
    %35 = arith.truncf %34 : vector<128x128xf32> to vector<128x128xbf16>
    %c0_50 = arith.constant 0 : index
    %c0_51 = arith.constant 0 : index
    %36 = vector.load %arg4[%c0_50, %c0_51] : memref<128x128xbf16, #tpu.memory_space<vmem>>, vector<128x128xbf16>
    tpu.vector_store %arg4[%c0_50, %c0_51], %35 {strides = array<i32>} : memref<128x128xbf16, #tpu.memory_space<vmem>>, vector<128x128xbf16>,
    return
  }
  func.func @transform_0(%arg0: i32) -> (i32, i32, i32, i32) {
    %c0_i32 = arith.constant 0 : i32
    %c0_i32_0 = arith.constant 0 : i32
    %c0_i32_1 = arith.constant 0 : i32
    %c0_i32_2 = arith.constant 0 : i32
    %c0_i32_3 = arith.constant 0 : i32
    return %c0_i32, %c0_i32_0, %c0_i32_1, %c0_i32_2 : i32, i32, i32, i32
  }
  func.func @transform_1(%arg0: i32) -> (i32, i32) {
    %c0_i32 = arith.constant 0 : i32
    %c0_i32_0 = arith.constant 0 : i32
    %c0_i32_1 = arith.constant 0 : i32
    return %c0_i32, %c0_i32_0 : i32, i32
  }
  func.func @transform_2(%arg0: i32) -> (i32, i32) {
    %c0_i32 = arith.constant 0 : i32
    %c0_i32_0 = arith.constant 0 : i32
    %c0_i32_1 = arith.constant 0 : i32
    return %c0_i32, %c0_i32_0 : i32, i32
  }
  func.func @transform_3(%arg0: i32) -> (i32, i32) {
    %c0_i32 = arith.constant 0 : i32
    %c0_i32_0 = arith.constant 0 : i32
    %c0_i32_1 = arith.constant 0 : i32
    return %c0_i32, %c0_i32_0 : i32, i32
  }
}

module attributes {stable_mosaic.version = 11 : i64} {
  func.func @_fused_conv3x3_kernel(%arg0: i32, %arg1: memref<2x10x10x128xbf16, #tpu.memory_space<vmem>>, %arg2: memref<1152x128xbf16, #tpu.memory_space<vmem>>, %arg3: memref<1x128xf32, #tpu.memory_space<vmem>>, %arg4: memref<2x10x10x128xbf16, #tpu.memory_space<vmem>>, %arg5: memref<128x128xbf16, #tpu.memory_space<vmem>>, %arg6: memref<128x1152xbf16, #tpu.memory_space<vmem>>) attributes {dimension_semantics = [#tpu.dimension_semantics<arbitrary>], iteration_bounds = array<i64: 1>, scalar_prefetch = 0 : i64, scratch_operands = 1 : i64, tpu.core_type = #tpu.core_type<tc>, window_params = [{pipeline_mode = #tpu.pipeline_mode<synchronous>, transform_indices = @transform_0, window_bounds = array<i64: 2, 10, 10, 128>}, {pipeline_mode = #tpu.pipeline_mode<synchronous>, transform_indices = @transform_1, window_bounds = array<i64: 1152, 128>}, {pipeline_mode = #tpu.pipeline_mode<synchronous>, transform_indices = @transform_2, window_bounds = array<i64: 1, 128>}, {pipeline_mode = #tpu.pipeline_mode<synchronous>, transform_indices = @transform_3, window_bounds = array<i64: 2, 10, 10, 128>}, {pipeline_mode = #tpu.pipeline_mode<synchronous>, transform_indices = @transform_4, window_bounds = array<i64: 128, 128>}]} {
    %c0 = arith.constant 0 : index
    %c0_0 = arith.constant 0 : index
    %c0_1 = arith.constant 0 : index
    %c0_2 = arith.constant 0 : index
    %0 = vector.load %arg1[%c0, %c0_0, %c0_1, %c0_2] : memref<2x10x10x128xbf16, #tpu.memory_space<vmem>>, vector<2x8x8x128xbf16>
    %1 = vector.shape_cast %0 : vector<2x8x8x128xbf16> to vector<128x128xbf16>
    %c0_3 = arith.constant 0 : index
    %c0_4 = arith.constant 0 : index
    %2 = vector.load %arg6[%c0_3, %c0_4] : memref<128x1152xbf16, #tpu.memory_space<vmem>>, vector<128x128xbf16>
    tpu.vector_store %arg6[%c0_3, %c0_4], %1 {strides = array<i32>} : memref<128x1152xbf16, #tpu.memory_space<vmem>>, vector<128x128xbf16>,
    %c0_5 = arith.constant 0 : index
    %c0_6 = arith.constant 0 : index
    %c1 = arith.constant 1 : index
    %c0_7 = arith.constant 0 : index
    %3 = vector.load %arg1[%c0_5, %c0_6, %c1, %c0_7] : memref<2x10x10x128xbf16, #tpu.memory_space<vmem>>, vector<2x8x8x128xbf16>
    %4 = vector.shape_cast %3 : vector<2x8x8x128xbf16> to vector<128x128xbf16>
    %c0_8 = arith.constant 0 : index
    %c128 = arith.constant 128 : index
    %5 = vector.load %arg6[%c0_8, %c128] : memref<128x1152xbf16, #tpu.memory_space<vmem>>, vector<128x128xbf16>
    tpu.vector_store %arg6[%c0_8, %c128], %4 {strides = array<i32>} : memref<128x1152xbf16, #tpu.memory_space<vmem>>, vector<128x128xbf16>,
    %c0_9 = arith.constant 0 : index
    %c0_10 = arith.constant 0 : index
    %c2 = arith.constant 2 : index
    %c0_11 = arith.constant 0 : index
    %6 = vector.load %arg1[%c0_9, %c0_10, %c2, %c0_11] : memref<2x10x10x128xbf16, #tpu.memory_space<vmem>>, vector<2x8x8x128xbf16>
    %7 = vector.shape_cast %6 : vector<2x8x8x128xbf16> to vector<128x128xbf16>
    %c0_12 = arith.constant 0 : index
    %c256 = arith.constant 256 : index
    %8 = vector.load %arg6[%c0_12, %c256] : memref<128x1152xbf16, #tpu.memory_space<vmem>>, vector<128x128xbf16>
    tpu.vector_store %arg6[%c0_12, %c256], %7 {strides = array<i32>} : memref<128x1152xbf16, #tpu.memory_space<vmem>>, vector<128x128xbf16>,
    %c0_13 = arith.constant 0 : index
    %c1_14 = arith.constant 1 : index
    %c0_15 = arith.constant 0 : index
    %c0_16 = arith.constant 0 : index
    %9 = vector.load %arg1[%c0_13, %c1_14, %c0_15, %c0_16] : memref<2x10x10x128xbf16, #tpu.memory_space<vmem>>, vector<2x8x8x128xbf16>
    %10 = vector.shape_cast %9 : vector<2x8x8x128xbf16> to vector<128x128xbf16>
    %c0_17 = arith.constant 0 : index
    %c384 = arith.constant 384 : index
    %11 = vector.load %arg6[%c0_17, %c384] : memref<128x1152xbf16, #tpu.memory_space<vmem>>, vector<128x128xbf16>
    tpu.vector_store %arg6[%c0_17, %c384], %10 {strides = array<i32>} : memref<128x1152xbf16, #tpu.memory_space<vmem>>, vector<128x128xbf16>,
    %c0_18 = arith.constant 0 : index
    %c1_19 = arith.constant 1 : index
    %c1_20 = arith.constant 1 : index
    %c0_21 = arith.constant 0 : index
    %12 = vector.load %arg1[%c0_18, %c1_19, %c1_20, %c0_21] : memref<2x10x10x128xbf16, #tpu.memory_space<vmem>>, vector<2x8x8x128xbf16>
    %13 = vector.shape_cast %12 : vector<2x8x8x128xbf16> to vector<128x128xbf16>
    %c0_22 = arith.constant 0 : index
    %c512 = arith.constant 512 : index
    %14 = vector.load %arg6[%c0_22, %c512] : memref<128x1152xbf16, #tpu.memory_space<vmem>>, vector<128x128xbf16>
    tpu.vector_store %arg6[%c0_22, %c512], %13 {strides = array<i32>} : memref<128x1152xbf16, #tpu.memory_space<vmem>>, vector<128x128xbf16>,
    %c0_23 = arith.constant 0 : index
    %c1_24 = arith.constant 1 : index
    %c2_25 = arith.constant 2 : index
    %c0_26 = arith.constant 0 : index
    %15 = vector.load %arg1[%c0_23, %c1_24, %c2_25, %c0_26] : memref<2x10x10x128xbf16, #tpu.memory_space<vmem>>, vector<2x8x8x128xbf16>
    %16 = vector.shape_cast %15 : vector<2x8x8x128xbf16> to vector<128x128xbf16>
    %c0_27 = arith.constant 0 : index
    %c640 = arith.constant 640 : index
    %17 = vector.load %arg6[%c0_27, %c640] : memref<128x1152xbf16, #tpu.memory_space<vmem>>, vector<128x128xbf16>
    tpu.vector_store %arg6[%c0_27, %c640], %16 {strides = array<i32>} : memref<128x1152xbf16, #tpu.memory_space<vmem>>, vector<128x128xbf16>,
    %c0_28 = arith.constant 0 : index
    %c2_29 = arith.constant 2 : index
    %c0_30 = arith.constant 0 : index
    %c0_31 = arith.constant 0 : index
    %18 = vector.load %arg1[%c0_28, %c2_29, %c0_30, %c0_31] : memref<2x10x10x128xbf16, #tpu.memory_space<vmem>>, vector<2x8x8x128xbf16>
    %19 = vector.shape_cast %18 : vector<2x8x8x128xbf16> to vector<128x128xbf16>
    %c0_32 = arith.constant 0 : index
    %c768 = arith.constant 768 : index
    %20 = vector.load %arg6[%c0_32, %c768] : memref<128x1152xbf16, #tpu.memory_space<vmem>>, vector<128x128xbf16>
    tpu.vector_store %arg6[%c0_32, %c768], %19 {strides = array<i32>} : memref<128x1152xbf16, #tpu.memory_space<vmem>>, vector<128x128xbf16>,
    %c0_33 = arith.constant 0 : index
    %c2_34 = arith.constant 2 : index
    %c1_35 = arith.constant 1 : index
    %c0_36 = arith.constant 0 : index
    %21 = vector.load %arg1[%c0_33, %c2_34, %c1_35, %c0_36] : memref<2x10x10x128xbf16, #tpu.memory_space<vmem>>, vector<2x8x8x128xbf16>
    %22 = vector.shape_cast %21 : vector<2x8x8x128xbf16> to vector<128x128xbf16>
    %c0_37 = arith.constant 0 : index
    %c896 = arith.constant 896 : index
    %23 = vector.load %arg6[%c0_37, %c896] : memref<128x1152xbf16, #tpu.memory_space<vmem>>, vector<128x128xbf16>
    tpu.vector_store %arg6[%c0_37, %c896], %22 {strides = array<i32>} : memref<128x1152xbf16, #tpu.memory_space<vmem>>, vector<128x128xbf16>,
    %c0_38 = arith.constant 0 : index
    %c2_39 = arith.constant 2 : index
    %c2_40 = arith.constant 2 : index
    %c0_41 = arith.constant 0 : index
    %24 = vector.load %arg1[%c0_38, %c2_39, %c2_40, %c0_41] : memref<2x10x10x128xbf16, #tpu.memory_space<vmem>>, vector<2x8x8x128xbf16>
    %25 = vector.shape_cast %24 : vector<2x8x8x128xbf16> to vector<128x128xbf16>
    %c0_42 = arith.constant 0 : index
    %c1024 = arith.constant 1024 : index
    %26 = vector.load %arg6[%c0_42, %c1024] : memref<128x1152xbf16, #tpu.memory_space<vmem>>, vector<128x128xbf16>
    tpu.vector_store %arg6[%c0_42, %c1024], %25 {strides = array<i32>} : memref<128x1152xbf16, #tpu.memory_space<vmem>>, vector<128x128xbf16>,
    %c0_43 = arith.constant 0 : index
    %c0_44 = arith.constant 0 : index
    %27 = vector.load %arg6[%c0_43, %c0_44] : memref<128x1152xbf16, #tpu.memory_space<vmem>>, vector<128x1152xbf16>
    %c0_45 = arith.constant 0 : index
    %c0_46 = arith.constant 0 : index
    %28 = vector.load %arg2[%c0_45, %c0_46] : memref<1152x128xbf16, #tpu.memory_space<vmem>>, vector<1152x128xbf16>
    %cst = arith.constant dense<0.000000e+00> : vector<128x128xf32>
    %29 = tpu.matmul %27, %28, %cst {dimension_numbers = #tpu.dot_dimension_numbers<[1], [0], [0], [1], [0, 0, 1, 1], [], []>} : vector<128x1152xbf16>, vector<1152x128xbf16>, vector<128x128xf32> -> vector<128x128xf32>
    %c0_47 = arith.constant 0 : index
    %c0_48 = arith.constant 0 : index
    %30 = vector.load %arg3[%c0_47, %c0_48] : memref<1x128xf32, #tpu.memory_space<vmem>>, vector<1x128xf32>
    %31 = vector.broadcast %30 : vector<1x128xf32> to vector<128x128xf32>
    %32 = arith.addf %29, %31 : vector<128x128xf32>
    %c0_49 = arith.constant 0 : index
    %c1_50 = arith.constant 1 : index
    %c1_51 = arith.constant 1 : index
    %c0_52 = arith.constant 0 : index
    %33 = vector.load %arg4[%c0_49, %c1_50, %c1_51, %c0_52] : memref<2x10x10x128xbf16, #tpu.memory_space<vmem>>, vector<2x8x8x128xbf16>
    %34 = vector.shape_cast %33 : vector<2x8x8x128xbf16> to vector<128x128xbf16>
    %35 = arith.extf %34 : vector<128x128xbf16> to vector<128x128xf32>
    %36 = arith.addf %32, %35 : vector<128x128xf32>
    %cst_53 = arith.constant 0.000000e+00 : f32
    %37 = vector.broadcast %cst_53 : f32 to vector<128x128xf32>
    %38 = arith.maximumf %36, %37 : vector<128x128xf32>
    %39 = arith.truncf %38 : vector<128x128xf32> to vector<128x128xbf16>
    %c0_54 = arith.constant 0 : index
    %c0_55 = arith.constant 0 : index
    %40 = vector.load %arg5[%c0_54, %c0_55] : memref<128x128xbf16, #tpu.memory_space<vmem>>, vector<128x128xbf16>
    tpu.vector_store %arg5[%c0_54, %c0_55], %39 {strides = array<i32>} : memref<128x128xbf16, #tpu.memory_space<vmem>>, vector<128x128xbf16>,
    return
  }
  func.func @transform_0(%arg0: i32) -> (i32, i32, i32, i32) {
    %c0_i32 = arith.constant 0 : i32
    %c0_i32_0 = arith.constant 0 : i32
    %c0_i32_1 = arith.constant 0 : i32
    %c0_i32_2 = arith.constant 0 : i32
    %c0_i32_3 = arith.constant 0 : i32
    return %c0_i32, %c0_i32_0, %c0_i32_1, %c0_i32_2 : i32, i32, i32, i32
  }
  func.func @transform_1(%arg0: i32) -> (i32, i32) {
    %c0_i32 = arith.constant 0 : i32
    %c0_i32_0 = arith.constant 0 : i32
    %c0_i32_1 = arith.constant 0 : i32
    return %c0_i32, %c0_i32_0 : i32, i32
  }
  func.func @transform_2(%arg0: i32) -> (i32, i32) {
    %c0_i32 = arith.constant 0 : i32
    %c0_i32_0 = arith.constant 0 : i32
    %c0_i32_1 = arith.constant 0 : i32
    return %c0_i32, %c0_i32_0 : i32, i32
  }
  func.func @transform_3(%arg0: i32) -> (i32, i32, i32, i32) {
    %c0_i32 = arith.constant 0 : i32
    %c0_i32_0 = arith.constant 0 : i32
    %c0_i32_1 = arith.constant 0 : i32
    %c0_i32_2 = arith.constant 0 : i32
    %c0_i32_3 = arith.constant 0 : i32
    return %c0_i32, %c0_i32_0, %c0_i32_1, %c0_i32_2 : i32, i32, i32, i32
  }
  func.func @transform_4(%arg0: i32) -> (i32, i32) {
    %c0_i32 = arith.constant 0 : i32
    %c0_i32_0 = arith.constant 0 : i32
    %c0_i32_1 = arith.constant 0 : i32
    return %c0_i32, %c0_i32_0 : i32, i32
  }
}

</mosaic_0001>

<llo_original>
// kernel: _lambda_.6
$region0: #{_lambda_.6}
  #allocation0 [shape = 'u32[]', space=smem, size = 0x4, offset = 0x4, fixed_abs, tag = 'smem constant byte address 0x4 - core index']
  #allocation1 [shape = 'u32[144,128]{1,0:T(1,128)}', space=vmem, size = 0x12000, scoped, tag = 'internal scratch']
  #allocation2 [shape = 'bf16[128,1152]{1,0:T(16,128)(2,1)}', space=vmem, size = 0x48000, scoped, tag = 'scratch operand']
  %s0 = inlined_call_operand.vmem [shape: bf16[2,10,10,128], index: 0, kind: input, shape index: {}]
  %s1 = inlined_call_operand.vmem [shape: bf16[1152,128], index: 1, kind: input, shape index: {}]
  %s2 = inlined_call_operand.vmem [shape: f32[1,128], index: 2, kind: input, shape index: {}]
  %s3 = inlined_call_operand.vmem [shape: bf16[128,128], index: 3, kind: output, shape index: {}]
  %s4 = sld [smem:[#allocation0]]
  $region22: #{_lambda_.6} parent=0
    _
  %s6 = ssub.s32 1, %s4
  %s7 = scalar_select 0, %s6, %s4
  // Predicated region
  $region2: #{_lambda_.6} parent=0 // pred_check
    _
  $region3: #{_lambda_.6} parent=0 // pred_check_branch
    %9 = sbr.rel (0) target = $region5
  $region4: #{_lambda_.6} parent=0 // pred_region
    _
  $region5: #{_lambda_.6} parent=0 // pred_fallthru
    _
  // Predicated region
  $region6: #{_lambda_.6} parent=0 // pred_check
    _
  $region7: #{_lambda_.6} parent=0 // pred_check_branch
    %11 = sbr.rel (0) target = $region9
  $region8: #{_lambda_.6} parent=0 // pred_region
    _
  $region9: #{_lambda_.6} parent=0 // pred_fallthru
    _
  // Predicated region
  $region10: #{_lambda_.6} parent=0 // pred_check
    _
  $region11: #{_lambda_.6} parent=0 // pred_check_branch
    %13 = sbr.rel (0) target = $region13
  $region12: #{_lambda_.6} parent=0 // pred_region
    _
  $region13: #{_lambda_.6} parent=0 // pred_fallthru
    _
  %v15 = vld [vmem:[%s0] sm:$0xf]
  %v16 = vld [vmem:[%s0 + $0x8] sm:$0xf]
  %v17 = vld [vmem:[%s0 + $0x10] sm:$0xf]
  %v18 = vld [vmem:[%s0 + $0x18] sm:$0xf]
  %v19 = vld [vmem:[%s0 + $0x20] sm:$0xf]
  %v20 = vld [vmem:[%s0 + $0x28] sm:$0xf]
  %v21 = vld [vmem:[%s0 + $0x30] sm:$0xf]
  %v22 = vld [vmem:[%s0 + $0x38] sm:$0xf]
  %v23 = vld [vmem:[%s0 + $0x50] sm:$0xf]
  %v24 = vld [vmem:[%s0 + $0x58] sm:$0xf]
  %v25 = vld [vmem:[%s0 + $0x60] sm:$0xf]
  %v26 = vld [vmem:[%s0 + $0x68] sm:$0xf]
  %v27 = vld [vmem:[%s0 + $0x70] sm:$0xf]
  %v28 = vld [vmem:[%s0 + $0x78] sm:$0xf]
  %v29 = vld [vmem:[%s0 + $0x80] sm:$0xf]
  %v30 = vld [vmem:[%s0 + $0x88] sm:$0xf]
  %v47 = vunpack.c.l.b16 %v15
  %v48 = vunpack.c.l.b16 %v16
  %v49 = vunpack.c.l.b16 %v17
  %v50 = vunpack.c.l.b16 %v18
  %v51 = vunpack.c.l.b16 %v19
  %v52 = vunpack.c.l.b16 %v20
  %v53 = vunpack.c.l.b16 %v21
  %v54 = vunpack.c.l.b16 %v22
  %v55 = vunpack.c.l.b16 %v23
  %v56 = vunpack.c.l.b16 %v24
  %v57 = vunpack.c.l.b16 %v25
  %v58 = vunpack.c.l.b16 %v26
  %v59 = vunpack.c.l.b16 %v27
  %v60 = vunpack.c.l.b16 %v28
  %v61 = vunpack.c.l.b16 %v29
  %v62 = vunpack.c.l.b16 %v30
  %v63 = vpack.c.b16 %v48, %v47
  %v64 = vpack.c.b16 %v50, %v49
  %v65 = vpack.c.b16 %v52, %v51
  %v66 = vpack.c.b16 %v54, %v53
  %v67 = vpack.c.b16 %v56, %v55
  %v68 = vpack.c.b16 %v58, %v57
  %v69 = vpack.c.b16 %v60, %v59
  %v70 = vpack.c.b16 %v62, %v61
  %79 = vst [vmem:[#allocation2] sm:$0xff] %v63
  %80 = vst [vmem:[#allocation2 + $0x48] sm:$0xff] %v64
  %81 = vst [vmem:[#allocation2 + $0x90] sm:$0xff] %v65
  %82 = vst [vmem:[#allocation2 + $0xd8] sm:$0xff] %v66
  %83 = vst [vmem:[#allocation2 + $0x120] sm:$0xff] %v67
  %84 = vst [vmem:[#allocation2 + $0x168] sm:$0xff] %v68
  %85 = vst [vmem:[#allocation2 + $0x1b0] sm:$0xff] %v69
  %86 = vst [vmem:[#allocation2 + $0x1f8] sm:$0xff] %v70
  %v87 = vld [vmem:[%s0] sm:$0xf]
  %v88 = vld [vmem:[%s0 + $0x4] sm:$0x1]
  %v89 = vld [vmem:[%s0 + $0x8] sm:$0xf]
  %v90 = vld [vmem:[%s0 + $0xc] sm:$0x1]
  %v91 = vld [vmem:[%s0 + $0x10] sm:$0xf]
  %v92 = vld [vmem:[%s0 + $0x14] sm:$0x1]
  %v93 = vld [vmem:[%s0 + $0x18] sm:$0xf]
  %v94 = vld [vmem:[%s0 + $0x1c] sm:$0x1]
  %v95 = vld [vmem:[%s0 + $0x20] sm:$0xf]
  %v96 = vld [vmem:[%s0 + $0x24] sm:$0x1]
  %v97 = vld [vmem:[%s0 + $0x28] sm:$0xf]
  %v98 = vld [vmem:[%s0 + $0x2c] sm:$0x1]
  %v99 = vld [vmem:[%s0 + $0x30] sm:$0xf]
  %v100 = vld [vmem:[%s0 + $0x34] sm:$0x1]
  %v101 = vld [vmem:[%s0 + $0x38] sm:$0xf]
  %v102 = vld [vmem:[%s0 + $0x3c] sm:$0x1]
  %v103 = vld [vmem:[%s0 + $0x50] sm:$0xf]
  %v104 = vld [vmem:[%s0 + $0x54] sm:$0x1]
  %v105 = vld [vmem:[%s0 + $0x58] sm:$0xf]
  %v106 = vld [vmem:[%s0 + $0x5c] sm:$0x1]
  %v107 = vld [vmem:[%s0 + $0x60] sm:$0xf]
  %v108 = vld [vmem:[%s0 + $0x64] sm:$0x1]
  %v109 = vld [vmem:[%s0 + $0x68] sm:$0xf]
  %v110 = vld [vmem:[%s0 + $0x6c] sm:$0x1]
  %v111 = vld [vmem:[%s0 + $0x70] sm:$0xf]
  %v112 = vld [vmem:[%s0 + $0x74] sm:$0x1]
  %v113 = vld [vmem:[%s0 + $0x78] sm:$0xf]
  %v114 = vld [vmem:[%s0 + $0x7c] sm:$0x1]
  %v115 = vld [vmem:[%s0 + $0x80] sm:$0xf]
  %v116 = vld [vmem:[%s0 + $0x84] sm:$0x1]
  %v117 = vld [vmem:[%s0 + $0x88] sm:$0xf]
  %v118 = vld [vmem:[%s0 + $0x8c] sm:$0x1]
  %vm119 = vsmask.f32 3328
  %vm120 = vsmask.f32 7440
  %vm121 = vmor %vm119, %vm120
  %v123 = vshrl.u32 %v87, 16
  %v125 = vrot.slane %v123, 4
  %v126 = vshll.u32 %v87, 16
  %v128 = vrot.slane %v126, 5
  %v129 = vor.u32 %v125, %v128
  %v130 = vrot.slane %v129, 4
  %v132 = vshll.u32 %v88, 16
  %v134 = vrot.slane %v132, 5
  %v135 = vsel %vm121, %v130, %v134
  %v137 = vshrl.u32 %v89, 16
  %v139 = vrot.slane %v137, 4
  %v140 = vshll.u32 %v89, 16
  %v142 = vrot.slane %v140, 5
  %v143 = vor.u32 %v139, %v142
  %v144 = vrot.slane %v143, 4
  %v146 = vshll.u32 %v90, 16
  %v148 = vrot.slane %v146, 5
  %v149 = vsel %vm121, %v144, %v148
  %v151 = vshrl.u32 %v91, 16
  %v153 = vrot.slane %v151, 4
  %v154 = vshll.u32 %v91, 16
  %v156 = vrot.slane %v154, 5
  %v157 = vor.u32 %v153, %v156
  %v158 = vrot.slane %v157, 4
  %v160 = vshll.u32 %v92, 16
  %v162 = vrot.slane %v160, 5
  %v163 = vsel %vm121, %v158, %v162
  %v165 = vshrl.u32 %v93, 16
  %v167 = vrot.slane %v165, 4
  %v168 = vshll.u32 %v93, 16
  %v170 = vrot.slane %v168, 5
  %v171 = vor.u32 %v167, %v170
  %v172 = vrot.slane %v171, 4
  %v174 = vshll.u32 %v94, 16
  %v176 = vrot.slane %v174, 5
  %v177 = vsel %vm121, %v172, %v176
  %v179 = vshrl.u32 %v95, 16
  %v181 = vrot.slane %v179, 4
  %v182 = vshll.u32 %v95, 16
  %v184 = vrot.slane %v182, 5
  %v185 = vor.u32 %v181, %v184
  %v186 = vrot.slane %v185, 4
  %v188 = vshll.u32 %v96, 16
  %v190 = vrot.slane %v188, 5
  %v191 = vsel %vm121, %v186, %v190
  %v193 = vshrl.u32 %v97, 16
  %v195 = vrot.slane %v193, 4
  %v196 = vshll.u32 %v97, 16
  %v198 = vrot.slane %v196, 5
  %v199 = vor.u32 %v195, %v198
  %v200 = vrot.slane %v199, 4
  %v202 = vshll.u32 %v98, 16
  %v204 = vrot.slane %v202, 5
  %v205 = vsel %vm121, %v200, %v204
  %v207 = vshrl.u32 %v99, 16
  %v209 = vrot.slane %v207, 4
  %v210 = vshll.u32 %v99, 16
  %v212 = vrot.slane %v210, 5
  %v213 = vor.u32 %v209, %v212
  %v214 = vrot.slane %v213, 4
  %v216 = vshll.u32 %v100, 16
  %v218 = vrot.slane %v216, 5
  %v219 = vsel %vm121, %v214, %v218
  %v221 = vshrl.u32 %v101, 16
  %v223 = vrot.slane %v221, 4
  %v224 = vshll.u32 %v101, 16
  %v226 = vrot.slane %v224, 5
  %v227 = vor.u32 %v223, %v226
  %v228 = vrot.slane %v227, 4
  %v230 = vshll.u32 %v102, 16
  %v232 = vrot.slane %v230, 5
  %v233 = vsel %vm121, %v228, %v232
  %v235 = vshrl.u32 %v103, 16
  %v237 = vrot.slane %v235, 4
  %v238 = vshll.u32 %v103, 16
  %v240 = vrot.slane %v238, 5
  %v241 = vor.u32 %v237, %v240
  %v242 = vrot.slane %v241, 4
  %v244 = vshll.u32 %v104, 16
  %v246 = vrot.slane %v244, 5
  %v247 = vsel %vm121, %v242, %v246
  %v249 = vshrl.u32 %v105, 16
  %v251 = vrot.slane %v249, 4
  %v252 = vshll.u32 %v105, 16
  %v254 = vrot.slane %v252, 5
  %v255 = vor.u32 %v251, %v254
  %v256 = vrot.slane %v255, 4
  %v258 = vshll.u32 %v106, 16
  %v260 = vrot.slane %v258, 5
  %v261 = vsel %vm121, %v256, %v260
  %v263 = vshrl.u32 %v107, 16
  %v265 = vrot.slane %v263, 4
  %v266 = vshll.u32 %v107, 16
  %v268 = vrot.slane %v266, 5
  %v269 = vor.u32 %v265, %v268
  %v270 = vrot.slane %v269, 4
  %v272 = vshll.u32 %v108, 16
  %v274 = vrot.slane %v272, 5
  %v275 = vsel %vm121, %v270, %v274
  %v277 = vshrl.u32 %v109, 16
  %v279 = vrot.slane %v277, 4
  %v280 = vshll.u32 %v109, 16
  %v282 = vrot.slane %v280, 5
  %v283 = vor.u32 %v279, %v282
  %v284 = vrot.slane %v283, 4
  %v286 = vshll.u32 %v110, 16
  %v288 = vrot.slane %v286, 5
  %v289 = vsel %vm121, %v284, %v288
  %v291 = vshrl.u32 %v111, 16
  %v293 = vrot.slane %v291, 4
  %v294 = vshll.u32 %v111, 16
  %v296 = vrot.slane %v294, 5
  %v297 = vor.u32 %v293, %v296
  %v298 = vrot.slane %v297, 4
  %v300 = vshll.u32 %v112, 16
  %v302 = vrot.slane %v300, 5
  %v303 = vsel %vm121, %v298, %v302
  %v305 = vshrl.u32 %v113, 16
  %v307 = vrot.slane %v305, 4
  %v308 = vshll.u32 %v113, 16
  %v310 = vrot.slane %v308, 5
  %v311 = vor.u32 %v307, %v310
  %v312 = vrot.slane %v311, 4
  %v314 = vshll.u32 %v114, 16
  %v316 = vrot.slane %v314, 5
  %v317 = vsel %vm121, %v312, %v316
  %v319 = vshrl.u32 %v115, 16
  %v321 = vrot.slane %v319, 4
  %v322 = vshll.u32 %v115, 16
  %v324 = vrot.slane %v322, 5
  %v325 = vor.u32 %v321, %v324
  %v326 = vrot.slane %v325, 4
  %v328 = vshll.u32 %v116, 16
  %v330 = vrot.slane %v328, 5
  %v331 = vsel %vm121, %v326, %v330
  %v333 = vshrl.u32 %v117, 16
  %v335 = vrot.slane %v333, 4
  %v336 = vshll.u32 %v117, 16
  %v338 = vrot.slane %v336, 5
  %v339 = vor.u32 %v335, %v338
  %v340 = vrot.slane %v339, 4
  %v342 = vshll.u32 %v118, 16
  %v344 = vrot.slane %v342, 5
  %v345 = vsel %vm121, %v340, %v344
  %v346 = vunpack.c.l.b16 %v135
  %v347 = vunpack.c.l.b16 %v149
  %v348 = vunpack.c.l.b16 %v163
  %v349 = vunpack.c.l.b16 %v177
  %v350 = vunpack.c.l.b16 %v191
  %v351 = vunpack.c.l.b16 %v205
  %v352 = vunpack.c.l.b16 %v219
  %v353 = vunpack.c.l.b16 %v233
  %v354 = vunpack.c.l.b16 %v247
  %v355 = vunpack.c.l.b16 %v261
  %v356 = vunpack.c.l.b16 %v275
  %v357 = vunpack.c.l.b16 %v289
  %v358 = vunpack.c.l.b16 %v303
  %v359 = vunpack.c.l.b16 %v317
  %v360 = vunpack.c.l.b16 %v331
  %v361 = vunpack.c.l.b16 %v345
  %v362 = vpack.c.b16 %v347, %v346
  %v363 = vpack.c.b16 %v349, %v348
  %v364 = vpack.c.b16 %v351, %v350
  %v365 = vpack.c.b16 %v353, %v352
  %v366 = vpack.c.b16 %v355, %v354
  %v367 = vpack.c.b16 %v357, %v356
  %v368 = vpack.c.b16 %v359, %v358
  %v369 = vpack.c.b16 %v361, %v360
  %378 = vst [vmem:[#allocation2 + $0x8] sm:$0xff] %v362
  %379 = vst [vmem:[#allocation2 + $0x50] sm:$0xff] %v363
  %380 = vst [vmem:[#allocation2 + $0x98] sm:$0xff] %v364
  %381 = vst [vmem:[#allocation2 + $0xe0] sm:$0xff] %v365
  %382 = vst [vmem:[#allocation2 + $0x128] sm:$0xff] %v366
  %383 = vst [vmem:[#allocation2 + $0x170] sm:$0xff] %v367
  %384 = vst [vmem:[#allocation2 + $0x1b8] sm:$0xff] %v368
  %385 = vst [vmem:[#allocation2 + $0x200] sm:$0xff] %v369
  %v386 = vld [vmem:[%s0] sm:$0xe]
  %v387 = vld [vmem:[%s0 + $0x4] sm:$0x1]
  %v388 = vld [vmem:[%s0 + $0x8] sm:$0xe]
  %v389 = vld [vmem:[%s0 + $0xc] sm:$0x1]
  %v390 = vld [vmem:[%s0 + $0x10] sm:$0xe]
  %v391 = vld [vmem:[%s0 + $0x14] sm:$0x1]
  %v392 = vld [vmem:[%s0 + $0x18] sm:$0xe]
  %v393 = vld [vmem:[%s0 + $0x1c] sm:$0x1]
  %v394 = vld [vmem:[%s0 + $0x20] sm:$0xe]
  %v395 = vld [vmem:[%s0 + $0x24] sm:$0x1]
  %v396 = vld [vmem:[%s0 + $0x28] sm:$0xe]
  %v397 = vld [vmem:[%s0 + $0x2c] sm:$0x1]
  %v398 = vld [vmem:[%s0 + $0x30] sm:$0xe]
  %v399 = vld [vmem:[%s0 + $0x34] sm:$0x1]
  %v400 = vld [vmem:[%s0 + $0x38] sm:$0xe]
  %v401 = vld [vmem:[%s0 + $0x3c] sm:$0x1]
  %v402 = vld [vmem:[%s0 + $0x50] sm:$0xe]
  %v403 = vld [vmem:[%s0 + $0x54] sm:$0x1]
  %v404 = vld [vmem:[%s0 + $0x58] sm:$0xe]
  %v405 = vld [vmem:[%s0 + $0x5c] sm:$0x1]
  %v406 = vld [vmem:[%s0 + $0x60] sm:$0xe]
  %v407 = vld [vmem:[%s0 + $0x64] sm:$0x1]
  %v408 = vld [vmem:[%s0 + $0x68] sm:$0xe]
  %v409 = vld [vmem:[%s0 + $0x6c] sm:$0x1]
  %v410 = vld [vmem:[%s0 + $0x70] sm:$0xe]
  %v411 = vld [vmem:[%s0 + $0x74] sm:$0x1]
  %v412 = vld [vmem:[%s0 + $0x78] sm:$0xe]
  %v413 = vld [vmem:[%s0 + $0x7c] sm:$0x1]
  %v414 = vld [vmem:[%s0 + $0x80] sm:$0xe]
  %v415 = vld [vmem:[%s0 + $0x84] sm:$0x1]
  %v416 = vld [vmem:[%s0 + $0x88] sm:$0xe]
  %v417 = vld [vmem:[%s0 + $0x8c] sm:$0x1]
  %vm450 = vcmask 1042432
  %vm451 = vcmask 1046532
  %vm452 = vmor %vm450, %vm451
  %v453 = vrot.slane %v386, 5
  %v454 = vrot.slane %v453, 4
  %v455 = vrot.slane %v387, 5
  %v456 = vsel %vm452, %v454, %v455
  %v457 = vrot.slane %v388, 5
  %v458 = vrot.slane %v457, 4
  %v459 = vrot.slane %v389, 5
  %v460 = vsel %vm452, %v458, %v459
  %v461 = vrot.slane %v390, 5
  %v462 = vrot.slane %v461, 4
  %v463 = vrot.slane %v391, 5
  %v464 = vsel %vm452, %v462, %v463
  %v465 = vrot.slane %v392, 5
  %v466 = vrot.slane %v465, 4
  %v467 = vrot.slane %v393, 5
  %v468 = vsel %vm452, %v466, %v467
  %v469 = vrot.slane %v394, 5
  %v470 = vrot.slane %v469, 4
  %v471 = vrot.slane %v395, 5
  %v472 = vsel %vm452, %v470, %v471
  %v473 = vrot.slane %v396, 5
  %v474 = vrot.slane %v473, 4
  %v475 = vrot.slane %v397, 5
  %v476 = vsel %vm452, %v474, %v475
  %v477 = vrot.slane %v398, 5
  %v478 = vrot.slane %v477, 4
  %v479 = vrot.slane %v399, 5
  %v480 = vsel %vm452, %v478, %v479
  %v481 = vrot.slane %v400, 5
  %v482 = vrot.slane %v481, 4
  %v483 = vrot.slane %v401, 5
  %v484 = vsel %vm452, %v482, %v483
  %v485 = vrot.slane %v402, 5
  %v486 = vrot.slane %v485, 4
  %v487 = vrot.slane %v403, 5
  %v488 = vsel %vm452, %v486, %v487
  %v489 = vrot.slane %v404, 5
  %v490 = vrot.slane %v489, 4
  %v491 = vrot.slane %v405, 5
  %v492 = vsel %vm452, %v490, %v491
  %v493 = vrot.slane %v406, 5
  %v494 = vrot.slane %v493, 4
  %v495 = vrot.slane %v407, 5
  %v496 = vsel %vm452, %v494, %v495
  %v497 = vrot.slane %v408, 5
  %v498 = vrot.slane %v497, 4
  %v499 = vrot.slane %v409, 5
  %v500 = vsel %vm452, %v498, %v499
  %v501 = vrot.slane %v410, 5
  %v502 = vrot.slane %v501, 4
  %v503 = vrot.slane %v411, 5
  %v504 = vsel %vm452, %v502, %v503
  %v505 = vrot.slane %v412, 5
  %v506 = vrot.slane %v505, 4
  %v507 = vrot.slane %v413, 5
  %v508 = vsel %vm452, %v506, %v507
  %v509 = vrot.slane %v414, 5
  %v510 = vrot.slane %v509, 4
  %v511 = vrot.slane %v415, 5
  %v512 = vsel %vm452, %v510, %v511
  %v513 = vrot.slane %v416, 5
  %v514 = vrot.slane %v513, 4
  %v515 = vrot.slane %v417, 5
  %v516 = vsel %vm452, %v514, %v515
  %v517 = vunpack.c.l.b16 %v456
  %v518 = vunpack.c.l.b16 %v460
  %v519 = vunpack.c.l.b16 %v464
  %v520 = vunpack.c.l.b16 %v468
  %v521 = vunpack.c.l.b16 %v472
  %v522 = vunpack.c.l.b16 %v476
  %v523 = vunpack.c.l.b16 %v480
  %v524 = vunpack.c.l.b16 %v484
  %v525 = vunpack.c.l.b16 %v488
  %v526 = vunpack.c.l.b16 %v492
  %v527 = vunpack.c.l.b16 %v496
  %v528 = vunpack.c.l.b16 %v500
  %v529 = vunpack.c.l.b16 %v504
  %v530 = vunpack.c.l.b16 %v508
  %v531 = vunpack.c.l.b16 %v512
  %v532 = vunpack.c.l.b16 %v516
  %v533 = vpack.c.b16 %v518, %v517
  %v534 = vpack.c.b16 %v520, %v519
  %v535 = vpack.c.b16 %v522, %v521
  %v536 = vpack.c.b16 %v524, %v523
  %v537 = vpack.c.b16 %v526, %v525
  %v538 = vpack.c.b16 %v528, %v527
  %v539 = vpack.c.b16 %v530, %v529
  %v540 = vpack.c.b16 %v532, %v531
  %549 = vst [vmem:[#allocation2 + $0x10] sm:$0xff] %v533
  %550 = vst [vmem:[#allocation2 + $0x58] sm:$0xff] %v534
  %551 = vst [vmem:[#allocation2 + $0xa0] sm:$0xff] %v535
  %552 = vst [vmem:[#allocation2 + $0xe8] sm:$0xff] %v536
  %553 = vst [vmem:[#allocation2 + $0x130] sm:$0xff] %v537
  %554 = vst [vmem:[#allocation2 + $0x178] sm:$0xff] %v538
  %555 = vst [vmem:[#allocation2 + $0x1c0] sm:$0xff] %v539
  %556 = vst [vmem:[#allocation2 + $0x208] sm:$0xff] %v540
  %s557 = scalar_lea.vmem %s0, 8
  %v558 = vld [vmem:[%s557] sm:$0xf]
  %v559 = vld [vmem:[%s557 + $0x8] sm:$0xf]
  %v560 = vld [vmem:[%s557 + $0x10] sm:$0xf]
  %v561 = vld [vmem:[%s557 + $0x18] sm:$0xf]
  %v562 = vld [vmem:[%s557 + $0x20] sm:$0xf]
  %v563 = vld [vmem:[%s557 + $0x28] sm:$0xf]
  %v564 = vld [vmem:[%s557 + $0x30] sm:$0xf]
  %v565 = vld [vmem:[%s557 + $0x38] sm:$0xf]
  %v566 = vld [vmem:[%s557 + $0x50] sm:$0xf]
  %v567 = vld [vmem:[%s557 + $0x58] sm:$0xf]
  %v568 = vld [vmem:[%s557 + $0x60] sm:$0xf]
  %v569 = vld [vmem:[%s557 + $0x68] sm:$0xf]
  %v570 = vld [vmem:[%s557 + $0x70] sm:$0xf]
  %v571 = vld [vmem:[%s557 + $0x78] sm:$0xf]
  %v572 = vld [vmem:[%s557 + $0x80] sm:$0xf]
  %v573 = vld [vmem:[%s557 + $0x88] sm:$0xf]
  %v590 = vunpack.c.l.b16 %v558
  %v591 = vunpack.c.l.b16 %v559
  %v592 = vunpack.c.l.b16 %v560
  %v593 = vunpack.c.l.b16 %v561
  %v594 = vunpack.c.l.b16 %v562
  %v595 = vunpack.c.l.b16 %v563
  %v596 = vunpack.c.l.b16 %v564
  %v597 = vunpack.c.l.b16 %v565
  %v598 = vunpack.c.l.b16 %v566
  %v599 = vunpack.c.l.b16 %v567
  %v600 = vunpack.c.l.b16 %v568
  %v601 = vunpack.c.l.b16 %v569
  %v602 = vunpack.c.l.b16 %v570
  %v603 = vunpack.c.l.b16 %v571
  %v604 = vunpack.c.l.b16 %v572
  %v605 = vunpack.c.l.b16 %v573
  %v606 = vpack.c.b16 %v591, %v590
  %v607 = vpack.c.b16 %v593, %v592
  %v608 = vpack.c.b16 %v595, %v594
  %v609 = vpack.c.b16 %v597, %v596
  %v610 = vpack.c.b16 %v599, %v598
  %v611 = vpack.c.b16 %v601, %v600
  %v612 = vpack.c.b16 %v603, %v602
  %v613 = vpack.c.b16 %v605, %v604
  %622 = vst [vmem:[#allocation2 + $0x18] sm:$0xff] %v606
  %623 = vst [vmem:[#allocation2 + $0x60] sm:$0xff] %v607
  %624 = vst [vmem:[#allocation2 + $0xa8] sm:$0xff] %v608
  %625 = vst [vmem:[#allocation2 + $0xf0] sm:$0xff] %v609
  %626 = vst [vmem:[#allocation2 + $0x138] sm:$0xff] %v610
  %627 = vst [vmem:[#allocation2 + $0x180] sm:$0xff] %v611
  %628 = vst [vmem:[#allocation2 + $0x1c8] sm:$0xff] %v612
  %629 = vst [vmem:[#allocation2 + $0x210] sm:$0xff] %v613
  %v630 = vld [vmem:[%s557] sm:$0xf]
  %v631 = vld [vmem:[%s557 + $0x4] sm:$0x1]
  %v632 = vld [vmem:[%s557 + $0x8] sm:$0xf]
  %v633 = vld [vmem:[%s557 + $0xc] sm:$0x1]
  %v634 = vld [vmem:[%s557 + $0x10] sm:$0xf]
  %v635 = vld [vmem:[%s557 + $0x14] sm:$0x1]
  %v636 = vld [vmem:[%s557 + $0x18] sm:$0xf]
  %v637 = vld [vmem:[%s557 + $0x1c] sm:$0x1]
  %v638 = vld [vmem:[%s557 + $0x20] sm:$0xf]
  %v639 = vld [vmem:[%s557 + $0x24] sm:$0x1]
  %v640 = vld [vmem:[%s557 + $0x28] sm:$0xf]
  %v641 = vld [vmem:[%s557 + $0x2c] sm:$0x1]
  %v642 = vld [vmem:[%s557 + $0x30] sm:$0xf]
  %v643 = vld [vmem:[%s557 + $0x34] sm:$0x1]
  %v644 = vld [vmem:[%s557 + $0x38] sm:$0xf]
  %v645 = vld [vmem:[%s557 + $0x3c] sm:$0x1]
  %v646 = vld [vmem:[%s557 + $0x50] sm:$0xf]
  %v647 = vld [vmem:[%s557 + $0x54] sm:$0x1]
  %v648 = vld [vmem:[%s557 + $0x58] sm:$0xf]
  %v649 = vld [vmem:[%s557 + $0x5c] sm:$0x1]
  %v650 = vld [vmem:[%s557 + $0x60] sm:$0xf]
  %v651 = vld [vmem:[%s557 + $0x64] sm:$0x1]
  %v652 = vld [vmem:[%s557 + $0x68] sm:$0xf]
  %v653 = vld [vmem:[%s557 + $0x6c] sm:$0x1]
  %v654 = vld [vmem:[%s557 + $0x70] sm:$0xf]
  %v655 = vld [vmem:[%s557 + $0x74] sm:$0x1]
  %v656 = vld [vmem:[%s557 + $0x78] sm:$0xf]
  %v657 = vld [vmem:[%s557 + $0x7c] sm:$0x1]
  %v658 = vld [vmem:[%s557 + $0x80] sm:$0xf]
  %v659 = vld [vmem:[%s557 + $0x84] sm:$0x1]
  %v660 = vld [vmem:[%s557 + $0x88] sm:$0xf]
  %v661 = vld [vmem:[%s557 + $0x8c] sm:$0x1]
  %v663 = vshrl.u32 %v630, 16
  %v665 = vrot.slane %v663, 4
  %v666 = vshll.u32 %v630, 16
  %v668 = vrot.slane %v666, 5
  %v669 = vor.u32 %v665, %v668
  %v670 = vrot.slane %v669, 4
  %v672 = vshll.u32 %v631, 16
  %v674 = vrot.slane %v672, 5
  %v675 = vsel %vm121, %v670, %v674
  %v677 = vshrl.u32 %v632, 16
  %v679 = vrot.slane %v677, 4
  %v680 = vshll.u32 %v632, 16
  %v682 = vrot.slane %v680, 5
  %v683 = vor.u32 %v679, %v682
  %v684 = vrot.slane %v683, 4
  %v686 = vshll.u32 %v633, 16
  %v688 = vrot.slane %v686, 5
  %v689 = vsel %vm121, %v684, %v688
  %v691 = vshrl.u32 %v634, 16
  %v693 = vrot.slane %v691, 4
  %v694 = vshll.u32 %v634, 16
  %v696 = vrot.slane %v694, 5
  %v697 = vor.u32 %v693, %v696
  %v698 = vrot.slane %v697, 4
  %v700 = vshll.u32 %v635, 16
  %v702 = vrot.slane %v700, 5
  %v703 = vsel %vm121, %v698, %v702
  %v705 = vshrl.u32 %v636, 16
  %v707 = vrot.slane %v705, 4
  %v708 = vshll.u32 %v636, 16
  %v710 = vrot.slane %v708, 5
  %v711 = vor.u32 %v707, %v710
  %v712 = vrot.slane %v711, 4
  %v714 = vshll.u32 %v637, 16
  %v716 = vrot.slane %v714, 5
  %v717 = vsel %vm121, %v712, %v716
  %v719 = vshrl.u32 %v638, 16
  %v721 = vrot.slane %v719, 4
  %v722 = vshll.u32 %v638, 16
  %v724 = vrot.slane %v722, 5
  %v725 = vor.u32 %v721, %v724
  %v726 = vrot.slane %v725, 4
  %v728 = vshll.u32 %v639, 16
  %v730 = vrot.slane %v728, 5
  %v731 = vsel %vm121, %v726, %v730
  %v733 = vshrl.u32 %v640, 16
  %v735 = vrot.slane %v733, 4
  %v736 = vshll.u32 %v640, 16
  %v738 = vrot.slane %v736, 5
  %v739 = vor.u32 %v735, %v738
  %v740 = vrot.slane %v739, 4
  %v742 = vshll.u32 %v641, 16
  %v744 = vrot.slane %v742, 5
  %v745 = vsel %vm121, %v740, %v744
  %v747 = vshrl.u32 %v642, 16
  %v749 = vrot.slane %v747, 4
  %v750 = vshll.u32 %v642, 16
  %v752 = vrot.slane %v750, 5
  %v753 = vor.u32 %v749, %v752
  %v754 = vrot.slane %v753, 4
  %v756 = vshll.u32 %v643, 16
  %v758 = vrot.slane %v756, 5
  %v759 = vsel %vm121, %v754, %v758
  %v761 = vshrl.u32 %v644, 16
  %v763 = vrot.slane %v761, 4
  %v764 = vshll.u32 %v644, 16
  %v766 = vrot.slane %v764, 5
  %v767 = vor.u32 %v763, %v766
  %v768 = vrot.slane %v767, 4
  %v770 = vshll.u32 %v645, 16
  %v772 = vrot.slane %v770, 5
  %v773 = vsel %vm121, %v768, %v772
  %v775 = vshrl.u32 %v646, 16
  %v777 = vrot.slane %v775, 4
  %v778 = vshll.u32 %v646, 16
  %v780 = vrot.slane %v778, 5
  %v781 = vor.u32 %v777, %v780
  %v782 = vrot.slane %v781, 4
  %v784 = vshll.u32 %v647, 16
  %v786 = vrot.slane %v784, 5
  %v787 = vsel %vm121, %v782, %v786
  %v789 = vshrl.u32 %v648, 16
  %v791 = vrot.slane %v789, 4
  %v792 = vshll.u32 %v648, 16
  %v794 = vrot.slane %v792, 5
  %v795 = vor.u32 %v791, %v794
  %v796 = vrot.slane %v795, 4
  %v798 = vshll.u32 %v649, 16
  %v800 = vrot.slane %v798, 5
  %v801 = vsel %vm121, %v796, %v800
  %v803 = vshrl.u32 %v650, 16
  %v805 = vrot.slane %v803, 4
  %v806 = vshll.u32 %v650, 16
  %v808 = vrot.slane %v806, 5
  %v809 = vor.u32 %v805, %v808
  %v810 = vrot.slane %v809, 4
  %v812 = vshll.u32 %v651, 16
  %v814 = vrot.slane %v812, 5
  %v815 = vsel %vm121, %v810, %v814
  %v817 = vshrl.u32 %v652, 16
  %v819 = vrot.slane %v817, 4
  %v820 = vshll.u32 %v652, 16
  %v822 = vrot.slane %v820, 5
  %v823 = vor.u32 %v819, %v822
  %v824 = vrot.slane %v823, 4
  %v826 = vshll.u32 %v653, 16
  %v828 = vrot.slane %v826, 5
  %v829 = vsel %vm121, %v824, %v828
  %v831 = vshrl.u32 %v654, 16
  %v833 = vrot.slane %v831, 4
  %v834 = vshll.u32 %v654, 16
  %v836 = vrot.slane %v834, 5
  %v837 = vor.u32 %v833, %v836
  %v838 = vrot.slane %v837, 4
  %v840 = vshll.u32 %v655, 16
  %v842 = vrot.slane %v840, 5
  %v843 = vsel %vm121, %v838, %v842
  %v845 = vshrl.u32 %v656, 16
  %v847 = vrot.slane %v845, 4
  %v848 = vshll.u32 %v656, 16
  %v850 = vrot.slane %v848, 5
  %v851 = vor.u32 %v847, %v850
  %v852 = vrot.slane %v851, 4
  %v854 = vshll.u32 %v657, 16
  %v856 = vrot.slane %v854, 5
  %v857 = vsel %vm121, %v852, %v856
  %v859 = vshrl.u32 %v658, 16
  %v861 = vrot.slane %v859, 4
  %v862 = vshll.u32 %v658, 16
  %v864 = vrot.slane %v862, 5
  %v865 = vor.u32 %v861, %v864
  %v866 = vrot.slane %v865, 4
  %v868 = vshll.u32 %v659, 16
  %v870 = vrot.slane %v868, 5
  %v871 = vsel %vm121, %v866, %v870
  %v873 = vshrl.u32 %v660, 16
  %v875 = vrot.slane %v873, 4
  %v876 = vshll.u32 %v660, 16
  %v878 = vrot.slane %v876, 5
  %v879 = vor.u32 %v875, %v878
  %v880 = vrot.slane %v879, 4
  %v882 = vshll.u32 %v661, 16
  %v884 = vrot.slane %v882, 5
  %v885 = vsel %vm121, %v880, %v884
  %v886 = vunpack.c.l.b16 %v675
  %v887 = vunpack.c.l.b16 %v689
  %v888 = vunpack.c.l.b16 %v703
  %v889 = vunpack.c.l.b16 %v717
  %v890 = vunpack.c.l.b16 %v731
  %v891 = vunpack.c.l.b16 %v745
  %v892 = vunpack.c.l.b16 %v759
  %v893 = vunpack.c.l.b16 %v773
  %v894 = vunpack.c.l.b16 %v787
  %v895 = vunpack.c.l.b16 %v801
  %v896 = vunpack.c.l.b16 %v815
  %v897 = vunpack.c.l.b16 %v829
  %v898 = vunpack.c.l.b16 %v843
  %v899 = vunpack.c.l.b16 %v857
  %v900 = vunpack.c.l.b16 %v871
  %v901 = vunpack.c.l.b16 %v885
  %v902 = vpack.c.b16 %v887, %v886
  %v903 = vpack.c.b16 %v889, %v888
  %v904 = vpack.c.b16 %v891, %v890
  %v905 = vpack.c.b16 %v893, %v892
  %v906 = vpack.c.b16 %v895, %v894
  %v907 = vpack.c.b16 %v897, %v896
  %v908 = vpack.c.b16 %v899, %v898
  %v909 = vpack.c.b16 %v901, %v900
  %918 = vst [vmem:[#allocation2 + $0x20] sm:$0xff] %v902
  %919 = vst [vmem:[#allocation2 + $0x68] sm:$0xff] %v903
  %920 = vst [vmem:[#allocation2 + $0xb0] sm:$0xff] %v904
  %921 = vst [vmem:[#allocation2 + $0xf8] sm:$0xff] %v905
  %922 = vst [vmem:[#allocation2 + $0x140] sm:$0xff] %v906
  %923 = vst [vmem:[#allocation2 + $0x188] sm:$0xff] %v907
  %924 = vst [vmem:[#allocation2 + $0x1d0] sm:$0xff] %v908
  %925 = vst [vmem:[#allocation2 + $0x218] sm:$0xff] %v909
  %v926 = vld [vmem:[%s557] sm:$0xe]
  %v927 = vld [vmem:[%s557 + $0x4] sm:$0x1]
  %v928 = vld [vmem:[%s557 + $0x8] sm:$0xe]
  %v929 = vld [vmem:[%s557 + $0xc] sm:$0x1]
  %v930 = vld [vmem:[%s557 + $0x10] sm:$0xe]
  %v931 = vld [vmem:[%s557 + $0x14] sm:$0x1]
  %v932 = vld [vmem:[%s557 + $0x18] sm:$0xe]
  %v933 = vld [vmem:[%s557 + $0x1c] sm:$0x1]
  %v934 = vld [vmem:[%s557 + $0x20] sm:$0xe]
  %v935 = vld [vmem:[%s557 + $0x24] sm:$0x1]
  %v936 = vld [vmem:[%s557 + $0x28] sm:$0xe]
  %v937 = vld [vmem:[%s557 + $0x2c] sm:$0x1]
  %v938 = vld [vmem:[%s557 + $0x30] sm:$0xe]
  %v939 = vld [vmem:[%s557 + $0x34] sm:$0x1]
  %v940 = vld [vmem:[%s557 + $0x38] sm:$0xe]
  %v941 = vld [vmem:[%s557 + $0x3c] sm:$0x1]
  %v942 = vld [vmem:[%s557 + $0x50] sm:$0xe]
  %v943 = vld [vmem:[%s557 + $0x54] sm:$0x1]
  %v944 = vld [vmem:[%s557 + $0x58] sm:$0xe]
  %v945 = vld [vmem:[%s557 + $0x5c] sm:$0x1]
  %v946 = vld [vmem:[%s557 + $0x60] sm:$0xe]
  %v947 = vld [vmem:[%s557 + $0x64] sm:$0x1]
  %v948 = vld [vmem:[%s557 + $0x68] sm:$0xe]
  %v949 = vld [vmem:[%s557 + $0x6c] sm:$0x1]
  %v950 = vld [vmem:[%s557 + $0x70] sm:$0xe]
  %v951 = vld [vmem:[%s557 + $0x74] sm:$0x1]
  %v952 = vld [vmem:[%s557 + $0x78] sm:$0xe]
  %v953 = vld [vmem:[%s557 + $0x7c] sm:$0x1]
  %v954 = vld [vmem:[%s557 + $0x80] sm:$0xe]
  %v955 = vld [vmem:[%s557 + $0x84] sm:$0x1]
  %v956 = vld [vmem:[%s557 + $0x88] sm:$0xe]
  %v957 = vld [vmem:[%s557 + $0x8c] sm:$0x1]
  %v990 = vrot.slane %v926, 5
  %v991 = vrot.slane %v990, 4
  %v992 = vrot.slane %v927, 5
  %v993 = vsel %vm452, %v991, %v992
  %v994 = vrot.slane %v928, 5
  %v995 = vrot.slane %v994, 4
  %v996 = vrot.slane %v929, 5
  %v997 = vsel %vm452, %v995, %v996
  %v998 = vrot.slane %v930, 5
  %v999 = vrot.slane %v998, 4
  %v1000 = vrot.slane %v931, 5
  %v1001 = vsel %vm452, %v999, %v1000
  %v1002 = vrot.slane %v932, 5
  %v1003 = vrot.slane %v1002, 4
  %v1004 = vrot.slane %v933, 5
  %v1005 = vsel %vm452, %v1003, %v1004
  %v1006 = vrot.slane %v934, 5
  %v1007 = vrot.slane %v1006, 4
  %v1008 = vrot.slane %v935, 5
  %v1009 = vsel %vm452, %v1007, %v1008
  %v1010 = vrot.slane %v936, 5
  %v1011 = vrot.slane %v1010, 4
  %v1012 = vrot.slane %v937, 5
  %v1013 = vsel %vm452, %v1011, %v1012
  %v1014 = vrot.slane %v938, 5
  %v1015 = vrot.slane %v1014, 4
  %v1016 = vrot.slane %v939, 5
  %v1017 = vsel %vm452, %v1015, %v1016
  %v1018 = vrot.slane %v940, 5
  %v1019 = vrot.slane %v1018, 4
  %v1020 = vrot.slane %v941, 5
  %v1021 = vsel %vm452, %v1019, %v1020
  %v1022 = vrot.slane %v942, 5
  %v1023 = vrot.slane %v1022, 4
  %v1024 = vrot.slane %v943, 5
  %v1025 = vsel %vm452, %v1023, %v1024
  %v1026 = vrot.slane %v944, 5
  %v1027 = vrot.slane %v1026, 4
  %v1028 = vrot.slane %v945, 5
  %v1029 = vsel %vm452, %v1027, %v1028
  %v1030 = vrot.slane %v946, 5
  %v1031 = vrot.slane %v1030, 4
  %v1032 = vrot.slane %v947, 5
  %v1033 = vsel %vm452, %v1031, %v1032
  %v1034 = vrot.slane %v948, 5
  %v1035 = vrot.slane %v1034, 4
  %v1036 = vrot.slane %v949, 5
  %v1037 = vsel %vm452, %v1035, %v1036
  %v1038 = vrot.slane %v950, 5
  %v1039 = vrot.slane %v1038, 4
  %v1040 = vrot.slane %v951, 5
  %v1041 = vsel %vm452, %v1039, %v1040
  %v1042 = vrot.slane %v952, 5
  %v1043 = vrot.slane %v1042, 4
  %v1044 = vrot.slane %v953, 5
  %v1045 = vsel %vm452, %v1043, %v1044
  %v1046 = vrot.slane %v954, 5
  %v1047 = vrot.slane %v1046, 4
  %v1048 = vrot.slane %v955, 5
  %v1049 = vsel %vm452, %v1047, %v1048
  %v1050 = vrot.slane %v956, 5
  %v1051 = vrot.slane %v1050, 4
  %v1052 = vrot.slane %v957, 5
  %v1053 = vsel %vm452, %v1051, %v1052
  %v1054 = vunpack.c.l.b16 %v993
  %v1055 = vunpack.c.l.b16 %v997
  %v1056 = vunpack.c.l.b16 %v1001
  %v1057 = vunpack.c.l.b16 %v1005
  %v1058 = vunpack.c.l.b16 %v1009
  %v1059 = vunpack.c.l.b16 %v1013
  %v1060 = vunpack.c.l.b16 %v1017
  %v1061 = vunpack.c.l.b16 %v1021
  %v1062 = vunpack.c.l.b16 %v1025
  %v1063 = vunpack.c.l.b16 %v1029
  %v1064 = vunpack.c.l.b16 %v1033
  %v1065 = vunpack.c.l.b16 %v1037
  %v1066 = vunpack.c.l.b16 %v1041
  %v1067 = vunpack.c.l.b16 %v1045
  %v1068 = vunpack.c.l.b16 %v1049
  %v1069 = vunpack.c.l.b16 %v1053
  %v1070 = vpack.c.b16 %v1055, %v1054
  %v1071 = vpack.c.b16 %v1057, %v1056
  %v1072 = vpack.c.b16 %v1059, %v1058
  %v1073 = vpack.c.b16 %v1061, %v1060
  %v1074 = vpack.c.b16 %v1063, %v1062
  %v1075 = vpack.c.b16 %v1065, %v1064
  %v1076 = vpack.c.b16 %v1067, %v1066
  %v1077 = vpack.c.b16 %v1069, %v1068
  %1086 = vst [vmem:[#allocation2 + $0x28] sm:$0xff] %v1070
  %1087 = vst [vmem:[#allocation2 + $0x70] sm:$0xff] %v1071
  %1088 = vst [vmem:[#allocation2 + $0xb8] sm:$0xff] %v1072
  %1089 = vst [vmem:[#allocation2 + $0x100] sm:$0xff] %v1073
  %1090 = vst [vmem:[#allocation2 + $0x148] sm:$0xff] %v1074
  %1091 = vst [vmem:[#allocation2 + $0x190] sm:$0xff] %v1075
  %1092 = vst [vmem:[#allocation2 + $0x1d8] sm:$0xff] %v1076
  %1093 = vst [vmem:[#allocation2 + $0x220] sm:$0xff] %v1077
  %s1094 = scalar_lea.vmem %s0, 16
  %v1095 = vld [vmem:[%s1094] sm:$0xf]
  %v1096 = vld [vmem:[%s1094 + $0x8] sm:$0xf]
  %v1097 = vld [vmem:[%s1094 + $0x10] sm:$0xf]
  %v1098 = vld [vmem:[%s1094 + $0x18] sm:$0xf]
  %v1099 = vld [vmem:[%s1094 + $0x20] sm:$0xf]
  %v1100 = vld [vmem:[%s1094 + $0x28] sm:$0xf]
  %v1101 = vld [vmem:[%s1094 + $0x30] sm:$0xf]
  %v1102 = vld [vmem:[%s1094 + $0x38] sm:$0xf]
  %v1103 = vld [vmem:[%s1094 + $0x50] sm:$0xf]
  %v1104 = vld [vmem:[%s1094 + $0x58] sm:$0xf]
  %v1105 = vld [vmem:[%s1094 + $0x60] sm:$0xf]
  %v1106 = vld [vmem:[%s1094 + $0x68] sm:$0xf]
  %v1107 = vld [vmem:[%s1094 + $0x70] sm:$0xf]
  %v1108 = vld [vmem:[%s1094 + $0x78] sm:$0xf]
  %v1109 = vld [vmem:[%s1094 + $0x80] sm:$0xf]
  %v1110 = vld [vmem:[%s1094 + $0x88] sm:$0xf]
  %v1127 = vunpack.c.l.b16 %v1095
  %v1128 = vunpack.c.l.b16 %v1096
  %v1129 = vunpack.c.l.b16 %v1097
  %v1130 = vunpack.c.l.b16 %v1098
  %v1131 = vunpack.c.l.b16 %v1099
  %v1132 = vunpack.c.l.b16 %v1100
  %v1133 = vunpack.c.l.b16 %v1101
  %v1134 = vunpack.c.l.b16 %v1102
  %v1135 = vunpack.c.l.b16 %v1103
  %v1136 = vunpack.c.l.b16 %v1104
  %v1137 = vunpack.c.l.b16 %v1105
  %v1138 = vunpack.c.l.b16 %v1106
  %v1139 = vunpack.c.l.b16 %v1107
  %v1140 = vunpack.c.l.b16 %v1108
  %v1141 = vunpack.c.l.b16 %v1109
  %v1142 = vunpack.c.l.b16 %v1110
  %v1143 = vpack.c.b16 %v1128, %v1127
  %v1144 = vpack.c.b16 %v1130, %v1129
  %v1145 = vpack.c.b16 %v1132, %v1131
  %v1146 = vpack.c.b16 %v1134, %v1133
  %v1147 = vpack.c.b16 %v1136, %v1135
  %v1148 = vpack.c.b16 %v1138, %v1137
  %v1149 = vpack.c.b16 %v1140, %v1139
  %v1150 = vpack.c.b16 %v1142, %v1141
  %1159 = vst [vmem:[#allocation2 + $0x30] sm:$0xff] %v1143
  %1160 = vst [vmem:[#allocation2 + $0x78] sm:$0xff] %v1144
  %1161 = vst [vmem:[#allocation2 + $0xc0] sm:$0xff] %v1145
  %1162 = vst [vmem:[#allocation2 + $0x108] sm:$0xff] %v1146
  %1163 = vst [vmem:[#allocation2 + $0x150] sm:$0xff] %v1147
  %1164 = vst [vmem:[#allocation2 + $0x198] sm:$0xff] %v1148
  %1165 = vst [vmem:[#allocation2 + $0x1e0] sm:$0xff] %v1149
  %1166 = vst [vmem:[#allocation2 + $0x228] sm:$0xff] %v1150
  %v1167 = vld [vmem:[%s1094] sm:$0xf]
  %v1168 = vld [vmem:[%s1094 + $0x4] sm:$0x1]
  %v1169 = vld [vmem:[%s1094 + $0x8] sm:$0xf]
  %v1170 = vld [vmem:[%s1094 + $0xc] sm:$0x1]
  %v1171 = vld [vmem:[%s1094 + $0x10] sm:$0xf]
  %v1172 = vld [vmem:[%s1094 + $0x14] sm:$0x1]
  %v1173 = vld [vmem:[%s1094 + $0x18] sm:$0xf]
  %v1174 = vld [vmem:[%s1094 + $0x1c] sm:$0x1]
  %v1175 = vld [vmem:[%s1094 + $0x20] sm:$0xf]
  %v1176 = vld [vmem:[%s1094 + $0x24] sm:$0x1]
  %v1177 = vld [vmem:[%s1094 + $0x28] sm:$0xf]
  %v1178 = vld [vmem:[%s1094 + $0x2c] sm:$0x1]
  %v1179 = vld [vmem:[%s1094 + $0x30] sm:$0xf]
  %v1180 = vld [vmem:[%s1094 + $0x34] sm:$0x1]
  %v1181 = vld [vmem:[%s1094 + $0x38] sm:$0xf]
  %v1182 = vld [vmem:[%s1094 + $0x3c] sm:$0x1]
  %v1183 = vld [vmem:[%s1094 + $0x50] sm:$0xf]
  %v1184 = vld [vmem:[%s1094 + $0x54] sm:$0x1]
  %v1185 = vld [vmem:[%s1094 + $0x58] sm:$0xf]
  %v1186 = vld [vmem:[%s1094 + $0x5c] sm:$0x1]
  %v1187 = vld [vmem:[%s1094 + $0x60] sm:$0xf]
  %v1188 = vld [vmem:[%s1094 + $0x64] sm:$0x1]
  %v1189 = vld [vmem:[%s1094 + $0x68] sm:$0xf]
  %v1190 = vld [vmem:[%s1094 + $0x6c] sm:$0x1]
  %v1191 = vld [vmem:[%s1094 + $0x70] sm:$0xf]
  %v1192 = vld [vmem:[%s1094 + $0x74] sm:$0x1]
  %v1193 = vld [vmem:[%s1094 + $0x78] sm:$0xf]
  %v1194 = vld [vmem:[%s1094 + $0x7c] sm:$0x1]
  %v1195 = vld [vmem:[%s1094 + $0x80] sm:$0xf]
  %v1196 = vld [vmem:[%s1094 + $0x84] sm:$0x1]
  %v1197 = vld [vmem:[%s1094 + $0x88] sm:$0xf]
  %v1198 = vld [vmem:[%s1094 + $0x8c] sm:$0x1]
  %v1200 = vshrl.u32 %v1167, 16
  %v1202 = vrot.slane %v1200, 4
  %v1203 = vshll.u32 %v1167, 16
  %v1205 = vrot.slane %v1203, 5
  %v1206 = vor.u32 %v1202, %v1205
  %v1207 = vrot.slane %v1206, 4
  %v1209 = vshll.u32 %v1168, 16
  %v1211 = vrot.slane %v1209, 5
  %v1212 = vsel %vm121, %v1207, %v1211
  %v1214 = vshrl.u32 %v1169, 16
  %v1216 = vrot.slane %v1214, 4
  %v1217 = vshll.u32 %v1169, 16
  %v1219 = vrot.slane %v1217, 5
  %v1220 = vor.u32 %v1216, %v1219
  %v1221 = vrot.slane %v1220, 4
  %v1223 = vshll.u32 %v1170, 16
  %v1225 = vrot.slane %v1223, 5
  %v1226 = vsel %vm121, %v1221, %v1225
  %v1228 = vshrl.u32 %v1171, 16
  %v1230 = vrot.slane %v1228, 4
  %v1231 = vshll.u32 %v1171, 16
  %v1233 = vrot.slane %v1231, 5
  %v1234 = vor.u32 %v1230, %v1233
  %v1235 = vrot.slane %v1234, 4
  %v1237 = vshll.u32 %v1172, 16
  %v1239 = vrot.slane %v1237, 5
  %v1240 = vsel %vm121, %v1235, %v1239
  %v1242 = vshrl.u32 %v1173, 16
  %v1244 = vrot.slane %v1242, 4
  %v1245 = vshll.u32 %v1173, 16
  %v1247 = vrot.slane %v1245, 5
  %v1248 = vor.u32 %v1244, %v1247
  %v1249 = vrot.slane %v1248, 4
  %v1251 = vshll.u32 %v1174, 16
  %v1253 = vrot.slane %v1251, 5
  %v1254 = vsel %vm121, %v1249, %v1253
  %v1256 = vshrl.u32 %v1175, 16
  %v1258 = vrot.slane %v1256, 4
  %v1259 = vshll.u32 %v1175, 16
  %v1261 = vrot.slane %v1259, 5
  %v1262 = vor.u32 %v1258, %v1261
  %v1263 = vrot.slane %v1262, 4
  %v1265 = vshll.u32 %v1176, 16
  %v1267 = vrot.slane %v1265, 5
  %v1268 = vsel %vm121, %v1263, %v1267
  %v1270 = vshrl.u32 %v1177, 16
  %v1272 = vrot.slane %v1270, 4
  %v1273 = vshll.u32 %v1177, 16
  %v1275 = vrot.slane %v1273, 5
  %v1276 = vor.u32 %v1272, %v1275
  %v1277 = vrot.slane %v1276, 4
  %v1279 = vshll.u32 %v1178, 16
  %v1281 = vrot.slane %v1279, 5
  %v1282 = vsel %vm121, %v1277, %v1281
  %v1284 = vshrl.u32 %v1179, 16
  %v1286 = vrot.slane %v1284, 4
  %v1287 = vshll.u32 %v1179, 16
  %v1289 = vrot.slane %v1287, 5
  %v1290 = vor.u32 %v1286, %v1289
  %v1291 = vrot.slane %v1290, 4
  %v1293 = vshll.u32 %v1180, 16
  %v1295 = vrot.slane %v1293, 5
  %v1296 = vsel %vm121, %v1291, %v1295
  %v1298 = vshrl.u32 %v1181, 16
  %v1300 = vrot.slane %v1298, 4
  %v1301 = vshll.u32 %v1181, 16
  %v1303 = vrot.slane %v1301, 5
  %v1304 = vor.u32 %v1300, %v1303
  %v1305 = vrot.slane %v1304, 4
  %v1307 = vshll.u32 %v1182, 16
  %v1309 = vrot.slane %v1307, 5
  %v1310 = vsel %vm121, %v1305, %v1309
  %v1312 = vshrl.u32 %v1183, 16
  %v1314 = vrot.slane %v1312, 4
  %v1315 = vshll.u32 %v1183, 16
  %v1317 = vrot.slane %v1315, 5
  %v1318 = vor.u32 %v1314, %v1317
  %v1319 = vrot.slane %v1318, 4
  %v1321 = vshll.u32 %v1184, 16
  %v1323 = vrot.slane %v1321, 5
  %v1324 = vsel %vm121, %v1319, %v1323
  %v1326 = vshrl.u32 %v1185, 16
  %v1328 = vrot.slane %v1326, 4
  %v1329 = vshll.u32 %v1185, 16
  %v1331 = vrot.slane %v1329, 5
  %v1332 = vor.u32 %v1328, %v1331
  %v1333 = vrot.slane %v1332, 4
  %v1335 = vshll.u32 %v1186, 16
  %v1337 = vrot.slane %v1335, 5
  %v1338 = vsel %vm121, %v1333, %v1337
  %v1340 = vshrl.u32 %v1187, 16
  %v1342 = vrot.slane %v1340, 4
  %v1343 = vshll.u32 %v1187, 16
  %v1345 = vrot.slane %v1343, 5
  %v1346 = vor.u32 %v1342, %v1345
  %v1347 = vrot.slane %v1346, 4
  %v1349 = vshll.u32 %v1188, 16
  %v1351 = vrot.slane %v1349, 5
  %v1352 = vsel %vm121, %v1347, %v1351
  %v1354 = vshrl.u32 %v1189, 16
  %v1356 = vrot.slane %v1354, 4
  %v1357 = vshll.u32 %v1189, 16
  %v1359 = vrot.slane %v1357, 5
  %v1360 = vor.u32 %v1356, %v1359
  %v1361 = vrot.slane %v1360, 4
  %v1363 = vshll.u32 %v1190, 16
  %v1365 = vrot.slane %v1363, 5
  %v1366 = vsel %vm121, %v1361, %v1365
  %v1368 = vshrl.u32 %v1191, 16
  %v1370 = vrot.slane %v1368, 4
  %v1371 = vshll.u32 %v1191, 16
  %v1373 = vrot.slane %v1371, 5
  %v1374 = vor.u32 %v1370, %v1373
  %v1375 = vrot.slane %v1374, 4
  %v1377 = vshll.u32 %v1192, 16
  %v1379 = vrot.slane %v1377, 5
  %v1380 = vsel %vm121, %v1375, %v1379
  %v1382 = vshrl.u32 %v1193, 16
  %v1384 = vrot.slane %v1382, 4
  %v1385 = vshll.u32 %v1193, 16
  %v1387 = vrot.slane %v1385, 5
  %v1388 = vor.u32 %v1384, %v1387
  %v1389 = vrot.slane %v1388, 4
  %v1391 = vshll.u32 %v1194, 16
  %v1393 = vrot.slane %v1391, 5
  %v1394 = vsel %vm121, %v1389, %v1393
  %v1396 = vshrl.u32 %v1195, 16
  %v1398 = vrot.slane %v1396, 4
  %v1399 = vshll.u32 %v1195, 16
  %v1401 = vrot.slane %v1399, 5
  %v1402 = vor.u32 %v1398, %v1401
  %v1403 = vrot.slane %v1402, 4
  %v1405 = vshll.u32 %v1196, 16
  %v1407 = vrot.slane %v1405, 5
  %v1408 = vsel %vm121, %v1403, %v1407
  %v1410 = vshrl.u32 %v1197, 16
  %v1412 = vrot.slane %v1410, 4
  %v1413 = vshll.u32 %v1197, 16
  %v1415 = vrot.slane %v1413, 5
  %v1416 = vor.u32 %v1412, %v1415
  %v1417 = vrot.slane %v1416, 4
  %v1419 = vshll.u32 %v1198, 16
  %v1421 = vrot.slane %v1419, 5
  %v1422 = vsel %vm121, %v1417, %v1421
  %v1423 = vunpack.c.l.b16 %v1212
  %v1424 = vunpack.c.l.b16 %v1226
  %v1425 = vunpack.c.l.b16 %v1240
  %v1426 = vunpack.c.l.b16 %v1254
  %v1427 = vunpack.c.l.b16 %v1268
  %v1428 = vunpack.c.l.b16 %v1282
  %v1429 = vunpack.c.l.b16 %v1296
  %v1430 = vunpack.c.l.b16 %v1310
  %v1431 = vunpack.c.l.b16 %v1324
  %v1432 = vunpack.c.l.b16 %v1338
  %v1433 = vunpack.c.l.b16 %v1352
  %v1434 = vunpack.c.l.b16 %v1366
  %v1435 = vunpack.c.l.b16 %v1380
  %v1436 = vunpack.c.l.b16 %v1394
  %v1437 = vunpack.c.l.b16 %v1408
  %v1438 = vunpack.c.l.b16 %v1422
  %v1439 = vpack.c.b16 %v1424, %v1423
  %v1440 = vpack.c.b16 %v1426, %v1425
  %v1441 = vpack.c.b16 %v1428, %v1427
  %v1442 = vpack.c.b16 %v1430, %v1429
  %v1443 = vpack.c.b16 %v1432, %v1431
  %v1444 = vpack.c.b16 %v1434, %v1433
  %v1445 = vpack.c.b16 %v1436, %v1435
  %v1446 = vpack.c.b16 %v1438, %v1437
  %1455 = vst [vmem:[#allocation2 + $0x38] sm:$0xff] %v1439
  %1456 = vst [vmem:[#allocation2 + $0x80] sm:$0xff] %v1440
  %1457 = vst [vmem:[#allocation2 + $0xc8] sm:$0xff] %v1441
  %1458 = vst [vmem:[#allocation2 + $0x110] sm:$0xff] %v1442
  %1459 = vst [vmem:[#allocation2 + $0x158] sm:$0xff] %v1443
  %1460 = vst [vmem:[#allocation2 + $0x1a0] sm:$0xff] %v1444
  %1461 = vst [vmem:[#allocation2 + $0x1e8] sm:$0xff] %v1445
  %1462 = vst [vmem:[#allocation2 + $0x230] sm:$0xff] %v1446
  %v1463 = vld [vmem:[%s1094] sm:$0xe]
  %v1464 = vld [vmem:[%s1094 + $0x4] sm:$0x1]
  %v1465 = vld [vmem:[%s1094 + $0x8] sm:$0xe]
  %v1466 = vld [vmem:[%s1094 + $0xc] sm:$0x1]
  %v1467 = vld [vmem:[%s1094 + $0x10] sm:$0xe]
  %v1468 = vld [vmem:[%s1094 + $0x14] sm:$0x1]
  %v1469 = vld [vmem:[%s1094 + $0x18] sm:$0xe]
  %v1470 = vld [vmem:[%s1094 + $0x1c] sm:$0x1]
  %v1471 = vld [vmem:[%s1094 + $0x20] sm:$0xe]
  %v1472 = vld [vmem:[%s1094 + $0x24] sm:$0x1]
  %v1473 = vld [vmem:[%s1094 + $0x28] sm:$0xe]
  %v1474 = vld [vmem:[%s1094 + $0x2c] sm:$0x1]
  %v1475 = vld [vmem:[%s1094 + $0x30] sm:$0xe]
  %v1476 = vld [vmem:[%s1094 + $0x34] sm:$0x1]
  %v1477 = vld [vmem:[%s1094 + $0x38] sm:$0xe]
  %v1478 = vld [vmem:[%s1094 + $0x3c] sm:$0x1]
  %v1479 = vld [vmem:[%s1094 + $0x50] sm:$0xe]
  %v1480 = vld [vmem:[%s1094 + $0x54] sm:$0x1]
  %v1481 = vld [vmem:[%s1094 + $0x58] sm:$0xe]
  %v1482 = vld [vmem:[%s1094 + $0x5c] sm:$0x1]
  %v1483 = vld [vmem:[%s1094 + $0x60] sm:$0xe]
  %v1484 = vld [vmem:[%s1094 + $0x64] sm:$0x1]
  %v1485 = vld [vmem:[%s1094 + $0x68] sm:$0xe]
  %v1486 = vld [vmem:[%s1094 + $0x6c] sm:$0x1]
  %v1487 = vld [vmem:[%s1094 + $0x70] sm:$0xe]
  %v1488 = vld [vmem:[%s1094 + $0x74] sm:$0x1]
  %v1489 = vld [vmem:[%s1094 + $0x78] sm:$0xe]
  %v1490 = vld [vmem:[%s1094 + $0x7c] sm:$0x1]
  %v1491 = vld [vmem:[%s1094 + $0x80] sm:$0xe]
  %v1492 = vld [vmem:[%s1094 + $0x84] sm:$0x1]
  %v1493 = vld [vmem:[%s1094 + $0x88] sm:$0xe]
  %v1494 = vld [vmem:[%s1094 + $0x8c] sm:$0x1]
  %v1527 = vrot.slane %v1463, 5
  %v1528 = vrot.slane %v1527, 4
  %v1529 = vrot.slane %v1464, 5
  %v1530 = vsel %vm452, %v1528, %v1529
  %v1531 = vrot.slane %v1465, 5
  %v1532 = vrot.slane %v1531, 4
  %v1533 = vrot.slane %v1466, 5
  %v1534 = vsel %vm452, %v1532, %v1533
  %v1535 = vrot.slane %v1467, 5
  %v1536 = vrot.slane %v1535, 4
  %v1537 = vrot.slane %v1468, 5
  %v1538 = vsel %vm452, %v1536, %v1537
  %v1539 = vrot.slane %v1469, 5
  %v1540 = vrot.slane %v1539, 4
  %v1541 = vrot.slane %v1470, 5
  %v1542 = vsel %vm452, %v1540, %v1541
  %v1543 = vrot.slane %v1471, 5
  %v1544 = vrot.slane %v1543, 4
  %v1545 = vrot.slane %v1472, 5
  %v1546 = vsel %vm452, %v1544, %v1545
  %v1547 = vrot.slane %v1473, 5
  %v1548 = vrot.slane %v1547, 4
  %v1549 = vrot.slane %v1474, 5
  %v1550 = vsel %vm452, %v1548, %v1549
  %v1551 = vrot.slane %v1475, 5
  %v1552 = vrot.slane %v1551, 4
  %v1553 = vrot.slane %v1476, 5
  %v1554 = vsel %vm452, %v1552, %v1553
  %v1555 = vrot.slane %v1477, 5
  %v1556 = vrot.slane %v1555, 4
  %v1557 = vrot.slane %v1478, 5
  %v1558 = vsel %vm452, %v1556, %v1557
  %v1559 = vrot.slane %v1479, 5
  %v1560 = vrot.slane %v1559, 4
  %v1561 = vrot.slane %v1480, 5
  %v1562 = vsel %vm452, %v1560, %v1561
  %v1563 = vrot.slane %v1481, 5
  %v1564 = vrot.slane %v1563, 4
  %v1565 = vrot.slane %v1482, 5
  %v1566 = vsel %vm452, %v1564, %v1565
  %v1567 = vrot.slane %v1483, 5
  %v1568 = vrot.slane %v1567, 4
  %v1569 = vrot.slane %v1484, 5
  %v1570 = vsel %vm452, %v1568, %v1569
  %v1571 = vrot.slane %v1485, 5
  %v1572 = vrot.slane %v1571, 4
  %v1573 = vrot.slane %v1486, 5
  %v1574 = vsel %vm452, %v1572, %v1573
  %v1575 = vrot.slane %v1487, 5
  %v1576 = vrot.slane %v1575, 4
  %v1577 = vrot.slane %v1488, 5
  %v1578 = vsel %vm452, %v1576, %v1577
  %v1579 = vrot.slane %v1489, 5
  %v1580 = vrot.slane %v1579, 4
  %v1581 = vrot.slane %v1490, 5
  %v1582 = vsel %vm452, %v1580, %v1581
  %v1583 = vrot.slane %v1491, 5
  %v1584 = vrot.slane %v1583, 4
  %v1585 = vrot.slane %v1492, 5
  %v1586 = vsel %vm452, %v1584, %v1585
  %v1587 = vrot.slane %v1493, 5
  %v1588 = vrot.slane %v1587, 4
  %v1589 = vrot.slane %v1494, 5
  %v1590 = vsel %vm452, %v1588, %v1589
  %v1591 = vunpack.c.l.b16 %v1530
  %v1592 = vunpack.c.l.b16 %v1534
  %v1593 = vunpack.c.l.b16 %v1538
  %v1594 = vunpack.c.l.b16 %v1542
  %v1595 = vunpack.c.l.b16 %v1546
  %v1596 = vunpack.c.l.b16 %v1550
  %v1597 = vunpack.c.l.b16 %v1554
  %v1598 = vunpack.c.l.b16 %v1558
  %v1599 = vunpack.c.l.b16 %v1562
  %v1600 = vunpack.c.l.b16 %v1566
  %v1601 = vunpack.c.l.b16 %v1570
  %v1602 = vunpack.c.l.b16 %v1574
  %v1603 = vunpack.c.l.b16 %v1578
  %v1604 = vunpack.c.l.b16 %v1582
  %v1605 = vunpack.c.l.b16 %v1586
  %v1606 = vunpack.c.l.b16 %v1590
  %v1607 = vpack.c.b16 %v1592, %v1591
  %v1608 = vpack.c.b16 %v1594, %v1593
  %v1609 = vpack.c.b16 %v1596, %v1595
  %v1610 = vpack.c.b16 %v1598, %v1597
  %v1611 = vpack.c.b16 %v1600, %v1599
  %v1612 = vpack.c.b16 %v1602, %v1601
  %v1613 = vpack.c.b16 %v1604, %v1603
  %v1614 = vpack.c.b16 %v1606, %v1605
  %1623 = vst [vmem:[#allocation2 + $0x40] sm:$0xff] %v1607
  %1624 = vst [vmem:[#allocation2 + $0x88] sm:$0xff] %v1608
  %1625 = vst [vmem:[#allocation2 + $0xd0] sm:$0xff] %v1609
  %1626 = vst [vmem:[#allocation2 + $0x118] sm:$0xff] %v1610
  %1627 = vst [vmem:[#allocation2 + $0x160] sm:$0xff] %v1611
  %1628 = vst [vmem:[#allocation2 + $0x1a8] sm:$0xff] %v1612
  %1629 = vst [vmem:[#allocation2 + $0x1f0] sm:$0xff] %v1613
  %1630 = vst [vmem:[#allocation2 + $0x238] sm:$0xff] %v1614
  %v1631 = vld [vmem:[#allocation2] sm:$0xff]
  %v1632 = vld [vmem:[#allocation2 + $0x8] sm:$0xff]
  %v1633 = vld [vmem:[#allocation2 + $0x10] sm:$0xff]
  %v1634 = vld [vmem:[#allocation2 + $0x18] sm:$0xff]
  %v1635 = vld [vmem:[#allocation2 + $0x20] sm:$0xff]
  %v1636 = vld [vmem:[#allocation2 + $0x28] sm:$0xff]
  %v1637 = vld [vmem:[#allocation2 + $0x30] sm:$0xff]
  %v1638 = vld [vmem:[#allocation2 + $0x38] sm:$0xff]
  %v1639 = vld [vmem:[#allocation2 + $0x40] sm:$0xff]
  %v1640 = vld [vmem:[#allocation2 + $0x48] sm:$0xff]
  %v1641 = vld [vmem:[#allocation2 + $0x50] sm:$0xff]
  %v1642 = vld [vmem:[#allocation2 + $0x58] sm:$0xff]
  %v1643 = vld [vmem:[#allocation2 + $0x60] sm:$0xff]
  %v1644 = vld [vmem:[#allocation2 + $0x68] sm:$0xff]
  %v1645 = vld [vmem:[#allocation2 + $0x70] sm:$0xff]
  %v1646 = vld [vmem:[#allocation2 + $0x78] sm:$0xff]
  %v1647 = vld [vmem:[#allocation2 + $0x80] sm:$0xff]
  %v1648 = vld [vmem:[#allocation2 + $0x88] sm:$0xff]
  %v1649 = vld [vmem:[#allocation2 + $0x90] sm:$0xff]
  %v1650 = vld [vmem:[#allocation2 + $0x98] sm:$0xff]
  %v1651 = vld [vmem:[#allocation2 + $0xa0] sm:$0xff]
  %v1652 = vld [vmem:[#allocation2 + $0xa8] sm:$0xff]
  %v1653 = vld [vmem:[#allocation2 + $0xb0] sm:$0xff]
  %v1654 = vld [vmem:[#allocation2 + $0xb8] sm:$0xff]
  %v1655 = vld [vmem:[#allocation2 + $0xc0] sm:$0xff]
  %v1656 = vld [vmem:[#allocation2 + $0xc8] sm:$0xff]
  %v1657 = vld [vmem:[#allocation2 + $0xd0] sm:$0xff]
  %v1658 = vld [vmem:[#allocation2 + $0xd8] sm:$0xff]
  %v1659 = vld [vmem:[#allocation2 + $0xe0] sm:$0xff]
  %v1660 = vld [vmem:[#allocation2 + $0xe8] sm:$0xff]
  %v1661 = vld [vmem:[#allocation2 + $0xf0] sm:$0xff]
  %v1662 = vld [vmem:[#allocation2 + $0xf8] sm:$0xff]
  %v1663 = vld [vmem:[#allocation2 + $0x100] sm:$0xff]
  %v1664 = vld [vmem:[#allocation2 + $0x108] sm:$0xff]
  %v1665 = vld [vmem:[#allocation2 + $0x110] sm:$0xff]
  %v1666 = vld [vmem:[#allocation2 + $0x118] sm:$0xff]
  %v1667 = vld [vmem:[#allocation2 + $0x120] sm:$0xff]
  %v1668 = vld [vmem:[#allocation2 + $0x128] sm:$0xff]
  %v1669 = vld [vmem:[#allocation2 + $0x130] sm:$0xff]
  %v1670 = vld [vmem:[#allocation2 + $0x138] sm:$0xff]
  %v1671 = vld [vmem:[#allocation2 + $0x140] sm:$0xff]
  %v1672 = vld [vmem:[#allocation2 + $0x148] sm:$0xff]
  %v1673 = vld [vmem:[#allocation2 + $0x150] sm:$0xff]
  %v1674 = vld [vmem:[#allocation2 + $0x158] sm:$0xff]
  %v1675 = vld [vmem:[#allocation2 + $0x160] sm:$0xff]
  %v1676 = vld [vmem:[#allocation2 + $0x168] sm:$0xff]
  %v1677 = vld [vmem:[#allocation2 + $0x170] sm:$0xff]
  %v1678 = vld [vmem:[#allocation2 + $0x178] sm:$0xff]
  %v1679 = vld [vmem:[#allocation2 + $0x180] sm:$0xff]
  %v1680 = vld [vmem:[#allocation2 + $0x188] sm:$0xff]
  %v1681 = vld [vmem:[#allocation2 + $0x190] sm:$0xff]
  %v1682 = vld [vmem:[#allocation2 + $0x198] sm:$0xff]
  %v1683 = vld [vmem:[#allocation2 + $0x1a0] sm:$0xff]
  %v1684 = vld [vmem:[#allocation2 + $0x1a8] sm:$0xff]
  %v1685 = vld [vmem:[#allocation2 + $0x1b0] sm:$0xff]
  %v1686 = vld [vmem:[#allocation2 + $0x1b8] sm:$0xff]
  %v1687 = vld [vmem:[#allocation2 + $0x1c0] sm:$0xff]
  %v1688 = vld [vmem:[#allocation2 + $0x1c8] sm:$0xff]
  %v1689 = vld [vmem:[#allocation2 + $0x1d0] sm:$0xff]
  %v1690 = vld [vmem:[#allocation2 + $0x1d8] sm:$0xff]
  %v1691 = vld [vmem:[#allocation2 + $0x1e0] sm:$0xff]
  %v1692 = vld [vmem:[#allocation2 + $0x1e8] sm:$0xff]
  %v1693 = vld [vmem:[#allocation2 + $0x1f0] sm:$0xff]
  %v1694 = vld [vmem:[#allocation2 + $0x1f8] sm:$0xff]
  %v1695 = vld [vmem:[#allocation2 + $0x200] sm:$0xff]
  %v1696 = vld [vmem:[#allocation2 + $0x208] sm:$0xff]
  %v1697 = vld [vmem:[#allocation2 + $0x210] sm:$0xff]
  %v1698 = vld [vmem:[#allocation2 + $0x218] sm:$0xff]
  %v1699 = vld [vmem:[#allocation2 + $0x220] sm:$0xff]
  %v1700 = vld [vmem:[#allocation2 + $0x228] sm:$0xff]
  %v1701 = vld [vmem:[#allocation2 + $0x230] sm:$0xff]
  %v1702 = vld [vmem:[#allocation2 + $0x238] sm:$0xff]
  %v1703 = vld [vmem:[%s1] sm:$0xf]
  %v1704 = vld [vmem:[%s1 + $0x4] sm:$0xf]
  %v1705 = vld [vmem:[%s1 + $0x8] sm:$0xf]
  %v1706 = vld [vmem:[%s1 + $0xc] sm:$0xf]
  %v1707 = vld [vmem:[%s1 + $0x10] sm:$0xf]
  %v1708 = vld [vmem:[%s1 + $0x14] sm:$0xf]
  %v1709 = vld [vmem:[%s1 + $0x18] sm:$0xf]
  %v1710 = vld [vmem:[%s1 + $0x1c] sm:$0xf]
  %v1711 = vld [vmem:[%s1 + $0x20] sm:$0xf]
  %v1712 = vld [vmem:[%s1 + $0x24] sm:$0xf]
  %v1713 = vld [vmem:[%s1 + $0x28] sm:$0xf]
  %v1714 = vld [vmem:[%s1 + $0x2c] sm:$0xf]
  %v1715 = vld [vmem:[%s1 + $0x30] sm:$0xf]
  %v1716 = vld [vmem:[%s1 + $0x34] sm:$0xf]
  %v1717 = vld [vmem:[%s1 + $0x38] sm:$0xf]
  %v1718 = vld [vmem:[%s1 + $0x3c] sm:$0xf]
  %v1719 = vld [vmem:[%s1 + $0x40] sm:$0xf]
  %v1720 = vld [vmem:[%s1 + $0x44] sm:$0xf]
  %v1721 = vld [vmem:[%s1 + $0x48] sm:$0xf]
  %v1722 = vld [vmem:[%s1 + $0x4c] sm:$0xf]
  %v1723 = vld [vmem:[%s1 + $0x50] sm:$0xf]
  %v1724 = vld [vmem:[%s1 + $0x54] sm:$0xf]
  %v1725 = vld [vmem:[%s1 + $0x58] sm:$0xf]
  %v1726 = vld [vmem:[%s1 + $0x5c] sm:$0xf]
  %v1727 = vld [vmem:[%s1 + $0x60] sm:$0xf]
  %v1728 = vld [vmem:[%s1 + $0x64] sm:$0xf]
  %v1729 = vld [vmem:[%s1 + $0x68] sm:$0xf]
  %v1730 = vld [vmem:[%s1 + $0x6c] sm:$0xf]
  %v1731 = vld [vmem:[%s1 + $0x70] sm:$0xf]
  %v1732 = vld [vmem:[%s1 + $0x74] sm:$0xf]
  %v1733 = vld [vmem:[%s1 + $0x78] sm:$0xf]
  %v1734 = vld [vmem:[%s1 + $0x7c] sm:$0xf]
  %v1735 = vld [vmem:[%s1 + $0x80] sm:$0xf]
  %v1736 = vld [vmem:[%s1 + $0x84] sm:$0xf]
  %v1737 = vld [vmem:[%s1 + $0x88] sm:$0xf]
  %v1738 = vld [vmem:[%s1 + $0x8c] sm:$0xf]
  %v1739 = vld [vmem:[%s1 + $0x90] sm:$0xf]
  %v1740 = vld [vmem:[%s1 + $0x94] sm:$0xf]
  %v1741 = vld [vmem:[%s1 + $0x98] sm:$0xf]
  %v1742 = vld [vmem:[%s1 + $0x9c] sm:$0xf]
  %v1743 = vld [vmem:[%s1 + $0xa0] sm:$0xf]
  %v1744 = vld [vmem:[%s1 + $0xa4] sm:$0xf]
  %v1745 = vld [vmem:[%s1 + $0xa8] sm:$0xf]
  %v1746 = vld [vmem:[%s1 + $0xac] sm:$0xf]
  %v1747 = vld [vmem:[%s1 + $0xb0] sm:$0xf]
  %v1748 = vld [vmem:[%s1 + $0xb4] sm:$0xf]
  %v1749 = vld [vmem:[%s1 + $0xb8] sm:$0xf]
  %v1750 = vld [vmem:[%s1 + $0xbc] sm:$0xf]
  %v1751 = vld [vmem:[%s1 + $0xc0] sm:$0xf]
  %v1752 = vld [vmem:[%s1 + $0xc4] sm:$0xf]
  %v1753 = vld [vmem:[%s1 + $0xc8] sm:$0xf]
  %v1754 = vld [vmem:[%s1 + $0xcc] sm:$0xf]
  %v1755 = vld [vmem:[%s1 + $0xd0] sm:$0xf]
  %v1756 = vld [vmem:[%s1 + $0xd4] sm:$0xf]
  %v1757 = vld [vmem:[%s1 + $0xd8] sm:$0xf]
  %v1758 = vld [vmem:[%s1 + $0xdc] sm:$0xf]
  %v1759 = vld [vmem:[%s1 + $0xe0] sm:$0xf]
  %v1760 = vld [vmem:[%s1 + $0xe4] sm:$0xf]
  %v1761 = vld [vmem:[%s1 + $0xe8] sm:$0xf]
  %v1762 = vld [vmem:[%s1 + $0xec] sm:$0xf]
  %v1763 = vld [vmem:[%s1 + $0xf0] sm:$0xf]
  %v1764 = vld [vmem:[%s1 + $0xf4] sm:$0xf]
  %v1765 = vld [vmem:[%s1 + $0xf8] sm:$0xf]
  %v1766 = vld [vmem:[%s1 + $0xfc] sm:$0xf]
  %v1767 = vld [vmem:[%s1 + $0x100] sm:$0xf]
  %v1768 = vld [vmem:[%s1 + $0x104] sm:$0xf]
  %v1769 = vld [vmem:[%s1 + $0x108] sm:$0xf]
  %v1770 = vld [vmem:[%s1 + $0x10c] sm:$0xf]
  %v1771 = vld [vmem:[%s1 + $0x110] sm:$0xf]
  %v1772 = vld [vmem:[%s1 + $0x114] sm:$0xf]
  %v1773 = vld [vmem:[%s1 + $0x118] sm:$0xf]
  %v1774 = vld [vmem:[%s1 + $0x11c] sm:$0xf]
  %v1775 = vld [vmem:[%s1 + $0x120] sm:$0xf]
  %v1776 = vld [vmem:[%s1 + $0x124] sm:$0xf]
  %v1777 = vld [vmem:[%s1 + $0x128] sm:$0xf]
  %v1778 = vld [vmem:[%s1 + $0x12c] sm:$0xf]
  %v1779 = vld [vmem:[%s1 + $0x130] sm:$0xf]
  %v1780 = vld [vmem:[%s1 + $0x134] sm:$0xf]
  %v1781 = vld [vmem:[%s1 + $0x138] sm:$0xf]
  %v1782 = vld [vmem:[%s1 + $0x13c] sm:$0xf]
  %v1783 = vld [vmem:[%s1 + $0x140] sm:$0xf]
  %v1784 = vld [vmem:[%s1 + $0x144] sm:$0xf]
  %v1785 = vld [vmem:[%s1 + $0x148] sm:$0xf]
  %v1786 = vld [vmem:[%s1 + $0x14c] sm:$0xf]
  %v1787 = vld [vmem:[%s1 + $0x150] sm:$0xf]
  %v1788 = vld [vmem:[%s1 + $0x154] sm:$0xf]
  %v1789 = vld [vmem:[%s1 + $0x158] sm:$0xf]
  %v1790 = vld [vmem:[%s1 + $0x15c] sm:$0xf]
  %v1791 = vld [vmem:[%s1 + $0x160] sm:$0xf]
  %v1792 = vld [vmem:[%s1 + $0x164] sm:$0xf]
  %v1793 = vld [vmem:[%s1 + $0x168] sm:$0xf]
  %v1794 = vld [vmem:[%s1 + $0x16c] sm:$0xf]
  %v1795 = vld [vmem:[%s1 + $0x170] sm:$0xf]
  %v1796 = vld [vmem:[%s1 + $0x174] sm:$0xf]
  %v1797 = vld [vmem:[%s1 + $0x178] sm:$0xf]
  %v1798 = vld [vmem:[%s1 + $0x17c] sm:$0xf]
  %v1799 = vld [vmem:[%s1 + $0x180] sm:$0xf]
  %v1800 = vld [vmem:[%s1 + $0x184] sm:$0xf]
  %v1801 = vld [vmem:[%s1 + $0x188] sm:$0xf]
  %v1802 = vld [vmem:[%s1 + $0x18c] sm:$0xf]
  %v1803 = vld [vmem:[%s1 + $0x190] sm:$0xf]
  %v1804 = vld [vmem:[%s1 + $0x194] sm:$0xf]
  %v1805 = vld [vmem:[%s1 + $0x198] sm:$0xf]
  %v1806 = vld [vmem:[%s1 + $0x19c] sm:$0xf]
  %v1807 = vld [vmem:[%s1 + $0x1a0] sm:$0xf]
  %v1808 = vld [vmem:[%s1 + $0x1a4] sm:$0xf]
  %v1809 = vld [vmem:[%s1 + $0x1a8] sm:$0xf]
  %v1810 = vld [vmem:[%s1 + $0x1ac] sm:$0xf]
  %v1811 = vld [vmem:[%s1 + $0x1b0] sm:$0xf]
  %v1812 = vld [vmem:[%s1 + $0x1b4] sm:$0xf]
  %v1813 = vld [vmem:[%s1 + $0x1b8] sm:$0xf]
  %v1814 = vld [vmem:[%s1 + $0x1bc] sm:$0xf]
  %v1815 = vld [vmem:[%s1 + $0x1c0] sm:$0xf]
  %v1816 = vld [vmem:[%s1 + $0x1c4] sm:$0xf]
  %v1817 = vld [vmem:[%s1 + $0x1c8] sm:$0xf]
  %v1818 = vld [vmem:[%s1 + $0x1cc] sm:$0xf]
  %v1819 = vld [vmem:[%s1 + $0x1d0] sm:$0xf]
  %v1820 = vld [vmem:[%s1 + $0x1d4] sm:$0xf]
  %v1821 = vld [vmem:[%s1 + $0x1d8] sm:$0xf]
  %v1822 = vld [vmem:[%s1 + $0x1dc] sm:$0xf]
  %v1823 = vld [vmem:[%s1 + $0x1e0] sm:$0xf]
  %v1824 = vld [vmem:[%s1 + $0x1e4] sm:$0xf]
  %v1825 = vld [vmem:[%s1 + $0x1e8] sm:$0xf]
  %v1826 = vld [vmem:[%s1 + $0x1ec] sm:$0xf]
  %v1827 = vld [vmem:[%s1 + $0x1f0] sm:$0xf]
  %v1828 = vld [vmem:[%s1 + $0x1f4] sm:$0xf]
  %v1829 = vld [vmem:[%s1 + $0x1f8] sm:$0xf]
  %v1830 = vld [vmem:[%s1 + $0x1fc] sm:$0xf]
  %v1831 = vld [vmem:[%s1 + $0x200] sm:$0xf]
  %v1832 = vld [vmem:[%s1 + $0x204] sm:$0xf]
  %v1833 = vld [vmem:[%s1 + $0x208] sm:$0xf]
  %v1834 = vld [vmem:[%s1 + $0x20c] sm:$0xf]
  %v1835 = vld [vmem:[%s1 + $0x210] sm:$0xf]
  %v1836 = vld [vmem:[%s1 + $0x214] sm:$0xf]
  %v1837 = vld [vmem:[%s1 + $0x218] sm:$0xf]
  %v1838 = vld [vmem:[%s1 + $0x21c] sm:$0xf]
  %v1839 = vld [vmem:[%s1 + $0x220] sm:$0xf]
  %v1840 = vld [vmem:[%s1 + $0x224] sm:$0xf]
  %v1841 = vld [vmem:[%s1 + $0x228] sm:$0xf]
  %v1842 = vld [vmem:[%s1 + $0x22c] sm:$0xf]
  %v1843 = vld [vmem:[%s1 + $0x230] sm:$0xf]
  %v1844 = vld [vmem:[%s1 + $0x234] sm:$0xf]
  %v1845 = vld [vmem:[%s1 + $0x238] sm:$0xf]
  %v1846 = vld [vmem:[%s1 + $0x23c] sm:$0xf]
  %v1847 = vld [vmem:[%s2] sm:$0x1]
  %v1849 = vlaneseq
  %v1850 = vshrl.u32 %v1849, 7
  %v1851 = vsub.s32 0, %v1850
  %v1852 = vrot.slane %v1847, %v1851
  %v1998 = vunpack.c.l.b16 %v1703
  %v1999 = vunpack.c.l.b16 %v1704
  %v2000 = vunpack.c.l.b16 %v1705
  %v2001 = vunpack.c.l.b16 %v1706
  %v2002 = vunpack.c.l.b16 %v1707
  %v2003 = vunpack.c.l.b16 %v1708
  %v2004 = vunpack.c.l.b16 %v1709
  %v2005 = vunpack.c.l.b16 %v1710
  %v2006 = vunpack.c.l.b16 %v1711
  %v2007 = vunpack.c.l.b16 %v1712
  %v2008 = vunpack.c.l.b16 %v1713
  %v2009 = vunpack.c.l.b16 %v1714
  %v2010 = vunpack.c.l.b16 %v1715
  %v2011 = vunpack.c.l.b16 %v1716
  %v2012 = vunpack.c.l.b16 %v1717
  %v2013 = vunpack.c.l.b16 %v1718
  %v2014 = vunpack.c.l.b16 %v1719
  %v2015 = vunpack.c.l.b16 %v1720
  %v2016 = vunpack.c.l.b16 %v1721
  %v2017 = vunpack.c.l.b16 %v1722
  %v2018 = vunpack.c.l.b16 %v1723
  %v2019 = vunpack.c.l.b16 %v1724
  %v2020 = vunpack.c.l.b16 %v1725
  %v2021 = vunpack.c.l.b16 %v1726
  %v2022 = vunpack.c.l.b16 %v1727
  %v2023 = vunpack.c.l.b16 %v1728
  %v2024 = vunpack.c.l.b16 %v1729
  %v2025 = vunpack.c.l.b16 %v1730
  %v2026 = vunpack.c.l.b16 %v1731
  %v2027 = vunpack.c.l.b16 %v1732
  %v2028 = vunpack.c.l.b16 %v1733
  %v2029 = vunpack.c.l.b16 %v1734
  %v2030 = vunpack.c.l.b16 %v1735
  %v2031 = vunpack.c.l.b16 %v1736
  %v2032 = vunpack.c.l.b16 %v1737
  %v2033 = vunpack.c.l.b16 %v1738
  %v2034 = vunpack.c.l.b16 %v1739
  %v2035 = vunpack.c.l.b16 %v1740
  %v2036 = vunpack.c.l.b16 %v1741
  %v2037 = vunpack.c.l.b16 %v1742
  %v2038 = vunpack.c.l.b16 %v1743
  %v2039 = vunpack.c.l.b16 %v1744
  %v2040 = vunpack.c.l.b16 %v1745
  %v2041 = vunpack.c.l.b16 %v1746
  %v2042 = vunpack.c.l.b16 %v1747
  %v2043 = vunpack.c.l.b16 %v1748
  %v2044 = vunpack.c.l.b16 %v1749
  %v2045 = vunpack.c.l.b16 %v1750
  %v2046 = vunpack.c.l.b16 %v1751
  %v2047 = vunpack.c.l.b16 %v1752
  %v2048 = vunpack.c.l.b16 %v1753
  %v2049 = vunpack.c.l.b16 %v1754
  %v2050 = vunpack.c.l.b16 %v1755
  %v2051 = vunpack.c.l.b16 %v1756
  %v2052 = vunpack.c.l.b16 %v1757
  %v2053 = vunpack.c.l.b16 %v1758
  %v2054 = vunpack.c.l.b16 %v1759
  %v2055 = vunpack.c.l.b16 %v1760
  %v2056 = vunpack.c.l.b16 %v1761
  %v2057 = vunpack.c.l.b16 %v1762
  %v2058 = vunpack.c.l.b16 %v1763
  %v2059 = vunpack.c.l.b16 %v1764
  %v2060 = vunpack.c.l.b16 %v1765
  %v2061 = vunpack.c.l.b16 %v1766
  %v2062 = vunpack.c.l.b16 %v1767
  %v2063 = vunpack.c.l.b16 %v1768
  %v2064 = vunpack.c.l.b16 %v1769
  %v2065 = vunpack.c.l.b16 %v1770
  %v2066 = vunpack.c.l.b16 %v1771
  %v2067 = vunpack.c.l.b16 %v1772
  %v2068 = vunpack.c.l.b16 %v1773
  %v2069 = vunpack.c.l.b16 %v1774
  %v2070 = vunpack.c.l.b16 %v1775
  %v2071 = vunpack.c.l.b16 %v1776
  %v2072 = vunpack.c.l.b16 %v1777
  %v2073 = vunpack.c.l.b16 %v1778
  %v2074 = vunpack.c.l.b16 %v1779
  %v2075 = vunpack.c.l.b16 %v1780
  %v2076 = vunpack.c.l.b16 %v1781
  %v2077 = vunpack.c.l.b16 %v1782
  %v2078 = vunpack.c.l.b16 %v1783
  %v2079 = vunpack.c.l.b16 %v1784
  %v2080 = vunpack.c.l.b16 %v1785
  %v2081 = vunpack.c.l.b16 %v1786
  %v2082 = vunpack.c.l.b16 %v1787
  %v2083 = vunpack.c.l.b16 %v1788
  %v2084 = vunpack.c.l.b16 %v1789
  %v2085 = vunpack.c.l.b16 %v1790
  %v2086 = vunpack.c.l.b16 %v1791
  %v2087 = vunpack.c.l.b16 %v1792
  %v2088 = vunpack.c.l.b16 %v1793
  %v2089 = vunpack.c.l.b16 %v1794
  %v2090 = vunpack.c.l.b16 %v1795
  %v2091 = vunpack.c.l.b16 %v1796
  %v2092 = vunpack.c.l.b16 %v1797
  %v2093 = vunpack.c.l.b16 %v1798
  %v2094 = vunpack.c.l.b16 %v1799
  %v2095 = vunpack.c.l.b16 %v1800
  %v2096 = vunpack.c.l.b16 %v1801
  %v2097 = vunpack.c.l.b16 %v1802
  %v2098 = vunpack.c.l.b16 %v1803
  %v2099 = vunpack.c.l.b16 %v1804
  %v2100 = vunpack.c.l.b16 %v1805
  %v2101 = vunpack.c.l.b16 %v1806
  %v2102 = vunpack.c.l.b16 %v1807
  %v2103 = vunpack.c.l.b16 %v1808
  %v2104 = vunpack.c.l.b16 %v1809
  %v2105 = vunpack.c.l.b16 %v1810
  %v2106 = vunpack.c.l.b16 %v1811
  %v2107 = vunpack.c.l.b16 %v1812
  %v2108 = vunpack.c.l.b16 %v1813
  %v2109 = vunpack.c.l.b16 %v1814
  %v2110 = vunpack.c.l.b16 %v1815
  %v2111 = vunpack.c.l.b16 %v1816
  %v2112 = vunpack.c.l.b16 %v1817
  %v2113 = vunpack.c.l.b16 %v1818
  %v2114 = vunpack.c.l.b16 %v1819
  %v2115 = vunpack.c.l.b16 %v1820
  %v2116 = vunpack.c.l.b16 %v1821
  %v2117 = vunpack.c.l.b16 %v1822
  %v2118 = vunpack.c.l.b16 %v1823
  %v2119 = vunpack.c.l.b16 %v1824
  %v2120 = vunpack.c.l.b16 %v1825
  %v2121 = vunpack.c.l.b16 %v1826
  %v2122 = vunpack.c.l.b16 %v1827
  %v2123 = vunpack.c.l.b16 %v1828
  %v2124 = vunpack.c.l.b16 %v1829
  %v2125 = vunpack.c.l.b16 %v1830
  %v2126 = vunpack.c.l.b16 %v1831
  %v2127 = vunpack.c.l.b16 %v1832
  %v2128 = vunpack.c.l.b16 %v1833
  %v2129 = vunpack.c.l.b16 %v1834
  %v2130 = vunpack.c.l.b16 %v1835
  %v2131 = vunpack.c.l.b16 %v1836
  %v2132 = vunpack.c.l.b16 %v1837
  %v2133 = vunpack.c.l.b16 %v1838
  %v2134 = vunpack.c.l.b16 %v1839
  %v2135 = vunpack.c.l.b16 %v1840
  %v2136 = vunpack.c.l.b16 %v1841
  %v2137 = vunpack.c.l.b16 %v1842
  %v2138 = vunpack.c.l.b16 %v1843
  %v2139 = vunpack.c.l.b16 %v1844
  %v2140 = vunpack.c.l.b16 %v1845
  %v2141 = vunpack.c.l.b16 %v1846
  %v2142 = vpack.c.b16 %v1999, %v1998
  %v2143 = vpack.c.b16 %v2001, %v2000
  %v2144 = vpack.c.b16 %v2003, %v2002
  %v2145 = vpack.c.b16 %v2005, %v2004
  %v2146 = vpack.c.b16 %v2007, %v2006
  %v2147 = vpack.c.b16 %v2009, %v2008
  %v2148 = vpack.c.b16 %v2011, %v2010
  %v2149 = vpack.c.b16 %v2013, %v2012
  %v2150 = vpack.c.b16 %v2015, %v2014
  %v2151 = vpack.c.b16 %v2017, %v2016
  %v2152 = vpack.c.b16 %v2019, %v2018
  %v2153 = vpack.c.b16 %v2021, %v2020
  %v2154 = vpack.c.b16 %v2023, %v2022
  %v2155 = vpack.c.b16 %v2025, %v2024
  %v2156 = vpack.c.b16 %v2027, %v2026
  %v2157 = vpack.c.b16 %v2029, %v2028
  %v2158 = vpack.c.b16 %v2031, %v2030
  %v2159 = vpack.c.b16 %v2033, %v2032
  %v2160 = vpack.c.b16 %v2035, %v2034
  %v2161 = vpack.c.b16 %v2037, %v2036
  %v2162 = vpack.c.b16 %v2039, %v2038
  %v2163 = vpack.c.b16 %v2041, %v2040
  %v2164 = vpack.c.b16 %v2043, %v2042
  %v2165 = vpack.c.b16 %v2045, %v2044
  %v2166 = vpack.c.b16 %v2047, %v2046
  %v2167 = vpack.c.b16 %v2049, %v2048
  %v2168 = vpack.c.b16 %v2051, %v2050
  %v2169 = vpack.c.b16 %v2053, %v2052
  %v2170 = vpack.c.b16 %v2055, %v2054
  %v2171 = vpack.c.b16 %v2057, %v2056
  %v2172 = vpack.c.b16 %v2059, %v2058
  %v2173 = vpack.c.b16 %v2061, %v2060
  %v2174 = vpack.c.b16 %v2063, %v2062
  %v2175 = vpack.c.b16 %v2065, %v2064
  %v2176 = vpack.c.b16 %v2067, %v2066
  %v2177 = vpack.c.b16 %v2069, %v2068
  %v2178 = vpack.c.b16 %v2071, %v2070
  %v2179 = vpack.c.b16 %v2073, %v2072
  %v2180 = vpack.c.b16 %v2075, %v2074
  %v2181 = vpack.c.b16 %v2077, %v2076
  %v2182 = vpack.c.b16 %v2079, %v2078
  %v2183 = vpack.c.b16 %v2081, %v2080
  %v2184 = vpack.c.b16 %v2083, %v2082
  %v2185 = vpack.c.b16 %v2085, %v2084
  %v2186 = vpack.c.b16 %v2087, %v2086
  %v2187 = vpack.c.b16 %v2089, %v2088
  %v2188 = vpack.c.b16 %v2091, %v2090
  %v2189 = vpack.c.b16 %v2093, %v2092
  %v2190 = vpack.c.b16 %v2095, %v2094
  %v2191 = vpack.c.b16 %v2097, %v2096
  %v2192 = vpack.c.b16 %v2099, %v2098
  %v2193 = vpack.c.b16 %v2101, %v2100
  %v2194 = vpack.c.b16 %v2103, %v2102
  %v2195 = vpack.c.b16 %v2105, %v2104
  %v2196 = vpack.c.b16 %v2107, %v2106
  %v2197 = vpack.c.b16 %v2109, %v2108
  %v2198 = vpack.c.b16 %v2111, %v2110
  %v2199 = vpack.c.b16 %v2113, %v2112
  %v2200 = vpack.c.b16 %v2115, %v2114
  %v2201 = vpack.c.b16 %v2117, %v2116
  %v2202 = vpack.c.b16 %v2119, %v2118
  %v2203 = vpack.c.b16 %v2121, %v2120
  %v2204 = vpack.c.b16 %v2123, %v2122
  %v2205 = vpack.c.b16 %v2125, %v2124
  %v2206 = vpack.c.b16 %v2127, %v2126
  %v2207 = vpack.c.b16 %v2129, %v2128
  %v2208 = vpack.c.b16 %v2131, %v2130
  %v2209 = vpack.c.b16 %v2133, %v2132
  %v2210 = vpack.c.b16 %v2135, %v2134
  %v2211 = vpack.c.b16 %v2137, %v2136
  %v2212 = vpack.c.b16 %v2139, %v2138
  %v2213 = vpack.c.b16 %v2141, %v2140
  %2286 = vmatprep.subr.bf16.mxu0 0
  %2287 = vmatpush1.bf16.msra.mxu0 %v2142
  %2288 = vmatprep.subr.bf16.mxu0 0
  %2289 = vmatpush1.bf16.msra.mxu0 %v2143
  %2290 = vmatprep.subr.bf16.mxu0 0
  %2291 = vmatpush1.bf16.msra.mxu0 %v2144
  %2292 = vmatprep.subr.bf16.mxu0 0
  %2293 = vmatpush1.bf16.msra.mxu0 %v2145
  %2294 = vmatprep.subr.bf16.mxu0 0
  %2295 = vmatpush1.bf16.msra.mxu0 %v2146
  %2296 = vmatprep.subr.bf16.mxu0 0
  %2297 = vmatpush1.bf16.msra.mxu0 %v2147
  %2298 = vmatprep.subr.bf16.mxu0 0
  %2299 = vmatpush1.bf16.msra.mxu0 %v2148
  %2300 = vmatprep.subr.bf16.mxu0 0
  %2301 = vmatpush1.bf16.msra.mxu0 %v2149
  %2302 = vmatprep.subr.bf16.mxu0 0
  %2303 = vmatpush1.bf16.msra.mxu0 %v2150
  %2304 = vmatprep.subr.bf16.mxu0 0
  %2305 = vmatpush1.bf16.msra.mxu0 %v2151
  %2306 = vmatprep.subr.bf16.mxu0 0
  %2307 = vmatpush1.bf16.msra.mxu0 %v2152
  %2308 = vmatprep.subr.bf16.mxu0 0
  %2309 = vmatpush1.bf16.msra.mxu0 %v2153
  %2310 = vmatprep.subr.bf16.mxu0 0
  %2311 = vmatpush1.bf16.msra.mxu0 %v2154
  %2312 = vmatprep.subr.bf16.mxu0 0
  %2313 = vmatpush1.bf16.msra.mxu0 %v2155
  %2314 = vmatprep.subr.bf16.mxu0 0
  %2315 = vmatpush1.bf16.msra.mxu0 %v2156
  %2316 = vmatprep.subr.bf16.mxu0 0
  %2317 = vmatpush1.bf16.msra.mxu0 %v2157
  %2318 = vmatprep.mubr.bf16.mxu0 %v1632
  %2319 = vmatmul.mubr.bf16.gmra.mrb[0].mxu0 %v1631
  %v2320 = vpop.f32.mrb[0].mxu0
  %v2321 = vadd.f32 %v1852, %v2320
  %v2322 = vpop.f32.mrb[0].mxu0
  %v2323 = vpop.f32.mrb[0].mxu0
  %v2324 = vadd.f32 %v1852, %v2323
  %v2325 = vpop.f32.mrb[0].mxu0
  %2326 = vmatprep.mubr.bf16.mxu0 %v1641
  %2327 = vmatmul.mubr.bf16.gmra.mrb[0].mxu0 %v1640
  %v2328 = vpop.f32.mrb[0].mxu0
  %v2329 = vadd.f32 %v1852, %v2328
  %v2330 = vpop.f32.mrb[0].mxu0
  %v2331 = vpop.f32.mrb[0].mxu0
  %v2332 = vadd.f32 %v1852, %v2331
  %v2333 = vpop.f32.mrb[0].mxu0
  %2334 = vmatprep.mubr.bf16.mxu0 %v1650
  %2335 = vmatmul.mubr.bf16.gmra.mrb[0].mxu0 %v1649
  %v2336 = vpop.f32.mrb[0].mxu0
  %v2337 = vadd.f32 %v1852, %v2336
  %v2338 = vpop.f32.mrb[0].mxu0
  %v2339 = vpop.f32.mrb[0].mxu0
  %v2340 = vadd.f32 %v1852, %v2339
  %v2341 = vpop.f32.mrb[0].mxu0
  %2342 = vmatprep.mubr.bf16.mxu0 %v1659
  %2343 = vmatmul.mubr.bf16.gmra.mrb[0].mxu0 %v1658
  %v2344 = vpop.f32.mrb[0].mxu0
  %v2345 = vadd.f32 %v1852, %v2344
  %v2346 = vpop.f32.mrb[0].mxu0
  %v2347 = vpop.f32.mrb[0].mxu0
  %v2348 = vadd.f32 %v1852, %v2347
  %v2349 = vpop.f32.mrb[0].mxu0
  %2350 = vmatprep.mubr.bf16.mxu0 %v1668
  %2351 = vmatmul.mubr.bf16.gmra.mrb[0].mxu0 %v1667
  %v2352 = vpop.f32.mrb[0].mxu0
  %v2353 = vadd.f32 %v1852, %v2352
  %v2354 = vpop.f32.mrb[0].mxu0
  %v2355 = vpop.f32.mrb[0].mxu0
  %v2356 = vadd.f32 %v1852, %v2355
  %v2357 = vpop.f32.mrb[0].mxu0
  %2358 = vmatprep.mubr.bf16.mxu0 %v1677
  %2359 = vmatmul.mubr.bf16.gmra.mrb[0].mxu0 %v1676
  %v2360 = vpop.f32.mrb[0].mxu0
  %v2361 = vadd.f32 %v1852, %v2360
  %v2362 = vpop.f32.mrb[0].mxu0
  %v2363 = vpop.f32.mrb[0].mxu0
  %v2364 = vadd.f32 %v1852, %v2363
  %v2365 = vpop.f32.mrb[0].mxu0
  %2366 = vmatprep.mubr.bf16.mxu0 %v1686
  %2367 = vmatmul.mubr.bf16.gmra.mrb[0].mxu0 %v1685
  %v2368 = vpop.f32.mrb[0].mxu0
  %v2369 = vadd.f32 %v1852, %v2368
  %v2370 = vpop.f32.mrb[0].mxu0
  %v2371 = vpop.f32.mrb[0].mxu0
  %v2372 = vadd.f32 %v1852, %v2371
  %v2373 = vpop.f32.mrb[0].mxu0
  %2374 = vmatprep.mubr.bf16.mxu0 %v1695
  %2375 = vmatmul.mubr.bf16.gmra.mrb[0].mxu0 %v1694
  %v2376 = vpop.f32.mrb[0].mxu0
  %v2377 = vadd.f32 %v1852, %v2376
  %v2378 = vpop.f32.mrb[0].mxu0
  %v2379 = vpop.f32.mrb[0].mxu0
  %v2380 = vadd.f32 %v1852, %v2379
  %v2381 = vpop.f32.mrb[0].mxu0
  %2382 = vdwg.mxu0
  %2383 = vmatprep.subr.bf16.mxu0 0
  %2384 = vmatpush1.bf16.msra.mxu0 %v2158
  %2385 = vmatprep.subr.bf16.mxu0 0
  %2386 = vmatpush1.bf16.msra.mxu0 %v2159
  %2387 = vmatprep.subr.bf16.mxu0 0
  %2388 = vmatpush1.bf16.msra.mxu0 %v2160
  %2389 = vmatprep.subr.bf16.mxu0 0
  %2390 = vmatpush1.bf16.msra.mxu0 %v2161
  %2391 = vmatprep.subr.bf16.mxu0 0
  %2392 = vmatpush1.bf16.msra.mxu0 %v2162
  %2393 = vmatprep.subr.bf16.mxu0 0
  %2394 = vmatpush1.bf16.msra.mxu0 %v2163
  %2395 = vmatprep.subr.bf16.mxu0 0
  %2396 = vmatpush1.bf16.msra.mxu0 %v2164
  %2397 = vmatprep.subr.bf16.mxu0 0
  %2398 = vmatpush1.bf16.msra.mxu0 %v2165
  %2399 = vmatprep.subr.bf16.mxu0 0
  %2400 = vmatpush1.bf16.msra.mxu0 %v2166
  %2401 = vmatprep.subr.bf16.mxu0 0
  %2402 = vmatpush1.bf16.msra.mxu0 %v2167
  %2403 = vmatprep.subr.bf16.mxu0 0
  %2404 = vmatpush1.bf16.msra.mxu0 %v2168
  %2405 = vmatprep.subr.bf16.mxu0 0
  %2406 = vmatpush1.bf16.msra.mxu0 %v2169
  %2407 = vmatprep.subr.bf16.mxu0 0
  %2408 = vmatpush1.bf16.msra.mxu0 %v2170
  %2409 = vmatprep.subr.bf16.mxu0 0
  %2410 = vmatpush1.bf16.msra.mxu0 %v2171
  %2411 = vmatprep.subr.bf16.mxu0 0
  %2412 = vmatpush1.bf16.msra.mxu0 %v2172
  %2413 = vmatprep.subr.bf16.mxu0 0
  %2414 = vmatpush1.bf16.msra.mxu0 %v2173
  %2415 = vmatprep.mubr.bf16.mxu0 %v1634
  %2416 = vmatmul.mubr.bf16.gmra.mrb[0].mxu0 %v1633
  %v2417 = vpop.f32.mrb[0].mxu0
  %v2418 = vadd.f32 %v2321, %v2417
  %v2419 = vpop.f32.mrb[0].mxu0
  %v2420 = vpop.f32.mrb[0].mxu0
  %v2421 = vadd.f32 %v2324, %v2420
  %v2422 = vpop.f32.mrb[0].mxu0
  %2423 = vmatprep.mubr.bf16.mxu0 %v1643
  %2424 = vmatmul.mubr.bf16.gmra.mrb[0].mxu0 %v1642
  %v2425 = vpop.f32.mrb[0].mxu0
  %v2426 = vadd.f32 %v2329, %v2425
  %v2427 = vpop.f32.mrb[0].mxu0
  %v2428 = vpop.f32.mrb[0].mxu0
  %v2429 = vadd.f32 %v2332, %v2428
  %v2430 = vpop.f32.mrb[0].mxu0
  %2431 = vmatprep.mubr.bf16.mxu0 %v1652
  %2432 = vmatmul.mubr.bf16.gmra.mrb[0].mxu0 %v1651
  %v2433 = vpop.f32.mrb[0].mxu0
  %v2434 = vadd.f32 %v2337, %v2433
  %v2435 = vpop.f32.mrb[0].mxu0
  %v2436 = vpop.f32.mrb[0].mxu0
  %v2437 = vadd.f32 %v2340, %v2436
  %v2438 = vpop.f32.mrb[0].mxu0
  %2439 = vmatprep.mubr.bf16.mxu0 %v1661
  %2440 = vmatmul.mubr.bf16.gmra.mrb[0].mxu0 %v1660
  %v2441 = vpop.f32.mrb[0].mxu0
  %v2442 = vadd.f32 %v2345, %v2441
  %v2443 = vpop.f32.mrb[0].mxu0
  %v2444 = vpop.f32.mrb[0].mxu0
  %v2445 = vadd.f32 %v2348, %v2444
  %v2446 = vpop.f32.mrb[0].mxu0
  %2447 = vmatprep.mubr.bf16.mxu0 %v1670
  %2448 = vmatmul.mubr.bf16.gmra.mrb[0].mxu0 %v1669
  %v2449 = vpop.f32.mrb[0].mxu0
  %v2450 = vadd.f32 %v2353, %v2449
  %v2451 = vpop.f32.mrb[0].mxu0
  %v2452 = vpop.f32.mrb[0].mxu0
  %v2453 = vadd.f32 %v2356, %v2452
  %v2454 = vpop.f32.mrb[0].mxu0
  %2455 = vmatprep.mubr.bf16.mxu0 %v1679
  %2456 = vmatmul.mubr.bf16.gmra.mrb[0].mxu0 %v1678
  %v2457 = vpop.f32.mrb[0].mxu0
  %v2458 = vadd.f32 %v2361, %v2457
  %v2459 = vpop.f32.mrb[0].mxu0
  %v2460 = vpop.f32.mrb[0].mxu0
  %v2461 = vadd.f32 %v2364, %v2460
  %v2462 = vpop.f32.mrb[0].mxu0
  %2463 = vmatprep.mubr.bf16.mxu0 %v1688
  %2464 = vmatmul.mubr.bf16.gmra.mrb[0].mxu0 %v1687
  %v2465 = vpop.f32.mrb[0].mxu0
  %v2466 = vadd.f32 %v2369, %v2465
  %v2467 = vpop.f32.mrb[0].mxu0
  %v2468 = vpop.f32.mrb[0].mxu0
  %v2469 = vadd.f32 %v2372, %v2468
  %v2470 = vpop.f32.mrb[0].mxu0
  %2471 = vmatprep.mubr.bf16.mxu0 %v1697
  %2472 = vmatmul.mubr.bf16.gmra.mrb[0].mxu0 %v1696
  %v2473 = vpop.f32.mrb[0].mxu0
  %v2474 = vadd.f32 %v2377, %v2473
  %v2475 = vpop.f32.mrb[0].mxu0
  %v2476 = vpop.f32.mrb[0].mxu0
  %v2477 = vadd.f32 %v2380, %v2476
  %v2478 = vpop.f32.mrb[0].mxu0
  %2479 = vdwg.mxu0
  %2480 = vmatprep.subr.bf16.mxu0 0
  %2481 = vmatpush1.bf16.msra.mxu0 %v2174
  %2482 = vmatprep.subr.bf16.mxu0 0
  %2483 = vmatpush1.bf16.msra.mxu0 %v2175
  %2484 = vmatprep.subr.bf16.mxu0 0
  %2485 = vmatpush1.bf16.msra.mxu0 %v2176
  %2486 = vmatprep.subr.bf16.mxu0 0
  %2487 = vmatpush1.bf16.msra.mxu0 %v2177
  %2488 = vmatprep.subr.bf16.mxu0 0
  %2489 = vmatpush1.bf16.msra.mxu0 %v2178
  %2490 = vmatprep.subr.bf16.mxu0 0
  %2491 = vmatpush1.bf16.msra.mxu0 %v2179
  %2492 = vmatprep.subr.bf16.mxu0 0
  %2493 = vmatpush1.bf16.msra.mxu0 %v2180
  %2494 = vmatprep.subr.bf16.mxu0 0
  %2495 = vmatpush1.bf16.msra.mxu0 %v2181
  %2496 = vmatprep.subr.bf16.mxu0 0
  %2497 = vmatpush1.bf16.msra.mxu0 %v2182
  %2498 = vmatprep.subr.bf16.mxu0 0
  %2499 = vmatpush1.bf16.msra.mxu0 %v2183
  %2500 = vmatprep.subr.bf16.mxu0 0
  %2501 = vmatpush1.bf16.msra.mxu0 %v2184
  %2502 = vmatprep.subr.bf16.mxu0 0
  %2503 = vmatpush1.bf16.msra.mxu0 %v2185
  %2504 = vmatprep.subr.bf16.mxu0 0
  %2505 = vmatpush1.bf16.msra.mxu0 %v2186
  %2506 = vmatprep.subr.bf16.mxu0 0
  %2507 = vmatpush1.bf16.msra.mxu0 %v2187
  %2508 = vmatprep.subr.bf16.mxu0 0
  %2509 = vmatpush1.bf16.msra.mxu0 %v2188
  %2510 = vmatprep.subr.bf16.mxu0 0
  %2511 = vmatpush1.bf16.msra.mxu0 %v2189
  %2512 = vmatprep.mubr.bf16.mxu0 %v1636
  %2513 = vmatmul.mubr.bf16.gmra.mrb[0].mxu0 %v1635
  %v2514 = vpop.f32.mrb[0].mxu0
  %v2515 = vadd.f32 %v2418, %v2514
  %v2516 = vpop.f32.mrb[0].mxu0
  %v2517 = vpop.f32.mrb[0].mxu0
  %v2518 = vadd.f32 %v2421, %v2517
  %v2519 = vpop.f32.mrb[0].mxu0
  %2520 = vmatprep.mubr.bf16.mxu0 %v1645
  %2521 = vmatmul.mubr.bf16.gmra.mrb[0].mxu0 %v1644
  %v2522 = vpop.f32.mrb[0].mxu0
  %v2523 = vadd.f32 %v2426, %v2522
  %v2524 = vpop.f32.mrb[0].mxu0
  %v2525 = vpop.f32.mrb[0].mxu0
  %v2526 = vadd.f32 %v2429, %v2525
  %v2527 = vpop.f32.mrb[0].mxu0
  %2528 = vmatprep.mubr.bf16.mxu0 %v1654
  %2529 = vmatmul.mubr.bf16.gmra.mrb[0].mxu0 %v1653
  %v2530 = vpop.f32.mrb[0].mxu0
  %v2531 = vadd.f32 %v2434, %v2530
  %v2532 = vpop.f32.mrb[0].mxu0
  %v2533 = vpop.f32.mrb[0].mxu0
  %v2534 = vadd.f32 %v2437, %v2533
  %v2535 = vpop.f32.mrb[0].mxu0
  %2536 = vmatprep.mubr.bf16.mxu0 %v1663
  %2537 = vmatmul.mubr.bf16.gmra.mrb[0].mxu0 %v1662
  %v2538 = vpop.f32.mrb[0].mxu0
  %v2539 = vadd.f32 %v2442, %v2538
  %v2540 = vpop.f32.mrb[0].mxu0
  %v2541 = vpop.f32.mrb[0].mxu0
  %v2542 = vadd.f32 %v2445, %v2541
  %v2543 = vpop.f32.mrb[0].mxu0
  %2544 = vmatprep.mubr.bf16.mxu0 %v1672
  %2545 = vmatmul.mubr.bf16.gmra.mrb[0].mxu0 %v1671
  %v2546 = vpop.f32.mrb[0].mxu0
  %v2547 = vadd.f32 %v2450, %v2546
  %v2548 = vpop.f32.mrb[0].mxu0
  %v2549 = vpop.f32.mrb[0].mxu0
  %v2550 = vadd.f32 %v2453, %v2549
  %v2551 = vpop.f32.mrb[0].mxu0
  %2552 = vmatprep.mubr.bf16.mxu0 %v1681
  %2553 = vmatmul.mubr.bf16.gmra.mrb[0].mxu0 %v1680
  %v2554 = vpop.f32.mrb[0].mxu0
  %v2555 = vadd.f32 %v2458, %v2554
  %v2556 = vpop.f32.mrb[0].mxu0
  %v2557 = vpop.f32.mrb[0].mxu0
  %v2558 = vadd.f32 %v2461, %v2557
  %v2559 = vpop.f32.mrb[0].mxu0
  %2560 = vmatprep.mubr.bf16.mxu0 %v1690
  %2561 = vmatmul.mubr.bf16.gmra.mrb[0].mxu0 %v1689
  %v2562 = vpop.f32.mrb[0].mxu0
  %v2563 = vadd.f32 %v2466, %v2562
  %v2564 = vpop.f32.mrb[0].mxu0
  %v2565 = vpop.f32.mrb[0].mxu0
  %v2566 = vadd.f32 %v2469, %v2565
  %v2567 = vpop.f32.mrb[0].mxu0
  %2568 = vmatprep.mubr.bf16.mxu0 %v1699
  %2569 = vmatmul.mubr.bf16.gmra.mrb[0].mxu0 %v1698
  %v2570 = vpop.f32.mrb[0].mxu0
  %v2571 = vadd.f32 %v2474, %v2570
  %v2572 = vpop.f32.mrb[0].mxu0
  %v2573 = vpop.f32.mrb[0].mxu0
  %v2574 = vadd.f32 %v2477, %v2573
  %v2575 = vpop.f32.mrb[0].mxu0
  %2576 = vdwg.mxu0
  %2577 = vmatprep.subr.bf16.mxu0 0
  %2578 = vmatpush1.bf16.msra.mxu0 %v2190
  %2579 = vmatprep.subr.bf16.mxu0 0
  %2580 = vmatpush1.bf16.msra.mxu0 %v2191
  %2581 = vmatprep.subr.bf16.mxu0 0
  %2582 = vmatpush1.bf16.msra.mxu0 %v2192
  %2583 = vmatprep.subr.bf16.mxu0 0
  %2584 = vmatpush1.bf16.msra.mxu0 %v2193
  %2585 = vmatprep.subr.bf16.mxu0 0
  %2586 = vmatpush1.bf16.msra.mxu0 %v2194
  %2587 = vmatprep.subr.bf16.mxu0 0
  %2588 = vmatpush1.bf16.msra.mxu0 %v2195
  %2589 = vmatprep.subr.bf16.mxu0 0
  %2590 = vmatpush1.bf16.msra.mxu0 %v2196
  %2591 = vmatprep.subr.bf16.mxu0 0
  %2592 = vmatpush1.bf16.msra.mxu0 %v2197
  %2593 = vmatprep.subr.bf16.mxu0 0
  %2594 = vmatpush1.bf16.msra.mxu0 %v2198
  %2595 = vmatprep.subr.bf16.mxu0 0
  %2596 = vmatpush1.bf16.msra.mxu0 %v2199
  %2597 = vmatprep.subr.bf16.mxu0 0
  %2598 = vmatpush1.bf16.msra.mxu0 %v2200
  %2599 = vmatprep.subr.bf16.mxu0 0
  %2600 = vmatpush1.bf16.msra.mxu0 %v2201
  %2601 = vmatprep.subr.bf16.mxu0 0
  %2602 = vmatpush1.bf16.msra.mxu0 %v2202
  %2603 = vmatprep.subr.bf16.mxu0 0
  %2604 = vmatpush1.bf16.msra.mxu0 %v2203
  %2605 = vmatprep.subr.bf16.mxu0 0
  %2606 = vmatpush1.bf16.msra.mxu0 %v2204
  %2607 = vmatprep.subr.bf16.mxu0 0
  %2608 = vmatpush1.bf16.msra.mxu0 %v2205
  %2609 = vmatprep.mubr.bf16.mxu0 %v1638
  %2610 = vmatmul.mubr.bf16.gmra.mrb[0].mxu0 %v1637
  %v2611 = vpop.f32.mrb[0].mxu0
  %v2612 = vadd.f32 %v2515, %v2611
  %v2613 = vpop.f32.mrb[0].mxu0
  %v2614 = vpop.f32.mrb[0].mxu0
  %v2615 = vadd.f32 %v2518, %v2614
  %v2616 = vpop.f32.mrb[0].mxu0
  %2617 = vmatprep.mubr.bf16.mxu0 %v1647
  %2618 = vmatmul.mubr.bf16.gmra.mrb[0].mxu0 %v1646
  %v2619 = vpop.f32.mrb[0].mxu0
  %v2620 = vadd.f32 %v2523, %v2619
  %v2621 = vpop.f32.mrb[0].mxu0
  %v2622 = vpop.f32.mrb[0].mxu0
  %v2623 = vadd.f32 %v2526, %v2622
  %v2624 = vpop.f32.mrb[0].mxu0
  %2625 = vmatprep.mubr.bf16.mxu0 %v1656
  %2626 = vmatmul.mubr.bf16.gmra.mrb[0].mxu0 %v1655
  %v2627 = vpop.f32.mrb[0].mxu0
  %v2628 = vadd.f32 %v2531, %v2627
  %v2629 = vpop.f32.mrb[0].mxu0
  %v2630 = vpop.f32.mrb[0].mxu0
  %v2631 = vadd.f32 %v2534, %v2630
  %v2632 = vpop.f32.mrb[0].mxu0
  %2633 = vmatprep.mubr.bf16.mxu0 %v1665
  %2634 = vmatmul.mubr.bf16.gmra.mrb[0].mxu0 %v1664
  %v2635 = vpop.f32.mrb[0].mxu0
  %v2636 = vadd.f32 %v2539, %v2635
  %v2637 = vpop.f32.mrb[0].mxu0
  %v2638 = vpop.f32.mrb[0].mxu0
  %v2639 = vadd.f32 %v2542, %v2638
  %v2640 = vpop.f32.mrb[0].mxu0
  %2641 = vmatprep.mubr.bf16.mxu0 %v1674
  %2642 = vmatmul.mubr.bf16.gmra.mrb[0].mxu0 %v1673
  %v2643 = vpop.f32.mrb[0].mxu0
  %v2644 = vadd.f32 %v2547, %v2643
  %v2645 = vpop.f32.mrb[0].mxu0
  %v2646 = vpop.f32.mrb[0].mxu0
  %v2647 = vadd.f32 %v2550, %v2646
  %v2648 = vpop.f32.mrb[0].mxu0
  %2649 = vmatprep.mubr.bf16.mxu0 %v1683
  %2650 = vmatmul.mubr.bf16.gmra.mrb[0].mxu0 %v1682
  %v2651 = vpop.f32.mrb[0].mxu0
  %v2652 = vadd.f32 %v2555, %v2651
  %v2653 = vpop.f32.mrb[0].mxu0
  %v2654 = vpop.f32.mrb[0].mxu0
  %v2655 = vadd.f32 %v2558, %v2654
  %v2656 = vpop.f32.mrb[0].mxu0
  %2657 = vmatprep.mubr.bf16.mxu0 %v1692
  %2658 = vmatmul.mubr.bf16.gmra.mrb[0].mxu0 %v1691
  %v2659 = vpop.f32.mrb[0].mxu0
  %v2660 = vadd.f32 %v2563, %v2659
  %v2661 = vpop.f32.mrb[0].mxu0
  %v2662 = vpop.f32.mrb[0].mxu0
  %v2663 = vadd.f32 %v2566, %v2662
  %v2664 = vpop.f32.mrb[0].mxu0
  %2665 = vmatprep.mubr.bf16.mxu0 %v1701
  %2666 = vmatmul.mubr.bf16.gmra.mrb[0].mxu0 %v1700
  %v2667 = vpop.f32.mrb[0].mxu0
  %v2668 = vadd.f32 %v2571, %v2667
  %v2669 = vpop.f32.mrb[0].mxu0
  %v2670 = vpop.f32.mrb[0].mxu0
  %v2671 = vadd.f32 %v2574, %v2670
  %v2672 = vpop.f32.mrb[0].mxu0
  %2673 = vdwg.mxu0
  %2674 = vmatprep.subr.bf16.mxu0 0
  %2675 = vmatpush1.bf16.msra.mxu0 %v2206
  %2676 = vmatprep.subr.bf16.mxu0 0
  %2677 = vmatpush1.bf16.msra.mxu0 %v2207
  %2678 = vmatprep.subr.bf16.mxu0 0
  %2679 = vmatpush1.bf16.msra.mxu0 %v2208
  %2680 = vmatprep.subr.bf16.mxu0 0
  %2681 = vmatpush1.bf16.msra.mxu0 %v2209
  %2682 = vmatprep.subr.bf16.mxu0 0
  %2683 = vmatpush1.bf16.msra.mxu0 %v2210
  %2684 = vmatprep.subr.bf16.mxu0 0
  %2685 = vmatpush1.bf16.msra.mxu0 %v2211
  %2686 = vmatprep.subr.bf16.mxu0 0
  %2687 = vmatpush1.bf16.msra.mxu0 %v2212
  %2688 = vmatprep.subr.bf16.mxu0 0
  %2689 = vmatpush1.bf16.msra.mxu0 %v2213
  %2690 = vmatprep.subr.bf16.mxu0 0
  %2691 = vmatpush1.bf16.msra.mxu0 0
  %2692 = vmatprep.subr.bf16.mxu0 0
  %2693 = vmatpush1.bf16.msra.mxu0 0
  %2694 = vmatprep.subr.bf16.mxu0 0
  %2695 = vmatpush1.bf16.msra.mxu0 0
  %2696 = vmatprep.subr.bf16.mxu0 0
  %2697 = vmatpush1.bf16.msra.mxu0 0
  %2698 = vmatprep.subr.bf16.mxu0 0
  %2699 = vmatpush1.bf16.msra.mxu0 0
  %2700 = vmatprep.subr.bf16.mxu0 0
  %2701 = vmatpush1.bf16.msra.mxu0 0
  %2702 = vmatprep.subr.bf16.mxu0 0
  %2703 = vmatpush1.bf16.msra.mxu0 0
  %2704 = vmatprep.subr.bf16.mxu0 0
  %2705 = vmatpush1.bf16.msra.mxu0 0
  %2706 = vmatprep.mubr.bf16.mxu0 0
  %2707 = vmatmul.mubr.bf16.gmra.mrb[0].mxu0 %v1639
  %v2708 = vpop.f32.mrb[0].mxu0
  %v2709 = vadd.f32 %v2612, %v2708
  %v2710 = vpop.f32.mrb[0].mxu0
  %v2711 = vpop.f32.mrb[0].mxu0
  %v2712 = vadd.f32 %v2615, %v2711
  %v2713 = vpop.f32.mrb[0].mxu0
  %2714 = vmatprep.mubr.bf16.mxu0 0
  %2715 = vmatmul.mubr.bf16.gmra.mrb[0].mxu0 %v1648
  %v2716 = vpop.f32.mrb[0].mxu0
  %v2717 = vadd.f32 %v2620, %v2716
  %v2718 = vpop.f32.mrb[0].mxu0
  %v2719 = vpop.f32.mrb[0].mxu0
  %v2720 = vadd.f32 %v2623, %v2719
  %v2721 = vpop.f32.mrb[0].mxu0
  %2722 = vmatprep.mubr.bf16.mxu0 0
  %2723 = vmatmul.mubr.bf16.gmra.mrb[0].mxu0 %v1657
  %v2724 = vpop.f32.mrb[0].mxu0
  %v2725 = vadd.f32 %v2628, %v2724
  %v2726 = vpop.f32.mrb[0].mxu0
  %v2727 = vpop.f32.mrb[0].mxu0
  %v2728 = vadd.f32 %v2631, %v2727
  %v2729 = vpop.f32.mrb[0].mxu0
  %2730 = vmatprep.mubr.bf16.mxu0 0
  %2731 = vmatmul.mubr.bf16.gmra.mrb[0].mxu0 %v1666
  %v2732 = vpop.f32.mrb[0].mxu0
  %v2733 = vadd.f32 %v2636, %v2732
  %v2734 = vpop.f32.mrb[0].mxu0
  %v2735 = vpop.f32.mrb[0].mxu0
  %v2736 = vadd.f32 %v2639, %v2735
  %v2737 = vpop.f32.mrb[0].mxu0
  %2738 = vmatprep.mubr.bf16.mxu0 0
  %2739 = vmatmul.mubr.bf16.gmra.mrb[0].mxu0 %v1675
  %v2740 = vpop.f32.mrb[0].mxu0
  %v2741 = vadd.f32 %v2644, %v2740
  %v2742 = vpop.f32.mrb[0].mxu0
  %v2743 = vpop.f32.mrb[0].mxu0
  %v2744 = vadd.f32 %v2647, %v2743
  %v2745 = vpop.f32.mrb[0].mxu0
  %2746 = vmatprep.mubr.bf16.mxu0 0
  %2747 = vmatmul.mubr.bf16.gmra.mrb[0].mxu0 %v1684
  %v2748 = vpop.f32.mrb[0].mxu0
  %v2749 = vadd.f32 %v2652, %v2748
  %v2750 = vpop.f32.mrb[0].mxu0
  %v2751 = vpop.f32.mrb[0].mxu0
  %v2752 = vadd.f32 %v2655, %v2751
  %v2753 = vpop.f32.mrb[0].mxu0
  %2754 = vmatprep.mubr.bf16.mxu0 0
  %2755 = vmatmul.mubr.bf16.gmra.mrb[0].mxu0 %v1693
  %v2756 = vpop.f32.mrb[0].mxu0
  %v2757 = vadd.f32 %v2660, %v2756
  %v2758 = vpop.f32.mrb[0].mxu0
  %v2759 = vpop.f32.mrb[0].mxu0
  %v2760 = vadd.f32 %v2663, %v2759
  %v2761 = vpop.f32.mrb[0].mxu0
  %2762 = vmatprep.mubr.bf16.mxu0 0
  %2763 = vmatmul.mubr.bf16.gmra.mrb[0].mxu0 %v1702
  %v2764 = vpop.f32.mrb[0].mxu0
  %v2765 = vadd.f32 %v2668, %v2764
  %v2766 = vpop.f32.mrb[0].mxu0
  %v2767 = vpop.f32.mrb[0].mxu0
  %v2768 = vadd.f32 %v2671, %v2767
  %v2769 = vpop.f32.mrb[0].mxu0
  %2770 = vdwg.mxu0
  %v2771 = vmax.f32 %v2709, 0.0
  %v2772 = vmax.f32 %v2712, 0.0
  %v2773 = vmax.f32 %v2717, 0.0
  %v2774 = vmax.f32 %v2720, 0.0
  %v2775 = vmax.f32 %v2725, 0.0
  %v2776 = vmax.f32 %v2728, 0.0
  %v2777 = vmax.f32 %v2733, 0.0
  %v2778 = vmax.f32 %v2736, 0.0
  %v2779 = vmax.f32 %v2741, 0.0
  %v2780 = vmax.f32 %v2744, 0.0
  %v2781 = vmax.f32 %v2749, 0.0
  %v2782 = vmax.f32 %v2752, 0.0
  %v2783 = vmax.f32 %v2757, 0.0
  %v2784 = vmax.f32 %v2760, 0.0
  %v2785 = vmax.f32 %v2765, 0.0
  %v2786 = vmax.f32 %v2768, 0.0
  %v2787 = vpack.c.bf16 %v2772, %v2771
  %v2788 = vpack.c.bf16 %v2774, %v2773
  %v2789 = vpack.c.bf16 %v2776, %v2775
  %v2790 = vpack.c.bf16 %v2778, %v2777
  %v2791 = vpack.c.bf16 %v2780, %v2779
  %v2792 = vpack.c.bf16 %v2782, %v2781
  %v2793 = vpack.c.bf16 %v2784, %v2783
  %v2794 = vpack.c.bf16 %v2786, %v2785
  %v2803 = vunpack.c.l.b16 %v2787
  %v2804 = vunpack.c.h.b16 %v2787
  %v2805 = vunpack.c.l.b16 %v2788
  %v2806 = vunpack.c.h.b16 %v2788
  %v2807 = vunpack.c.l.b16 %v2789
  %v2808 = vunpack.c.h.b16 %v2789
  %v2809 = vunpack.c.l.b16 %v2790
  %v2810 = vunpack.c.h.b16 %v2790
  %v2811 = vunpack.c.l.b16 %v2791
  %v2812 = vunpack.c.h.b16 %v2791
  %v2813 = vunpack.c.l.b16 %v2792
  %v2814 = vunpack.c.h.b16 %v2792
  %v2815 = vunpack.c.l.b16 %v2793
  %v2816 = vunpack.c.h.b16 %v2793
  %v2817 = vunpack.c.l.b16 %v2794
  %v2818 = vunpack.c.h.b16 %v2794
  %v2819 = vpack.c.b16 %v2803, %v2803
  %v2820 = vpack.c.b16 %v2804, %v2804
  %v2821 = vpack.c.b16 %v2805, %v2805
  %v2822 = vpack.c.b16 %v2806, %v2806
  %v2823 = vpack.c.b16 %v2807, %v2807
  %v2824 = vpack.c.b16 %v2808, %v2808
  %v2825 = vpack.c.b16 %v2809, %v2809
  %v2826 = vpack.c.b16 %v2810, %v2810
  %v2827 = vpack.c.b16 %v2811, %v2811
  %v2828 = vpack.c.b16 %v2812, %v2812
  %v2829 = vpack.c.b16 %v2813, %v2813
  %v2830 = vpack.c.b16 %v2814, %v2814
  %v2831 = vpack.c.b16 %v2815, %v2815
  %v2832 = vpack.c.b16 %v2816, %v2816
  %v2833 = vpack.c.b16 %v2817, %v2817
  %v2834 = vpack.c.b16 %v2818, %v2818
  %2851 = vst [vmem:[%s3] sm:$0xf] %v2819
  %2852 = vst [vmem:[%s3 + $0x4] sm:$0xf] %v2820
  %2853 = vst [vmem:[%s3 + $0x8] sm:$0xf] %v2821
  %2854 = vst [vmem:[%s3 + $0xc] sm:$0xf] %v2822
  %2855 = vst [vmem:[%s3 + $0x10] sm:$0xf] %v2823
  %2856 = vst [vmem:[%s3 + $0x14] sm:$0xf] %v2824
  %2857 = vst [vmem:[%s3 + $0x18] sm:$0xf] %v2825
  %2858 = vst [vmem:[%s3 + $0x1c] sm:$0xf] %v2826
  %2859 = vst [vmem:[%s3 + $0x20] sm:$0xf] %v2827
  %2860 = vst [vmem:[%s3 + $0x24] sm:$0xf] %v2828
  %2861 = vst [vmem:[%s3 + $0x28] sm:$0xf] %v2829
  %2862 = vst [vmem:[%s3 + $0x2c] sm:$0xf] %v2830
  %2863 = vst [vmem:[%s3 + $0x30] sm:$0xf] %v2831
  %2864 = vst [vmem:[%s3 + $0x34] sm:$0xf] %v2832
  %2865 = vst [vmem:[%s3 + $0x38] sm:$0xf] %v2833
  %2866 = vst [vmem:[%s3 + $0x3c] sm:$0xf] %v2834
  // Predicated region
  $region14: #{_lambda_.6} parent=0 // pred_check
    _
  $region15: #{_lambda_.6} parent=0 // pred_check_branch
    %2868 = sbr.rel (0) target = $region17
  $region16: #{_lambda_.6} parent=0 // pred_region
    _
  $region17: #{_lambda_.6} parent=0 // pred_fallthru
    _
  // Predicated region
  $region18: #{_lambda_.6} parent=0 // pred_check
    _
  $region19: #{_lambda_.6} parent=0 // pred_check_branch
    %2870 = sbr.rel (0) target = $region21
  $region20: #{_lambda_.6} parent=0 // pred_region
    _
  $region21: #{_lambda_.6} parent=0 // pred_fallthru
    _

// kernel: _lambda_.4
$region0: #{_lambda_.4}
  #allocation0 [shape = 'u32[]', space=smem, size = 0x4, offset = 0x4, fixed_abs, tag = 'smem constant byte address 0x4 - core index']
  #allocation1 [shape = 'u32[144,128]{1,0:T(1,128)}', space=vmem, size = 0x12000, scoped, tag = 'internal scratch']
  #allocation2 [shape = 'bf16[128,1152]{1,0:T(16,128)(2,1)}', space=vmem, size = 0x48000, scoped, tag = 'scratch operand']
  %s0 = inlined_call_operand.vmem [shape: bf16[2,9,9,128], index: 0, kind: input, shape index: {}]
  %s1 = inlined_call_operand.vmem [shape: bf16[2,9,9,128], index: 1, kind: input, shape index: {}]
  %s2 = inlined_call_operand.vmem [shape: bf16[2,9,9,128], index: 2, kind: input, shape index: {}]
  %s3 = inlined_call_operand.vmem [shape: bf16[2,9,9,128], index: 3, kind: input, shape index: {}]
  %s4 = inlined_call_operand.vmem [shape: bf16[1152,128], index: 4, kind: input, shape index: {}]
  %s5 = inlined_call_operand.vmem [shape: f32[1,128], index: 5, kind: input, shape index: {}]
  %s6 = inlined_call_operand.vmem [shape: bf16[128,128], index: 6, kind: output, shape index: {}]
  %s7 = sld [smem:[#allocation0]]
  $region34: #{_lambda_.4} parent=0
    _
  %s9 = ssub.s32 1, %s7
  %s10 = scalar_select 0, %s9, %s7
  // Predicated region
  $region2: #{_lambda_.4} parent=0 // pred_check
    _
  $region3: #{_lambda_.4} parent=0 // pred_check_branch
    %12 = sbr.rel (0) target = $region5
  $region4: #{_lambda_.4} parent=0 // pred_region
    _
  $region5: #{_lambda_.4} parent=0 // pred_fallthru
    _
  // Predicated region
  $region6: #{_lambda_.4} parent=0 // pred_check
    _
  $region7: #{_lambda_.4} parent=0 // pred_check_branch
    %14 = sbr.rel (0) target = $region9
  $region8: #{_lambda_.4} parent=0 // pred_region
    _
  $region9: #{_lambda_.4} parent=0 // pred_fallthru
    _
  // Predicated region
  $region10: #{_lambda_.4} parent=0 // pred_check
    _
  $region11: #{_lambda_.4} parent=0 // pred_check_branch
    %16 = sbr.rel (0) target = $region13
  $region12: #{_lambda_.4} parent=0 // pred_region
    _
  $region13: #{_lambda_.4} parent=0 // pred_fallthru
    _
  // Predicated region
  $region14: #{_lambda_.4} parent=0 // pred_check
    _
  $region15: #{_lambda_.4} parent=0 // pred_check_branch
    %18 = sbr.rel (0) target = $region17
  $region16: #{_lambda_.4} parent=0 // pred_region
    _
  $region17: #{_lambda_.4} parent=0 // pred_fallthru
    _
  // Predicated region
  $region18: #{_lambda_.4} parent=0 // pred_check
    _
  $region19: #{_lambda_.4} parent=0 // pred_check_branch
    %20 = sbr.rel (0) target = $region21
  $region20: #{_lambda_.4} parent=0 // pred_region
    _
  $region21: #{_lambda_.4} parent=0 // pred_fallthru
    _
  // Predicated region
  $region22: #{_lambda_.4} parent=0 // pred_check
    _
  $region23: #{_lambda_.4} parent=0 // pred_check_branch
    %22 = sbr.rel (0) target = $region25
  $region24: #{_lambda_.4} parent=0 // pred_region
    _
  $region25: #{_lambda_.4} parent=0 // pred_fallthru
    _
  %v24 = vld [vmem:[%s0] sm:$0xf]
  %v25 = vld [vmem:[%s0 + $0x8] sm:$0xf]
  %v26 = vld [vmem:[%s0 + $0x10] sm:$0xf]
  %v27 = vld [vmem:[%s0 + $0x18] sm:$0xf]
  %v28 = vld [vmem:[%s0 + $0x20] sm:$0xf]
  %v29 = vld [vmem:[%s0 + $0x28] sm:$0xf]
  %v30 = vld [vmem:[%s0 + $0x30] sm:$0xf]
  %v31 = vld [vmem:[%s0 + $0x38] sm:$0xf]
  %v32 = vld [vmem:[%s0 + $0x48] sm:$0xf]
  %v33 = vld [vmem:[%s0 + $0x50] sm:$0xf]
  %v34 = vld [vmem:[%s0 + $0x58] sm:$0xf]
  %v35 = vld [vmem:[%s0 + $0x60] sm:$0xf]
  %v36 = vld [vmem:[%s0 + $0x68] sm:$0xf]
  %v37 = vld [vmem:[%s0 + $0x70] sm:$0xf]
  %v38 = vld [vmem:[%s0 + $0x78] sm:$0xf]
  %v39 = vld [vmem:[%s0 + $0x80] sm:$0xf]
  %v56 = vunpack.c.l.b16 %v24
  %v57 = vunpack.c.l.b16 %v25
  %v58 = vunpack.c.l.b16 %v26
  %v59 = vunpack.c.l.b16 %v27
  %v60 = vunpack.c.l.b16 %v28
  %v61 = vunpack.c.l.b16 %v29
  %v62 = vunpack.c.l.b16 %v30
  %v63 = vunpack.c.l.b16 %v31
  %v64 = vunpack.c.l.b16 %v32
  %v65 = vunpack.c.l.b16 %v33
  %v66 = vunpack.c.l.b16 %v34
  %v67 = vunpack.c.l.b16 %v35
  %v68 = vunpack.c.l.b16 %v36
  %v69 = vunpack.c.l.b16 %v37
  %v70 = vunpack.c.l.b16 %v38
  %v71 = vunpack.c.l.b16 %v39
  %v72 = vpack.c.b16 %v57, %v56
  %v73 = vpack.c.b16 %v59, %v58
  %v74 = vpack.c.b16 %v61, %v60
  %v75 = vpack.c.b16 %v63, %v62
  %v76 = vpack.c.b16 %v65, %v64
  %v77 = vpack.c.b16 %v67, %v66
  %v78 = vpack.c.b16 %v69, %v68
  %v79 = vpack.c.b16 %v71, %v70
  %88 = vst [vmem:[#allocation2] sm:$0xff] %v72
  %89 = vst [vmem:[#allocation2 + $0x48] sm:$0xff] %v73
  %90 = vst [vmem:[#allocation2 + $0x90] sm:$0xff] %v74
  %91 = vst [vmem:[#allocation2 + $0xd8] sm:$0xff] %v75
  %92 = vst [vmem:[#allocation2 + $0x120] sm:$0xff] %v76
  %93 = vst [vmem:[#allocation2 + $0x168] sm:$0xff] %v77
  %94 = vst [vmem:[#allocation2 + $0x1b0] sm:$0xff] %v78
  %95 = vst [vmem:[#allocation2 + $0x1f8] sm:$0xff] %v79
  %v96 = vld [vmem:[%s1] sm:$0xf]
  %v97 = vld [vmem:[%s1 + $0x8] sm:$0xf]
  %v98 = vld [vmem:[%s1 + $0x10] sm:$0xf]
  %v99 = vld [vmem:[%s1 + $0x18] sm:$0xf]
  %v100 = vld [vmem:[%s1 + $0x20] sm:$0xf]
  %v101 = vld [vmem:[%s1 + $0x28] sm:$0xf]
  %v102 = vld [vmem:[%s1 + $0x30] sm:$0xf]
  %v103 = vld [vmem:[%s1 + $0x38] sm:$0xf]
  %v104 = vld [vmem:[%s1 + $0x48] sm:$0xf]
  %v105 = vld [vmem:[%s1 + $0x50] sm:$0xf]
  %v106 = vld [vmem:[%s1 + $0x58] sm:$0xf]
  %v107 = vld [vmem:[%s1 + $0x60] sm:$0xf]
  %v108 = vld [vmem:[%s1 + $0x68] sm:$0xf]
  %v109 = vld [vmem:[%s1 + $0x70] sm:$0xf]
  %v110 = vld [vmem:[%s1 + $0x78] sm:$0xf]
  %v111 = vld [vmem:[%s1 + $0x80] sm:$0xf]
  %v128 = vunpack.c.l.b16 %v96
  %v129 = vunpack.c.l.b16 %v97
  %v130 = vunpack.c.l.b16 %v98
  %v131 = vunpack.c.l.b16 %v99
  %v132 = vunpack.c.l.b16 %v100
  %v133 = vunpack.c.l.b16 %v101
  %v134 = vunpack.c.l.b16 %v102
  %v135 = vunpack.c.l.b16 %v103
  %v136 = vunpack.c.l.b16 %v104
  %v137 = vunpack.c.l.b16 %v105
  %v138 = vunpack.c.l.b16 %v106
  %v139 = vunpack.c.l.b16 %v107
  %v140 = vunpack.c.l.b16 %v108
  %v141 = vunpack.c.l.b16 %v109
  %v142 = vunpack.c.l.b16 %v110
  %v143 = vunpack.c.l.b16 %v111
  %v144 = vpack.c.b16 %v129, %v128
  %v145 = vpack.c.b16 %v131, %v130
  %v146 = vpack.c.b16 %v133, %v132
  %v147 = vpack.c.b16 %v135, %v134
  %v148 = vpack.c.b16 %v137, %v136
  %v149 = vpack.c.b16 %v139, %v138
  %v150 = vpack.c.b16 %v141, %v140
  %v151 = vpack.c.b16 %v143, %v142
  %160 = vst [vmem:[#allocation2 + $0x8] sm:$0xff] %v144
  %161 = vst [vmem:[#allocation2 + $0x50] sm:$0xff] %v145
  %162 = vst [vmem:[#allocation2 + $0x98] sm:$0xff] %v146
  %163 = vst [vmem:[#allocation2 + $0xe0] sm:$0xff] %v147
  %164 = vst [vmem:[#allocation2 + $0x128] sm:$0xff] %v148
  %165 = vst [vmem:[#allocation2 + $0x170] sm:$0xff] %v149
  %166 = vst [vmem:[#allocation2 + $0x1b8] sm:$0xff] %v150
  %167 = vst [vmem:[#allocation2 + $0x200] sm:$0xff] %v151
  %v168 = vld [vmem:[%s0] sm:$0xf]
  %v169 = vld [vmem:[%s0 + $0x4] sm:$0x1]
  %v170 = vld [vmem:[%s0 + $0x8] sm:$0xf]
  %v171 = vld [vmem:[%s0 + $0xc] sm:$0x1]
  %v172 = vld [vmem:[%s0 + $0x10] sm:$0xf]
  %v173 = vld [vmem:[%s0 + $0x14] sm:$0x1]
  %v174 = vld [vmem:[%s0 + $0x18] sm:$0xf]
  %v175 = vld [vmem:[%s0 + $0x1c] sm:$0x1]
  %v176 = vld [vmem:[%s0 + $0x20] sm:$0xf]
  %v177 = vld [vmem:[%s0 + $0x24] sm:$0x1]
  %v178 = vld [vmem:[%s0 + $0x28] sm:$0xf]
  %v179 = vld [vmem:[%s0 + $0x2c] sm:$0x1]
  %v180 = vld [vmem:[%s0 + $0x30] sm:$0xf]
  %v181 = vld [vmem:[%s0 + $0x34] sm:$0x1]
  %v182 = vld [vmem:[%s0 + $0x38] sm:$0xf]
  %v183 = vld [vmem:[%s0 + $0x3c] sm:$0x1]
  %v184 = vld [vmem:[%s0 + $0x48] sm:$0xf]
  %v185 = vld [vmem:[%s0 + $0x4c] sm:$0x1]
  %v186 = vld [vmem:[%s0 + $0x50] sm:$0xf]
  %v187 = vld [vmem:[%s0 + $0x54] sm:$0x1]
  %v188 = vld [vmem:[%s0 + $0x58] sm:$0xf]
  %v189 = vld [vmem:[%s0 + $0x5c] sm:$0x1]
  %v190 = vld [vmem:[%s0 + $0x60] sm:$0xf]
  %v191 = vld [vmem:[%s0 + $0x64] sm:$0x1]
  %v192 = vld [vmem:[%s0 + $0x68] sm:$0xf]
  %v193 = vld [vmem:[%s0 + $0x6c] sm:$0x1]
  %v194 = vld [vmem:[%s0 + $0x70] sm:$0xf]
  %v195 = vld [vmem:[%s0 + $0x74] sm:$0x1]
  %v196 = vld [vmem:[%s0 + $0x78] sm:$0xf]
  %v197 = vld [vmem:[%s0 + $0x7c] sm:$0x1]
  %v198 = vld [vmem:[%s0 + $0x80] sm:$0xf]
  %v199 = vld [vmem:[%s0 + $0x84] sm:$0x1]
  %vm200 = vsmask.f32 3328
  %vm201 = vsmask.f32 7440
  %vm202 = vmor %vm200, %vm201
  %v204 = vshrl.u32 %v168, 16
  %v206 = vrot.slane %v204, 4
  %v207 = vshll.u32 %v168, 16
  %v209 = vrot.slane %v207, 5
  %v210 = vor.u32 %v206, %v209
  %v211 = vrot.slane %v210, 4
  %v213 = vshll.u32 %v169, 16
  %v215 = vrot.slane %v213, 5
  %v216 = vsel %vm202, %v211, %v215
  %v218 = vshrl.u32 %v170, 16
  %v220 = vrot.slane %v218, 4
  %v221 = vshll.u32 %v170, 16
  %v223 = vrot.slane %v221, 5
  %v224 = vor.u32 %v220, %v223
  %v225 = vrot.slane %v224, 4
  %v227 = vshll.u32 %v171, 16
  %v229 = vrot.slane %v227, 5
  %v230 = vsel %vm202, %v225, %v229
  %v232 = vshrl.u32 %v172, 16
  %v234 = vrot.slane %v232, 4
  %v235 = vshll.u32 %v172, 16
  %v237 = vrot.slane %v235, 5
  %v238 = vor.u32 %v234, %v237
  %v239 = vrot.slane %v238, 4
  %v241 = vshll.u32 %v173, 16
  %v243 = vrot.slane %v241, 5
  %v244 = vsel %vm202, %v239, %v243
  %v246 = vshrl.u32 %v174, 16
  %v248 = vrot.slane %v246, 4
  %v249 = vshll.u32 %v174, 16
  %v251 = vrot.slane %v249, 5
  %v252 = vor.u32 %v248, %v251
  %v253 = vrot.slane %v252, 4
  %v255 = vshll.u32 %v175, 16
  %v257 = vrot.slane %v255, 5
  %v258 = vsel %vm202, %v253, %v257
  %v260 = vshrl.u32 %v176, 16
  %v262 = vrot.slane %v260, 4
  %v263 = vshll.u32 %v176, 16
  %v265 = vrot.slane %v263, 5
  %v266 = vor.u32 %v262, %v265
  %v267 = vrot.slane %v266, 4
  %v269 = vshll.u32 %v177, 16
  %v271 = vrot.slane %v269, 5
  %v272 = vsel %vm202, %v267, %v271
  %v274 = vshrl.u32 %v178, 16
  %v276 = vrot.slane %v274, 4
  %v277 = vshll.u32 %v178, 16
  %v279 = vrot.slane %v277, 5
  %v280 = vor.u32 %v276, %v279
  %v281 = vrot.slane %v280, 4
  %v283 = vshll.u32 %v179, 16
  %v285 = vrot.slane %v283, 5
  %v286 = vsel %vm202, %v281, %v285
  %v288 = vshrl.u32 %v180, 16
  %v290 = vrot.slane %v288, 4
  %v291 = vshll.u32 %v180, 16
  %v293 = vrot.slane %v291, 5
  %v294 = vor.u32 %v290, %v293
  %v295 = vrot.slane %v294, 4
  %v297 = vshll.u32 %v181, 16
  %v299 = vrot.slane %v297, 5
  %v300 = vsel %vm202, %v295, %v299
  %v302 = vshrl.u32 %v182, 16
  %v304 = vrot.slane %v302, 4
  %v305 = vshll.u32 %v182, 16
  %v307 = vrot.slane %v305, 5
  %v308 = vor.u32 %v304, %v307
  %v309 = vrot.slane %v308, 4
  %v311 = vshll.u32 %v183, 16
  %v313 = vrot.slane %v311, 5
  %v314 = vsel %vm202, %v309, %v313
  %v316 = vshrl.u32 %v184, 16
  %v318 = vrot.slane %v316, 4
  %v319 = vshll.u32 %v184, 16
  %v321 = vrot.slane %v319, 5
  %v322 = vor.u32 %v318, %v321
  %v323 = vrot.slane %v322, 4
  %v325 = vshll.u32 %v185, 16
  %v327 = vrot.slane %v325, 5
  %v328 = vsel %vm202, %v323, %v327
  %v330 = vshrl.u32 %v186, 16
  %v332 = vrot.slane %v330, 4
  %v333 = vshll.u32 %v186, 16
  %v335 = vrot.slane %v333, 5
  %v336 = vor.u32 %v332, %v335
  %v337 = vrot.slane %v336, 4
  %v339 = vshll.u32 %v187, 16
  %v341 = vrot.slane %v339, 5
  %v342 = vsel %vm202, %v337, %v341
  %v344 = vshrl.u32 %v188, 16
  %v346 = vrot.slane %v344, 4
  %v347 = vshll.u32 %v188, 16
  %v349 = vrot.slane %v347, 5
  %v350 = vor.u32 %v346, %v349
  %v351 = vrot.slane %v350, 4
  %v353 = vshll.u32 %v189, 16
  %v355 = vrot.slane %v353, 5
  %v356 = vsel %vm202, %v351, %v355
  %v358 = vshrl.u32 %v190, 16
  %v360 = vrot.slane %v358, 4
  %v361 = vshll.u32 %v190, 16
  %v363 = vrot.slane %v361, 5
  %v364 = vor.u32 %v360, %v363
  %v365 = vrot.slane %v364, 4
  %v367 = vshll.u32 %v191, 16
  %v369 = vrot.slane %v367, 5
  %v370 = vsel %vm202, %v365, %v369
  %v372 = vshrl.u32 %v192, 16
  %v374 = vrot.slane %v372, 4
  %v375 = vshll.u32 %v192, 16
  %v377 = vrot.slane %v375, 5
  %v378 = vor.u32 %v374, %v377
  %v379 = vrot.slane %v378, 4
  %v381 = vshll.u32 %v193, 16
  %v383 = vrot.slane %v381, 5
  %v384 = vsel %vm202, %v379, %v383
  %v386 = vshrl.u32 %v194, 16
  %v388 = vrot.slane %v386, 4
  %v389 = vshll.u32 %v194, 16
  %v391 = vrot.slane %v389, 5
  %v392 = vor.u32 %v388, %v391
  %v393 = vrot.slane %v392, 4
  %v395 = vshll.u32 %v195, 16
  %v397 = vrot.slane %v395, 5
  %v398 = vsel %vm202, %v393, %v397
  %v400 = vshrl.u32 %v196, 16
  %v402 = vrot.slane %v400, 4
  %v403 = vshll.u32 %v196, 16
  %v405 = vrot.slane %v403, 5
  %v406 = vor.u32 %v402, %v405
  %v407 = vrot.slane %v406, 4
  %v409 = vshll.u32 %v197, 16
  %v411 = vrot.slane %v409, 5
  %v412 = vsel %vm202, %v407, %v411
  %v414 = vshrl.u32 %v198, 16
  %v416 = vrot.slane %v414, 4
  %v417 = vshll.u32 %v198, 16
  %v419 = vrot.slane %v417, 5
  %v420 = vor.u32 %v416, %v419
  %v421 = vrot.slane %v420, 4
  %v423 = vshll.u32 %v199, 16
  %v425 = vrot.slane %v423, 5
  %v426 = vsel %vm202, %v421, %v425
  %v427 = vunpack.c.l.b16 %v216
  %v428 = vunpack.c.l.b16 %v230
  %v429 = vunpack.c.l.b16 %v244
  %v430 = vunpack.c.l.b16 %v258
  %v431 = vunpack.c.l.b16 %v272
  %v432 = vunpack.c.l.b16 %v286
  %v433 = vunpack.c.l.b16 %v300
  %v434 = vunpack.c.l.b16 %v314
  %v435 = vunpack.c.l.b16 %v328
  %v436 = vunpack.c.l.b16 %v342
  %v437 = vunpack.c.l.b16 %v356
  %v438 = vunpack.c.l.b16 %v370
  %v439 = vunpack.c.l.b16 %v384
  %v440 = vunpack.c.l.b16 %v398
  %v441 = vunpack.c.l.b16 %v412
  %v442 = vunpack.c.l.b16 %v426
  %v443 = vpack.c.b16 %v428, %v427
  %v444 = vpack.c.b16 %v430, %v429
  %v445 = vpack.c.b16 %v432, %v431
  %v446 = vpack.c.b16 %v434, %v433
  %v447 = vpack.c.b16 %v436, %v435
  %v448 = vpack.c.b16 %v438, %v437
  %v449 = vpack.c.b16 %v440, %v439
  %v450 = vpack.c.b16 %v442, %v441
  %459 = vst [vmem:[#allocation2 + $0x10] sm:$0xff] %v443
  %460 = vst [vmem:[#allocation2 + $0x58] sm:$0xff] %v444
  %461 = vst [vmem:[#allocation2 + $0xa0] sm:$0xff] %v445
  %462 = vst [vmem:[#allocation2 + $0xe8] sm:$0xff] %v446
  %463 = vst [vmem:[#allocation2 + $0x130] sm:$0xff] %v447
  %464 = vst [vmem:[#allocation2 + $0x178] sm:$0xff] %v448
  %465 = vst [vmem:[#allocation2 + $0x1c0] sm:$0xff] %v449
  %466 = vst [vmem:[#allocation2 + $0x208] sm:$0xff] %v450
  %v467 = vld [vmem:[%s2] sm:$0xf]
  %v468 = vld [vmem:[%s2 + $0x8] sm:$0xf]
  %v469 = vld [vmem:[%s2 + $0x10] sm:$0xf]
  %v470 = vld [vmem:[%s2 + $0x18] sm:$0xf]
  %v471 = vld [vmem:[%s2 + $0x20] sm:$0xf]
  %v472 = vld [vmem:[%s2 + $0x28] sm:$0xf]
  %v473 = vld [vmem:[%s2 + $0x30] sm:$0xf]
  %v474 = vld [vmem:[%s2 + $0x38] sm:$0xf]
  %v475 = vld [vmem:[%s2 + $0x48] sm:$0xf]
  %v476 = vld [vmem:[%s2 + $0x50] sm:$0xf]
  %v477 = vld [vmem:[%s2 + $0x58] sm:$0xf]
  %v478 = vld [vmem:[%s2 + $0x60] sm:$0xf]
  %v479 = vld [vmem:[%s2 + $0x68] sm:$0xf]
  %v480 = vld [vmem:[%s2 + $0x70] sm:$0xf]
  %v481 = vld [vmem:[%s2 + $0x78] sm:$0xf]
  %v482 = vld [vmem:[%s2 + $0x80] sm:$0xf]
  %v499 = vunpack.c.l.b16 %v467
  %v500 = vunpack.c.l.b16 %v468
  %v501 = vunpack.c.l.b16 %v469
  %v502 = vunpack.c.l.b16 %v470
  %v503 = vunpack.c.l.b16 %v471
  %v504 = vunpack.c.l.b16 %v472
  %v505 = vunpack.c.l.b16 %v473
  %v506 = vunpack.c.l.b16 %v474
  %v507 = vunpack.c.l.b16 %v475
  %v508 = vunpack.c.l.b16 %v476
  %v509 = vunpack.c.l.b16 %v477
  %v510 = vunpack.c.l.b16 %v478
  %v511 = vunpack.c.l.b16 %v479
  %v512 = vunpack.c.l.b16 %v480
  %v513 = vunpack.c.l.b16 %v481
  %v514 = vunpack.c.l.b16 %v482
  %v515 = vpack.c.b16 %v500, %v499
  %v516 = vpack.c.b16 %v502, %v501
  %v517 = vpack.c.b16 %v504, %v503
  %v518 = vpack.c.b16 %v506, %v505
  %v519 = vpack.c.b16 %v508, %v507
  %v520 = vpack.c.b16 %v510, %v509
  %v521 = vpack.c.b16 %v512, %v511
  %v522 = vpack.c.b16 %v514, %v513
  %531 = vst [vmem:[#allocation2 + $0x18] sm:$0xff] %v515
  %532 = vst [vmem:[#allocation2 + $0x60] sm:$0xff] %v516
  %533 = vst [vmem:[#allocation2 + $0xa8] sm:$0xff] %v517
  %534 = vst [vmem:[#allocation2 + $0xf0] sm:$0xff] %v518
  %535 = vst [vmem:[#allocation2 + $0x138] sm:$0xff] %v519
  %536 = vst [vmem:[#allocation2 + $0x180] sm:$0xff] %v520
  %537 = vst [vmem:[#allocation2 + $0x1c8] sm:$0xff] %v521
  %538 = vst [vmem:[#allocation2 + $0x210] sm:$0xff] %v522
  %v539 = vld [vmem:[%s3] sm:$0xf]
  %v540 = vld [vmem:[%s3 + $0x8] sm:$0xf]
  %v541 = vld [vmem:[%s3 + $0x10] sm:$0xf]
  %v542 = vld [vmem:[%s3 + $0x18] sm:$0xf]
  %v543 = vld [vmem:[%s3 + $0x20] sm:$0xf]
  %v544 = vld [vmem:[%s3 + $0x28] sm:$0xf]
  %v545 = vld [vmem:[%s3 + $0x30] sm:$0xf]
  %v546 = vld [vmem:[%s3 + $0x38] sm:$0xf]
  %v547 = vld [vmem:[%s3 + $0x48] sm:$0xf]
  %v548 = vld [vmem:[%s3 + $0x50] sm:$0xf]
  %v549 = vld [vmem:[%s3 + $0x58] sm:$0xf]
  %v550 = vld [vmem:[%s3 + $0x60] sm:$0xf]
  %v551 = vld [vmem:[%s3 + $0x68] sm:$0xf]
  %v552 = vld [vmem:[%s3 + $0x70] sm:$0xf]
  %v553 = vld [vmem:[%s3 + $0x78] sm:$0xf]
  %v554 = vld [vmem:[%s3 + $0x80] sm:$0xf]
  %v571 = vunpack.c.l.b16 %v539
  %v572 = vunpack.c.l.b16 %v540
  %v573 = vunpack.c.l.b16 %v541
  %v574 = vunpack.c.l.b16 %v542
  %v575 = vunpack.c.l.b16 %v543
  %v576 = vunpack.c.l.b16 %v544
  %v577 = vunpack.c.l.b16 %v545
  %v578 = vunpack.c.l.b16 %v546
  %v579 = vunpack.c.l.b16 %v547
  %v580 = vunpack.c.l.b16 %v548
  %v581 = vunpack.c.l.b16 %v549
  %v582 = vunpack.c.l.b16 %v550
  %v583 = vunpack.c.l.b16 %v551
  %v584 = vunpack.c.l.b16 %v552
  %v585 = vunpack.c.l.b16 %v553
  %v586 = vunpack.c.l.b16 %v554
  %v587 = vpack.c.b16 %v572, %v571
  %v588 = vpack.c.b16 %v574, %v573
  %v589 = vpack.c.b16 %v576, %v575
  %v590 = vpack.c.b16 %v578, %v577
  %v591 = vpack.c.b16 %v580, %v579
  %v592 = vpack.c.b16 %v582, %v581
  %v593 = vpack.c.b16 %v584, %v583
  %v594 = vpack.c.b16 %v586, %v585
  %603 = vst [vmem:[#allocation2 + $0x20] sm:$0xff] %v587
  %604 = vst [vmem:[#allocation2 + $0x68] sm:$0xff] %v588
  %605 = vst [vmem:[#allocation2 + $0xb0] sm:$0xff] %v589
  %606 = vst [vmem:[#allocation2 + $0xf8] sm:$0xff] %v590
  %607 = vst [vmem:[#allocation2 + $0x140] sm:$0xff] %v591
  %608 = vst [vmem:[#allocation2 + $0x188] sm:$0xff] %v592
  %609 = vst [vmem:[#allocation2 + $0x1d0] sm:$0xff] %v593
  %610 = vst [vmem:[#allocation2 + $0x218] sm:$0xff] %v594
  %v611 = vld [vmem:[%s2] sm:$0xf]
  %v612 = vld [vmem:[%s2 + $0x4] sm:$0x1]
  %v613 = vld [vmem:[%s2 + $0x8] sm:$0xf]
  %v614 = vld [vmem:[%s2 + $0xc] sm:$0x1]
  %v615 = vld [vmem:[%s2 + $0x10] sm:$0xf]
  %v616 = vld [vmem:[%s2 + $0x14] sm:$0x1]
  %v617 = vld [vmem:[%s2 + $0x18] sm:$0xf]
  %v618 = vld [vmem:[%s2 + $0x1c] sm:$0x1]
  %v619 = vld [vmem:[%s2 + $0x20] sm:$0xf]
  %v620 = vld [vmem:[%s2 + $0x24] sm:$0x1]
  %v621 = vld [vmem:[%s2 + $0x28] sm:$0xf]
  %v622 = vld [vmem:[%s2 + $0x2c] sm:$0x1]
  %v623 = vld [vmem:[%s2 + $0x30] sm:$0xf]
  %v624 = vld [vmem:[%s2 + $0x34] sm:$0x1]
  %v625 = vld [vmem:[%s2 + $0x38] sm:$0xf]
  %v626 = vld [vmem:[%s2 + $0x3c] sm:$0x1]
  %v627 = vld [vmem:[%s2 + $0x48] sm:$0xf]
  %v628 = vld [vmem:[%s2 + $0x4c] sm:$0x1]
  %v629 = vld [vmem:[%s2 + $0x50] sm:$0xf]
  %v630 = vld [vmem:[%s2 + $0x54] sm:$0x1]
  %v631 = vld [vmem:[%s2 + $0x58] sm:$0xf]
  %v632 = vld [vmem:[%s2 + $0x5c] sm:$0x1]
  %v633 = vld [vmem:[%s2 + $0x60] sm:$0xf]
  %v634 = vld [vmem:[%s2 + $0x64] sm:$0x1]
  %v635 = vld [vmem:[%s2 + $0x68] sm:$0xf]
  %v636 = vld [vmem:[%s2 + $0x6c] sm:$0x1]
  %v637 = vld [vmem:[%s2 + $0x70] sm:$0xf]
  %v638 = vld [vmem:[%s2 + $0x74] sm:$0x1]
  %v639 = vld [vmem:[%s2 + $0x78] sm:$0xf]
  %v640 = vld [vmem:[%s2 + $0x7c] sm:$0x1]
  %v641 = vld [vmem:[%s2 + $0x80] sm:$0xf]
  %v642 = vld [vmem:[%s2 + $0x84] sm:$0x1]
  %v644 = vshrl.u32 %v611, 16
  %v646 = vrot.slane %v644, 4
  %v647 = vshll.u32 %v611, 16
  %v649 = vrot.slane %v647, 5
  %v650 = vor.u32 %v646, %v649
  %v651 = vrot.slane %v650, 4
  %v653 = vshll.u32 %v612, 16
  %v655 = vrot.slane %v653, 5
  %v656 = vsel %vm202, %v651, %v655
  %v658 = vshrl.u32 %v613, 16
  %v660 = vrot.slane %v658, 4
  %v661 = vshll.u32 %v613, 16
  %v663 = vrot.slane %v661, 5
  %v664 = vor.u32 %v660, %v663
  %v665 = vrot.slane %v664, 4
  %v667 = vshll.u32 %v614, 16
  %v669 = vrot.slane %v667, 5
  %v670 = vsel %vm202, %v665, %v669
  %v672 = vshrl.u32 %v615, 16
  %v674 = vrot.slane %v672, 4
  %v675 = vshll.u32 %v615, 16
  %v677 = vrot.slane %v675, 5
  %v678 = vor.u32 %v674, %v677
  %v679 = vrot.slane %v678, 4
  %v681 = vshll.u32 %v616, 16
  %v683 = vrot.slane %v681, 5
  %v684 = vsel %vm202, %v679, %v683
  %v686 = vshrl.u32 %v617, 16
  %v688 = vrot.slane %v686, 4
  %v689 = vshll.u32 %v617, 16
  %v691 = vrot.slane %v689, 5
  %v692 = vor.u32 %v688, %v691
  %v693 = vrot.slane %v692, 4
  %v695 = vshll.u32 %v618, 16
  %v697 = vrot.slane %v695, 5
  %v698 = vsel %vm202, %v693, %v697
  %v700 = vshrl.u32 %v619, 16
  %v702 = vrot.slane %v700, 4
  %v703 = vshll.u32 %v619, 16
  %v705 = vrot.slane %v703, 5
  %v706 = vor.u32 %v702, %v705
  %v707 = vrot.slane %v706, 4
  %v709 = vshll.u32 %v620, 16
  %v711 = vrot.slane %v709, 5
  %v712 = vsel %vm202, %v707, %v711
  %v714 = vshrl.u32 %v621, 16
  %v716 = vrot.slane %v714, 4
  %v717 = vshll.u32 %v621, 16
  %v719 = vrot.slane %v717, 5
  %v720 = vor.u32 %v716, %v719
  %v721 = vrot.slane %v720, 4
  %v723 = vshll.u32 %v622, 16
  %v725 = vrot.slane %v723, 5
  %v726 = vsel %vm202, %v721, %v725
  %v728 = vshrl.u32 %v623, 16
  %v730 = vrot.slane %v728, 4
  %v731 = vshll.u32 %v623, 16
  %v733 = vrot.slane %v731, 5
  %v734 = vor.u32 %v730, %v733
  %v735 = vrot.slane %v734, 4
  %v737 = vshll.u32 %v624, 16
  %v739 = vrot.slane %v737, 5
  %v740 = vsel %vm202, %v735, %v739
  %v742 = vshrl.u32 %v625, 16
  %v744 = vrot.slane %v742, 4
  %v745 = vshll.u32 %v625, 16
  %v747 = vrot.slane %v745, 5
  %v748 = vor.u32 %v744, %v747
  %v749 = vrot.slane %v748, 4
  %v751 = vshll.u32 %v626, 16
  %v753 = vrot.slane %v751, 5
  %v754 = vsel %vm202, %v749, %v753
  %v756 = vshrl.u32 %v627, 16
  %v758 = vrot.slane %v756, 4
  %v759 = vshll.u32 %v627, 16
  %v761 = vrot.slane %v759, 5
  %v762 = vor.u32 %v758, %v761
  %v763 = vrot.slane %v762, 4
  %v765 = vshll.u32 %v628, 16
  %v767 = vrot.slane %v765, 5
  %v768 = vsel %vm202, %v763, %v767
  %v770 = vshrl.u32 %v629, 16
  %v772 = vrot.slane %v770, 4
  %v773 = vshll.u32 %v629, 16
  %v775 = vrot.slane %v773, 5
  %v776 = vor.u32 %v772, %v775
  %v777 = vrot.slane %v776, 4
  %v779 = vshll.u32 %v630, 16
  %v781 = vrot.slane %v779, 5
  %v782 = vsel %vm202, %v777, %v781
  %v784 = vshrl.u32 %v631, 16
  %v786 = vrot.slane %v784, 4
  %v787 = vshll.u32 %v631, 16
  %v789 = vrot.slane %v787, 5
  %v790 = vor.u32 %v786, %v789
  %v791 = vrot.slane %v790, 4
  %v793 = vshll.u32 %v632, 16
  %v795 = vrot.slane %v793, 5
  %v796 = vsel %vm202, %v791, %v795
  %v798 = vshrl.u32 %v633, 16
  %v800 = vrot.slane %v798, 4
  %v801 = vshll.u32 %v633, 16
  %v803 = vrot.slane %v801, 5
  %v804 = vor.u32 %v800, %v803
  %v805 = vrot.slane %v804, 4
  %v807 = vshll.u32 %v634, 16
  %v809 = vrot.slane %v807, 5
  %v810 = vsel %vm202, %v805, %v809
  %v812 = vshrl.u32 %v635, 16
  %v814 = vrot.slane %v812, 4
  %v815 = vshll.u32 %v635, 16
  %v817 = vrot.slane %v815, 5
  %v818 = vor.u32 %v814, %v817
  %v819 = vrot.slane %v818, 4
  %v821 = vshll.u32 %v636, 16
  %v823 = vrot.slane %v821, 5
  %v824 = vsel %vm202, %v819, %v823
  %v826 = vshrl.u32 %v637, 16
  %v828 = vrot.slane %v826, 4
  %v829 = vshll.u32 %v637, 16
  %v831 = vrot.slane %v829, 5
  %v832 = vor.u32 %v828, %v831
  %v833 = vrot.slane %v832, 4
  %v835 = vshll.u32 %v638, 16
  %v837 = vrot.slane %v835, 5
  %v838 = vsel %vm202, %v833, %v837
  %v840 = vshrl.u32 %v639, 16
  %v842 = vrot.slane %v840, 4
  %v843 = vshll.u32 %v639, 16
  %v845 = vrot.slane %v843, 5
  %v846 = vor.u32 %v842, %v845
  %v847 = vrot.slane %v846, 4
  %v849 = vshll.u32 %v640, 16
  %v851 = vrot.slane %v849, 5
  %v852 = vsel %vm202, %v847, %v851
  %v854 = vshrl.u32 %v641, 16
  %v856 = vrot.slane %v854, 4
  %v857 = vshll.u32 %v641, 16
  %v859 = vrot.slane %v857, 5
  %v860 = vor.u32 %v856, %v859
  %v861 = vrot.slane %v860, 4
  %v863 = vshll.u32 %v642, 16
  %v865 = vrot.slane %v863, 5
  %v866 = vsel %vm202, %v861, %v865
  %v867 = vunpack.c.l.b16 %v656
  %v868 = vunpack.c.l.b16 %v670
  %v869 = vunpack.c.l.b16 %v684
  %v870 = vunpack.c.l.b16 %v698
  %v871 = vunpack.c.l.b16 %v712
  %v872 = vunpack.c.l.b16 %v726
  %v873 = vunpack.c.l.b16 %v740
  %v874 = vunpack.c.l.b16 %v754
  %v875 = vunpack.c.l.b16 %v768
  %v876 = vunpack.c.l.b16 %v782
  %v877 = vunpack.c.l.b16 %v796
  %v878 = vunpack.c.l.b16 %v810
  %v879 = vunpack.c.l.b16 %v824
  %v880 = vunpack.c.l.b16 %v838
  %v881 = vunpack.c.l.b16 %v852
  %v882 = vunpack.c.l.b16 %v866
  %v883 = vpack.c.b16 %v868, %v867
  %v884 = vpack.c.b16 %v870, %v869
  %v885 = vpack.c.b16 %v872, %v871
  %v886 = vpack.c.b16 %v874, %v873
  %v887 = vpack.c.b16 %v876, %v875
  %v888 = vpack.c.b16 %v878, %v877
  %v889 = vpack.c.b16 %v880, %v879
  %v890 = vpack.c.b16 %v882, %v881
  %899 = vst [vmem:[#allocation2 + $0x28] sm:$0xff] %v883
  %900 = vst [vmem:[#allocation2 + $0x70] sm:$0xff] %v884
  %901 = vst [vmem:[#allocation2 + $0xb8] sm:$0xff] %v885
  %902 = vst [vmem:[#allocation2 + $0x100] sm:$0xff] %v886
  %903 = vst [vmem:[#allocation2 + $0x148] sm:$0xff] %v887
  %904 = vst [vmem:[#allocation2 + $0x190] sm:$0xff] %v888
  %905 = vst [vmem:[#allocation2 + $0x1d8] sm:$0xff] %v889
  %906 = vst [vmem:[#allocation2 + $0x220] sm:$0xff] %v890
  %s907 = scalar_lea.vmem %s0, 8
  %v908 = vld [vmem:[%s907] sm:$0xf]
  %v909 = vld [vmem:[%s907 + $0x8] sm:$0xf]
  %v910 = vld [vmem:[%s907 + $0x10] sm:$0xf]
  %v911 = vld [vmem:[%s907 + $0x18] sm:$0xf]
  %v912 = vld [vmem:[%s907 + $0x20] sm:$0xf]
  %v913 = vld [vmem:[%s907 + $0x28] sm:$0xf]
  %v914 = vld [vmem:[%s907 + $0x30] sm:$0xf]
  %v915 = vld [vmem:[%s907 + $0x38] sm:$0xf]
  %v916 = vld [vmem:[%s907 + $0x48] sm:$0xf]
  %v917 = vld [vmem:[%s907 + $0x50] sm:$0xf]
  %v918 = vld [vmem:[%s907 + $0x58] sm:$0xf]
  %v919 = vld [vmem:[%s907 + $0x60] sm:$0xf]
  %v920 = vld [vmem:[%s907 + $0x68] sm:$0xf]
  %v921 = vld [vmem:[%s907 + $0x70] sm:$0xf]
  %v922 = vld [vmem:[%s907 + $0x78] sm:$0xf]
  %v923 = vld [vmem:[%s907 + $0x80] sm:$0xf]
  %v940 = vunpack.c.l.b16 %v908
  %v941 = vunpack.c.l.b16 %v909
  %v942 = vunpack.c.l.b16 %v910
  %v943 = vunpack.c.l.b16 %v911
  %v944 = vunpack.c.l.b16 %v912
  %v945 = vunpack.c.l.b16 %v913
  %v946 = vunpack.c.l.b16 %v914
  %v947 = vunpack.c.l.b16 %v915
  %v948 = vunpack.c.l.b16 %v916
  %v949 = vunpack.c.l.b16 %v917
  %v950 = vunpack.c.l.b16 %v918
  %v951 = vunpack.c.l.b16 %v919
  %v952 = vunpack.c.l.b16 %v920
  %v953 = vunpack.c.l.b16 %v921
  %v954 = vunpack.c.l.b16 %v922
  %v955 = vunpack.c.l.b16 %v923
  %v956 = vpack.c.b16 %v941, %v940
  %v957 = vpack.c.b16 %v943, %v942
  %v958 = vpack.c.b16 %v945, %v944
  %v959 = vpack.c.b16 %v947, %v946
  %v960 = vpack.c.b16 %v949, %v948
  %v961 = vpack.c.b16 %v951, %v950
  %v962 = vpack.c.b16 %v953, %v952
  %v963 = vpack.c.b16 %v955, %v954
  %972 = vst [vmem:[#allocation2 + $0x30] sm:$0xff] %v956
  %973 = vst [vmem:[#allocation2 + $0x78] sm:$0xff] %v957
  %974 = vst [vmem:[#allocation2 + $0xc0] sm:$0xff] %v958
  %975 = vst [vmem:[#allocation2 + $0x108] sm:$0xff] %v959
  %976 = vst [vmem:[#allocation2 + $0x150] sm:$0xff] %v960
  %977 = vst [vmem:[#allocation2 + $0x198] sm:$0xff] %v961
  %978 = vst [vmem:[#allocation2 + $0x1e0] sm:$0xff] %v962
  %979 = vst [vmem:[#allocation2 + $0x228] sm:$0xff] %v963
  %s980 = scalar_lea.vmem %s1, 8
  %v981 = vld [vmem:[%s980] sm:$0xf]
  %v982 = vld [vmem:[%s980 + $0x8] sm:$0xf]
  %v983 = vld [vmem:[%s980 + $0x10] sm:$0xf]
  %v984 = vld [vmem:[%s980 + $0x18] sm:$0xf]
  %v985 = vld [vmem:[%s980 + $0x20] sm:$0xf]
  %v986 = vld [vmem:[%s980 + $0x28] sm:$0xf]
  %v987 = vld [vmem:[%s980 + $0x30] sm:$0xf]
  %v988 = vld [vmem:[%s980 + $0x38] sm:$0xf]
  %v989 = vld [vmem:[%s980 + $0x48] sm:$0xf]
  %v990 = vld [vmem:[%s980 + $0x50] sm:$0xf]
  %v991 = vld [vmem:[%s980 + $0x58] sm:$0xf]
  %v992 = vld [vmem:[%s980 + $0x60] sm:$0xf]
  %v993 = vld [vmem:[%s980 + $0x68] sm:$0xf]
  %v994 = vld [vmem:[%s980 + $0x70] sm:$0xf]
  %v995 = vld [vmem:[%s980 + $0x78] sm:$0xf]
  %v996 = vld [vmem:[%s980 + $0x80] sm:$0xf]
  %v1013 = vunpack.c.l.b16 %v981
  %v1014 = vunpack.c.l.b16 %v982
  %v1015 = vunpack.c.l.b16 %v983
  %v1016 = vunpack.c.l.b16 %v984
  %v1017 = vunpack.c.l.b16 %v985
  %v1018 = vunpack.c.l.b16 %v986
  %v1019 = vunpack.c.l.b16 %v987
  %v1020 = vunpack.c.l.b16 %v988
  %v1021 = vunpack.c.l.b16 %v989
  %v1022 = vunpack.c.l.b16 %v990
  %v1023 = vunpack.c.l.b16 %v991
  %v1024 = vunpack.c.l.b16 %v992
  %v1025 = vunpack.c.l.b16 %v993
  %v1026 = vunpack.c.l.b16 %v994
  %v1027 = vunpack.c.l.b16 %v995
  %v1028 = vunpack.c.l.b16 %v996
  %v1029 = vpack.c.b16 %v1014, %v1013
  %v1030 = vpack.c.b16 %v1016, %v1015
  %v1031 = vpack.c.b16 %v1018, %v1017
  %v1032 = vpack.c.b16 %v1020, %v1019
  %v1033 = vpack.c.b16 %v1022, %v1021
  %v1034 = vpack.c.b16 %v1024, %v1023
  %v1035 = vpack.c.b16 %v1026, %v1025
  %v1036 = vpack.c.b16 %v1028, %v1027
  %1045 = vst [vmem:[#allocation2 + $0x38] sm:$0xff] %v1029
  %1046 = vst [vmem:[#allocation2 + $0x80] sm:$0xff] %v1030
  %1047 = vst [vmem:[#allocation2 + $0xc8] sm:$0xff] %v1031
  %1048 = vst [vmem:[#allocation2 + $0x110] sm:$0xff] %v1032
  %1049 = vst [vmem:[#allocation2 + $0x158] sm:$0xff] %v1033
  %1050 = vst [vmem:[#allocation2 + $0x1a0] sm:$0xff] %v1034
  %1051 = vst [vmem:[#allocation2 + $0x1e8] sm:$0xff] %v1035
  %1052 = vst [vmem:[#allocation2 + $0x230] sm:$0xff] %v1036
  %v1053 = vld [vmem:[%s907] sm:$0xf]
  %v1054 = vld [vmem:[%s907 + $0x4] sm:$0x1]
  %v1055 = vld [vmem:[%s907 + $0x8] sm:$0xf]
  %v1056 = vld [vmem:[%s907 + $0xc] sm:$0x1]
  %v1057 = vld [vmem:[%s907 + $0x10] sm:$0xf]
  %v1058 = vld [vmem:[%s907 + $0x14] sm:$0x1]
  %v1059 = vld [vmem:[%s907 + $0x18] sm:$0xf]
  %v1060 = vld [vmem:[%s907 + $0x1c] sm:$0x1]
  %v1061 = vld [vmem:[%s907 + $0x20] sm:$0xf]
  %v1062 = vld [vmem:[%s907 + $0x24] sm:$0x1]
  %v1063 = vld [vmem:[%s907 + $0x28] sm:$0xf]
  %v1064 = vld [vmem:[%s907 + $0x2c] sm:$0x1]
  %v1065 = vld [vmem:[%s907 + $0x30] sm:$0xf]
  %v1066 = vld [vmem:[%s907 + $0x34] sm:$0x1]
  %v1067 = vld [vmem:[%s907 + $0x38] sm:$0xf]
  %v1068 = vld [vmem:[%s907 + $0x3c] sm:$0x1]
  %v1069 = vld [vmem:[%s907 + $0x48] sm:$0xf]
  %v1070 = vld [vmem:[%s907 + $0x4c] sm:$0x1]
  %v1071 = vld [vmem:[%s907 + $0x50] sm:$0xf]
  %v1072 = vld [vmem:[%s907 + $0x54] sm:$0x1]
  %v1073 = vld [vmem:[%s907 + $0x58] sm:$0xf]
  %v1074 = vld [vmem:[%s907 + $0x5c] sm:$0x1]
  %v1075 = vld [vmem:[%s907 + $0x60] sm:$0xf]
  %v1076 = vld [vmem:[%s907 + $0x64] sm:$0x1]
  %v1077 = vld [vmem:[%s907 + $0x68] sm:$0xf]
  %v1078 = vld [vmem:[%s907 + $0x6c] sm:$0x1]
  %v1079 = vld [vmem:[%s907 + $0x70] sm:$0xf]
  %v1080 = vld [vmem:[%s907 + $0x74] sm:$0x1]
  %v1081 = vld [vmem:[%s907 + $0x78] sm:$0xf]
  %v1082 = vld [vmem:[%s907 + $0x7c] sm:$0x1]
  %v1083 = vld [vmem:[%s907 + $0x80] sm:$0xf]
  %v1084 = vld [vmem:[%s907 + $0x84] sm:$0x1]
  %v1086 = vshrl.u32 %v1053, 16
  %v1088 = vrot.slane %v1086, 4
  %v1089 = vshll.u32 %v1053, 16
  %v1091 = vrot.slane %v1089, 5
  %v1092 = vor.u32 %v1088, %v1091
  %v1093 = vrot.slane %v1092, 4
  %v1095 = vshll.u32 %v1054, 16
  %v1097 = vrot.slane %v1095, 5
  %v1098 = vsel %vm202, %v1093, %v1097
  %v1100 = vshrl.u32 %v1055, 16
  %v1102 = vrot.slane %v1100, 4
  %v1103 = vshll.u32 %v1055, 16
  %v1105 = vrot.slane %v1103, 5
  %v1106 = vor.u32 %v1102, %v1105
  %v1107 = vrot.slane %v1106, 4
  %v1109 = vshll.u32 %v1056, 16
  %v1111 = vrot.slane %v1109, 5
  %v1112 = vsel %vm202, %v1107, %v1111
  %v1114 = vshrl.u32 %v1057, 16
  %v1116 = vrot.slane %v1114, 4
  %v1117 = vshll.u32 %v1057, 16
  %v1119 = vrot.slane %v1117, 5
  %v1120 = vor.u32 %v1116, %v1119
  %v1121 = vrot.slane %v1120, 4
  %v1123 = vshll.u32 %v1058, 16
  %v1125 = vrot.slane %v1123, 5
  %v1126 = vsel %vm202, %v1121, %v1125
  %v1128 = vshrl.u32 %v1059, 16
  %v1130 = vrot.slane %v1128, 4
  %v1131 = vshll.u32 %v1059, 16
  %v1133 = vrot.slane %v1131, 5
  %v1134 = vor.u32 %v1130, %v1133
  %v1135 = vrot.slane %v1134, 4
  %v1137 = vshll.u32 %v1060, 16
  %v1139 = vrot.slane %v1137, 5
  %v1140 = vsel %vm202, %v1135, %v1139
  %v1142 = vshrl.u32 %v1061, 16
  %v1144 = vrot.slane %v1142, 4
  %v1145 = vshll.u32 %v1061, 16
  %v1147 = vrot.slane %v1145, 5
  %v1148 = vor.u32 %v1144, %v1147
  %v1149 = vrot.slane %v1148, 4
  %v1151 = vshll.u32 %v1062, 16
  %v1153 = vrot.slane %v1151, 5
  %v1154 = vsel %vm202, %v1149, %v1153
  %v1156 = vshrl.u32 %v1063, 16
  %v1158 = vrot.slane %v1156, 4
  %v1159 = vshll.u32 %v1063, 16
  %v1161 = vrot.slane %v1159, 5
  %v1162 = vor.u32 %v1158, %v1161
  %v1163 = vrot.slane %v1162, 4
  %v1165 = vshll.u32 %v1064, 16
  %v1167 = vrot.slane %v1165, 5
  %v1168 = vsel %vm202, %v1163, %v1167
  %v1170 = vshrl.u32 %v1065, 16
  %v1172 = vrot.slane %v1170, 4
  %v1173 = vshll.u32 %v1065, 16
  %v1175 = vrot.slane %v1173, 5
  %v1176 = vor.u32 %v1172, %v1175
  %v1177 = vrot.slane %v1176, 4
  %v1179 = vshll.u32 %v1066, 16
  %v1181 = vrot.slane %v1179, 5
  %v1182 = vsel %vm202, %v1177, %v1181
  %v1184 = vshrl.u32 %v1067, 16
  %v1186 = vrot.slane %v1184, 4
  %v1187 = vshll.u32 %v1067, 16
  %v1189 = vrot.slane %v1187, 5
  %v1190 = vor.u32 %v1186, %v1189
  %v1191 = vrot.slane %v1190, 4
  %v1193 = vshll.u32 %v1068, 16
  %v1195 = vrot.slane %v1193, 5
  %v1196 = vsel %vm202, %v1191, %v1195
  %v1198 = vshrl.u32 %v1069, 16
  %v1200 = vrot.slane %v1198, 4
  %v1201 = vshll.u32 %v1069, 16
  %v1203 = vrot.slane %v1201, 5
  %v1204 = vor.u32 %v1200, %v1203
  %v1205 = vrot.slane %v1204, 4
  %v1207 = vshll.u32 %v1070, 16
  %v1209 = vrot.slane %v1207, 5
  %v1210 = vsel %vm202, %v1205, %v1209
  %v1212 = vshrl.u32 %v1071, 16
  %v1214 = vrot.slane %v1212, 4
  %v1215 = vshll.u32 %v1071, 16
  %v1217 = vrot.slane %v1215, 5
  %v1218 = vor.u32 %v1214, %v1217
  %v1219 = vrot.slane %v1218, 4
  %v1221 = vshll.u32 %v1072, 16
  %v1223 = vrot.slane %v1221, 5
  %v1224 = vsel %vm202, %v1219, %v1223
  %v1226 = vshrl.u32 %v1073, 16
  %v1228 = vrot.slane %v1226, 4
  %v1229 = vshll.u32 %v1073, 16
  %v1231 = vrot.slane %v1229, 5
  %v1232 = vor.u32 %v1228, %v1231
  %v1233 = vrot.slane %v1232, 4
  %v1235 = vshll.u32 %v1074, 16
  %v1237 = vrot.slane %v1235, 5
  %v1238 = vsel %vm202, %v1233, %v1237
  %v1240 = vshrl.u32 %v1075, 16
  %v1242 = vrot.slane %v1240, 4
  %v1243 = vshll.u32 %v1075, 16
  %v1245 = vrot.slane %v1243, 5
  %v1246 = vor.u32 %v1242, %v1245
  %v1247 = vrot.slane %v1246, 4
  %v1249 = vshll.u32 %v1076, 16
  %v1251 = vrot.slane %v1249, 5
  %v1252 = vsel %vm202, %v1247, %v1251
  %v1254 = vshrl.u32 %v1077, 16
  %v1256 = vrot.slane %v1254, 4
  %v1257 = vshll.u32 %v1077, 16
  %v1259 = vrot.slane %v1257, 5
  %v1260 = vor.u32 %v1256, %v1259
  %v1261 = vrot.slane %v1260, 4
  %v1263 = vshll.u32 %v1078, 16
  %v1265 = vrot.slane %v1263, 5
  %v1266 = vsel %vm202, %v1261, %v1265
  %v1268 = vshrl.u32 %v1079, 16
  %v1270 = vrot.slane %v1268, 4
  %v1271 = vshll.u32 %v1079, 16
  %v1273 = vrot.slane %v1271, 5
  %v1274 = vor.u32 %v1270, %v1273
  %v1275 = vrot.slane %v1274, 4
  %v1277 = vshll.u32 %v1080, 16
  %v1279 = vrot.slane %v1277, 5
  %v1280 = vsel %vm202, %v1275, %v1279
  %v1282 = vshrl.u32 %v1081, 16
  %v1284 = vrot.slane %v1282, 4
  %v1285 = vshll.u32 %v1081, 16
  %v1287 = vrot.slane %v1285, 5
  %v1288 = vor.u32 %v1284, %v1287
  %v1289 = vrot.slane %v1288, 4
  %v1291 = vshll.u32 %v1082, 16
  %v1293 = vrot.slane %v1291, 5
  %v1294 = vsel %vm202, %v1289, %v1293
  %v1296 = vshrl.u32 %v1083, 16
  %v1298 = vrot.slane %v1296, 4
  %v1299 = vshll.u32 %v1083, 16
  %v1301 = vrot.slane %v1299, 5
  %v1302 = vor.u32 %v1298, %v1301
  %v1303 = vrot.slane %v1302, 4
  %v1305 = vshll.u32 %v1084, 16
  %v1307 = vrot.slane %v1305, 5
  %v1308 = vsel %vm202, %v1303, %v1307
  %v1309 = vunpack.c.l.b16 %v1098
  %v1310 = vunpack.c.l.b16 %v1112
  %v1311 = vunpack.c.l.b16 %v1126
  %v1312 = vunpack.c.l.b16 %v1140
  %v1313 = vunpack.c.l.b16 %v1154
  %v1314 = vunpack.c.l.b16 %v1168
  %v1315 = vunpack.c.l.b16 %v1182
  %v1316 = vunpack.c.l.b16 %v1196
  %v1317 = vunpack.c.l.b16 %v1210
  %v1318 = vunpack.c.l.b16 %v1224
  %v1319 = vunpack.c.l.b16 %v1238
  %v1320 = vunpack.c.l.b16 %v1252
  %v1321 = vunpack.c.l.b16 %v1266
  %v1322 = vunpack.c.l.b16 %v1280
  %v1323 = vunpack.c.l.b16 %v1294
  %v1324 = vunpack.c.l.b16 %v1308
  %v1325 = vpack.c.b16 %v1310, %v1309
  %v1326 = vpack.c.b16 %v1312, %v1311
  %v1327 = vpack.c.b16 %v1314, %v1313
  %v1328 = vpack.c.b16 %v1316, %v1315
  %v1329 = vpack.c.b16 %v1318, %v1317
  %v1330 = vpack.c.b16 %v1320, %v1319
  %v1331 = vpack.c.b16 %v1322, %v1321
  %v1332 = vpack.c.b16 %v1324, %v1323
  %1341 = vst [vmem:[#allocation2 + $0x40] sm:$0xff] %v1325
  %1342 = vst [vmem:[#allocation2 + $0x88] sm:$0xff] %v1326
  %1343 = vst [vmem:[#allocation2 + $0xd0] sm:$0xff] %v1327
  %1344 = vst [vmem:[#allocation2 + $0x118] sm:$0xff] %v1328
  %1345 = vst [vmem:[#allocation2 + $0x160] sm:$0xff] %v1329
  %1346 = vst [vmem:[#allocation2 + $0x1a8] sm:$0xff] %v1330
  %1347 = vst [vmem:[#allocation2 + $0x1f0] sm:$0xff] %v1331
  %1348 = vst [vmem:[#allocation2 + $0x238] sm:$0xff] %v1332
  %v1349 = vld [vmem:[#allocation2] sm:$0xff]
  %v1350 = vld [vmem:[#allocation2 + $0x8] sm:$0xff]
  %v1351 = vld [vmem:[#allocation2 + $0x10] sm:$0xff]
  %v1352 = vld [vmem:[#allocation2 + $0x18] sm:$0xff]
  %v1353 = vld [vmem:[#allocation2 + $0x20] sm:$0xff]
  %v1354 = vld [vmem:[#allocation2 + $0x28] sm:$0xff]
  %v1355 = vld [vmem:[#allocation2 + $0x30] sm:$0xff]
  %v1356 = vld [vmem:[#allocation2 + $0x38] sm:$0xff]
  %v1357 = vld [vmem:[#allocation2 + $0x40] sm:$0xff]
  %v1358 = vld [vmem:[#allocation2 + $0x48] sm:$0xff]
  %v1359 = vld [vmem:[#allocation2 + $0x50] sm:$0xff]
  %v1360 = vld [vmem:[#allocation2 + $0x58] sm:$0xff]
  %v1361 = vld [vmem:[#allocation2 + $0x60] sm:$0xff]
  %v1362 = vld [vmem:[#allocation2 + $0x68] sm:$0xff]
  %v1363 = vld [vmem:[#allocation2 + $0x70] sm:$0xff]
  %v1364 = vld [vmem:[#allocation2 + $0x78] sm:$0xff]
  %v1365 = vld [vmem:[#allocation2 + $0x80] sm:$0xff]
  %v1366 = vld [vmem:[#allocation2 + $0x88] sm:$0xff]
  %v1367 = vld [vmem:[#allocation2 + $0x90] sm:$0xff]
  %v1368 = vld [vmem:[#allocation2 + $0x98] sm:$0xff]
  %v1369 = vld [vmem:[#allocation2 + $0xa0] sm:$0xff]
  %v1370 = vld [vmem:[#allocation2 + $0xa8] sm:$0xff]
  %v1371 = vld [vmem:[#allocation2 + $0xb0] sm:$0xff]
  %v1372 = vld [vmem:[#allocation2 + $0xb8] sm:$0xff]
  %v1373 = vld [vmem:[#allocation2 + $0xc0] sm:$0xff]
  %v1374 = vld [vmem:[#allocation2 + $0xc8] sm:$0xff]
  %v1375 = vld [vmem:[#allocation2 + $0xd0] sm:$0xff]
  %v1376 = vld [vmem:[#allocation2 + $0xd8] sm:$0xff]
  %v1377 = vld [vmem:[#allocation2 + $0xe0] sm:$0xff]
  %v1378 = vld [vmem:[#allocation2 + $0xe8] sm:$0xff]
  %v1379 = vld [vmem:[#allocation2 + $0xf0] sm:$0xff]
  %v1380 = vld [vmem:[#allocation2 + $0xf8] sm:$0xff]
  %v1381 = vld [vmem:[#allocation2 + $0x100] sm:$0xff]
  %v1382 = vld [vmem:[#allocation2 + $0x108] sm:$0xff]
  %v1383 = vld [vmem:[#allocation2 + $0x110] sm:$0xff]
  %v1384 = vld [vmem:[#allocation2 + $0x118] sm:$0xff]
  %v1385 = vld [vmem:[#allocation2 + $0x120] sm:$0xff]
  %v1386 = vld [vmem:[#allocation2 + $0x128] sm:$0xff]
  %v1387 = vld [vmem:[#allocation2 + $0x130] sm:$0xff]
  %v1388 = vld [vmem:[#allocation2 + $0x138] sm:$0xff]
  %v1389 = vld [vmem:[#allocation2 + $0x140] sm:$0xff]
  %v1390 = vld [vmem:[#allocation2 + $0x148] sm:$0xff]
  %v1391 = vld [vmem:[#allocation2 + $0x150] sm:$0xff]
  %v1392 = vld [vmem:[#allocation2 + $0x158] sm:$0xff]
  %v1393 = vld [vmem:[#allocation2 + $0x160] sm:$0xff]
  %v1394 = vld [vmem:[#allocation2 + $0x168] sm:$0xff]
  %v1395 = vld [vmem:[#allocation2 + $0x170] sm:$0xff]
  %v1396 = vld [vmem:[#allocation2 + $0x178] sm:$0xff]
  %v1397 = vld [vmem:[#allocation2 + $0x180] sm:$0xff]
  %v1398 = vld [vmem:[#allocation2 + $0x188] sm:$0xff]
  %v1399 = vld [vmem:[#allocation2 + $0x190] sm:$0xff]
  %v1400 = vld [vmem:[#allocation2 + $0x198] sm:$0xff]
  %v1401 = vld [vmem:[#allocation2 + $0x1a0] sm:$0xff]
  %v1402 = vld [vmem:[#allocation2 + $0x1a8] sm:$0xff]
  %v1403 = vld [vmem:[#allocation2 + $0x1b0] sm:$0xff]
  %v1404 = vld [vmem:[#allocation2 + $0x1b8] sm:$0xff]
  %v1405 = vld [vmem:[#allocation2 + $0x1c0] sm:$0xff]
  %v1406 = vld [vmem:[#allocation2 + $0x1c8] sm:$0xff]
  %v1407 = vld [vmem:[#allocation2 + $0x1d0] sm:$0xff]
  %v1408 = vld [vmem:[#allocation2 + $0x1d8] sm:$0xff]
  %v1409 = vld [vmem:[#allocation2 + $0x1e0] sm:$0xff]
  %v1410 = vld [vmem:[#allocation2 + $0x1e8] sm:$0xff]
  %v1411 = vld [vmem:[#allocation2 + $0x1f0] sm:$0xff]
  %v1412 = vld [vmem:[#allocation2 + $0x1f8] sm:$0xff]
  %v1413 = vld [vmem:[#allocation2 + $0x200] sm:$0xff]
  %v1414 = vld [vmem:[#allocation2 + $0x208] sm:$0xff]
  %v1415 = vld [vmem:[#allocation2 + $0x210] sm:$0xff]
  %v1416 = vld [vmem:[#allocation2 + $0x218] sm:$0xff]
  %v1417 = vld [vmem:[#allocation2 + $0x220] sm:$0xff]
  %v1418 = vld [vmem:[#allocation2 + $0x228] sm:$0xff]
  %v1419 = vld [vmem:[#allocation2 + $0x230] sm:$0xff]
  %v1420 = vld [vmem:[#allocation2 + $0x238] sm:$0xff]
  %v1421 = vld [vmem:[%s4] sm:$0xf]
  %v1422 = vld [vmem:[%s4 + $0x4] sm:$0xf]
  %v1423 = vld [vmem:[%s4 + $0x8] sm:$0xf]
  %v1424 = vld [vmem:[%s4 + $0xc] sm:$0xf]
  %v1425 = vld [vmem:[%s4 + $0x10] sm:$0xf]
  %v1426 = vld [vmem:[%s4 + $0x14] sm:$0xf]
  %v1427 = vld [vmem:[%s4 + $0x18] sm:$0xf]
  %v1428 = vld [vmem:[%s4 + $0x1c] sm:$0xf]
  %v1429 = vld [vmem:[%s4 + $0x20] sm:$0xf]
  %v1430 = vld [vmem:[%s4 + $0x24] sm:$0xf]
  %v1431 = vld [vmem:[%s4 + $0x28] sm:$0xf]
  %v1432 = vld [vmem:[%s4 + $0x2c] sm:$0xf]
  %v1433 = vld [vmem:[%s4 + $0x30] sm:$0xf]
  %v1434 = vld [vmem:[%s4 + $0x34] sm:$0xf]
  %v1435 = vld [vmem:[%s4 + $0x38] sm:$0xf]
  %v1436 = vld [vmem:[%s4 + $0x3c] sm:$0xf]
  %v1437 = vld [vmem:[%s4 + $0x40] sm:$0xf]
  %v1438 = vld [vmem:[%s4 + $0x44] sm:$0xf]
  %v1439 = vld [vmem:[%s4 + $0x48] sm:$0xf]
  %v1440 = vld [vmem:[%s4 + $0x4c] sm:$0xf]
  %v1441 = vld [vmem:[%s4 + $0x50] sm:$0xf]
  %v1442 = vld [vmem:[%s4 + $0x54] sm:$0xf]
  %v1443 = vld [vmem:[%s4 + $0x58] sm:$0xf]
  %v1444 = vld [vmem:[%s4 + $0x5c] sm:$0xf]
  %v1445 = vld [vmem:[%s4 + $0x60] sm:$0xf]
  %v1446 = vld [vmem:[%s4 + $0x64] sm:$0xf]
  %v1447 = vld [vmem:[%s4 + $0x68] sm:$0xf]
  %v1448 = vld [vmem:[%s4 + $0x6c] sm:$0xf]
  %v1449 = vld [vmem:[%s4 + $0x70] sm:$0xf]
  %v1450 = vld [vmem:[%s4 + $0x74] sm:$0xf]
  %v1451 = vld [vmem:[%s4 + $0x78] sm:$0xf]
  %v1452 = vld [vmem:[%s4 + $0x7c] sm:$0xf]
  %v1453 = vld [vmem:[%s4 + $0x80] sm:$0xf]
  %v1454 = vld [vmem:[%s4 + $0x84] sm:$0xf]
  %v1455 = vld [vmem:[%s4 + $0x88] sm:$0xf]
  %v1456 = vld [vmem:[%s4 + $0x8c] sm:$0xf]
  %v1457 = vld [vmem:[%s4 + $0x90] sm:$0xf]
  %v1458 = vld [vmem:[%s4 + $0x94] sm:$0xf]
  %v1459 = vld [vmem:[%s4 + $0x98] sm:$0xf]
  %v1460 = vld [vmem:[%s4 + $0x9c] sm:$0xf]
  %v1461 = vld [vmem:[%s4 + $0xa0] sm:$0xf]
  %v1462 = vld [vmem:[%s4 + $0xa4] sm:$0xf]
  %v1463 = vld [vmem:[%s4 + $0xa8] sm:$0xf]
  %v1464 = vld [vmem:[%s4 + $0xac] sm:$0xf]
  %v1465 = vld [vmem:[%s4 + $0xb0] sm:$0xf]
  %v1466 = vld [vmem:[%s4 + $0xb4] sm:$0xf]
  %v1467 = vld [vmem:[%s4 + $0xb8] sm:$0xf]
  %v1468 = vld [vmem:[%s4 + $0xbc] sm:$0xf]
  %v1469 = vld [vmem:[%s4 + $0xc0] sm:$0xf]
  %v1470 = vld [vmem:[%s4 + $0xc4] sm:$0xf]
  %v1471 = vld [vmem:[%s4 + $0xc8] sm:$0xf]
  %v1472 = vld [vmem:[%s4 + $0xcc] sm:$0xf]
  %v1473 = vld [vmem:[%s4 + $0xd0] sm:$0xf]
  %v1474 = vld [vmem:[%s4 + $0xd4] sm:$0xf]
  %v1475 = vld [vmem:[%s4 + $0xd8] sm:$0xf]
  %v1476 = vld [vmem:[%s4 + $0xdc] sm:$0xf]
  %v1477 = vld [vmem:[%s4 + $0xe0] sm:$0xf]
  %v1478 = vld [vmem:[%s4 + $0xe4] sm:$0xf]
  %v1479 = vld [vmem:[%s4 + $0xe8] sm:$0xf]
  %v1480 = vld [vmem:[%s4 + $0xec] sm:$0xf]
  %v1481 = vld [vmem:[%s4 + $0xf0] sm:$0xf]
  %v1482 = vld [vmem:[%s4 + $0xf4] sm:$0xf]
  %v1483 = vld [vmem:[%s4 + $0xf8] sm:$0xf]
  %v1484 = vld [vmem:[%s4 + $0xfc] sm:$0xf]
  %v1485 = vld [vmem:[%s4 + $0x100] sm:$0xf]
  %v1486 = vld [vmem:[%s4 + $0x104] sm:$0xf]
  %v1487 = vld [vmem:[%s4 + $0x108] sm:$0xf]
  %v1488 = vld [vmem:[%s4 + $0x10c] sm:$0xf]
  %v1489 = vld [vmem:[%s4 + $0x110] sm:$0xf]
  %v1490 = vld [vmem:[%s4 + $0x114] sm:$0xf]
  %v1491 = vld [vmem:[%s4 + $0x118] sm:$0xf]
  %v1492 = vld [vmem:[%s4 + $0x11c] sm:$0xf]
  %v1493 = vld [vmem:[%s4 + $0x120] sm:$0xf]
  %v1494 = vld [vmem:[%s4 + $0x124] sm:$0xf]
  %v1495 = vld [vmem:[%s4 + $0x128] sm:$0xf]
  %v1496 = vld [vmem:[%s4 + $0x12c] sm:$0xf]
  %v1497 = vld [vmem:[%s4 + $0x130] sm:$0xf]
  %v1498 = vld [vmem:[%s4 + $0x134] sm:$0xf]
  %v1499 = vld [vmem:[%s4 + $0x138] sm:$0xf]
  %v1500 = vld [vmem:[%s4 + $0x13c] sm:$0xf]
  %v1501 = vld [vmem:[%s4 + $0x140] sm:$0xf]
  %v1502 = vld [vmem:[%s4 + $0x144] sm:$0xf]
  %v1503 = vld [vmem:[%s4 + $0x148] sm:$0xf]
  %v1504 = vld [vmem:[%s4 + $0x14c] sm:$0xf]
  %v1505 = vld [vmem:[%s4 + $0x150] sm:$0xf]
  %v1506 = vld [vmem:[%s4 + $0x154] sm:$0xf]
  %v1507 = vld [vmem:[%s4 + $0x158] sm:$0xf]
  %v1508 = vld [vmem:[%s4 + $0x15c] sm:$0xf]
  %v1509 = vld [vmem:[%s4 + $0x160] sm:$0xf]
  %v1510 = vld [vmem:[%s4 + $0x164] sm:$0xf]
  %v1511 = vld [vmem:[%s4 + $0x168] sm:$0xf]
  %v1512 = vld [vmem:[%s4 + $0x16c] sm:$0xf]
  %v1513 = vld [vmem:[%s4 + $0x170] sm:$0xf]
  %v1514 = vld [vmem:[%s4 + $0x174] sm:$0xf]
  %v1515 = vld [vmem:[%s4 + $0x178] sm:$0xf]
  %v1516 = vld [vmem:[%s4 + $0x17c] sm:$0xf]
  %v1517 = vld [vmem:[%s4 + $0x180] sm:$0xf]
  %v1518 = vld [vmem:[%s4 + $0x184] sm:$0xf]
  %v1519 = vld [vmem:[%s4 + $0x188] sm:$0xf]
  %v1520 = vld [vmem:[%s4 + $0x18c] sm:$0xf]
  %v1521 = vld [vmem:[%s4 + $0x190] sm:$0xf]
  %v1522 = vld [vmem:[%s4 + $0x194] sm:$0xf]
  %v1523 = vld [vmem:[%s4 + $0x198] sm:$0xf]
  %v1524 = vld [vmem:[%s4 + $0x19c] sm:$0xf]
  %v1525 = vld [vmem:[%s4 + $0x1a0] sm:$0xf]
  %v1526 = vld [vmem:[%s4 + $0x1a4] sm:$0xf]
  %v1527 = vld [vmem:[%s4 + $0x1a8] sm:$0xf]
  %v1528 = vld [vmem:[%s4 + $0x1ac] sm:$0xf]
  %v1529 = vld [vmem:[%s4 + $0x1b0] sm:$0xf]
  %v1530 = vld [vmem:[%s4 + $0x1b4] sm:$0xf]
  %v1531 = vld [vmem:[%s4 + $0x1b8] sm:$0xf]
  %v1532 = vld [vmem:[%s4 + $0x1bc] sm:$0xf]
  %v1533 = vld [vmem:[%s4 + $0x1c0] sm:$0xf]
  %v1534 = vld [vmem:[%s4 + $0x1c4] sm:$0xf]
  %v1535 = vld [vmem:[%s4 + $0x1c8] sm:$0xf]
  %v1536 = vld [vmem:[%s4 + $0x1cc] sm:$0xf]
  %v1537 = vld [vmem:[%s4 + $0x1d0] sm:$0xf]
  %v1538 = vld [vmem:[%s4 + $0x1d4] sm:$0xf]
  %v1539 = vld [vmem:[%s4 + $0x1d8] sm:$0xf]
  %v1540 = vld [vmem:[%s4 + $0x1dc] sm:$0xf]
  %v1541 = vld [vmem:[%s4 + $0x1e0] sm:$0xf]
  %v1542 = vld [vmem:[%s4 + $0x1e4] sm:$0xf]
  %v1543 = vld [vmem:[%s4 + $0x1e8] sm:$0xf]
  %v1544 = vld [vmem:[%s4 + $0x1ec] sm:$0xf]
  %v1545 = vld [vmem:[%s4 + $0x1f0] sm:$0xf]
  %v1546 = vld [vmem:[%s4 + $0x1f4] sm:$0xf]
  %v1547 = vld [vmem:[%s4 + $0x1f8] sm:$0xf]
  %v1548 = vld [vmem:[%s4 + $0x1fc] sm:$0xf]
  %v1549 = vld [vmem:[%s4 + $0x200] sm:$0xf]
  %v1550 = vld [vmem:[%s4 + $0x204] sm:$0xf]
  %v1551 = vld [vmem:[%s4 + $0x208] sm:$0xf]
  %v1552 = vld [vmem:[%s4 + $0x20c] sm:$0xf]
  %v1553 = vld [vmem:[%s4 + $0x210] sm:$0xf]
  %v1554 = vld [vmem:[%s4 + $0x214] sm:$0xf]
  %v1555 = vld [vmem:[%s4 + $0x218] sm:$0xf]
  %v1556 = vld [vmem:[%s4 + $0x21c] sm:$0xf]
  %v1557 = vld [vmem:[%s4 + $0x220] sm:$0xf]
  %v1558 = vld [vmem:[%s4 + $0x224] sm:$0xf]
  %v1559 = vld [vmem:[%s4 + $0x228] sm:$0xf]
  %v1560 = vld [vmem:[%s4 + $0x22c] sm:$0xf]
  %v1561 = vld [vmem:[%s4 + $0x230] sm:$0xf]
  %v1562 = vld [vmem:[%s4 + $0x234] sm:$0xf]
  %v1563 = vld [vmem:[%s4 + $0x238] sm:$0xf]
  %v1564 = vld [vmem:[%s4 + $0x23c] sm:$0xf]
  %v1565 = vld [vmem:[%s5] sm:$0x1]
  %v1567 = vlaneseq
  %v1568 = vshrl.u32 %v1567, 7
  %v1569 = vsub.s32 0, %v1568
  %v1570 = vrot.slane %v1565, %v1569
  %v1716 = vunpack.c.l.b16 %v1421
  %v1717 = vunpack.c.l.b16 %v1422
  %v1718 = vunpack.c.l.b16 %v1423
  %v1719 = vunpack.c.l.b16 %v1424
  %v1720 = vunpack.c.l.b16 %v1425
  %v1721 = vunpack.c.l.b16 %v1426
  %v1722 = vunpack.c.l.b16 %v1427
  %v1723 = vunpack.c.l.b16 %v1428
  %v1724 = vunpack.c.l.b16 %v1429
  %v1725 = vunpack.c.l.b16 %v1430
  %v1726 = vunpack.c.l.b16 %v1431
  %v1727 = vunpack.c.l.b16 %v1432
  %v1728 = vunpack.c.l.b16 %v1433
  %v1729 = vunpack.c.l.b16 %v1434
  %v1730 = vunpack.c.l.b16 %v1435
  %v1731 = vunpack.c.l.b16 %v1436
  %v1732 = vunpack.c.l.b16 %v1437
  %v1733 = vunpack.c.l.b16 %v1438
  %v1734 = vunpack.c.l.b16 %v1439
  %v1735 = vunpack.c.l.b16 %v1440
  %v1736 = vunpack.c.l.b16 %v1441
  %v1737 = vunpack.c.l.b16 %v1442
  %v1738 = vunpack.c.l.b16 %v1443
  %v1739 = vunpack.c.l.b16 %v1444
  %v1740 = vunpack.c.l.b16 %v1445
  %v1741 = vunpack.c.l.b16 %v1446
  %v1742 = vunpack.c.l.b16 %v1447
  %v1743 = vunpack.c.l.b16 %v1448
  %v1744 = vunpack.c.l.b16 %v1449
  %v1745 = vunpack.c.l.b16 %v1450
  %v1746 = vunpack.c.l.b16 %v1451
  %v1747 = vunpack.c.l.b16 %v1452
  %v1748 = vunpack.c.l.b16 %v1453
  %v1749 = vunpack.c.l.b16 %v1454
  %v1750 = vunpack.c.l.b16 %v1455
  %v1751 = vunpack.c.l.b16 %v1456
  %v1752 = vunpack.c.l.b16 %v1457
  %v1753 = vunpack.c.l.b16 %v1458
  %v1754 = vunpack.c.l.b16 %v1459
  %v1755 = vunpack.c.l.b16 %v1460
  %v1756 = vunpack.c.l.b16 %v1461
  %v1757 = vunpack.c.l.b16 %v1462
  %v1758 = vunpack.c.l.b16 %v1463
  %v1759 = vunpack.c.l.b16 %v1464
  %v1760 = vunpack.c.l.b16 %v1465
  %v1761 = vunpack.c.l.b16 %v1466
  %v1762 = vunpack.c.l.b16 %v1467
  %v1763 = vunpack.c.l.b16 %v1468
  %v1764 = vunpack.c.l.b16 %v1469
  %v1765 = vunpack.c.l.b16 %v1470
  %v1766 = vunpack.c.l.b16 %v1471
  %v1767 = vunpack.c.l.b16 %v1472
  %v1768 = vunpack.c.l.b16 %v1473
  %v1769 = vunpack.c.l.b16 %v1474
  %v1770 = vunpack.c.l.b16 %v1475
  %v1771 = vunpack.c.l.b16 %v1476
  %v1772 = vunpack.c.l.b16 %v1477
  %v1773 = vunpack.c.l.b16 %v1478
  %v1774 = vunpack.c.l.b16 %v1479
  %v1775 = vunpack.c.l.b16 %v1480
  %v1776 = vunpack.c.l.b16 %v1481
  %v1777 = vunpack.c.l.b16 %v1482
  %v1778 = vunpack.c.l.b16 %v1483
  %v1779 = vunpack.c.l.b16 %v1484
  %v1780 = vunpack.c.l.b16 %v1485
  %v1781 = vunpack.c.l.b16 %v1486
  %v1782 = vunpack.c.l.b16 %v1487
  %v1783 = vunpack.c.l.b16 %v1488
  %v1784 = vunpack.c.l.b16 %v1489
  %v1785 = vunpack.c.l.b16 %v1490
  %v1786 = vunpack.c.l.b16 %v1491
  %v1787 = vunpack.c.l.b16 %v1492
  %v1788 = vunpack.c.l.b16 %v1493
  %v1789 = vunpack.c.l.b16 %v1494
  %v1790 = vunpack.c.l.b16 %v1495
  %v1791 = vunpack.c.l.b16 %v1496
  %v1792 = vunpack.c.l.b16 %v1497
  %v1793 = vunpack.c.l.b16 %v1498
  %v1794 = vunpack.c.l.b16 %v1499
  %v1795 = vunpack.c.l.b16 %v1500
  %v1796 = vunpack.c.l.b16 %v1501
  %v1797 = vunpack.c.l.b16 %v1502
  %v1798 = vunpack.c.l.b16 %v1503
  %v1799 = vunpack.c.l.b16 %v1504
  %v1800 = vunpack.c.l.b16 %v1505
  %v1801 = vunpack.c.l.b16 %v1506
  %v1802 = vunpack.c.l.b16 %v1507
  %v1803 = vunpack.c.l.b16 %v1508
  %v1804 = vunpack.c.l.b16 %v1509
  %v1805 = vunpack.c.l.b16 %v1510
  %v1806 = vunpack.c.l.b16 %v1511
  %v1807 = vunpack.c.l.b16 %v1512
  %v1808 = vunpack.c.l.b16 %v1513
  %v1809 = vunpack.c.l.b16 %v1514
  %v1810 = vunpack.c.l.b16 %v1515
  %v1811 = vunpack.c.l.b16 %v1516
  %v1812 = vunpack.c.l.b16 %v1517
  %v1813 = vunpack.c.l.b16 %v1518
  %v1814 = vunpack.c.l.b16 %v1519
  %v1815 = vunpack.c.l.b16 %v1520
  %v1816 = vunpack.c.l.b16 %v1521
  %v1817 = vunpack.c.l.b16 %v1522
  %v1818 = vunpack.c.l.b16 %v1523
  %v1819 = vunpack.c.l.b16 %v1524
  %v1820 = vunpack.c.l.b16 %v1525
  %v1821 = vunpack.c.l.b16 %v1526
  %v1822 = vunpack.c.l.b16 %v1527
  %v1823 = vunpack.c.l.b16 %v1528
  %v1824 = vunpack.c.l.b16 %v1529
  %v1825 = vunpack.c.l.b16 %v1530
  %v1826 = vunpack.c.l.b16 %v1531
  %v1827 = vunpack.c.l.b16 %v1532
  %v1828 = vunpack.c.l.b16 %v1533
  %v1829 = vunpack.c.l.b16 %v1534
  %v1830 = vunpack.c.l.b16 %v1535
  %v1831 = vunpack.c.l.b16 %v1536
  %v1832 = vunpack.c.l.b16 %v1537
  %v1833 = vunpack.c.l.b16 %v1538
  %v1834 = vunpack.c.l.b16 %v1539
  %v1835 = vunpack.c.l.b16 %v1540
  %v1836 = vunpack.c.l.b16 %v1541
  %v1837 = vunpack.c.l.b16 %v1542
  %v1838 = vunpack.c.l.b16 %v1543
  %v1839 = vunpack.c.l.b16 %v1544
  %v1840 = vunpack.c.l.b16 %v1545
  %v1841 = vunpack.c.l.b16 %v1546
  %v1842 = vunpack.c.l.b16 %v1547
  %v1843 = vunpack.c.l.b16 %v1548
  %v1844 = vunpack.c.l.b16 %v1549
  %v1845 = vunpack.c.l.b16 %v1550
  %v1846 = vunpack.c.l.b16 %v1551
  %v1847 = vunpack.c.l.b16 %v1552
  %v1848 = vunpack.c.l.b16 %v1553
  %v1849 = vunpack.c.l.b16 %v1554
  %v1850 = vunpack.c.l.b16 %v1555
  %v1851 = vunpack.c.l.b16 %v1556
  %v1852 = vunpack.c.l.b16 %v1557
  %v1853 = vunpack.c.l.b16 %v1558
  %v1854 = vunpack.c.l.b16 %v1559
  %v1855 = vunpack.c.l.b16 %v1560
  %v1856 = vunpack.c.l.b16 %v1561
  %v1857 = vunpack.c.l.b16 %v1562
  %v1858 = vunpack.c.l.b16 %v1563
  %v1859 = vunpack.c.l.b16 %v1564
  %v1860 = vpack.c.b16 %v1717, %v1716
  %v1861 = vpack.c.b16 %v1719, %v1718
  %v1862 = vpack.c.b16 %v1721, %v1720
  %v1863 = vpack.c.b16 %v1723, %v1722
  %v1864 = vpack.c.b16 %v1725, %v1724
  %v1865 = vpack.c.b16 %v1727, %v1726
  %v1866 = vpack.c.b16 %v1729, %v1728
  %v1867 = vpack.c.b16 %v1731, %v1730
  %v1868 = vpack.c.b16 %v1733, %v1732
  %v1869 = vpack.c.b16 %v1735, %v1734
  %v1870 = vpack.c.b16 %v1737, %v1736
  %v1871 = vpack.c.b16 %v1739, %v1738
  %v1872 = vpack.c.b16 %v1741, %v1740
  %v1873 = vpack.c.b16 %v1743, %v1742
  %v1874 = vpack.c.b16 %v1745, %v1744
  %v1875 = vpack.c.b16 %v1747, %v1746
  %v1876 = vpack.c.b16 %v1749, %v1748
  %v1877 = vpack.c.b16 %v1751, %v1750
  %v1878 = vpack.c.b16 %v1753, %v1752
  %v1879 = vpack.c.b16 %v1755, %v1754
  %v1880 = vpack.c.b16 %v1757, %v1756
  %v1881 = vpack.c.b16 %v1759, %v1758
  %v1882 = vpack.c.b16 %v1761, %v1760
  %v1883 = vpack.c.b16 %v1763, %v1762
  %v1884 = vpack.c.b16 %v1765, %v1764
  %v1885 = vpack.c.b16 %v1767, %v1766
  %v1886 = vpack.c.b16 %v1769, %v1768
  %v1887 = vpack.c.b16 %v1771, %v1770
  %v1888 = vpack.c.b16 %v1773, %v1772
  %v1889 = vpack.c.b16 %v1775, %v1774
  %v1890 = vpack.c.b16 %v1777, %v1776
  %v1891 = vpack.c.b16 %v1779, %v1778
  %v1892 = vpack.c.b16 %v1781, %v1780
  %v1893 = vpack.c.b16 %v1783, %v1782
  %v1894 = vpack.c.b16 %v1785, %v1784
  %v1895 = vpack.c.b16 %v1787, %v1786
  %v1896 = vpack.c.b16 %v1789, %v1788
  %v1897 = vpack.c.b16 %v1791, %v1790
  %v1898 = vpack.c.b16 %v1793, %v1792
  %v1899 = vpack.c.b16 %v1795, %v1794
  %v1900 = vpack.c.b16 %v1797, %v1796
  %v1901 = vpack.c.b16 %v1799, %v1798
  %v1902 = vpack.c.b16 %v1801, %v1800
  %v1903 = vpack.c.b16 %v1803, %v1802
  %v1904 = vpack.c.b16 %v1805, %v1804
  %v1905 = vpack.c.b16 %v1807, %v1806
  %v1906 = vpack.c.b16 %v1809, %v1808
  %v1907 = vpack.c.b16 %v1811, %v1810
  %v1908 = vpack.c.b16 %v1813, %v1812
  %v1909 = vpack.c.b16 %v1815, %v1814
  %v1910 = vpack.c.b16 %v1817, %v1816
  %v1911 = vpack.c.b16 %v1819, %v1818
  %v1912 = vpack.c.b16 %v1821, %v1820
  %v1913 = vpack.c.b16 %v1823, %v1822
  %v1914 = vpack.c.b16 %v1825, %v1824
  %v1915 = vpack.c.b16 %v1827, %v1826
  %v1916 = vpack.c.b16 %v1829, %v1828
  %v1917 = vpack.c.b16 %v1831, %v1830
  %v1918 = vpack.c.b16 %v1833, %v1832
  %v1919 = vpack.c.b16 %v1835, %v1834
  %v1920 = vpack.c.b16 %v1837, %v1836
  %v1921 = vpack.c.b16 %v1839, %v1838
  %v1922 = vpack.c.b16 %v1841, %v1840
  %v1923 = vpack.c.b16 %v1843, %v1842
  %v1924 = vpack.c.b16 %v1845, %v1844
  %v1925 = vpack.c.b16 %v1847, %v1846
  %v1926 = vpack.c.b16 %v1849, %v1848
  %v1927 = vpack.c.b16 %v1851, %v1850
  %v1928 = vpack.c.b16 %v1853, %v1852
  %v1929 = vpack.c.b16 %v1855, %v1854
  %v1930 = vpack.c.b16 %v1857, %v1856
  %v1931 = vpack.c.b16 %v1859, %v1858
  %2004 = vmatprep.subr.bf16.mxu0 0
  %2005 = vmatpush1.bf16.msra.mxu0 %v1860
  %2006 = vmatprep.subr.bf16.mxu0 0
  %2007 = vmatpush1.bf16.msra.mxu0 %v1861
  %2008 = vmatprep.subr.bf16.mxu0 0
  %2009 = vmatpush1.bf16.msra.mxu0 %v1862
  %2010 = vmatprep.subr.bf16.mxu0 0
  %2011 = vmatpush1.bf16.msra.mxu0 %v1863
  %2012 = vmatprep.subr.bf16.mxu0 0
  %2013 = vmatpush1.bf16.msra.mxu0 %v1864
  %2014 = vmatprep.subr.bf16.mxu0 0
  %2015 = vmatpush1.bf16.msra.mxu0 %v1865
  %2016 = vmatprep.subr.bf16.mxu0 0
  %2017 = vmatpush1.bf16.msra.mxu0 %v1866
  %2018 = vmatprep.subr.bf16.mxu0 0
  %2019 = vmatpush1.bf16.msra.mxu0 %v1867
  %2020 = vmatprep.subr.bf16.mxu0 0
  %2021 = vmatpush1.bf16.msra.mxu0 %v1868
  %2022 = vmatprep.subr.bf16.mxu0 0
  %2023 = vmatpush1.bf16.msra.mxu0 %v1869
  %2024 = vmatprep.subr.bf16.mxu0 0
  %2025 = vmatpush1.bf16.msra.mxu0 %v1870
  %2026 = vmatprep.subr.bf16.mxu0 0
  %2027 = vmatpush1.bf16.msra.mxu0 %v1871
  %2028 = vmatprep.subr.bf16.mxu0 0
  %2029 = vmatpush1.bf16.msra.mxu0 %v1872
  %2030 = vmatprep.subr.bf16.mxu0 0
  %2031 = vmatpush1.bf16.msra.mxu0 %v1873
  %2032 = vmatprep.subr.bf16.mxu0 0
  %2033 = vmatpush1.bf16.msra.mxu0 %v1874
  %2034 = vmatprep.subr.bf16.mxu0 0
  %2035 = vmatpush1.bf16.msra.mxu0 %v1875
  %2036 = vmatprep.mubr.bf16.mxu0 %v1350
  %2037 = vmatmul.mubr.bf16.gmra.mrb[0].mxu0 %v1349
  %v2038 = vpop.f32.mrb[0].mxu0
  %v2039 = vadd.f32 %v1570, %v2038
  %v2040 = vpop.f32.mrb[0].mxu0
  %v2041 = vpop.f32.mrb[0].mxu0
  %v2042 = vadd.f32 %v1570, %v2041
  %v2043 = vpop.f32.mrb[0].mxu0
  %2044 = vmatprep.mubr.bf16.mxu0 %v1359
  %2045 = vmatmul.mubr.bf16.gmra.mrb[0].mxu0 %v1358
  %v2046 = vpop.f32.mrb[0].mxu0
  %v2047 = vadd.f32 %v1570, %v2046
  %v2048 = vpop.f32.mrb[0].mxu0
  %v2049 = vpop.f32.mrb[0].mxu0
  %v2050 = vadd.f32 %v1570, %v2049
  %v2051 = vpop.f32.mrb[0].mxu0
  %2052 = vmatprep.mubr.bf16.mxu0 %v1368
  %2053 = vmatmul.mubr.bf16.gmra.mrb[0].mxu0 %v1367
  %v2054 = vpop.f32.mrb[0].mxu0
  %v2055 = vadd.f32 %v1570, %v2054
  %v2056 = vpop.f32.mrb[0].mxu0
  %v2057 = vpop.f32.mrb[0].mxu0
  %v2058 = vadd.f32 %v1570, %v2057
  %v2059 = vpop.f32.mrb[0].mxu0
  %2060 = vmatprep.mubr.bf16.mxu0 %v1377
  %2061 = vmatmul.mubr.bf16.gmra.mrb[0].mxu0 %v1376
  %v2062 = vpop.f32.mrb[0].mxu0
  %v2063 = vadd.f32 %v1570, %v2062
  %v2064 = vpop.f32.mrb[0].mxu0
  %v2065 = vpop.f32.mrb[0].mxu0
  %v2066 = vadd.f32 %v1570, %v2065
  %v2067 = vpop.f32.mrb[0].mxu0
  %2068 = vmatprep.mubr.bf16.mxu0 %v1386
  %2069 = vmatmul.mubr.bf16.gmra.mrb[0].mxu0 %v1385
  %v2070 = vpop.f32.mrb[0].mxu0
  %v2071 = vadd.f32 %v1570, %v2070
  %v2072 = vpop.f32.mrb[0].mxu0
  %v2073 = vpop.f32.mrb[0].mxu0
  %v2074 = vadd.f32 %v1570, %v2073
  %v2075 = vpop.f32.mrb[0].mxu0
  %2076 = vmatprep.mubr.bf16.mxu0 %v1395
  %2077 = vmatmul.mubr.bf16.gmra.mrb[0].mxu0 %v1394
  %v2078 = vpop.f32.mrb[0].mxu0
  %v2079 = vadd.f32 %v1570, %v2078
  %v2080 = vpop.f32.mrb[0].mxu0
  %v2081 = vpop.f32.mrb[0].mxu0
  %v2082 = vadd.f32 %v1570, %v2081
  %v2083 = vpop.f32.mrb[0].mxu0
  %2084 = vmatprep.mubr.bf16.mxu0 %v1404
  %2085 = vmatmul.mubr.bf16.gmra.mrb[0].mxu0 %v1403
  %v2086 = vpop.f32.mrb[0].mxu0
  %v2087 = vadd.f32 %v1570, %v2086
  %v2088 = vpop.f32.mrb[0].mxu0
  %v2089 = vpop.f32.mrb[0].mxu0
  %v2090 = vadd.f32 %v1570, %v2089
  %v2091 = vpop.f32.mrb[0].mxu0
  %2092 = vmatprep.mubr.bf16.mxu0 %v1413
  %2093 = vmatmul.mubr.bf16.gmra.mrb[0].mxu0 %v1412
  %v2094 = vpop.f32.mrb[0].mxu0
  %v2095 = vadd.f32 %v1570, %v2094
  %v2096 = vpop.f32.mrb[0].mxu0
  %v2097 = vpop.f32.mrb[0].mxu0
  %v2098 = vadd.f32 %v1570, %v2097
  %v2099 = vpop.f32.mrb[0].mxu0
  %2100 = vdwg.mxu0
  %2101 = vmatprep.subr.bf16.mxu0 0
  %2102 = vmatpush1.bf16.msra.mxu0 %v1876
  %2103 = vmatprep.subr.bf16.mxu0 0
  %2104 = vmatpush1.bf16.msra.mxu0 %v1877
  %2105 = vmatprep.subr.bf16.mxu0 0
  %2106 = vmatpush1.bf16.msra.mxu0 %v1878
  %2107 = vmatprep.subr.bf16.mxu0 0
  %2108 = vmatpush1.bf16.msra.mxu0 %v1879
  %2109 = vmatprep.subr.bf16.mxu0 0
  %2110 = vmatpush1.bf16.msra.mxu0 %v1880
  %2111 = vmatprep.subr.bf16.mxu0 0
  %2112 = vmatpush1.bf16.msra.mxu0 %v1881
  %2113 = vmatprep.subr.bf16.mxu0 0
  %2114 = vmatpush1.bf16.msra.mxu0 %v1882
  %2115 = vmatprep.subr.bf16.mxu0 0
  %2116 = vmatpush1.bf16.msra.mxu0 %v1883
  %2117 = vmatprep.subr.bf16.mxu0 0
  %2118 = vmatpush1.bf16.msra.mxu0 %v1884
  %2119 = vmatprep.subr.bf16.mxu0 0
  %2120 = vmatpush1.bf16.msra.mxu0 %v1885
  %2121 = vmatprep.subr.bf16.mxu0 0
  %2122 = vmatpush1.bf16.msra.mxu0 %v1886
  %2123 = vmatprep.subr.bf16.mxu0 0
  %2124 = vmatpush1.bf16.msra.mxu0 %v1887
  %2125 = vmatprep.subr.bf16.mxu0 0
  %2126 = vmatpush1.bf16.msra.mxu0 %v1888
  %2127 = vmatprep.subr.bf16.mxu0 0
  %2128 = vmatpush1.bf16.msra.mxu0 %v1889
  %2129 = vmatprep.subr.bf16.mxu0 0
  %2130 = vmatpush1.bf16.msra.mxu0 %v1890
  %2131 = vmatprep.subr.bf16.mxu0 0
  %2132 = vmatpush1.bf16.msra.mxu0 %v1891
  %2133 = vmatprep.mubr.bf16.mxu0 %v1352
  %2134 = vmatmul.mubr.bf16.gmra.mrb[0].mxu0 %v1351
  %v2135 = vpop.f32.mrb[0].mxu0
  %v2136 = vadd.f32 %v2039, %v2135
  %v2137 = vpop.f32.mrb[0].mxu0
  %v2138 = vpop.f32.mrb[0].mxu0
  %v2139 = vadd.f32 %v2042, %v2138
  %v2140 = vpop.f32.mrb[0].mxu0
  %2141 = vmatprep.mubr.bf16.mxu0 %v1361
  %2142 = vmatmul.mubr.bf16.gmra.mrb[0].mxu0 %v1360
  %v2143 = vpop.f32.mrb[0].mxu0
  %v2144 = vadd.f32 %v2047, %v2143
  %v2145 = vpop.f32.mrb[0].mxu0
  %v2146 = vpop.f32.mrb[0].mxu0
  %v2147 = vadd.f32 %v2050, %v2146
  %v2148 = vpop.f32.mrb[0].mxu0
  %2149 = vmatprep.mubr.bf16.mxu0 %v1370
  %2150 = vmatmul.mubr.bf16.gmra.mrb[0].mxu0 %v1369
  %v2151 = vpop.f32.mrb[0].mxu0
  %v2152 = vadd.f32 %v2055, %v2151
  %v2153 = vpop.f32.mrb[0].mxu0
  %v2154 = vpop.f32.mrb[0].mxu0
  %v2155 = vadd.f32 %v2058, %v2154
  %v2156 = vpop.f32.mrb[0].mxu0
  %2157 = vmatprep.mubr.bf16.mxu0 %v1379
  %2158 = vmatmul.mubr.bf16.gmra.mrb[0].mxu0 %v1378
  %v2159 = vpop.f32.mrb[0].mxu0
  %v2160 = vadd.f32 %v2063, %v2159
  %v2161 = vpop.f32.mrb[0].mxu0
  %v2162 = vpop.f32.mrb[0].mxu0
  %v2163 = vadd.f32 %v2066, %v2162
  %v2164 = vpop.f32.mrb[0].mxu0
  %2165 = vmatprep.mubr.bf16.mxu0 %v1388
  %2166 = vmatmul.mubr.bf16.gmra.mrb[0].mxu0 %v1387
  %v2167 = vpop.f32.mrb[0].mxu0
  %v2168 = vadd.f32 %v2071, %v2167
  %v2169 = vpop.f32.mrb[0].mxu0
  %v2170 = vpop.f32.mrb[0].mxu0
  %v2171 = vadd.f32 %v2074, %v2170
  %v2172 = vpop.f32.mrb[0].mxu0
  %2173 = vmatprep.mubr.bf16.mxu0 %v1397
  %2174 = vmatmul.mubr.bf16.gmra.mrb[0].mxu0 %v1396
  %v2175 = vpop.f32.mrb[0].mxu0
  %v2176 = vadd.f32 %v2079, %v2175
  %v2177 = vpop.f32.mrb[0].mxu0
  %v2178 = vpop.f32.mrb[0].mxu0
  %v2179 = vadd.f32 %v2082, %v2178
  %v2180 = vpop.f32.mrb[0].mxu0
  %2181 = vmatprep.mubr.bf16.mxu0 %v1406
  %2182 = vmatmul.mubr.bf16.gmra.mrb[0].mxu0 %v1405
  %v2183 = vpop.f32.mrb[0].mxu0
  %v2184 = vadd.f32 %v2087, %v2183
  %v2185 = vpop.f32.mrb[0].mxu0
  %v2186 = vpop.f32.mrb[0].mxu0
  %v2187 = vadd.f32 %v2090, %v2186
  %v2188 = vpop.f32.mrb[0].mxu0
  %2189 = vmatprep.mubr.bf16.mxu0 %v1415
  %2190 = vmatmul.mubr.bf16.gmra.mrb[0].mxu0 %v1414
  %v2191 = vpop.f32.mrb[0].mxu0
  %v2192 = vadd.f32 %v2095, %v2191
  %v2193 = vpop.f32.mrb[0].mxu0
  %v2194 = vpop.f32.mrb[0].mxu0
  %v2195 = vadd.f32 %v2098, %v2194
  %v2196 = vpop.f32.mrb[0].mxu0
  %2197 = vdwg.mxu0
  %2198 = vmatprep.subr.bf16.mxu0 0
  %2199 = vmatpush1.bf16.msra.mxu0 %v1892
  %2200 = vmatprep.subr.bf16.mxu0 0
  %2201 = vmatpush1.bf16.msra.mxu0 %v1893
  %2202 = vmatprep.subr.bf16.mxu0 0
  %2203 = vmatpush1.bf16.msra.mxu0 %v1894
  %2204 = vmatprep.subr.bf16.mxu0 0
  %2205 = vmatpush1.bf16.msra.mxu0 %v1895
  %2206 = vmatprep.subr.bf16.mxu0 0
  %2207 = vmatpush1.bf16.msra.mxu0 %v1896
  %2208 = vmatprep.subr.bf16.mxu0 0
  %2209 = vmatpush1.bf16.msra.mxu0 %v1897
  %2210 = vmatprep.subr.bf16.mxu0 0
  %2211 = vmatpush1.bf16.msra.mxu0 %v1898
  %2212 = vmatprep.subr.bf16.mxu0 0
  %2213 = vmatpush1.bf16.msra.mxu0 %v1899
  %2214 = vmatprep.subr.bf16.mxu0 0
  %2215 = vmatpush1.bf16.msra.mxu0 %v1900
  %2216 = vmatprep.subr.bf16.mxu0 0
  %2217 = vmatpush1.bf16.msra.mxu0 %v1901
  %2218 = vmatprep.subr.bf16.mxu0 0
  %2219 = vmatpush1.bf16.msra.mxu0 %v1902
  %2220 = vmatprep.subr.bf16.mxu0 0
  %2221 = vmatpush1.bf16.msra.mxu0 %v1903
  %2222 = vmatprep.subr.bf16.mxu0 0
  %2223 = vmatpush1.bf16.msra.mxu0 %v1904
  %2224 = vmatprep.subr.bf16.mxu0 0
  %2225 = vmatpush1.bf16.msra.mxu0 %v1905
  %2226 = vmatprep.subr.bf16.mxu0 0
  %2227 = vmatpush1.bf16.msra.mxu0 %v1906
  %2228 = vmatprep.subr.bf16.mxu0 0
  %2229 = vmatpush1.bf16.msra.mxu0 %v1907
  %2230 = vmatprep.mubr.bf16.mxu0 %v1354
  %2231 = vmatmul.mubr.bf16.gmra.mrb[0].mxu0 %v1353
  %v2232 = vpop.f32.mrb[0].mxu0
  %v2233 = vadd.f32 %v2136, %v2232
  %v2234 = vpop.f32.mrb[0].mxu0
  %v2235 = vpop.f32.mrb[0].mxu0
  %v2236 = vadd.f32 %v2139, %v2235
  %v2237 = vpop.f32.mrb[0].mxu0
  %2238 = vmatprep.mubr.bf16.mxu0 %v1363
  %2239 = vmatmul.mubr.bf16.gmra.mrb[0].mxu0 %v1362
  %v2240 = vpop.f32.mrb[0].mxu0
  %v2241 = vadd.f32 %v2144, %v2240
  %v2242 = vpop.f32.mrb[0].mxu0
  %v2243 = vpop.f32.mrb[0].mxu0
  %v2244 = vadd.f32 %v2147, %v2243
  %v2245 = vpop.f32.mrb[0].mxu0
  %2246 = vmatprep.mubr.bf16.mxu0 %v1372
  %2247 = vmatmul.mubr.bf16.gmra.mrb[0].mxu0 %v1371
  %v2248 = vpop.f32.mrb[0].mxu0
  %v2249 = vadd.f32 %v2152, %v2248
  %v2250 = vpop.f32.mrb[0].mxu0
  %v2251 = vpop.f32.mrb[0].mxu0
  %v2252 = vadd.f32 %v2155, %v2251
  %v2253 = vpop.f32.mrb[0].mxu0
  %2254 = vmatprep.mubr.bf16.mxu0 %v1381
  %2255 = vmatmul.mubr.bf16.gmra.mrb[0].mxu0 %v1380
  %v2256 = vpop.f32.mrb[0].mxu0
  %v2257 = vadd.f32 %v2160, %v2256
  %v2258 = vpop.f32.mrb[0].mxu0
  %v2259 = vpop.f32.mrb[0].mxu0
  %v2260 = vadd.f32 %v2163, %v2259
  %v2261 = vpop.f32.mrb[0].mxu0
  %2262 = vmatprep.mubr.bf16.mxu0 %v1390
  %2263 = vmatmul.mubr.bf16.gmra.mrb[0].mxu0 %v1389
  %v2264 = vpop.f32.mrb[0].mxu0
  %v2265 = vadd.f32 %v2168, %v2264
  %v2266 = vpop.f32.mrb[0].mxu0
  %v2267 = vpop.f32.mrb[0].mxu0
  %v2268 = vadd.f32 %v2171, %v2267
  %v2269 = vpop.f32.mrb[0].mxu0
  %2270 = vmatprep.mubr.bf16.mxu0 %v1399
  %2271 = vmatmul.mubr.bf16.gmra.mrb[0].mxu0 %v1398
  %v2272 = vpop.f32.mrb[0].mxu0
  %v2273 = vadd.f32 %v2176, %v2272
  %v2274 = vpop.f32.mrb[0].mxu0
  %v2275 = vpop.f32.mrb[0].mxu0
  %v2276 = vadd.f32 %v2179, %v2275
  %v2277 = vpop.f32.mrb[0].mxu0
  %2278 = vmatprep.mubr.bf16.mxu0 %v1408
  %2279 = vmatmul.mubr.bf16.gmra.mrb[0].mxu0 %v1407
  %v2280 = vpop.f32.mrb[0].mxu0
  %v2281 = vadd.f32 %v2184, %v2280
  %v2282 = vpop.f32.mrb[0].mxu0
  %v2283 = vpop.f32.mrb[0].mxu0
  %v2284 = vadd.f32 %v2187, %v2283
  %v2285 = vpop.f32.mrb[0].mxu0
  %2286 = vmatprep.mubr.bf16.mxu0 %v1417
  %2287 = vmatmul.mubr.bf16.gmra.mrb[0].mxu0 %v1416
  %v2288 = vpop.f32.mrb[0].mxu0
  %v2289 = vadd.f32 %v2192, %v2288
  %v2290 = vpop.f32.mrb[0].mxu0
  %v2291 = vpop.f32.mrb[0].mxu0
  %v2292 = vadd.f32 %v2195, %v2291
  %v2293 = vpop.f32.mrb[0].mxu0
  %2294 = vdwg.mxu0
  %2295 = vmatprep.subr.bf16.mxu0 0
  %2296 = vmatpush1.bf16.msra.mxu0 %v1908
  %2297 = vmatprep.subr.bf16.mxu0 0
  %2298 = vmatpush1.bf16.msra.mxu0 %v1909
  %2299 = vmatprep.subr.bf16.mxu0 0
  %2300 = vmatpush1.bf16.msra.mxu0 %v1910
  %2301 = vmatprep.subr.bf16.mxu0 0
  %2302 = vmatpush1.bf16.msra.mxu0 %v1911
  %2303 = vmatprep.subr.bf16.mxu0 0
  %2304 = vmatpush1.bf16.msra.mxu0 %v1912
  %2305 = vmatprep.subr.bf16.mxu0 0
  %2306 = vmatpush1.bf16.msra.mxu0 %v1913
  %2307 = vmatprep.subr.bf16.mxu0 0
  %2308 = vmatpush1.bf16.msra.mxu0 %v1914
  %2309 = vmatprep.subr.bf16.mxu0 0
  %2310 = vmatpush1.bf16.msra.mxu0 %v1915
  %2311 = vmatprep.subr.bf16.mxu0 0
  %2312 = vmatpush1.bf16.msra.mxu0 %v1916
  %2313 = vmatprep.subr.bf16.mxu0 0
  %2314 = vmatpush1.bf16.msra.mxu0 %v1917
  %2315 = vmatprep.subr.bf16.mxu0 0
  %2316 = vmatpush1.bf16.msra.mxu0 %v1918
  %2317 = vmatprep.subr.bf16.mxu0 0
  %2318 = vmatpush1.bf16.msra.mxu0 %v1919
  %2319 = vmatprep.subr.bf16.mxu0 0
  %2320 = vmatpush1.bf16.msra.mxu0 %v1920
  %2321 = vmatprep.subr.bf16.mxu0 0
  %2322 = vmatpush1.bf16.msra.mxu0 %v1921
  %2323 = vmatprep.subr.bf16.mxu0 0
  %2324 = vmatpush1.bf16.msra.mxu0 %v1922
  %2325 = vmatprep.subr.bf16.mxu0 0
  %2326 = vmatpush1.bf16.msra.mxu0 %v1923
  %2327 = vmatprep.mubr.bf16.mxu0 %v1356
  %2328 = vmatmul.mubr.bf16.gmra.mrb[0].mxu0 %v1355
  %v2329 = vpop.f32.mrb[0].mxu0
  %v2330 = vadd.f32 %v2233, %v2329
  %v2331 = vpop.f32.mrb[0].mxu0
  %v2332 = vpop.f32.mrb[0].mxu0
  %v2333 = vadd.f32 %v2236, %v2332
  %v2334 = vpop.f32.mrb[0].mxu0
  %2335 = vmatprep.mubr.bf16.mxu0 %v1365
  %2336 = vmatmul.mubr.bf16.gmra.mrb[0].mxu0 %v1364
  %v2337 = vpop.f32.mrb[0].mxu0
  %v2338 = vadd.f32 %v2241, %v2337
  %v2339 = vpop.f32.mrb[0].mxu0
  %v2340 = vpop.f32.mrb[0].mxu0
  %v2341 = vadd.f32 %v2244, %v2340
  %v2342 = vpop.f32.mrb[0].mxu0
  %2343 = vmatprep.mubr.bf16.mxu0 %v1374
  %2344 = vmatmul.mubr.bf16.gmra.mrb[0].mxu0 %v1373
  %v2345 = vpop.f32.mrb[0].mxu0
  %v2346 = vadd.f32 %v2249, %v2345
  %v2347 = vpop.f32.mrb[0].mxu0
  %v2348 = vpop.f32.mrb[0].mxu0
  %v2349 = vadd.f32 %v2252, %v2348
  %v2350 = vpop.f32.mrb[0].mxu0
  %2351 = vmatprep.mubr.bf16.mxu0 %v1383
  %2352 = vmatmul.mubr.bf16.gmra.mrb[0].mxu0 %v1382
  %v2353 = vpop.f32.mrb[0].mxu0
  %v2354 = vadd.f32 %v2257, %v2353
  %v2355 = vpop.f32.mrb[0].mxu0
  %v2356 = vpop.f32.mrb[0].mxu0
  %v2357 = vadd.f32 %v2260, %v2356
  %v2358 = vpop.f32.mrb[0].mxu0
  %2359 = vmatprep.mubr.bf16.mxu0 %v1392
  %2360 = vmatmul.mubr.bf16.gmra.mrb[0].mxu0 %v1391
  %v2361 = vpop.f32.mrb[0].mxu0
  %v2362 = vadd.f32 %v2265, %v2361
  %v2363 = vpop.f32.mrb[0].mxu0
  %v2364 = vpop.f32.mrb[0].mxu0
  %v2365 = vadd.f32 %v2268, %v2364
  %v2366 = vpop.f32.mrb[0].mxu0
  %2367 = vmatprep.mubr.bf16.mxu0 %v1401
  %2368 = vmatmul.mubr.bf16.gmra.mrb[0].mxu0 %v1400
  %v2369 = vpop.f32.mrb[0].mxu0
  %v2370 = vadd.f32 %v2273, %v2369
  %v2371 = vpop.f32.mrb[0].mxu0
  %v2372 = vpop.f32.mrb[0].mxu0
  %v2373 = vadd.f32 %v2276, %v2372
  %v2374 = vpop.f32.mrb[0].mxu0
  %2375 = vmatprep.mubr.bf16.mxu0 %v1410
  %2376 = vmatmul.mubr.bf16.gmra.mrb[0].mxu0 %v1409
  %v2377 = vpop.f32.mrb[0].mxu0
  %v2378 = vadd.f32 %v2281, %v2377
  %v2379 = vpop.f32.mrb[0].mxu0
  %v2380 = vpop.f32.mrb[0].mxu0
  %v2381 = vadd.f32 %v2284, %v2380
  %v2382 = vpop.f32.mrb[0].mxu0
  %2383 = vmatprep.mubr.bf16.mxu0 %v1419
  %2384 = vmatmul.mubr.bf16.gmra.mrb[0].mxu0 %v1418
  %v2385 = vpop.f32.mrb[0].mxu0
  %v2386 = vadd.f32 %v2289, %v2385
  %v2387 = vpop.f32.mrb[0].mxu0
  %v2388 = vpop.f32.mrb[0].mxu0
  %v2389 = vadd.f32 %v2292, %v2388
  %v2390 = vpop.f32.mrb[0].mxu0
  %2391 = vdwg.mxu0
  %2392 = vmatprep.subr.bf16.mxu0 0
  %2393 = vmatpush1.bf16.msra.mxu0 %v1924
  %2394 = vmatprep.subr.bf16.mxu0 0
  %2395 = vmatpush1.bf16.msra.mxu0 %v1925
  %2396 = vmatprep.subr.bf16.mxu0 0
  %2397 = vmatpush1.bf16.msra.mxu0 %v1926
  %2398 = vmatprep.subr.bf16.mxu0 0
  %2399 = vmatpush1.bf16.msra.mxu0 %v1927
  %2400 = vmatprep.subr.bf16.mxu0 0
  %2401 = vmatpush1.bf16.msra.mxu0 %v1928
  %2402 = vmatprep.subr.bf16.mxu0 0
  %2403 = vmatpush1.bf16.msra.mxu0 %v1929
  %2404 = vmatprep.subr.bf16.mxu0 0
  %2405 = vmatpush1.bf16.msra.mxu0 %v1930
  %2406 = vmatprep.subr.bf16.mxu0 0
  %2407 = vmatpush1.bf16.msra.mxu0 %v1931
  %2408 = vmatprep.subr.bf16.mxu0 0
  %2409 = vmatpush1.bf16.msra.mxu0 0
  %2410 = vmatprep.subr.bf16.mxu0 0
  %2411 = vmatpush1.bf16.msra.mxu0 0
  %2412 = vmatprep.subr.bf16.mxu0 0
  %2413 = vmatpush1.bf16.msra.mxu0 0
  %2414 = vmatprep.subr.bf16.mxu0 0
  %2415 = vmatpush1.bf16.msra.mxu0 0
  %2416 = vmatprep.subr.bf16.mxu0 0
  %2417 = vmatpush1.bf16.msra.mxu0 0
  %2418 = vmatprep.subr.bf16.mxu0 0
  %2419 = vmatpush1.bf16.msra.mxu0 0
  %2420 = vmatprep.subr.bf16.mxu0 0
  %2421 = vmatpush1.bf16.msra.mxu0 0
  %2422 = vmatprep.subr.bf16.mxu0 0
  %2423 = vmatpush1.bf16.msra.mxu0 0
  %2424 = vmatprep.mubr.bf16.mxu0 0
  %2425 = vmatmul.mubr.bf16.gmra.mrb[0].mxu0 %v1357
  %v2426 = vpop.f32.mrb[0].mxu0
  %v2427 = vadd.f32 %v2330, %v2426
  %v2428 = vpop.f32.mrb[0].mxu0
  %v2429 = vpop.f32.mrb[0].mxu0
  %v2430 = vadd.f32 %v2333, %v2429
  %v2431 = vpop.f32.mrb[0].mxu0
  %2432 = vmatprep.mubr.bf16.mxu0 0
  %2433 = vmatmul.mubr.bf16.gmra.mrb[0].mxu0 %v1366
  %v2434 = vpop.f32.mrb[0].mxu0
  %v2435 = vadd.f32 %v2338, %v2434
  %v2436 = vpop.f32.mrb[0].mxu0
  %v2437 = vpop.f32.mrb[0].mxu0
  %v2438 = vadd.f32 %v2341, %v2437
  %v2439 = vpop.f32.mrb[0].mxu0
  %2440 = vmatprep.mubr.bf16.mxu0 0
  %2441 = vmatmul.mubr.bf16.gmra.mrb[0].mxu0 %v1375
  %v2442 = vpop.f32.mrb[0].mxu0
  %v2443 = vadd.f32 %v2346, %v2442
  %v2444 = vpop.f32.mrb[0].mxu0
  %v2445 = vpop.f32.mrb[0].mxu0
  %v2446 = vadd.f32 %v2349, %v2445
  %v2447 = vpop.f32.mrb[0].mxu0
  %2448 = vmatprep.mubr.bf16.mxu0 0
  %2449 = vmatmul.mubr.bf16.gmra.mrb[0].mxu0 %v1384
  %v2450 = vpop.f32.mrb[0].mxu0
  %v2451 = vadd.f32 %v2354, %v2450
  %v2452 = vpop.f32.mrb[0].mxu0
  %v2453 = vpop.f32.mrb[0].mxu0
  %v2454 = vadd.f32 %v2357, %v2453
  %v2455 = vpop.f32.mrb[0].mxu0
  %2456 = vmatprep.mubr.bf16.mxu0 0
  %2457 = vmatmul.mubr.bf16.gmra.mrb[0].mxu0 %v1393
  %v2458 = vpop.f32.mrb[0].mxu0
  %v2459 = vadd.f32 %v2362, %v2458
  %v2460 = vpop.f32.mrb[0].mxu0
  %v2461 = vpop.f32.mrb[0].mxu0
  %v2462 = vadd.f32 %v2365, %v2461
  %v2463 = vpop.f32.mrb[0].mxu0
  %2464 = vmatprep.mubr.bf16.mxu0 0
  %2465 = vmatmul.mubr.bf16.gmra.mrb[0].mxu0 %v1402
  %v2466 = vpop.f32.mrb[0].mxu0
  %v2467 = vadd.f32 %v2370, %v2466
  %v2468 = vpop.f32.mrb[0].mxu0
  %v2469 = vpop.f32.mrb[0].mxu0
  %v2470 = vadd.f32 %v2373, %v2469
  %v2471 = vpop.f32.mrb[0].mxu0
  %2472 = vmatprep.mubr.bf16.mxu0 0
  %2473 = vmatmul.mubr.bf16.gmra.mrb[0].mxu0 %v1411
  %v2474 = vpop.f32.mrb[0].mxu0
  %v2475 = vadd.f32 %v2378, %v2474
  %v2476 = vpop.f32.mrb[0].mxu0
  %v2477 = vpop.f32.mrb[0].mxu0
  %v2478 = vadd.f32 %v2381, %v2477
  %v2479 = vpop.f32.mrb[0].mxu0
  %2480 = vmatprep.mubr.bf16.mxu0 0
  %2481 = vmatmul.mubr.bf16.gmra.mrb[0].mxu0 %v1420
  %v2482 = vpop.f32.mrb[0].mxu0
  %v2483 = vadd.f32 %v2386, %v2482
  %v2484 = vpop.f32.mrb[0].mxu0
  %v2485 = vpop.f32.mrb[0].mxu0
  %v2486 = vadd.f32 %v2389, %v2485
  %v2487 = vpop.f32.mrb[0].mxu0
  %2488 = vdwg.mxu0
  %v2489 = vmax.f32 %v2427, 0.0
  %v2490 = vmax.f32 %v2430, 0.0
  %v2491 = vmax.f32 %v2435, 0.0
  %v2492 = vmax.f32 %v2438, 0.0
  %v2493 = vmax.f32 %v2443, 0.0
  %v2494 = vmax.f32 %v2446, 0.0
  %v2495 = vmax.f32 %v2451, 0.0
  %v2496 = vmax.f32 %v2454, 0.0
  %v2497 = vmax.f32 %v2459, 0.0
  %v2498 = vmax.f32 %v2462, 0.0
  %v2499 = vmax.f32 %v2467, 0.0
  %v2500 = vmax.f32 %v2470, 0.0
  %v2501 = vmax.f32 %v2475, 0.0
  %v2502 = vmax.f32 %v2478, 0.0
  %v2503 = vmax.f32 %v2483, 0.0
  %v2504 = vmax.f32 %v2486, 0.0
  %v2505 = vpack.c.bf16 %v2490, %v2489
  %v2506 = vpack.c.bf16 %v2492, %v2491
  %v2507 = vpack.c.bf16 %v2494, %v2493
  %v2508 = vpack.c.bf16 %v2496, %v2495
  %v2509 = vpack.c.bf16 %v2498, %v2497
  %v2510 = vpack.c.bf16 %v2500, %v2499
  %v2511 = vpack.c.bf16 %v2502, %v2501
  %v2512 = vpack.c.bf16 %v2504, %v2503
  %v2521 = vunpack.c.l.b16 %v2505
  %v2522 = vunpack.c.h.b16 %v2505
  %v2523 = vunpack.c.l.b16 %v2506
  %v2524 = vunpack.c.h.b16 %v2506
  %v2525 = vunpack.c.l.b16 %v2507
  %v2526 = vunpack.c.h.b16 %v2507
  %v2527 = vunpack.c.l.b16 %v2508
  %v2528 = vunpack.c.h.b16 %v2508
  %v2529 = vunpack.c.l.b16 %v2509
  %v2530 = vunpack.c.h.b16 %v2509
  %v2531 = vunpack.c.l.b16 %v2510
  %v2532 = vunpack.c.h.b16 %v2510
  %v2533 = vunpack.c.l.b16 %v2511
  %v2534 = vunpack.c.h.b16 %v2511
  %v2535 = vunpack.c.l.b16 %v2512
  %v2536 = vunpack.c.h.b16 %v2512
  %v2537 = vpack.c.b16 %v2521, %v2521
  %v2538 = vpack.c.b16 %v2522, %v2522
  %v2539 = vpack.c.b16 %v2523, %v2523
  %v2540 = vpack.c.b16 %v2524, %v2524
  %v2541 = vpack.c.b16 %v2525, %v2525
  %v2542 = vpack.c.b16 %v2526, %v2526
  %v2543 = vpack.c.b16 %v2527, %v2527
  %v2544 = vpack.c.b16 %v2528, %v2528
  %v2545 = vpack.c.b16 %v2529, %v2529
  %v2546 = vpack.c.b16 %v2530, %v2530
  %v2547 = vpack.c.b16 %v2531, %v2531
  %v2548 = vpack.c.b16 %v2532, %v2532
  %v2549 = vpack.c.b16 %v2533, %v2533
  %v2550 = vpack.c.b16 %v2534, %v2534
  %v2551 = vpack.c.b16 %v2535, %v2535
  %v2552 = vpack.c.b16 %v2536, %v2536
  %2569 = vst [vmem:[%s6] sm:$0xf] %v2537
  %2570 = vst [vmem:[%s6 + $0x4] sm:$0xf] %v2538
  %2571 = vst [vmem:[%s6 + $0x8] sm:$0xf] %v2539
  %2572 = vst [vmem:[%s6 + $0xc] sm:$0xf] %v2540
  %2573 = vst [vmem:[%s6 + $0x10] sm:$0xf] %v2541
  %2574 = vst [vmem:[%s6 + $0x14] sm:$0xf] %v2542
  %2575 = vst [vmem:[%s6 + $0x18] sm:$0xf] %v2543
  %2576 = vst [vmem:[%s6 + $0x1c] sm:$0xf] %v2544
  %2577 = vst [vmem:[%s6 + $0x20] sm:$0xf] %v2545
  %2578 = vst [vmem:[%s6 + $0x24] sm:$0xf] %v2546
  %2579 = vst [vmem:[%s6 + $0x28] sm:$0xf] %v2547
  %2580 = vst [vmem:[%s6 + $0x2c] sm:$0xf] %v2548
  %2581 = vst [vmem:[%s6 + $0x30] sm:$0xf] %v2549
  %2582 = vst [vmem:[%s6 + $0x34] sm:$0xf] %v2550
  %2583 = vst [vmem:[%s6 + $0x38] sm:$0xf] %v2551
  %2584 = vst [vmem:[%s6 + $0x3c] sm:$0xf] %v2552
  // Predicated region
  $region26: #{_lambda_.4} parent=0 // pred_check
    _
  $region27: #{_lambda_.4} parent=0 // pred_check_branch
    %2586 = sbr.rel (0) target = $region29
  $region28: #{_lambda_.4} parent=0 // pred_region
    _
  $region29: #{_lambda_.4} parent=0 // pred_fallthru
    _
  // Predicated region
  $region30: #{_lambda_.4} parent=0 // pred_check
    _
  $region31: #{_lambda_.4} parent=0 // pred_check_branch
    %2588 = sbr.rel (0) target = $region33
  $region32: #{_lambda_.4} parent=0 // pred_region
    _
  $region33: #{_lambda_.4} parent=0 // pred_fallthru
    _

// kernel: _lambda_.5
$region0: #{_lambda_.5}
  #allocation0 [shape = 'u32[]', space=smem, size = 0x4, offset = 0x4, fixed_abs, tag = 'smem constant byte address 0x4 - core index']
  #allocation1 [shape = 'u32[144,128]{1,0:T(1,128)}', space=vmem, size = 0x12000, scoped, tag = 'internal scratch']
  #allocation2 [shape = 'bf16[128,1280]{1,0:T(16,128)(2,1)}', space=vmem, size = 0x50000, scoped, tag = 'scratch operand']
  %s0 = inlined_call_operand.vmem [shape: bf16[2,10,10,128], index: 0, kind: input, shape index: {}]
  %s1 = inlined_call_operand.vmem [shape: bf16[1280,128], index: 1, kind: input, shape index: {}]
  %s2 = inlined_call_operand.vmem [shape: f32[1,128], index: 2, kind: input, shape index: {}]
  %s3 = inlined_call_operand.vmem [shape: bf16[2,9,9,128], index: 3, kind: input, shape index: {}]
  %s4 = inlined_call_operand.vmem [shape: bf16[128,128], index: 4, kind: output, shape index: {}]
  %s5 = sld [smem:[#allocation0]]
  $region26: #{_lambda_.5} parent=0
    _
  %s7 = ssub.s32 1, %s5
  %s8 = scalar_select 0, %s7, %s5
  // Predicated region
  $region2: #{_lambda_.5} parent=0 // pred_check
    _
  $region3: #{_lambda_.5} parent=0 // pred_check_branch
    %10 = sbr.rel (0) target = $region5
  $region4: #{_lambda_.5} parent=0 // pred_region
    _
  $region5: #{_lambda_.5} parent=0 // pred_fallthru
    _
  // Predicated region
  $region6: #{_lambda_.5} parent=0 // pred_check
    _
  $region7: #{_lambda_.5} parent=0 // pred_check_branch
    %12 = sbr.rel (0) target = $region9
  $region8: #{_lambda_.5} parent=0 // pred_region
    _
  $region9: #{_lambda_.5} parent=0 // pred_fallthru
    _
  // Predicated region
  $region10: #{_lambda_.5} parent=0 // pred_check
    _
  $region11: #{_lambda_.5} parent=0 // pred_check_branch
    %14 = sbr.rel (0) target = $region13
  $region12: #{_lambda_.5} parent=0 // pred_region
    _
  $region13: #{_lambda_.5} parent=0 // pred_fallthru
    _
  // Predicated region
  $region14: #{_lambda_.5} parent=0 // pred_check
    _
  $region15: #{_lambda_.5} parent=0 // pred_check_branch
    %16 = sbr.rel (0) target = $region17
  $region16: #{_lambda_.5} parent=0 // pred_region
    _
  $region17: #{_lambda_.5} parent=0 // pred_fallthru
    _
  %v18 = vld [vmem:[%s0] sm:$0xf]
  %v19 = vld [vmem:[%s0 + $0x8] sm:$0xf]
  %v20 = vld [vmem:[%s0 + $0x10] sm:$0xf]
  %v21 = vld [vmem:[%s0 + $0x18] sm:$0xf]
  %v22 = vld [vmem:[%s0 + $0x20] sm:$0xf]
  %v23 = vld [vmem:[%s0 + $0x28] sm:$0xf]
  %v24 = vld [vmem:[%s0 + $0x30] sm:$0xf]
  %v25 = vld [vmem:[%s0 + $0x38] sm:$0xf]
  %v26 = vld [vmem:[%s0 + $0x50] sm:$0xf]
  %v27 = vld [vmem:[%s0 + $0x58] sm:$0xf]
  %v28 = vld [vmem:[%s0 + $0x60] sm:$0xf]
  %v29 = vld [vmem:[%s0 + $0x68] sm:$0xf]
  %v30 = vld [vmem:[%s0 + $0x70] sm:$0xf]
  %v31 = vld [vmem:[%s0 + $0x78] sm:$0xf]
  %v32 = vld [vmem:[%s0 + $0x80] sm:$0xf]
  %v33 = vld [vmem:[%s0 + $0x88] sm:$0xf]
  %v50 = vunpack.c.l.b16 %v18
  %v51 = vunpack.c.l.b16 %v19
  %v52 = vunpack.c.l.b16 %v20
  %v53 = vunpack.c.l.b16 %v21
  %v54 = vunpack.c.l.b16 %v22
  %v55 = vunpack.c.l.b16 %v23
  %v56 = vunpack.c.l.b16 %v24
  %v57 = vunpack.c.l.b16 %v25
  %v58 = vunpack.c.l.b16 %v26
  %v59 = vunpack.c.l.b16 %v27
  %v60 = vunpack.c.l.b16 %v28
  %v61 = vunpack.c.l.b16 %v29
  %v62 = vunpack.c.l.b16 %v30
  %v63 = vunpack.c.l.b16 %v31
  %v64 = vunpack.c.l.b16 %v32
  %v65 = vunpack.c.l.b16 %v33
  %v66 = vpack.c.b16 %v51, %v50
  %v67 = vpack.c.b16 %v53, %v52
  %v68 = vpack.c.b16 %v55, %v54
  %v69 = vpack.c.b16 %v57, %v56
  %v70 = vpack.c.b16 %v59, %v58
  %v71 = vpack.c.b16 %v61, %v60
  %v72 = vpack.c.b16 %v63, %v62
  %v73 = vpack.c.b16 %v65, %v64
  %82 = vst [vmem:[#allocation2] sm:$0xff] %v66
  %83 = vst [vmem:[#allocation2 + $0x50] sm:$0xff] %v67
  %84 = vst [vmem:[#allocation2 + $0xa0] sm:$0xff] %v68
  %85 = vst [vmem:[#allocation2 + $0xf0] sm:$0xff] %v69
  %86 = vst [vmem:[#allocation2 + $0x140] sm:$0xff] %v70
  %87 = vst [vmem:[#allocation2 + $0x190] sm:$0xff] %v71
  %88 = vst [vmem:[#allocation2 + $0x1e0] sm:$0xff] %v72
  %89 = vst [vmem:[#allocation2 + $0x230] sm:$0xff] %v73
  %v90 = vld [vmem:[%s0] sm:$0xf]
  %v91 = vld [vmem:[%s0 + $0x4] sm:$0x1]
  %v92 = vld [vmem:[%s0 + $0x8] sm:$0xf]
  %v93 = vld [vmem:[%s0 + $0xc] sm:$0x1]
  %v94 = vld [vmem:[%s0 + $0x10] sm:$0xf]
  %v95 = vld [vmem:[%s0 + $0x14] sm:$0x1]
  %v96 = vld [vmem:[%s0 + $0x18] sm:$0xf]
  %v97 = vld [vmem:[%s0 + $0x1c] sm:$0x1]
  %v98 = vld [vmem:[%s0 + $0x20] sm:$0xf]
  %v99 = vld [vmem:[%s0 + $0x24] sm:$0x1]
  %v100 = vld [vmem:[%s0 + $0x28] sm:$0xf]
  %v101 = vld [vmem:[%s0 + $0x2c] sm:$0x1]
  %v102 = vld [vmem:[%s0 + $0x30] sm:$0xf]
  %v103 = vld [vmem:[%s0 + $0x34] sm:$0x1]
  %v104 = vld [vmem:[%s0 + $0x38] sm:$0xf]
  %v105 = vld [vmem:[%s0 + $0x3c] sm:$0x1]
  %v106 = vld [vmem:[%s0 + $0x50] sm:$0xf]
  %v107 = vld [vmem:[%s0 + $0x54] sm:$0x1]
  %v108 = vld [vmem:[%s0 + $0x58] sm:$0xf]
  %v109 = vld [vmem:[%s0 + $0x5c] sm:$0x1]
  %v110 = vld [vmem:[%s0 + $0x60] sm:$0xf]
  %v111 = vld [vmem:[%s0 + $0x64] sm:$0x1]
  %v112 = vld [vmem:[%s0 + $0x68] sm:$0xf]
  %v113 = vld [vmem:[%s0 + $0x6c] sm:$0x1]
  %v114 = vld [vmem:[%s0 + $0x70] sm:$0xf]
  %v115 = vld [vmem:[%s0 + $0x74] sm:$0x1]
  %v116 = vld [vmem:[%s0 + $0x78] sm:$0xf]
  %v117 = vld [vmem:[%s0 + $0x7c] sm:$0x1]
  %v118 = vld [vmem:[%s0 + $0x80] sm:$0xf]
  %v119 = vld [vmem:[%s0 + $0x84] sm:$0x1]
  %v120 = vld [vmem:[%s0 + $0x88] sm:$0xf]
  %v121 = vld [vmem:[%s0 + $0x8c] sm:$0x1]
  %vm122 = vsmask.f32 3328
  %vm123 = vsmask.f32 7440
  %vm124 = vmor %vm122, %vm123
  %v126 = vshrl.u32 %v90, 16
  %v128 = vrot.slane %v126, 4
  %v129 = vshll.u32 %v90, 16
  %v131 = vrot.slane %v129, 5
  %v132 = vor.u32 %v128, %v131
  %v133 = vrot.slane %v132, 4
  %v135 = vshll.u32 %v91, 16
  %v137 = vrot.slane %v135, 5
  %v138 = vsel %vm124, %v133, %v137
  %v140 = vshrl.u32 %v92, 16
  %v142 = vrot.slane %v140, 4
  %v143 = vshll.u32 %v92, 16
  %v145 = vrot.slane %v143, 5
  %v146 = vor.u32 %v142, %v145
  %v147 = vrot.slane %v146, 4
  %v149 = vshll.u32 %v93, 16
  %v151 = vrot.slane %v149, 5
  %v152 = vsel %vm124, %v147, %v151
  %v154 = vshrl.u32 %v94, 16
  %v156 = vrot.slane %v154, 4
  %v157 = vshll.u32 %v94, 16
  %v159 = vrot.slane %v157, 5
  %v160 = vor.u32 %v156, %v159
  %v161 = vrot.slane %v160, 4
  %v163 = vshll.u32 %v95, 16
  %v165 = vrot.slane %v163, 5
  %v166 = vsel %vm124, %v161, %v165
  %v168 = vshrl.u32 %v96, 16
  %v170 = vrot.slane %v168, 4
  %v171 = vshll.u32 %v96, 16
  %v173 = vrot.slane %v171, 5
  %v174 = vor.u32 %v170, %v173
  %v175 = vrot.slane %v174, 4
  %v177 = vshll.u32 %v97, 16
  %v179 = vrot.slane %v177, 5
  %v180 = vsel %vm124, %v175, %v179
  %v182 = vshrl.u32 %v98, 16
  %v184 = vrot.slane %v182, 4
  %v185 = vshll.u32 %v98, 16
  %v187 = vrot.slane %v185, 5
  %v188 = vor.u32 %v184, %v187
  %v189 = vrot.slane %v188, 4
  %v191 = vshll.u32 %v99, 16
  %v193 = vrot.slane %v191, 5
  %v194 = vsel %vm124, %v189, %v193
  %v196 = vshrl.u32 %v100, 16
  %v198 = vrot.slane %v196, 4
  %v199 = vshll.u32 %v100, 16
  %v201 = vrot.slane %v199, 5
  %v202 = vor.u32 %v198, %v201
  %v203 = vrot.slane %v202, 4
  %v205 = vshll.u32 %v101, 16
  %v207 = vrot.slane %v205, 5
  %v208 = vsel %vm124, %v203, %v207
  %v210 = vshrl.u32 %v102, 16
  %v212 = vrot.slane %v210, 4
  %v213 = vshll.u32 %v102, 16
  %v215 = vrot.slane %v213, 5
  %v216 = vor.u32 %v212, %v215
  %v217 = vrot.slane %v216, 4
  %v219 = vshll.u32 %v103, 16
  %v221 = vrot.slane %v219, 5
  %v222 = vsel %vm124, %v217, %v221
  %v224 = vshrl.u32 %v104, 16
  %v226 = vrot.slane %v224, 4
  %v227 = vshll.u32 %v104, 16
  %v229 = vrot.slane %v227, 5
  %v230 = vor.u32 %v226, %v229
  %v231 = vrot.slane %v230, 4
  %v233 = vshll.u32 %v105, 16
  %v235 = vrot.slane %v233, 5
  %v236 = vsel %vm124, %v231, %v235
  %v238 = vshrl.u32 %v106, 16
  %v240 = vrot.slane %v238, 4
  %v241 = vshll.u32 %v106, 16
  %v243 = vrot.slane %v241, 5
  %v244 = vor.u32 %v240, %v243
  %v245 = vrot.slane %v244, 4
  %v247 = vshll.u32 %v107, 16
  %v249 = vrot.slane %v247, 5
  %v250 = vsel %vm124, %v245, %v249
  %v252 = vshrl.u32 %v108, 16
  %v254 = vrot.slane %v252, 4
  %v255 = vshll.u32 %v108, 16
  %v257 = vrot.slane %v255, 5
  %v258 = vor.u32 %v254, %v257
  %v259 = vrot.slane %v258, 4
  %v261 = vshll.u32 %v109, 16
  %v263 = vrot.slane %v261, 5
  %v264 = vsel %vm124, %v259, %v263
  %v266 = vshrl.u32 %v110, 16
  %v268 = vrot.slane %v266, 4
  %v269 = vshll.u32 %v110, 16
  %v271 = vrot.slane %v269, 5
  %v272 = vor.u32 %v268, %v271
  %v273 = vrot.slane %v272, 4
  %v275 = vshll.u32 %v111, 16
  %v277 = vrot.slane %v275, 5
  %v278 = vsel %vm124, %v273, %v277
  %v280 = vshrl.u32 %v112, 16
  %v282 = vrot.slane %v280, 4
  %v283 = vshll.u32 %v112, 16
  %v285 = vrot.slane %v283, 5
  %v286 = vor.u32 %v282, %v285
  %v287 = vrot.slane %v286, 4
  %v289 = vshll.u32 %v113, 16
  %v291 = vrot.slane %v289, 5
  %v292 = vsel %vm124, %v287, %v291
  %v294 = vshrl.u32 %v114, 16
  %v296 = vrot.slane %v294, 4
  %v297 = vshll.u32 %v114, 16
  %v299 = vrot.slane %v297, 5
  %v300 = vor.u32 %v296, %v299
  %v301 = vrot.slane %v300, 4
  %v303 = vshll.u32 %v115, 16
  %v305 = vrot.slane %v303, 5
  %v306 = vsel %vm124, %v301, %v305
  %v308 = vshrl.u32 %v116, 16
  %v310 = vrot.slane %v308, 4
  %v311 = vshll.u32 %v116, 16
  %v313 = vrot.slane %v311, 5
  %v314 = vor.u32 %v310, %v313
  %v315 = vrot.slane %v314, 4
  %v317 = vshll.u32 %v117, 16
  %v319 = vrot.slane %v317, 5
  %v320 = vsel %vm124, %v315, %v319
  %v322 = vshrl.u32 %v118, 16
  %v324 = vrot.slane %v322, 4
  %v325 = vshll.u32 %v118, 16
  %v327 = vrot.slane %v325, 5
  %v328 = vor.u32 %v324, %v327
  %v329 = vrot.slane %v328, 4
  %v331 = vshll.u32 %v119, 16
  %v333 = vrot.slane %v331, 5
  %v334 = vsel %vm124, %v329, %v333
  %v336 = vshrl.u32 %v120, 16
  %v338 = vrot.slane %v336, 4
  %v339 = vshll.u32 %v120, 16
  %v341 = vrot.slane %v339, 5
  %v342 = vor.u32 %v338, %v341
  %v343 = vrot.slane %v342, 4
  %v345 = vshll.u32 %v121, 16
  %v347 = vrot.slane %v345, 5
  %v348 = vsel %vm124, %v343, %v347
  %v349 = vunpack.c.l.b16 %v138
  %v350 = vunpack.c.l.b16 %v152
  %v351 = vunpack.c.l.b16 %v166
  %v352 = vunpack.c.l.b16 %v180
  %v353 = vunpack.c.l.b16 %v194
  %v354 = vunpack.c.l.b16 %v208
  %v355 = vunpack.c.l.b16 %v222
  %v356 = vunpack.c.l.b16 %v236
  %v357 = vunpack.c.l.b16 %v250
  %v358 = vunpack.c.l.b16 %v264
  %v359 = vunpack.c.l.b16 %v278
  %v360 = vunpack.c.l.b16 %v292
  %v361 = vunpack.c.l.b16 %v306
  %v362 = vunpack.c.l.b16 %v320
  %v363 = vunpack.c.l.b16 %v334
  %v364 = vunpack.c.l.b16 %v348
  %v365 = vpack.c.b16 %v350, %v349
  %v366 = vpack.c.b16 %v352, %v351
  %v367 = vpack.c.b16 %v354, %v353
  %v368 = vpack.c.b16 %v356, %v355
  %v369 = vpack.c.b16 %v358, %v357
  %v370 = vpack.c.b16 %v360, %v359
  %v371 = vpack.c.b16 %v362, %v361
  %v372 = vpack.c.b16 %v364, %v363
  %381 = vst [vmem:[#allocation2 + $0x8] sm:$0xff] %v365
  %382 = vst [vmem:[#allocation2 + $0x58] sm:$0xff] %v366
  %383 = vst [vmem:[#allocation2 + $0xa8] sm:$0xff] %v367
  %384 = vst [vmem:[#allocation2 + $0xf8] sm:$0xff] %v368
  %385 = vst [vmem:[#allocation2 + $0x148] sm:$0xff] %v369
  %386 = vst [vmem:[#allocation2 + $0x198] sm:$0xff] %v370
  %387 = vst [vmem:[#allocation2 + $0x1e8] sm:$0xff] %v371
  %388 = vst [vmem:[#allocation2 + $0x238] sm:$0xff] %v372
  %v389 = vld [vmem:[%s0] sm:$0xe]
  %v390 = vld [vmem:[%s0 + $0x4] sm:$0x1]
  %v391 = vld [vmem:[%s0 + $0x8] sm:$0xe]
  %v392 = vld [vmem:[%s0 + $0xc] sm:$0x1]
  %v393 = vld [vmem:[%s0 + $0x10] sm:$0xe]
  %v394 = vld [vmem:[%s0 + $0x14] sm:$0x1]
  %v395 = vld [vmem:[%s0 + $0x18] sm:$0xe]
  %v396 = vld [vmem:[%s0 + $0x1c] sm:$0x1]
  %v397 = vld [vmem:[%s0 + $0x20] sm:$0xe]
  %v398 = vld [vmem:[%s0 + $0x24] sm:$0x1]
  %v399 = vld [vmem:[%s0 + $0x28] sm:$0xe]
  %v400 = vld [vmem:[%s0 + $0x2c] sm:$0x1]
  %v401 = vld [vmem:[%s0 + $0x30] sm:$0xe]
  %v402 = vld [vmem:[%s0 + $0x34] sm:$0x1]
  %v403 = vld [vmem:[%s0 + $0x38] sm:$0xe]
  %v404 = vld [vmem:[%s0 + $0x3c] sm:$0x1]
  %v405 = vld [vmem:[%s0 + $0x50] sm:$0xe]
  %v406 = vld [vmem:[%s0 + $0x54] sm:$0x1]
  %v407 = vld [vmem:[%s0 + $0x58] sm:$0xe]
  %v408 = vld [vmem:[%s0 + $0x5c] sm:$0x1]
  %v409 = vld [vmem:[%s0 + $0x60] sm:$0xe]
  %v410 = vld [vmem:[%s0 + $0x64] sm:$0x1]
  %v411 = vld [vmem:[%s0 + $0x68] sm:$0xe]
  %v412 = vld [vmem:[%s0 + $0x6c] sm:$0x1]
  %v413 = vld [vmem:[%s0 + $0x70] sm:$0xe]
  %v414 = vld [vmem:[%s0 + $0x74] sm:$0x1]
  %v415 = vld [vmem:[%s0 + $0x78] sm:$0xe]
  %v416 = vld [vmem:[%s0 + $0x7c] sm:$0x1]
  %v417 = vld [vmem:[%s0 + $0x80] sm:$0xe]
  %v418 = vld [vmem:[%s0 + $0x84] sm:$0x1]
  %v419 = vld [vmem:[%s0 + $0x88] sm:$0xe]
  %v420 = vld [vmem:[%s0 + $0x8c] sm:$0x1]
  %vm453 = vcmask 1042432
  %vm454 = vcmask 1046532
  %vm455 = vmor %vm453, %vm454
  %v456 = vrot.slane %v389, 5
  %v457 = vrot.slane %v456, 4
  %v458 = vrot.slane %v390, 5
  %v459 = vsel %vm455, %v457, %v458
  %v460 = vrot.slane %v391, 5
  %v461 = vrot.slane %v460, 4
  %v462 = vrot.slane %v392, 5
  %v463 = vsel %vm455, %v461, %v462
  %v464 = vrot.slane %v393, 5
  %v465 = vrot.slane %v464, 4
  %v466 = vrot.slane %v394, 5
  %v467 = vsel %vm455, %v465, %v466
  %v468 = vrot.slane %v395, 5
  %v469 = vrot.slane %v468, 4
  %v470 = vrot.slane %v396, 5
  %v471 = vsel %vm455, %v469, %v470
  %v472 = vrot.slane %v397, 5
  %v473 = vrot.slane %v472, 4
  %v474 = vrot.slane %v398, 5
  %v475 = vsel %vm455, %v473, %v474
  %v476 = vrot.slane %v399, 5
  %v477 = vrot.slane %v476, 4
  %v478 = vrot.slane %v400, 5
  %v479 = vsel %vm455, %v477, %v478
  %v480 = vrot.slane %v401, 5
  %v481 = vrot.slane %v480, 4
  %v482 = vrot.slane %v402, 5
  %v483 = vsel %vm455, %v481, %v482
  %v484 = vrot.slane %v403, 5
  %v485 = vrot.slane %v484, 4
  %v486 = vrot.slane %v404, 5
  %v487 = vsel %vm455, %v485, %v486
  %v488 = vrot.slane %v405, 5
  %v489 = vrot.slane %v488, 4
  %v490 = vrot.slane %v406, 5
  %v491 = vsel %vm455, %v489, %v490
  %v492 = vrot.slane %v407, 5
  %v493 = vrot.slane %v492, 4
  %v494 = vrot.slane %v408, 5
  %v495 = vsel %vm455, %v493, %v494
  %v496 = vrot.slane %v409, 5
  %v497 = vrot.slane %v496, 4
  %v498 = vrot.slane %v410, 5
  %v499 = vsel %vm455, %v497, %v498
  %v500 = vrot.slane %v411, 5
  %v501 = vrot.slane %v500, 4
  %v502 = vrot.slane %v412, 5
  %v503 = vsel %vm455, %v501, %v502
  %v504 = vrot.slane %v413, 5
  %v505 = vrot.slane %v504, 4
  %v506 = vrot.slane %v414, 5
  %v507 = vsel %vm455, %v505, %v506
  %v508 = vrot.slane %v415, 5
  %v509 = vrot.slane %v508, 4
  %v510 = vrot.slane %v416, 5
  %v511 = vsel %vm455, %v509, %v510
  %v512 = vrot.slane %v417, 5
  %v513 = vrot.slane %v512, 4
  %v514 = vrot.slane %v418, 5
  %v515 = vsel %vm455, %v513, %v514
  %v516 = vrot.slane %v419, 5
  %v517 = vrot.slane %v516, 4
  %v518 = vrot.slane %v420, 5
  %v519 = vsel %vm455, %v517, %v518
  %v520 = vunpack.c.l.b16 %v459
  %v521 = vunpack.c.l.b16 %v463
  %v522 = vunpack.c.l.b16 %v467
  %v523 = vunpack.c.l.b16 %v471
  %v524 = vunpack.c.l.b16 %v475
  %v525 = vunpack.c.l.b16 %v479
  %v526 = vunpack.c.l.b16 %v483
  %v527 = vunpack.c.l.b16 %v487
  %v528 = vunpack.c.l.b16 %v491
  %v529 = vunpack.c.l.b16 %v495
  %v530 = vunpack.c.l.b16 %v499
  %v531 = vunpack.c.l.b16 %v503
  %v532 = vunpack.c.l.b16 %v507
  %v533 = vunpack.c.l.b16 %v511
  %v534 = vunpack.c.l.b16 %v515
  %v535 = vunpack.c.l.b16 %v519
  %v536 = vpack.c.b16 %v521, %v520
  %v537 = vpack.c.b16 %v523, %v522
  %v538 = vpack.c.b16 %v525, %v524
  %v539 = vpack.c.b16 %v527, %v526
  %v540 = vpack.c.b16 %v529, %v528
  %v541 = vpack.c.b16 %v531, %v530
  %v542 = vpack.c.b16 %v533, %v532
  %v543 = vpack.c.b16 %v535, %v534
  %552 = vst [vmem:[#allocation2 + $0x10] sm:$0xff] %v536
  %553 = vst [vmem:[#allocation2 + $0x60] sm:$0xff] %v537
  %554 = vst [vmem:[#allocation2 + $0xb0] sm:$0xff] %v538
  %555 = vst [vmem:[#allocation2 + $0x100] sm:$0xff] %v539
  %556 = vst [vmem:[#allocation2 + $0x150] sm:$0xff] %v540
  %557 = vst [vmem:[#allocation2 + $0x1a0] sm:$0xff] %v541
  %558 = vst [vmem:[#allocation2 + $0x1f0] sm:$0xff] %v542
  %559 = vst [vmem:[#allocation2 + $0x240] sm:$0xff] %v543
  %s560 = scalar_lea.vmem %s0, 8
  %v561 = vld [vmem:[%s560] sm:$0xf]
  %v562 = vld [vmem:[%s560 + $0x8] sm:$0xf]
  %v563 = vld [vmem:[%s560 + $0x10] sm:$0xf]
  %v564 = vld [vmem:[%s560 + $0x18] sm:$0xf]
  %v565 = vld [vmem:[%s560 + $0x20] sm:$0xf]
  %v566 = vld [vmem:[%s560 + $0x28] sm:$0xf]
  %v567 = vld [vmem:[%s560 + $0x30] sm:$0xf]
  %v568 = vld [vmem:[%s560 + $0x38] sm:$0xf]
  %v569 = vld [vmem:[%s560 + $0x50] sm:$0xf]
  %v570 = vld [vmem:[%s560 + $0x58] sm:$0xf]
  %v571 = vld [vmem:[%s560 + $0x60] sm:$0xf]
  %v572 = vld [vmem:[%s560 + $0x68] sm:$0xf]
  %v573 = vld [vmem:[%s560 + $0x70] sm:$0xf]
  %v574 = vld [vmem:[%s560 + $0x78] sm:$0xf]
  %v575 = vld [vmem:[%s560 + $0x80] sm:$0xf]
  %v576 = vld [vmem:[%s560 + $0x88] sm:$0xf]
  %v593 = vunpack.c.l.b16 %v561
  %v594 = vunpack.c.l.b16 %v562
  %v595 = vunpack.c.l.b16 %v563
  %v596 = vunpack.c.l.b16 %v564
  %v597 = vunpack.c.l.b16 %v565
  %v598 = vunpack.c.l.b16 %v566
  %v599 = vunpack.c.l.b16 %v567
  %v600 = vunpack.c.l.b16 %v568
  %v601 = vunpack.c.l.b16 %v569
  %v602 = vunpack.c.l.b16 %v570
  %v603 = vunpack.c.l.b16 %v571
  %v604 = vunpack.c.l.b16 %v572
  %v605 = vunpack.c.l.b16 %v573
  %v606 = vunpack.c.l.b16 %v574
  %v607 = vunpack.c.l.b16 %v575
  %v608 = vunpack.c.l.b16 %v576
  %v609 = vpack.c.b16 %v594, %v593
  %v610 = vpack.c.b16 %v596, %v595
  %v611 = vpack.c.b16 %v598, %v597
  %v612 = vpack.c.b16 %v600, %v599
  %v613 = vpack.c.b16 %v602, %v601
  %v614 = vpack.c.b16 %v604, %v603
  %v615 = vpack.c.b16 %v606, %v605
  %v616 = vpack.c.b16 %v608, %v607
  %625 = vst [vmem:[#allocation2 + $0x18] sm:$0xff] %v609
  %626 = vst [vmem:[#allocation2 + $0x68] sm:$0xff] %v610
  %627 = vst [vmem:[#allocation2 + $0xb8] sm:$0xff] %v611
  %628 = vst [vmem:[#allocation2 + $0x108] sm:$0xff] %v612
  %629 = vst [vmem:[#allocation2 + $0x158] sm:$0xff] %v613
  %630 = vst [vmem:[#allocation2 + $0x1a8] sm:$0xff] %v614
  %631 = vst [vmem:[#allocation2 + $0x1f8] sm:$0xff] %v615
  %632 = vst [vmem:[#allocation2 + $0x248] sm:$0xff] %v616
  %v633 = vld [vmem:[%s560] sm:$0xf]
  %v634 = vld [vmem:[%s560 + $0x4] sm:$0x1]
  %v635 = vld [vmem:[%s560 + $0x8] sm:$0xf]
  %v636 = vld [vmem:[%s560 + $0xc] sm:$0x1]
  %v637 = vld [vmem:[%s560 + $0x10] sm:$0xf]
  %v638 = vld [vmem:[%s560 + $0x14] sm:$0x1]
  %v639 = vld [vmem:[%s560 + $0x18] sm:$0xf]
  %v640 = vld [vmem:[%s560 + $0x1c] sm:$0x1]
  %v641 = vld [vmem:[%s560 + $0x20] sm:$0xf]
  %v642 = vld [vmem:[%s560 + $0x24] sm:$0x1]
  %v643 = vld [vmem:[%s560 + $0x28] sm:$0xf]
  %v644 = vld [vmem:[%s560 + $0x2c] sm:$0x1]
  %v645 = vld [vmem:[%s560 + $0x30] sm:$0xf]
  %v646 = vld [vmem:[%s560 + $0x34] sm:$0x1]
  %v647 = vld [vmem:[%s560 + $0x38] sm:$0xf]
  %v648 = vld [vmem:[%s560 + $0x3c] sm:$0x1]
  %v649 = vld [vmem:[%s560 + $0x50] sm:$0xf]
  %v650 = vld [vmem:[%s560 + $0x54] sm:$0x1]
  %v651 = vld [vmem:[%s560 + $0x58] sm:$0xf]
  %v652 = vld [vmem:[%s560 + $0x5c] sm:$0x1]
  %v653 = vld [vmem:[%s560 + $0x60] sm:$0xf]
  %v654 = vld [vmem:[%s560 + $0x64] sm:$0x1]
  %v655 = vld [vmem:[%s560 + $0x68] sm:$0xf]
  %v656 = vld [vmem:[%s560 + $0x6c] sm:$0x1]
  %v657 = vld [vmem:[%s560 + $0x70] sm:$0xf]
  %v658 = vld [vmem:[%s560 + $0x74] sm:$0x1]
  %v659 = vld [vmem:[%s560 + $0x78] sm:$0xf]
  %v660 = vld [vmem:[%s560 + $0x7c] sm:$0x1]
  %v661 = vld [vmem:[%s560 + $0x80] sm:$0xf]
  %v662 = vld [vmem:[%s560 + $0x84] sm:$0x1]
  %v663 = vld [vmem:[%s560 + $0x88] sm:$0xf]
  %v664 = vld [vmem:[%s560 + $0x8c] sm:$0x1]
  %v666 = vshrl.u32 %v633, 16
  %v668 = vrot.slane %v666, 4
  %v669 = vshll.u32 %v633, 16
  %v671 = vrot.slane %v669, 5
  %v672 = vor.u32 %v668, %v671
  %v673 = vrot.slane %v672, 4
  %v675 = vshll.u32 %v634, 16
  %v677 = vrot.slane %v675, 5
  %v678 = vsel %vm124, %v673, %v677
  %v680 = vshrl.u32 %v635, 16
  %v682 = vrot.slane %v680, 4
  %v683 = vshll.u32 %v635, 16
  %v685 = vrot.slane %v683, 5
  %v686 = vor.u32 %v682, %v685
  %v687 = vrot.slane %v686, 4
  %v689 = vshll.u32 %v636, 16
  %v691 = vrot.slane %v689, 5
  %v692 = vsel %vm124, %v687, %v691
  %v694 = vshrl.u32 %v637, 16
  %v696 = vrot.slane %v694, 4
  %v697 = vshll.u32 %v637, 16
  %v699 = vrot.slane %v697, 5
  %v700 = vor.u32 %v696, %v699
  %v701 = vrot.slane %v700, 4
  %v703 = vshll.u32 %v638, 16
  %v705 = vrot.slane %v703, 5
  %v706 = vsel %vm124, %v701, %v705
  %v708 = vshrl.u32 %v639, 16
  %v710 = vrot.slane %v708, 4
  %v711 = vshll.u32 %v639, 16
  %v713 = vrot.slane %v711, 5
  %v714 = vor.u32 %v710, %v713
  %v715 = vrot.slane %v714, 4
  %v717 = vshll.u32 %v640, 16
  %v719 = vrot.slane %v717, 5
  %v720 = vsel %vm124, %v715, %v719
  %v722 = vshrl.u32 %v641, 16
  %v724 = vrot.slane %v722, 4
  %v725 = vshll.u32 %v641, 16
  %v727 = vrot.slane %v725, 5
  %v728 = vor.u32 %v724, %v727
  %v729 = vrot.slane %v728, 4
  %v731 = vshll.u32 %v642, 16
  %v733 = vrot.slane %v731, 5
  %v734 = vsel %vm124, %v729, %v733
  %v736 = vshrl.u32 %v643, 16
  %v738 = vrot.slane %v736, 4
  %v739 = vshll.u32 %v643, 16
  %v741 = vrot.slane %v739, 5
  %v742 = vor.u32 %v738, %v741
  %v743 = vrot.slane %v742, 4
  %v745 = vshll.u32 %v644, 16
  %v747 = vrot.slane %v745, 5
  %v748 = vsel %vm124, %v743, %v747
  %v750 = vshrl.u32 %v645, 16
  %v752 = vrot.slane %v750, 4
  %v753 = vshll.u32 %v645, 16
  %v755 = vrot.slane %v753, 5
  %v756 = vor.u32 %v752, %v755
  %v757 = vrot.slane %v756, 4
  %v759 = vshll.u32 %v646, 16
  %v761 = vrot.slane %v759, 5
  %v762 = vsel %vm124, %v757, %v761
  %v764 = vshrl.u32 %v647, 16
  %v766 = vrot.slane %v764, 4
  %v767 = vshll.u32 %v647, 16
  %v769 = vrot.slane %v767, 5
  %v770 = vor.u32 %v766, %v769
  %v771 = vrot.slane %v770, 4
  %v773 = vshll.u32 %v648, 16
  %v775 = vrot.slane %v773, 5
  %v776 = vsel %vm124, %v771, %v775
  %v778 = vshrl.u32 %v649, 16
  %v780 = vrot.slane %v778, 4
  %v781 = vshll.u32 %v649, 16
  %v783 = vrot.slane %v781, 5
  %v784 = vor.u32 %v780, %v783
  %v785 = vrot.slane %v784, 4
  %v787 = vshll.u32 %v650, 16
  %v789 = vrot.slane %v787, 5
  %v790 = vsel %vm124, %v785, %v789
  %v792 = vshrl.u32 %v651, 16
  %v794 = vrot.slane %v792, 4
  %v795 = vshll.u32 %v651, 16
  %v797 = vrot.slane %v795, 5
  %v798 = vor.u32 %v794, %v797
  %v799 = vrot.slane %v798, 4
  %v801 = vshll.u32 %v652, 16
  %v803 = vrot.slane %v801, 5
  %v804 = vsel %vm124, %v799, %v803
  %v806 = vshrl.u32 %v653, 16
  %v808 = vrot.slane %v806, 4
  %v809 = vshll.u32 %v653, 16
  %v811 = vrot.slane %v809, 5
  %v812 = vor.u32 %v808, %v811
  %v813 = vrot.slane %v812, 4
  %v815 = vshll.u32 %v654, 16
  %v817 = vrot.slane %v815, 5
  %v818 = vsel %vm124, %v813, %v817
  %v820 = vshrl.u32 %v655, 16
  %v822 = vrot.slane %v820, 4
  %v823 = vshll.u32 %v655, 16
  %v825 = vrot.slane %v823, 5
  %v826 = vor.u32 %v822, %v825
  %v827 = vrot.slane %v826, 4
  %v829 = vshll.u32 %v656, 16
  %v831 = vrot.slane %v829, 5
  %v832 = vsel %vm124, %v827, %v831
  %v834 = vshrl.u32 %v657, 16
  %v836 = vrot.slane %v834, 4
  %v837 = vshll.u32 %v657, 16
  %v839 = vrot.slane %v837, 5
  %v840 = vor.u32 %v836, %v839
  %v841 = vrot.slane %v840, 4
  %v843 = vshll.u32 %v658, 16
  %v845 = vrot.slane %v843, 5
  %v846 = vsel %vm124, %v841, %v845
  %v848 = vshrl.u32 %v659, 16
  %v850 = vrot.slane %v848, 4
  %v851 = vshll.u32 %v659, 16
  %v853 = vrot.slane %v851, 5
  %v854 = vor.u32 %v850, %v853
  %v855 = vrot.slane %v854, 4
  %v857 = vshll.u32 %v660, 16
  %v859 = vrot.slane %v857, 5
  %v860 = vsel %vm124, %v855, %v859
  %v862 = vshrl.u32 %v661, 16
  %v864 = vrot.slane %v862, 4
  %v865 = vshll.u32 %v661, 16
  %v867 = vrot.slane %v865, 5
  %v868 = vor.u32 %v864, %v867
  %v869 = vrot.slane %v868, 4
  %v871 = vshll.u32 %v662, 16
  %v873 = vrot.slane %v871, 5
  %v874 = vsel %vm124, %v869, %v873
  %v876 = vshrl.u32 %v663, 16
  %v878 = vrot.slane %v876, 4
  %v879 = vshll.u32 %v663, 16
  %v881 = vrot.slane %v879, 5
  %v882 = vor.u32 %v878, %v881
  %v883 = vrot.slane %v882, 4
  %v885 = vshll.u32 %v664, 16
  %v887 = vrot.slane %v885, 5
  %v888 = vsel %vm124, %v883, %v887
  %v889 = vunpack.c.l.b16 %v678
  %v890 = vunpack.c.l.b16 %v692
  %v891 = vunpack.c.l.b16 %v706
  %v892 = vunpack.c.l.b16 %v720
  %v893 = vunpack.c.l.b16 %v734
  %v894 = vunpack.c.l.b16 %v748
  %v895 = vunpack.c.l.b16 %v762
  %v896 = vunpack.c.l.b16 %v776
  %v897 = vunpack.c.l.b16 %v790
  %v898 = vunpack.c.l.b16 %v804
  %v899 = vunpack.c.l.b16 %v818
  %v900 = vunpack.c.l.b16 %v832
  %v901 = vunpack.c.l.b16 %v846
  %v902 = vunpack.c.l.b16 %v860
  %v903 = vunpack.c.l.b16 %v874
  %v904 = vunpack.c.l.b16 %v888
  %v905 = vpack.c.b16 %v890, %v889
  %v906 = vpack.c.b16 %v892, %v891
  %v907 = vpack.c.b16 %v894, %v893
  %v908 = vpack.c.b16 %v896, %v895
  %v909 = vpack.c.b16 %v898, %v897
  %v910 = vpack.c.b16 %v900, %v899
  %v911 = vpack.c.b16 %v902, %v901
  %v912 = vpack.c.b16 %v904, %v903
  %921 = vst [vmem:[#allocation2 + $0x20] sm:$0xff] %v905
  %922 = vst [vmem:[#allocation2 + $0x70] sm:$0xff] %v906
  %923 = vst [vmem:[#allocation2 + $0xc0] sm:$0xff] %v907
  %924 = vst [vmem:[#allocation2 + $0x110] sm:$0xff] %v908
  %925 = vst [vmem:[#allocation2 + $0x160] sm:$0xff] %v909
  %926 = vst [vmem:[#allocation2 + $0x1b0] sm:$0xff] %v910
  %927 = vst [vmem:[#allocation2 + $0x200] sm:$0xff] %v911
  %928 = vst [vmem:[#allocation2 + $0x250] sm:$0xff] %v912
  %v929 = vld [vmem:[%s560] sm:$0xe]
  %v930 = vld [vmem:[%s560 + $0x4] sm:$0x1]
  %v931 = vld [vmem:[%s560 + $0x8] sm:$0xe]
  %v932 = vld [vmem:[%s560 + $0xc] sm:$0x1]
  %v933 = vld [vmem:[%s560 + $0x10] sm:$0xe]
  %v934 = vld [vmem:[%s560 + $0x14] sm:$0x1]
  %v935 = vld [vmem:[%s560 + $0x18] sm:$0xe]
  %v936 = vld [vmem:[%s560 + $0x1c] sm:$0x1]
  %v937 = vld [vmem:[%s560 + $0x20] sm:$0xe]
  %v938 = vld [vmem:[%s560 + $0x24] sm:$0x1]
  %v939 = vld [vmem:[%s560 + $0x28] sm:$0xe]
  %v940 = vld [vmem:[%s560 + $0x2c] sm:$0x1]
  %v941 = vld [vmem:[%s560 + $0x30] sm:$0xe]
  %v942 = vld [vmem:[%s560 + $0x34] sm:$0x1]
  %v943 = vld [vmem:[%s560 + $0x38] sm:$0xe]
  %v944 = vld [vmem:[%s560 + $0x3c] sm:$0x1]
  %v945 = vld [vmem:[%s560 + $0x50] sm:$0xe]
  %v946 = vld [vmem:[%s560 + $0x54] sm:$0x1]
  %v947 = vld [vmem:[%s560 + $0x58] sm:$0xe]
  %v948 = vld [vmem:[%s560 + $0x5c] sm:$0x1]
  %v949 = vld [vmem:[%s560 + $0x60] sm:$0xe]
  %v950 = vld [vmem:[%s560 + $0x64] sm:$0x1]
  %v951 = vld [vmem:[%s560 + $0x68] sm:$0xe]
  %v952 = vld [vmem:[%s560 + $0x6c] sm:$0x1]
  %v953 = vld [vmem:[%s560 + $0x70] sm:$0xe]
  %v954 = vld [vmem:[%s560 + $0x74] sm:$0x1]
  %v955 = vld [vmem:[%s560 + $0x78] sm:$0xe]
  %v956 = vld [vmem:[%s560 + $0x7c] sm:$0x1]
  %v957 = vld [vmem:[%s560 + $0x80] sm:$0xe]
  %v958 = vld [vmem:[%s560 + $0x84] sm:$0x1]
  %v959 = vld [vmem:[%s560 + $0x88] sm:$0xe]
  %v960 = vld [vmem:[%s560 + $0x8c] sm:$0x1]
  %v993 = vrot.slane %v929, 5
  %v994 = vrot.slane %v993, 4
  %v995 = vrot.slane %v930, 5
  %v996 = vsel %vm455, %v994, %v995
  %v997 = vrot.slane %v931, 5
  %v998 = vrot.slane %v997, 4
  %v999 = vrot.slane %v932, 5
  %v1000 = vsel %vm455, %v998, %v999
  %v1001 = vrot.slane %v933, 5
  %v1002 = vrot.slane %v1001, 4
  %v1003 = vrot.slane %v934, 5
  %v1004 = vsel %vm455, %v1002, %v1003
  %v1005 = vrot.slane %v935, 5
  %v1006 = vrot.slane %v1005, 4
  %v1007 = vrot.slane %v936, 5
  %v1008 = vsel %vm455, %v1006, %v1007
  %v1009 = vrot.slane %v937, 5
  %v1010 = vrot.slane %v1009, 4
  %v1011 = vrot.slane %v938, 5
  %v1012 = vsel %vm455, %v1010, %v1011
  %v1013 = vrot.slane %v939, 5
  %v1014 = vrot.slane %v1013, 4
  %v1015 = vrot.slane %v940, 5
  %v1016 = vsel %vm455, %v1014, %v1015
  %v1017 = vrot.slane %v941, 5
  %v1018 = vrot.slane %v1017, 4
  %v1019 = vrot.slane %v942, 5
  %v1020 = vsel %vm455, %v1018, %v1019
  %v1021 = vrot.slane %v943, 5
  %v1022 = vrot.slane %v1021, 4
  %v1023 = vrot.slane %v944, 5
  %v1024 = vsel %vm455, %v1022, %v1023
  %v1025 = vrot.slane %v945, 5
  %v1026 = vrot.slane %v1025, 4
  %v1027 = vrot.slane %v946, 5
  %v1028 = vsel %vm455, %v1026, %v1027
  %v1029 = vrot.slane %v947, 5
  %v1030 = vrot.slane %v1029, 4
  %v1031 = vrot.slane %v948, 5
  %v1032 = vsel %vm455, %v1030, %v1031
  %v1033 = vrot.slane %v949, 5
  %v1034 = vrot.slane %v1033, 4
  %v1035 = vrot.slane %v950, 5
  %v1036 = vsel %vm455, %v1034, %v1035
  %v1037 = vrot.slane %v951, 5
  %v1038 = vrot.slane %v1037, 4
  %v1039 = vrot.slane %v952, 5
  %v1040 = vsel %vm455, %v1038, %v1039
  %v1041 = vrot.slane %v953, 5
  %v1042 = vrot.slane %v1041, 4
  %v1043 = vrot.slane %v954, 5
  %v1044 = vsel %vm455, %v1042, %v1043
  %v1045 = vrot.slane %v955, 5
  %v1046 = vrot.slane %v1045, 4
  %v1047 = vrot.slane %v956, 5
  %v1048 = vsel %vm455, %v1046, %v1047
  %v1049 = vrot.slane %v957, 5
  %v1050 = vrot.slane %v1049, 4
  %v1051 = vrot.slane %v958, 5
  %v1052 = vsel %vm455, %v1050, %v1051
  %v1053 = vrot.slane %v959, 5
  %v1054 = vrot.slane %v1053, 4
  %v1055 = vrot.slane %v960, 5
  %v1056 = vsel %vm455, %v1054, %v1055
  %v1057 = vunpack.c.l.b16 %v996
  %v1058 = vunpack.c.l.b16 %v1000
  %v1059 = vunpack.c.l.b16 %v1004
  %v1060 = vunpack.c.l.b16 %v1008
  %v1061 = vunpack.c.l.b16 %v1012
  %v1062 = vunpack.c.l.b16 %v1016
  %v1063 = vunpack.c.l.b16 %v1020
  %v1064 = vunpack.c.l.b16 %v1024
  %v1065 = vunpack.c.l.b16 %v1028
  %v1066 = vunpack.c.l.b16 %v1032
  %v1067 = vunpack.c.l.b16 %v1036
  %v1068 = vunpack.c.l.b16 %v1040
  %v1069 = vunpack.c.l.b16 %v1044
  %v1070 = vunpack.c.l.b16 %v1048
  %v1071 = vunpack.c.l.b16 %v1052
  %v1072 = vunpack.c.l.b16 %v1056
  %v1073 = vpack.c.b16 %v1058, %v1057
  %v1074 = vpack.c.b16 %v1060, %v1059
  %v1075 = vpack.c.b16 %v1062, %v1061
  %v1076 = vpack.c.b16 %v1064, %v1063
  %v1077 = vpack.c.b16 %v1066, %v1065
  %v1078 = vpack.c.b16 %v1068, %v1067
  %v1079 = vpack.c.b16 %v1070, %v1069
  %v1080 = vpack.c.b16 %v1072, %v1071
  %1089 = vst [vmem:[#allocation2 + $0x28] sm:$0xff] %v1073
  %1090 = vst [vmem:[#allocation2 + $0x78] sm:$0xff] %v1074
  %1091 = vst [vmem:[#allocation2 + $0xc8] sm:$0xff] %v1075
  %1092 = vst [vmem:[#allocation2 + $0x118] sm:$0xff] %v1076
  %1093 = vst [vmem:[#allocation2 + $0x168] sm:$0xff] %v1077
  %1094 = vst [vmem:[#allocation2 + $0x1b8] sm:$0xff] %v1078
  %1095 = vst [vmem:[#allocation2 + $0x208] sm:$0xff] %v1079
  %1096 = vst [vmem:[#allocation2 + $0x258] sm:$0xff] %v1080
  %s1097 = scalar_lea.vmem %s0, 16
  %v1098 = vld [vmem:[%s1097] sm:$0xf]
  %v1099 = vld [vmem:[%s1097 + $0x8] sm:$0xf]
  %v1100 = vld [vmem:[%s1097 + $0x10] sm:$0xf]
  %v1101 = vld [vmem:[%s1097 + $0x18] sm:$0xf]
  %v1102 = vld [vmem:[%s1097 + $0x20] sm:$0xf]
  %v1103 = vld [vmem:[%s1097 + $0x28] sm:$0xf]
  %v1104 = vld [vmem:[%s1097 + $0x30] sm:$0xf]
  %v1105 = vld [vmem:[%s1097 + $0x38] sm:$0xf]
  %v1106 = vld [vmem:[%s1097 + $0x50] sm:$0xf]
  %v1107 = vld [vmem:[%s1097 + $0x58] sm:$0xf]
  %v1108 = vld [vmem:[%s1097 + $0x60] sm:$0xf]
  %v1109 = vld [vmem:[%s1097 + $0x68] sm:$0xf]
  %v1110 = vld [vmem:[%s1097 + $0x70] sm:$0xf]
  %v1111 = vld [vmem:[%s1097 + $0x78] sm:$0xf]
  %v1112 = vld [vmem:[%s1097 + $0x80] sm:$0xf]
  %v1113 = vld [vmem:[%s1097 + $0x88] sm:$0xf]
  %v1130 = vunpack.c.l.b16 %v1098
  %v1131 = vunpack.c.l.b16 %v1099
  %v1132 = vunpack.c.l.b16 %v1100
  %v1133 = vunpack.c.l.b16 %v1101
  %v1134 = vunpack.c.l.b16 %v1102
  %v1135 = vunpack.c.l.b16 %v1103
  %v1136 = vunpack.c.l.b16 %v1104
  %v1137 = vunpack.c.l.b16 %v1105
  %v1138 = vunpack.c.l.b16 %v1106
  %v1139 = vunpack.c.l.b16 %v1107
  %v1140 = vunpack.c.l.b16 %v1108
  %v1141 = vunpack.c.l.b16 %v1109
  %v1142 = vunpack.c.l.b16 %v1110
  %v1143 = vunpack.c.l.b16 %v1111
  %v1144 = vunpack.c.l.b16 %v1112
  %v1145 = vunpack.c.l.b16 %v1113
  %v1146 = vpack.c.b16 %v1131, %v1130
  %v1147 = vpack.c.b16 %v1133, %v1132
  %v1148 = vpack.c.b16 %v1135, %v1134
  %v1149 = vpack.c.b16 %v1137, %v1136
  %v1150 = vpack.c.b16 %v1139, %v1138
  %v1151 = vpack.c.b16 %v1141, %v1140
  %v1152 = vpack.c.b16 %v1143, %v1142
  %v1153 = vpack.c.b16 %v1145, %v1144
  %1162 = vst [vmem:[#allocation2 + $0x30] sm:$0xff] %v1146
  %1163 = vst [vmem:[#allocation2 + $0x80] sm:$0xff] %v1147
  %1164 = vst [vmem:[#allocation2 + $0xd0] sm:$0xff] %v1148
  %1165 = vst [vmem:[#allocation2 + $0x120] sm:$0xff] %v1149
  %1166 = vst [vmem:[#allocation2 + $0x170] sm:$0xff] %v1150
  %1167 = vst [vmem:[#allocation2 + $0x1c0] sm:$0xff] %v1151
  %1168 = vst [vmem:[#allocation2 + $0x210] sm:$0xff] %v1152
  %1169 = vst [vmem:[#allocation2 + $0x260] sm:$0xff] %v1153
  %v1170 = vld [vmem:[%s1097] sm:$0xf]
  %v1171 = vld [vmem:[%s1097 + $0x4] sm:$0x1]
  %v1172 = vld [vmem:[%s1097 + $0x8] sm:$0xf]
  %v1173 = vld [vmem:[%s1097 + $0xc] sm:$0x1]
  %v1174 = vld [vmem:[%s1097 + $0x10] sm:$0xf]
  %v1175 = vld [vmem:[%s1097 + $0x14] sm:$0x1]
  %v1176 = vld [vmem:[%s1097 + $0x18] sm:$0xf]
  %v1177 = vld [vmem:[%s1097 + $0x1c] sm:$0x1]
  %v1178 = vld [vmem:[%s1097 + $0x20] sm:$0xf]
  %v1179 = vld [vmem:[%s1097 + $0x24] sm:$0x1]
  %v1180 = vld [vmem:[%s1097 + $0x28] sm:$0xf]
  %v1181 = vld [vmem:[%s1097 + $0x2c] sm:$0x1]
  %v1182 = vld [vmem:[%s1097 + $0x30] sm:$0xf]
  %v1183 = vld [vmem:[%s1097 + $0x34] sm:$0x1]
  %v1184 = vld [vmem:[%s1097 + $0x38] sm:$0xf]
  %v1185 = vld [vmem:[%s1097 + $0x3c] sm:$0x1]
  %v1186 = vld [vmem:[%s1097 + $0x50] sm:$0xf]
  %v1187 = vld [vmem:[%s1097 + $0x54] sm:$0x1]
  %v1188 = vld [vmem:[%s1097 + $0x58] sm:$0xf]
  %v1189 = vld [vmem:[%s1097 + $0x5c] sm:$0x1]
  %v1190 = vld [vmem:[%s1097 + $0x60] sm:$0xf]
  %v1191 = vld [vmem:[%s1097 + $0x64] sm:$0x1]
  %v1192 = vld [vmem:[%s1097 + $0x68] sm:$0xf]
  %v1193 = vld [vmem:[%s1097 + $0x6c] sm:$0x1]
  %v1194 = vld [vmem:[%s1097 + $0x70] sm:$0xf]
  %v1195 = vld [vmem:[%s1097 + $0x74] sm:$0x1]
  %v1196 = vld [vmem:[%s1097 + $0x78] sm:$0xf]
  %v1197 = vld [vmem:[%s1097 + $0x7c] sm:$0x1]
  %v1198 = vld [vmem:[%s1097 + $0x80] sm:$0xf]
  %v1199 = vld [vmem:[%s1097 + $0x84] sm:$0x1]
  %v1200 = vld [vmem:[%s1097 + $0x88] sm:$0xf]
  %v1201 = vld [vmem:[%s1097 + $0x8c] sm:$0x1]
  %v1203 = vshrl.u32 %v1170, 16
  %v1205 = vrot.slane %v1203, 4
  %v1206 = vshll.u32 %v1170, 16
  %v1208 = vrot.slane %v1206, 5
  %v1209 = vor.u32 %v1205, %v1208
  %v1210 = vrot.slane %v1209, 4
  %v1212 = vshll.u32 %v1171, 16
  %v1214 = vrot.slane %v1212, 5
  %v1215 = vsel %vm124, %v1210, %v1214
  %v1217 = vshrl.u32 %v1172, 16
  %v1219 = vrot.slane %v1217, 4
  %v1220 = vshll.u32 %v1172, 16
  %v1222 = vrot.slane %v1220, 5
  %v1223 = vor.u32 %v1219, %v1222
  %v1224 = vrot.slane %v1223, 4
  %v1226 = vshll.u32 %v1173, 16
  %v1228 = vrot.slane %v1226, 5
  %v1229 = vsel %vm124, %v1224, %v1228
  %v1231 = vshrl.u32 %v1174, 16
  %v1233 = vrot.slane %v1231, 4
  %v1234 = vshll.u32 %v1174, 16
  %v1236 = vrot.slane %v1234, 5
  %v1237 = vor.u32 %v1233, %v1236
  %v1238 = vrot.slane %v1237, 4
  %v1240 = vshll.u32 %v1175, 16
  %v1242 = vrot.slane %v1240, 5
  %v1243 = vsel %vm124, %v1238, %v1242
  %v1245 = vshrl.u32 %v1176, 16
  %v1247 = vrot.slane %v1245, 4
  %v1248 = vshll.u32 %v1176, 16
  %v1250 = vrot.slane %v1248, 5
  %v1251 = vor.u32 %v1247, %v1250
  %v1252 = vrot.slane %v1251, 4
  %v1254 = vshll.u32 %v1177, 16
  %v1256 = vrot.slane %v1254, 5
  %v1257 = vsel %vm124, %v1252, %v1256
  %v1259 = vshrl.u32 %v1178, 16
  %v1261 = vrot.slane %v1259, 4
  %v1262 = vshll.u32 %v1178, 16
  %v1264 = vrot.slane %v1262, 5
  %v1265 = vor.u32 %v1261, %v1264
  %v1266 = vrot.slane %v1265, 4
  %v1268 = vshll.u32 %v1179, 16
  %v1270 = vrot.slane %v1268, 5
  %v1271 = vsel %vm124, %v1266, %v1270
  %v1273 = vshrl.u32 %v1180, 16
  %v1275 = vrot.slane %v1273, 4
  %v1276 = vshll.u32 %v1180, 16
  %v1278 = vrot.slane %v1276, 5
  %v1279 = vor.u32 %v1275, %v1278
  %v1280 = vrot.slane %v1279, 4
  %v1282 = vshll.u32 %v1181, 16
  %v1284 = vrot.slane %v1282, 5
  %v1285 = vsel %vm124, %v1280, %v1284
  %v1287 = vshrl.u32 %v1182, 16
  %v1289 = vrot.slane %v1287, 4
  %v1290 = vshll.u32 %v1182, 16
  %v1292 = vrot.slane %v1290, 5
  %v1293 = vor.u32 %v1289, %v1292
  %v1294 = vrot.slane %v1293, 4
  %v1296 = vshll.u32 %v1183, 16
  %v1298 = vrot.slane %v1296, 5
  %v1299 = vsel %vm124, %v1294, %v1298
  %v1301 = vshrl.u32 %v1184, 16
  %v1303 = vrot.slane %v1301, 4
  %v1304 = vshll.u32 %v1184, 16
  %v1306 = vrot.slane %v1304, 5
  %v1307 = vor.u32 %v1303, %v1306
  %v1308 = vrot.slane %v1307, 4
  %v1310 = vshll.u32 %v1185, 16
  %v1312 = vrot.slane %v1310, 5
  %v1313 = vsel %vm124, %v1308, %v1312
  %v1315 = vshrl.u32 %v1186, 16
  %v1317 = vrot.slane %v1315, 4
  %v1318 = vshll.u32 %v1186, 16
  %v1320 = vrot.slane %v1318, 5
  %v1321 = vor.u32 %v1317, %v1320
  %v1322 = vrot.slane %v1321, 4
  %v1324 = vshll.u32 %v1187, 16
  %v1326 = vrot.slane %v1324, 5
  %v1327 = vsel %vm124, %v1322, %v1326
  %v1329 = vshrl.u32 %v1188, 16
  %v1331 = vrot.slane %v1329, 4
  %v1332 = vshll.u32 %v1188, 16
  %v1334 = vrot.slane %v1332, 5
  %v1335 = vor.u32 %v1331, %v1334
  %v1336 = vrot.slane %v1335, 4
  %v1338 = vshll.u32 %v1189, 16
  %v1340 = vrot.slane %v1338, 5
  %v1341 = vsel %vm124, %v1336, %v1340
  %v1343 = vshrl.u32 %v1190, 16
  %v1345 = vrot.slane %v1343, 4
  %v1346 = vshll.u32 %v1190, 16
  %v1348 = vrot.slane %v1346, 5
  %v1349 = vor.u32 %v1345, %v1348
  %v1350 = vrot.slane %v1349, 4
  %v1352 = vshll.u32 %v1191, 16
  %v1354 = vrot.slane %v1352, 5
  %v1355 = vsel %vm124, %v1350, %v1354
  %v1357 = vshrl.u32 %v1192, 16
  %v1359 = vrot.slane %v1357, 4
  %v1360 = vshll.u32 %v1192, 16
  %v1362 = vrot.slane %v1360, 5
  %v1363 = vor.u32 %v1359, %v1362
  %v1364 = vrot.slane %v1363, 4
  %v1366 = vshll.u32 %v1193, 16
  %v1368 = vrot.slane %v1366, 5
  %v1369 = vsel %vm124, %v1364, %v1368
  %v1371 = vshrl.u32 %v1194, 16
  %v1373 = vrot.slane %v1371, 4
  %v1374 = vshll.u32 %v1194, 16
  %v1376 = vrot.slane %v1374, 5
  %v1377 = vor.u32 %v1373, %v1376
  %v1378 = vrot.slane %v1377, 4
  %v1380 = vshll.u32 %v1195, 16
  %v1382 = vrot.slane %v1380, 5
  %v1383 = vsel %vm124, %v1378, %v1382
  %v1385 = vshrl.u32 %v1196, 16
  %v1387 = vrot.slane %v1385, 4
  %v1388 = vshll.u32 %v1196, 16
  %v1390 = vrot.slane %v1388, 5
  %v1391 = vor.u32 %v1387, %v1390
  %v1392 = vrot.slane %v1391, 4
  %v1394 = vshll.u32 %v1197, 16
  %v1396 = vrot.slane %v1394, 5
  %v1397 = vsel %vm124, %v1392, %v1396
  %v1399 = vshrl.u32 %v1198, 16
  %v1401 = vrot.slane %v1399, 4
  %v1402 = vshll.u32 %v1198, 16
  %v1404 = vrot.slane %v1402, 5
  %v1405 = vor.u32 %v1401, %v1404
  %v1406 = vrot.slane %v1405, 4
  %v1408 = vshll.u32 %v1199, 16
  %v1410 = vrot.slane %v1408, 5
  %v1411 = vsel %vm124, %v1406, %v1410
  %v1413 = vshrl.u32 %v1200, 16
  %v1415 = vrot.slane %v1413, 4
  %v1416 = vshll.u32 %v1200, 16
  %v1418 = vrot.slane %v1416, 5
  %v1419 = vor.u32 %v1415, %v1418
  %v1420 = vrot.slane %v1419, 4
  %v1422 = vshll.u32 %v1201, 16
  %v1424 = vrot.slane %v1422, 5
  %v1425 = vsel %vm124, %v1420, %v1424
  %v1426 = vunpack.c.l.b16 %v1215
  %v1427 = vunpack.c.l.b16 %v1229
  %v1428 = vunpack.c.l.b16 %v1243
  %v1429 = vunpack.c.l.b16 %v1257
  %v1430 = vunpack.c.l.b16 %v1271
  %v1431 = vunpack.c.l.b16 %v1285
  %v1432 = vunpack.c.l.b16 %v1299
  %v1433 = vunpack.c.l.b16 %v1313
  %v1434 = vunpack.c.l.b16 %v1327
  %v1435 = vunpack.c.l.b16 %v1341
  %v1436 = vunpack.c.l.b16 %v1355
  %v1437 = vunpack.c.l.b16 %v1369
  %v1438 = vunpack.c.l.b16 %v1383
  %v1439 = vunpack.c.l.b16 %v1397
  %v1440 = vunpack.c.l.b16 %v1411
  %v1441 = vunpack.c.l.b16 %v1425
  %v1442 = vpack.c.b16 %v1427, %v1426
  %v1443 = vpack.c.b16 %v1429, %v1428
  %v1444 = vpack.c.b16 %v1431, %v1430
  %v1445 = vpack.c.b16 %v1433, %v1432
  %v1446 = vpack.c.b16 %v1435, %v1434
  %v1447 = vpack.c.b16 %v1437, %v1436
  %v1448 = vpack.c.b16 %v1439, %v1438
  %v1449 = vpack.c.b16 %v1441, %v1440
  %1458 = vst [vmem:[#allocation2 + $0x38] sm:$0xff] %v1442
  %1459 = vst [vmem:[#allocation2 + $0x88] sm:$0xff] %v1443
  %1460 = vst [vmem:[#allocation2 + $0xd8] sm:$0xff] %v1444
  %1461 = vst [vmem:[#allocation2 + $0x128] sm:$0xff] %v1445
  %1462 = vst [vmem:[#allocation2 + $0x178] sm:$0xff] %v1446
  %1463 = vst [vmem:[#allocation2 + $0x1c8] sm:$0xff] %v1447
  %1464 = vst [vmem:[#allocation2 + $0x218] sm:$0xff] %v1448
  %1465 = vst [vmem:[#allocation2 + $0x268] sm:$0xff] %v1449
  %v1466 = vld [vmem:[%s1097] sm:$0xe]
  %v1467 = vld [vmem:[%s1097 + $0x4] sm:$0x1]
  %v1468 = vld [vmem:[%s1097 + $0x8] sm:$0xe]
  %v1469 = vld [vmem:[%s1097 + $0xc] sm:$0x1]
  %v1470 = vld [vmem:[%s1097 + $0x10] sm:$0xe]
  %v1471 = vld [vmem:[%s1097 + $0x14] sm:$0x1]
  %v1472 = vld [vmem:[%s1097 + $0x18] sm:$0xe]
  %v1473 = vld [vmem:[%s1097 + $0x1c] sm:$0x1]
  %v1474 = vld [vmem:[%s1097 + $0x20] sm:$0xe]
  %v1475 = vld [vmem:[%s1097 + $0x24] sm:$0x1]
  %v1476 = vld [vmem:[%s1097 + $0x28] sm:$0xe]
  %v1477 = vld [vmem:[%s1097 + $0x2c] sm:$0x1]
  %v1478 = vld [vmem:[%s1097 + $0x30] sm:$0xe]
  %v1479 = vld [vmem:[%s1097 + $0x34] sm:$0x1]
  %v1480 = vld [vmem:[%s1097 + $0x38] sm:$0xe]
  %v1481 = vld [vmem:[%s1097 + $0x3c] sm:$0x1]
  %v1482 = vld [vmem:[%s1097 + $0x50] sm:$0xe]
  %v1483 = vld [vmem:[%s1097 + $0x54] sm:$0x1]
  %v1484 = vld [vmem:[%s1097 + $0x58] sm:$0xe]
  %v1485 = vld [vmem:[%s1097 + $0x5c] sm:$0x1]
  %v1486 = vld [vmem:[%s1097 + $0x60] sm:$0xe]
  %v1487 = vld [vmem:[%s1097 + $0x64] sm:$0x1]
  %v1488 = vld [vmem:[%s1097 + $0x68] sm:$0xe]
  %v1489 = vld [vmem:[%s1097 + $0x6c] sm:$0x1]
  %v1490 = vld [vmem:[%s1097 + $0x70] sm:$0xe]
  %v1491 = vld [vmem:[%s1097 + $0x74] sm:$0x1]
  %v1492 = vld [vmem:[%s1097 + $0x78] sm:$0xe]
  %v1493 = vld [vmem:[%s1097 + $0x7c] sm:$0x1]
  %v1494 = vld [vmem:[%s1097 + $0x80] sm:$0xe]
  %v1495 = vld [vmem:[%s1097 + $0x84] sm:$0x1]
  %v1496 = vld [vmem:[%s1097 + $0x88] sm:$0xe]
  %v1497 = vld [vmem:[%s1097 + $0x8c] sm:$0x1]
  %v1530 = vrot.slane %v1466, 5
  %v1531 = vrot.slane %v1530, 4
  %v1532 = vrot.slane %v1467, 5
  %v1533 = vsel %vm455, %v1531, %v1532
  %v1534 = vrot.slane %v1468, 5
  %v1535 = vrot.slane %v1534, 4
  %v1536 = vrot.slane %v1469, 5
  %v1537 = vsel %vm455, %v1535, %v1536
  %v1538 = vrot.slane %v1470, 5
  %v1539 = vrot.slane %v1538, 4
  %v1540 = vrot.slane %v1471, 5
  %v1541 = vsel %vm455, %v1539, %v1540
  %v1542 = vrot.slane %v1472, 5
  %v1543 = vrot.slane %v1542, 4
  %v1544 = vrot.slane %v1473, 5
  %v1545 = vsel %vm455, %v1543, %v1544
  %v1546 = vrot.slane %v1474, 5
  %v1547 = vrot.slane %v1546, 4
  %v1548 = vrot.slane %v1475, 5
  %v1549 = vsel %vm455, %v1547, %v1548
  %v1550 = vrot.slane %v1476, 5
  %v1551 = vrot.slane %v1550, 4
  %v1552 = vrot.slane %v1477, 5
  %v1553 = vsel %vm455, %v1551, %v1552
  %v1554 = vrot.slane %v1478, 5
  %v1555 = vrot.slane %v1554, 4
  %v1556 = vrot.slane %v1479, 5
  %v1557 = vsel %vm455, %v1555, %v1556
  %v1558 = vrot.slane %v1480, 5
  %v1559 = vrot.slane %v1558, 4
  %v1560 = vrot.slane %v1481, 5
  %v1561 = vsel %vm455, %v1559, %v1560
  %v1562 = vrot.slane %v1482, 5
  %v1563 = vrot.slane %v1562, 4
  %v1564 = vrot.slane %v1483, 5
  %v1565 = vsel %vm455, %v1563, %v1564
  %v1566 = vrot.slane %v1484, 5
  %v1567 = vrot.slane %v1566, 4
  %v1568 = vrot.slane %v1485, 5
  %v1569 = vsel %vm455, %v1567, %v1568
  %v1570 = vrot.slane %v1486, 5
  %v1571 = vrot.slane %v1570, 4
  %v1572 = vrot.slane %v1487, 5
  %v1573 = vsel %vm455, %v1571, %v1572
  %v1574 = vrot.slane %v1488, 5
  %v1575 = vrot.slane %v1574, 4
  %v1576 = vrot.slane %v1489, 5
  %v1577 = vsel %vm455, %v1575, %v1576
  %v1578 = vrot.slane %v1490, 5
  %v1579 = vrot.slane %v1578, 4
  %v1580 = vrot.slane %v1491, 5
  %v1581 = vsel %vm455, %v1579, %v1580
  %v1582 = vrot.slane %v1492, 5
  %v1583 = vrot.slane %v1582, 4
  %v1584 = vrot.slane %v1493, 5
  %v1585 = vsel %vm455, %v1583, %v1584
  %v1586 = vrot.slane %v1494, 5
  %v1587 = vrot.slane %v1586, 4
  %v1588 = vrot.slane %v1495, 5
  %v1589 = vsel %vm455, %v1587, %v1588
  %v1590 = vrot.slane %v1496, 5
  %v1591 = vrot.slane %v1590, 4
  %v1592 = vrot.slane %v1497, 5
  %v1593 = vsel %vm455, %v1591, %v1592
  %v1594 = vunpack.c.l.b16 %v1533
  %v1595 = vunpack.c.l.b16 %v1537
  %v1596 = vunpack.c.l.b16 %v1541
  %v1597 = vunpack.c.l.b16 %v1545
  %v1598 = vunpack.c.l.b16 %v1549
  %v1599 = vunpack.c.l.b16 %v1553
  %v1600 = vunpack.c.l.b16 %v1557
  %v1601 = vunpack.c.l.b16 %v1561
  %v1602 = vunpack.c.l.b16 %v1565
  %v1603 = vunpack.c.l.b16 %v1569
  %v1604 = vunpack.c.l.b16 %v1573
  %v1605 = vunpack.c.l.b16 %v1577
  %v1606 = vunpack.c.l.b16 %v1581
  %v1607 = vunpack.c.l.b16 %v1585
  %v1608 = vunpack.c.l.b16 %v1589
  %v1609 = vunpack.c.l.b16 %v1593
  %v1610 = vpack.c.b16 %v1595, %v1594
  %v1611 = vpack.c.b16 %v1597, %v1596
  %v1612 = vpack.c.b16 %v1599, %v1598
  %v1613 = vpack.c.b16 %v1601, %v1600
  %v1614 = vpack.c.b16 %v1603, %v1602
  %v1615 = vpack.c.b16 %v1605, %v1604
  %v1616 = vpack.c.b16 %v1607, %v1606
  %v1617 = vpack.c.b16 %v1609, %v1608
  %1626 = vst [vmem:[#allocation2 + $0x40] sm:$0xff] %v1610
  %1627 = vst [vmem:[#allocation2 + $0x90] sm:$0xff] %v1611
  %1628 = vst [vmem:[#allocation2 + $0xe0] sm:$0xff] %v1612
  %1629 = vst [vmem:[#allocation2 + $0x130] sm:$0xff] %v1613
  %1630 = vst [vmem:[#allocation2 + $0x180] sm:$0xff] %v1614
  %1631 = vst [vmem:[#allocation2 + $0x1d0] sm:$0xff] %v1615
  %1632 = vst [vmem:[#allocation2 + $0x220] sm:$0xff] %v1616
  %1633 = vst [vmem:[#allocation2 + $0x270] sm:$0xff] %v1617
  %v1634 = vld [vmem:[%s3] sm:$0xf]
  %v1635 = vld [vmem:[%s3 + $0x8] sm:$0xf]
  %v1636 = vld [vmem:[%s3 + $0x10] sm:$0xf]
  %v1637 = vld [vmem:[%s3 + $0x18] sm:$0xf]
  %v1638 = vld [vmem:[%s3 + $0x20] sm:$0xf]
  %v1639 = vld [vmem:[%s3 + $0x28] sm:$0xf]
  %v1640 = vld [vmem:[%s3 + $0x30] sm:$0xf]
  %v1641 = vld [vmem:[%s3 + $0x38] sm:$0xf]
  %v1642 = vld [vmem:[%s3 + $0x48] sm:$0xf]
  %v1643 = vld [vmem:[%s3 + $0x50] sm:$0xf]
  %v1644 = vld [vmem:[%s3 + $0x58] sm:$0xf]
  %v1645 = vld [vmem:[%s3 + $0x60] sm:$0xf]
  %v1646 = vld [vmem:[%s3 + $0x68] sm:$0xf]
  %v1647 = vld [vmem:[%s3 + $0x70] sm:$0xf]
  %v1648 = vld [vmem:[%s3 + $0x78] sm:$0xf]
  %v1649 = vld [vmem:[%s3 + $0x80] sm:$0xf]
  %v1666 = vunpack.c.l.b16 %v1634
  %v1667 = vunpack.c.l.b16 %v1635
  %v1668 = vunpack.c.l.b16 %v1636
  %v1669 = vunpack.c.l.b16 %v1637
  %v1670 = vunpack.c.l.b16 %v1638
  %v1671 = vunpack.c.l.b16 %v1639
  %v1672 = vunpack.c.l.b16 %v1640
  %v1673 = vunpack.c.l.b16 %v1641
  %v1674 = vunpack.c.l.b16 %v1642
  %v1675 = vunpack.c.l.b16 %v1643
  %v1676 = vunpack.c.l.b16 %v1644
  %v1677 = vunpack.c.l.b16 %v1645
  %v1678 = vunpack.c.l.b16 %v1646
  %v1679 = vunpack.c.l.b16 %v1647
  %v1680 = vunpack.c.l.b16 %v1648
  %v1681 = vunpack.c.l.b16 %v1649
  %v1682 = vpack.c.b16 %v1667, %v1666
  %v1683 = vpack.c.b16 %v1669, %v1668
  %v1684 = vpack.c.b16 %v1671, %v1670
  %v1685 = vpack.c.b16 %v1673, %v1672
  %v1686 = vpack.c.b16 %v1675, %v1674
  %v1687 = vpack.c.b16 %v1677, %v1676
  %v1688 = vpack.c.b16 %v1679, %v1678
  %v1689 = vpack.c.b16 %v1681, %v1680
  %1698 = vst [vmem:[#allocation2 + $0x48] sm:$0xff] %v1682
  %1699 = vst [vmem:[#allocation2 + $0x98] sm:$0xff] %v1683
  %1700 = vst [vmem:[#allocation2 + $0xe8] sm:$0xff] %v1684
  %1701 = vst [vmem:[#allocation2 + $0x138] sm:$0xff] %v1685
  %1702 = vst [vmem:[#allocation2 + $0x188] sm:$0xff] %v1686
  %1703 = vst [vmem:[#allocation2 + $0x1d8] sm:$0xff] %v1687
  %1704 = vst [vmem:[#allocation2 + $0x228] sm:$0xff] %v1688
  %1705 = vst [vmem:[#allocation2 + $0x278] sm:$0xff] %v1689
  %v1706 = vld [vmem:[#allocation2] sm:$0xff]
  %v1707 = vld [vmem:[#allocation2 + $0x8] sm:$0xff]
  %v1708 = vld [vmem:[#allocation2 + $0x10] sm:$0xff]
  %v1709 = vld [vmem:[#allocation2 + $0x18] sm:$0xff]
  %v1710 = vld [vmem:[#allocation2 + $0x20] sm:$0xff]
  %v1711 = vld [vmem:[#allocation2 + $0x28] sm:$0xff]
  %v1712 = vld [vmem:[#allocation2 + $0x30] sm:$0xff]
  %v1713 = vld [vmem:[#allocation2 + $0x38] sm:$0xff]
  %v1714 = vld [vmem:[#allocation2 + $0x40] sm:$0xff]
  %v1715 = vld [vmem:[#allocation2 + $0x48] sm:$0xff]
  %v1716 = vld [vmem:[#allocation2 + $0x50] sm:$0xff]
  %v1717 = vld [vmem:[#allocation2 + $0x58] sm:$0xff]
  %v1718 = vld [vmem:[#allocation2 + $0x60] sm:$0xff]
  %v1719 = vld [vmem:[#allocation2 + $0x68] sm:$0xff]
  %v1720 = vld [vmem:[#allocation2 + $0x70] sm:$0xff]
  %v1721 = vld [vmem:[#allocation2 + $0x78] sm:$0xff]
  %v1722 = vld [vmem:[#allocation2 + $0x80] sm:$0xff]
  %v1723 = vld [vmem:[#allocation2 + $0x88] sm:$0xff]
  %v1724 = vld [vmem:[#allocation2 + $0x90] sm:$0xff]
  %v1725 = vld [vmem:[#allocation2 + $0x98] sm:$0xff]
  %v1726 = vld [vmem:[#allocation2 + $0xa0] sm:$0xff]
  %v1727 = vld [vmem:[#allocation2 + $0xa8] sm:$0xff]
  %v1728 = vld [vmem:[#allocation2 + $0xb0] sm:$0xff]
  %v1729 = vld [vmem:[#allocation2 + $0xb8] sm:$0xff]
  %v1730 = vld [vmem:[#allocation2 + $0xc0] sm:$0xff]
  %v1731 = vld [vmem:[#allocation2 + $0xc8] sm:$0xff]
  %v1732 = vld [vmem:[#allocation2 + $0xd0] sm:$0xff]
  %v1733 = vld [vmem:[#allocation2 + $0xd8] sm:$0xff]
  %v1734 = vld [vmem:[#allocation2 + $0xe0] sm:$0xff]
  %v1735 = vld [vmem:[#allocation2 + $0xe8] sm:$0xff]
  %v1736 = vld [vmem:[#allocation2 + $0xf0] sm:$0xff]
  %v1737 = vld [vmem:[#allocation2 + $0xf8] sm:$0xff]
  %v1738 = vld [vmem:[#allocation2 + $0x100] sm:$0xff]
  %v1739 = vld [vmem:[#allocation2 + $0x108] sm:$0xff]
  %v1740 = vld [vmem:[#allocation2 + $0x110] sm:$0xff]
  %v1741 = vld [vmem:[#allocation2 + $0x118] sm:$0xff]
  %v1742 = vld [vmem:[#allocation2 + $0x120] sm:$0xff]
  %v1743 = vld [vmem:[#allocation2 + $0x128] sm:$0xff]
  %v1744 = vld [vmem:[#allocation2 + $0x130] sm:$0xff]
  %v1745 = vld [vmem:[#allocation2 + $0x138] sm:$0xff]
  %v1746 = vld [vmem:[#allocation2 + $0x140] sm:$0xff]
  %v1747 = vld [vmem:[#allocation2 + $0x148] sm:$0xff]
  %v1748 = vld [vmem:[#allocation2 + $0x150] sm:$0xff]
  %v1749 = vld [vmem:[#allocation2 + $0x158] sm:$0xff]
  %v1750 = vld [vmem:[#allocation2 + $0x160] sm:$0xff]
  %v1751 = vld [vmem:[#allocation2 + $0x168] sm:$0xff]
  %v1752 = vld [vmem:[#allocation2 + $0x170] sm:$0xff]
  %v1753 = vld [vmem:[#allocation2 + $0x178] sm:$0xff]
  %v1754 = vld [vmem:[#allocation2 + $0x180] sm:$0xff]
  %v1755 = vld [vmem:[#allocation2 + $0x188] sm:$0xff]
  %v1756 = vld [vmem:[#allocation2 + $0x190] sm:$0xff]
  %v1757 = vld [vmem:[#allocation2 + $0x198] sm:$0xff]
  %v1758 = vld [vmem:[#allocation2 + $0x1a0] sm:$0xff]
  %v1759 = vld [vmem:[#allocation2 + $0x1a8] sm:$0xff]
  %v1760 = vld [vmem:[#allocation2 + $0x1b0] sm:$0xff]
  %v1761 = vld [vmem:[#allocation2 + $0x1b8] sm:$0xff]
  %v1762 = vld [vmem:[#allocation2 + $0x1c0] sm:$0xff]
  %v1763 = vld [vmem:[#allocation2 + $0x1c8] sm:$0xff]
  %v1764 = vld [vmem:[#allocation2 + $0x1d0] sm:$0xff]
  %v1765 = vld [vmem:[#allocation2 + $0x1d8] sm:$0xff]
  %v1766 = vld [vmem:[#allocation2 + $0x1e0] sm:$0xff]
  %v1767 = vld [vmem:[#allocation2 + $0x1e8] sm:$0xff]
  %v1768 = vld [vmem:[#allocation2 + $0x1f0] sm:$0xff]
  %v1769 = vld [vmem:[#allocation2 + $0x1f8] sm:$0xff]
  %v1770 = vld [vmem:[#allocation2 + $0x200] sm:$0xff]
  %v1771 = vld [vmem:[#allocation2 + $0x208] sm:$0xff]
  %v1772 = vld [vmem:[#allocation2 + $0x210] sm:$0xff]
  %v1773 = vld [vmem:[#allocation2 + $0x218] sm:$0xff]
  %v1774 = vld [vmem:[#allocation2 + $0x220] sm:$0xff]
  %v1775 = vld [vmem:[#allocation2 + $0x228] sm:$0xff]
  %v1776 = vld [vmem:[#allocation2 + $0x230] sm:$0xff]
  %v1777 = vld [vmem:[#allocation2 + $0x238] sm:$0xff]
  %v1778 = vld [vmem:[#allocation2 + $0x240] sm:$0xff]
  %v1779 = vld [vmem:[#allocation2 + $0x248] sm:$0xff]
  %v1780 = vld [vmem:[#allocation2 + $0x250] sm:$0xff]
  %v1781 = vld [vmem:[#allocation2 + $0x258] sm:$0xff]
  %v1782 = vld [vmem:[#allocation2 + $0x260] sm:$0xff]
  %v1783 = vld [vmem:[#allocation2 + $0x268] sm:$0xff]
  %v1784 = vld [vmem:[#allocation2 + $0x270] sm:$0xff]
  %v1785 = vld [vmem:[#allocation2 + $0x278] sm:$0xff]
  %v1786 = vld [vmem:[%s1] sm:$0xf]
  %v1787 = vld [vmem:[%s1 + $0x4] sm:$0xf]
  %v1788 = vld [vmem:[%s1 + $0x8] sm:$0xf]
  %v1789 = vld [vmem:[%s1 + $0xc] sm:$0xf]
  %v1790 = vld [vmem:[%s1 + $0x10] sm:$0xf]
  %v1791 = vld [vmem:[%s1 + $0x14] sm:$0xf]
  %v1792 = vld [vmem:[%s1 + $0x18] sm:$0xf]
  %v1793 = vld [vmem:[%s1 + $0x1c] sm:$0xf]
  %v1794 = vld [vmem:[%s1 + $0x20] sm:$0xf]
  %v1795 = vld [vmem:[%s1 + $0x24] sm:$0xf]
  %v1796 = vld [vmem:[%s1 + $0x28] sm:$0xf]
  %v1797 = vld [vmem:[%s1 + $0x2c] sm:$0xf]
  %v1798 = vld [vmem:[%s1 + $0x30] sm:$0xf]
  %v1799 = vld [vmem:[%s1 + $0x34] sm:$0xf]
  %v1800 = vld [vmem:[%s1 + $0x38] sm:$0xf]
  %v1801 = vld [vmem:[%s1 + $0x3c] sm:$0xf]
  %v1802 = vld [vmem:[%s1 + $0x40] sm:$0xf]
  %v1803 = vld [vmem:[%s1 + $0x44] sm:$0xf]
  %v1804 = vld [vmem:[%s1 + $0x48] sm:$0xf]
  %v1805 = vld [vmem:[%s1 + $0x4c] sm:$0xf]
  %v1806 = vld [vmem:[%s1 + $0x50] sm:$0xf]
  %v1807 = vld [vmem:[%s1 + $0x54] sm:$0xf]
  %v1808 = vld [vmem:[%s1 + $0x58] sm:$0xf]
  %v1809 = vld [vmem:[%s1 + $0x5c] sm:$0xf]
  %v1810 = vld [vmem:[%s1 + $0x60] sm:$0xf]
  %v1811 = vld [vmem:[%s1 + $0x64] sm:$0xf]
  %v1812 = vld [vmem:[%s1 + $0x68] sm:$0xf]
  %v1813 = vld [vmem:[%s1 + $0x6c] sm:$0xf]
  %v1814 = vld [vmem:[%s1 + $0x70] sm:$0xf]
  %v1815 = vld [vmem:[%s1 + $0x74] sm:$0xf]
  %v1816 = vld [vmem:[%s1 + $0x78] sm:$0xf]
  %v1817 = vld [vmem:[%s1 + $0x7c] sm:$0xf]
  %v1818 = vld [vmem:[%s1 + $0x80] sm:$0xf]
  %v1819 = vld [vmem:[%s1 + $0x84] sm:$0xf]
  %v1820 = vld [vmem:[%s1 + $0x88] sm:$0xf]
  %v1821 = vld [vmem:[%s1 + $0x8c] sm:$0xf]
  %v1822 = vld [vmem:[%s1 + $0x90] sm:$0xf]
  %v1823 = vld [vmem:[%s1 + $0x94] sm:$0xf]
  %v1824 = vld [vmem:[%s1 + $0x98] sm:$0xf]
  %v1825 = vld [vmem:[%s1 + $0x9c] sm:$0xf]
  %v1826 = vld [vmem:[%s1 + $0xa0] sm:$0xf]
  %v1827 = vld [vmem:[%s1 + $0xa4] sm:$0xf]
  %v1828 = vld [vmem:[%s1 + $0xa8] sm:$0xf]
  %v1829 = vld [vmem:[%s1 + $0xac] sm:$0xf]
  %v1830 = vld [vmem:[%s1 + $0xb0] sm:$0xf]
  %v1831 = vld [vmem:[%s1 + $0xb4] sm:$0xf]
  %v1832 = vld [vmem:[%s1 + $0xb8] sm:$0xf]
  %v1833 = vld [vmem:[%s1 + $0xbc] sm:$0xf]
  %v1834 = vld [vmem:[%s1 + $0xc0] sm:$0xf]
  %v1835 = vld [vmem:[%s1 + $0xc4] sm:$0xf]
  %v1836 = vld [vmem:[%s1 + $0xc8] sm:$0xf]
  %v1837 = vld [vmem:[%s1 + $0xcc] sm:$0xf]
  %v1838 = vld [vmem:[%s1 + $0xd0] sm:$0xf]
  %v1839 = vld [vmem:[%s1 + $0xd4] sm:$0xf]
  %v1840 = vld [vmem:[%s1 + $0xd8] sm:$0xf]
  %v1841 = vld [vmem:[%s1 + $0xdc] sm:$0xf]
  %v1842 = vld [vmem:[%s1 + $0xe0] sm:$0xf]
  %v1843 = vld [vmem:[%s1 + $0xe4] sm:$0xf]
  %v1844 = vld [vmem:[%s1 + $0xe8] sm:$0xf]
  %v1845 = vld [vmem:[%s1 + $0xec] sm:$0xf]
  %v1846 = vld [vmem:[%s1 + $0xf0] sm:$0xf]
  %v1847 = vld [vmem:[%s1 + $0xf4] sm:$0xf]
  %v1848 = vld [vmem:[%s1 + $0xf8] sm:$0xf]
  %v1849 = vld [vmem:[%s1 + $0xfc] sm:$0xf]
  %v1850 = vld [vmem:[%s1 + $0x100] sm:$0xf]
  %v1851 = vld [vmem:[%s1 + $0x104] sm:$0xf]
  %v1852 = vld [vmem:[%s1 + $0x108] sm:$0xf]
  %v1853 = vld [vmem:[%s1 + $0x10c] sm:$0xf]
  %v1854 = vld [vmem:[%s1 + $0x110] sm:$0xf]
  %v1855 = vld [vmem:[%s1 + $0x114] sm:$0xf]
  %v1856 = vld [vmem:[%s1 + $0x118] sm:$0xf]
  %v1857 = vld [vmem:[%s1 + $0x11c] sm:$0xf]
  %v1858 = vld [vmem:[%s1 + $0x120] sm:$0xf]
  %v1859 = vld [vmem:[%s1 + $0x124] sm:$0xf]
  %v1860 = vld [vmem:[%s1 + $0x128] sm:$0xf]
  %v1861 = vld [vmem:[%s1 + $0x12c] sm:$0xf]
  %v1862 = vld [vmem:[%s1 + $0x130] sm:$0xf]
  %v1863 = vld [vmem:[%s1 + $0x134] sm:$0xf]
  %v1864 = vld [vmem:[%s1 + $0x138] sm:$0xf]
  %v1865 = vld [vmem:[%s1 + $0x13c] sm:$0xf]
  %v1866 = vld [vmem:[%s1 + $0x140] sm:$0xf]
  %v1867 = vld [vmem:[%s1 + $0x144] sm:$0xf]
  %v1868 = vld [vmem:[%s1 + $0x148] sm:$0xf]
  %v1869 = vld [vmem:[%s1 + $0x14c] sm:$0xf]
  %v1870 = vld [vmem:[%s1 + $0x150] sm:$0xf]
  %v1871 = vld [vmem:[%s1 + $0x154] sm:$0xf]
  %v1872 = vld [vmem:[%s1 + $0x158] sm:$0xf]
  %v1873 = vld [vmem:[%s1 + $0x15c] sm:$0xf]
  %v1874 = vld [vmem:[%s1 + $0x160] sm:$0xf]
  %v1875 = vld [vmem:[%s1 + $0x164] sm:$0xf]
  %v1876 = vld [vmem:[%s1 + $0x168] sm:$0xf]
  %v1877 = vld [vmem:[%s1 + $0x16c] sm:$0xf]
  %v1878 = vld [vmem:[%s1 + $0x170] sm:$0xf]
  %v1879 = vld [vmem:[%s1 + $0x174] sm:$0xf]
  %v1880 = vld [vmem:[%s1 + $0x178] sm:$0xf]
  %v1881 = vld [vmem:[%s1 + $0x17c] sm:$0xf]
  %v1882 = vld [vmem:[%s1 + $0x180] sm:$0xf]
  %v1883 = vld [vmem:[%s1 + $0x184] sm:$0xf]
  %v1884 = vld [vmem:[%s1 + $0x188] sm:$0xf]
  %v1885 = vld [vmem:[%s1 + $0x18c] sm:$0xf]
  %v1886 = vld [vmem:[%s1 + $0x190] sm:$0xf]
  %v1887 = vld [vmem:[%s1 + $0x194] sm:$0xf]
  %v1888 = vld [vmem:[%s1 + $0x198] sm:$0xf]
  %v1889 = vld [vmem:[%s1 + $0x19c] sm:$0xf]
  %v1890 = vld [vmem:[%s1 + $0x1a0] sm:$0xf]
  %v1891 = vld [vmem:[%s1 + $0x1a4] sm:$0xf]
  %v1892 = vld [vmem:[%s1 + $0x1a8] sm:$0xf]
  %v1893 = vld [vmem:[%s1 + $0x1ac] sm:$0xf]
  %v1894 = vld [vmem:[%s1 + $0x1b0] sm:$0xf]
  %v1895 = vld [vmem:[%s1 + $0x1b4] sm:$0xf]
  %v1896 = vld [vmem:[%s1 + $0x1b8] sm:$0xf]
  %v1897 = vld [vmem:[%s1 + $0x1bc] sm:$0xf]
  %v1898 = vld [vmem:[%s1 + $0x1c0] sm:$0xf]
  %v1899 = vld [vmem:[%s1 + $0x1c4] sm:$0xf]
  %v1900 = vld [vmem:[%s1 + $0x1c8] sm:$0xf]
  %v1901 = vld [vmem:[%s1 + $0x1cc] sm:$0xf]
  %v1902 = vld [vmem:[%s1 + $0x1d0] sm:$0xf]
  %v1903 = vld [vmem:[%s1 + $0x1d4] sm:$0xf]
  %v1904 = vld [vmem:[%s1 + $0x1d8] sm:$0xf]
  %v1905 = vld [vmem:[%s1 + $0x1dc] sm:$0xf]
  %v1906 = vld [vmem:[%s1 + $0x1e0] sm:$0xf]
  %v1907 = vld [vmem:[%s1 + $0x1e4] sm:$0xf]
  %v1908 = vld [vmem:[%s1 + $0x1e8] sm:$0xf]
  %v1909 = vld [vmem:[%s1 + $0x1ec] sm:$0xf]
  %v1910 = vld [vmem:[%s1 + $0x1f0] sm:$0xf]
  %v1911 = vld [vmem:[%s1 + $0x1f4] sm:$0xf]
  %v1912 = vld [vmem:[%s1 + $0x1f8] sm:$0xf]
  %v1913 = vld [vmem:[%s1 + $0x1fc] sm:$0xf]
  %v1914 = vld [vmem:[%s1 + $0x200] sm:$0xf]
  %v1915 = vld [vmem:[%s1 + $0x204] sm:$0xf]
  %v1916 = vld [vmem:[%s1 + $0x208] sm:$0xf]
  %v1917 = vld [vmem:[%s1 + $0x20c] sm:$0xf]
  %v1918 = vld [vmem:[%s1 + $0x210] sm:$0xf]
  %v1919 = vld [vmem:[%s1 + $0x214] sm:$0xf]
  %v1920 = vld [vmem:[%s1 + $0x218] sm:$0xf]
  %v1921 = vld [vmem:[%s1 + $0x21c] sm:$0xf]
  %v1922 = vld [vmem:[%s1 + $0x220] sm:$0xf]
  %v1923 = vld [vmem:[%s1 + $0x224] sm:$0xf]
  %v1924 = vld [vmem:[%s1 + $0x228] sm:$0xf]
  %v1925 = vld [vmem:[%s1 + $0x22c] sm:$0xf]
  %v1926 = vld [vmem:[%s1 + $0x230] sm:$0xf]
  %v1927 = vld [vmem:[%s1 + $0x234] sm:$0xf]
  %v1928 = vld [vmem:[%s1 + $0x238] sm:$0xf]
  %v1929 = vld [vmem:[%s1 + $0x23c] sm:$0xf]
  %v1930 = vld [vmem:[%s1 + $0x240] sm:$0xf]
  %v1931 = vld [vmem:[%s1 + $0x244] sm:$0xf]
  %v1932 = vld [vmem:[%s1 + $0x248] sm:$0xf]
  %v1933 = vld [vmem:[%s1 + $0x24c] sm:$0xf]
  %v1934 = vld [vmem:[%s1 + $0x250] sm:$0xf]
  %v1935 = vld [vmem:[%s1 + $0x254] sm:$0xf]
  %v1936 = vld [vmem:[%s1 + $0x258] sm:$0xf]
  %v1937 = vld [vmem:[%s1 + $0x25c] sm:$0xf]
  %v1938 = vld [vmem:[%s1 + $0x260] sm:$0xf]
  %v1939 = vld [vmem:[%s1 + $0x264] sm:$0xf]
  %v1940 = vld [vmem:[%s1 + $0x268] sm:$0xf]
  %v1941 = vld [vmem:[%s1 + $0x26c] sm:$0xf]
  %v1942 = vld [vmem:[%s1 + $0x270] sm:$0xf]
  %v1943 = vld [vmem:[%s1 + $0x274] sm:$0xf]
  %v1944 = vld [vmem:[%s1 + $0x278] sm:$0xf]
  %v1945 = vld [vmem:[%s1 + $0x27c] sm:$0xf]
  %v1946 = vld [vmem:[%s2] sm:$0x1]
  %v1948 = vlaneseq
  %v1949 = vshrl.u32 %v1948, 7
  %v1950 = vsub.s32 0, %v1949
  %v1951 = vrot.slane %v1946, %v1950
  %v2113 = vunpack.c.l.b16 %v1786
  %v2114 = vunpack.c.l.b16 %v1787
  %v2115 = vunpack.c.l.b16 %v1788
  %v2116 = vunpack.c.l.b16 %v1789
  %v2117 = vunpack.c.l.b16 %v1790
  %v2118 = vunpack.c.l.b16 %v1791
  %v2119 = vunpack.c.l.b16 %v1792
  %v2120 = vunpack.c.l.b16 %v1793
  %v2121 = vunpack.c.l.b16 %v1794
  %v2122 = vunpack.c.l.b16 %v1795
  %v2123 = vunpack.c.l.b16 %v1796
  %v2124 = vunpack.c.l.b16 %v1797
  %v2125 = vunpack.c.l.b16 %v1798
  %v2126 = vunpack.c.l.b16 %v1799
  %v2127 = vunpack.c.l.b16 %v1800
  %v2128 = vunpack.c.l.b16 %v1801
  %v2129 = vunpack.c.l.b16 %v1802
  %v2130 = vunpack.c.l.b16 %v1803
  %v2131 = vunpack.c.l.b16 %v1804
  %v2132 = vunpack.c.l.b16 %v1805
  %v2133 = vunpack.c.l.b16 %v1806
  %v2134 = vunpack.c.l.b16 %v1807
  %v2135 = vunpack.c.l.b16 %v1808
  %v2136 = vunpack.c.l.b16 %v1809
  %v2137 = vunpack.c.l.b16 %v1810
  %v2138 = vunpack.c.l.b16 %v1811
  %v2139 = vunpack.c.l.b16 %v1812
  %v2140 = vunpack.c.l.b16 %v1813
  %v2141 = vunpack.c.l.b16 %v1814
  %v2142 = vunpack.c.l.b16 %v1815
  %v2143 = vunpack.c.l.b16 %v1816
  %v2144 = vunpack.c.l.b16 %v1817
  %v2145 = vunpack.c.l.b16 %v1818
  %v2146 = vunpack.c.l.b16 %v1819
  %v2147 = vunpack.c.l.b16 %v1820
  %v2148 = vunpack.c.l.b16 %v1821
  %v2149 = vunpack.c.l.b16 %v1822
  %v2150 = vunpack.c.l.b16 %v1823
  %v2151 = vunpack.c.l.b16 %v1824
  %v2152 = vunpack.c.l.b16 %v1825
  %v2153 = vunpack.c.l.b16 %v1826
  %v2154 = vunpack.c.l.b16 %v1827
  %v2155 = vunpack.c.l.b16 %v1828
  %v2156 = vunpack.c.l.b16 %v1829
  %v2157 = vunpack.c.l.b16 %v1830
  %v2158 = vunpack.c.l.b16 %v1831
  %v2159 = vunpack.c.l.b16 %v1832
  %v2160 = vunpack.c.l.b16 %v1833
  %v2161 = vunpack.c.l.b16 %v1834
  %v2162 = vunpack.c.l.b16 %v1835
  %v2163 = vunpack.c.l.b16 %v1836
  %v2164 = vunpack.c.l.b16 %v1837
  %v2165 = vunpack.c.l.b16 %v1838
  %v2166 = vunpack.c.l.b16 %v1839
  %v2167 = vunpack.c.l.b16 %v1840
  %v2168 = vunpack.c.l.b16 %v1841
  %v2169 = vunpack.c.l.b16 %v1842
  %v2170 = vunpack.c.l.b16 %v1843
  %v2171 = vunpack.c.l.b16 %v1844
  %v2172 = vunpack.c.l.b16 %v1845
  %v2173 = vunpack.c.l.b16 %v1846
  %v2174 = vunpack.c.l.b16 %v1847
  %v2175 = vunpack.c.l.b16 %v1848
  %v2176 = vunpack.c.l.b16 %v1849
  %v2177 = vunpack.c.l.b16 %v1850
  %v2178 = vunpack.c.l.b16 %v1851
  %v2179 = vunpack.c.l.b16 %v1852
  %v2180 = vunpack.c.l.b16 %v1853
  %v2181 = vunpack.c.l.b16 %v1854
  %v2182 = vunpack.c.l.b16 %v1855
  %v2183 = vunpack.c.l.b16 %v1856
  %v2184 = vunpack.c.l.b16 %v1857
  %v2185 = vunpack.c.l.b16 %v1858
  %v2186 = vunpack.c.l.b16 %v1859
  %v2187 = vunpack.c.l.b16 %v1860
  %v2188 = vunpack.c.l.b16 %v1861
  %v2189 = vunpack.c.l.b16 %v1862
  %v2190 = vunpack.c.l.b16 %v1863
  %v2191 = vunpack.c.l.b16 %v1864
  %v2192 = vunpack.c.l.b16 %v1865
  %v2193 = vunpack.c.l.b16 %v1866
  %v2194 = vunpack.c.l.b16 %v1867
  %v2195 = vunpack.c.l.b16 %v1868
  %v2196 = vunpack.c.l.b16 %v1869
  %v2197 = vunpack.c.l.b16 %v1870
  %v2198 = vunpack.c.l.b16 %v1871
  %v2199 = vunpack.c.l.b16 %v1872
  %v2200 = vunpack.c.l.b16 %v1873
  %v2201 = vunpack.c.l.b16 %v1874
  %v2202 = vunpack.c.l.b16 %v1875
  %v2203 = vunpack.c.l.b16 %v1876
  %v2204 = vunpack.c.l.b16 %v1877
  %v2205 = vunpack.c.l.b16 %v1878
  %v2206 = vunpack.c.l.b16 %v1879
  %v2207 = vunpack.c.l.b16 %v1880
  %v2208 = vunpack.c.l.b16 %v1881
  %v2209 = vunpack.c.l.b16 %v1882
  %v2210 = vunpack.c.l.b16 %v1883
  %v2211 = vunpack.c.l.b16 %v1884
  %v2212 = vunpack.c.l.b16 %v1885
  %v2213 = vunpack.c.l.b16 %v1886
  %v2214 = vunpack.c.l.b16 %v1887
  %v2215 = vunpack.c.l.b16 %v1888
  %v2216 = vunpack.c.l.b16 %v1889
  %v2217 = vunpack.c.l.b16 %v1890
  %v2218 = vunpack.c.l.b16 %v1891
  %v2219 = vunpack.c.l.b16 %v1892
  %v2220 = vunpack.c.l.b16 %v1893
  %v2221 = vunpack.c.l.b16 %v1894
  %v2222 = vunpack.c.l.b16 %v1895
  %v2223 = vunpack.c.l.b16 %v1896
  %v2224 = vunpack.c.l.b16 %v1897
  %v2225 = vunpack.c.l.b16 %v1898
  %v2226 = vunpack.c.l.b16 %v1899
  %v2227 = vunpack.c.l.b16 %v1900
  %v2228 = vunpack.c.l.b16 %v1901
  %v2229 = vunpack.c.l.b16 %v1902
  %v2230 = vunpack.c.l.b16 %v1903
  %v2231 = vunpack.c.l.b16 %v1904
  %v2232 = vunpack.c.l.b16 %v1905
  %v2233 = vunpack.c.l.b16 %v1906
  %v2234 = vunpack.c.l.b16 %v1907
  %v2235 = vunpack.c.l.b16 %v1908
  %v2236 = vunpack.c.l.b16 %v1909
  %v2237 = vunpack.c.l.b16 %v1910
  %v2238 = vunpack.c.l.b16 %v1911
  %v2239 = vunpack.c.l.b16 %v1912
  %v2240 = vunpack.c.l.b16 %v1913
  %v2241 = vunpack.c.l.b16 %v1914
  %v2242 = vunpack.c.l.b16 %v1915
  %v2243 = vunpack.c.l.b16 %v1916
  %v2244 = vunpack.c.l.b16 %v1917
  %v2245 = vunpack.c.l.b16 %v1918
  %v2246 = vunpack.c.l.b16 %v1919
  %v2247 = vunpack.c.l.b16 %v1920
  %v2248 = vunpack.c.l.b16 %v1921
  %v2249 = vunpack.c.l.b16 %v1922
  %v2250 = vunpack.c.l.b16 %v1923
  %v2251 = vunpack.c.l.b16 %v1924
  %v2252 = vunpack.c.l.b16 %v1925
  %v2253 = vunpack.c.l.b16 %v1926
  %v2254 = vunpack.c.l.b16 %v1927
  %v2255 = vunpack.c.l.b16 %v1928
  %v2256 = vunpack.c.l.b16 %v1929
  %v2257 = vunpack.c.l.b16 %v1930
  %v2258 = vunpack.c.l.b16 %v1931
  %v2259 = vunpack.c.l.b16 %v1932
  %v2260 = vunpack.c.l.b16 %v1933
  %v2261 = vunpack.c.l.b16 %v1934
  %v2262 = vunpack.c.l.b16 %v1935
  %v2263 = vunpack.c.l.b16 %v1936
  %v2264 = vunpack.c.l.b16 %v1937
  %v2265 = vunpack.c.l.b16 %v1938
  %v2266 = vunpack.c.l.b16 %v1939
  %v2267 = vunpack.c.l.b16 %v1940
  %v2268 = vunpack.c.l.b16 %v1941
  %v2269 = vunpack.c.l.b16 %v1942
  %v2270 = vunpack.c.l.b16 %v1943
  %v2271 = vunpack.c.l.b16 %v1944
  %v2272 = vunpack.c.l.b16 %v1945
  %v2273 = vpack.c.b16 %v2114, %v2113
  %v2274 = vpack.c.b16 %v2116, %v2115
  %v2275 = vpack.c.b16 %v2118, %v2117
  %v2276 = vpack.c.b16 %v2120, %v2119
  %v2277 = vpack.c.b16 %v2122, %v2121
  %v2278 = vpack.c.b16 %v2124, %v2123
  %v2279 = vpack.c.b16 %v2126, %v2125
  %v2280 = vpack.c.b16 %v2128, %v2127
  %v2281 = vpack.c.b16 %v2130, %v2129
  %v2282 = vpack.c.b16 %v2132, %v2131
  %v2283 = vpack.c.b16 %v2134, %v2133
  %v2284 = vpack.c.b16 %v2136, %v2135
  %v2285 = vpack.c.b16 %v2138, %v2137
  %v2286 = vpack.c.b16 %v2140, %v2139
  %v2287 = vpack.c.b16 %v2142, %v2141
  %v2288 = vpack.c.b16 %v2144, %v2143
  %v2289 = vpack.c.b16 %v2146, %v2145
  %v2290 = vpack.c.b16 %v2148, %v2147
  %v2291 = vpack.c.b16 %v2150, %v2149
  %v2292 = vpack.c.b16 %v2152, %v2151
  %v2293 = vpack.c.b16 %v2154, %v2153
  %v2294 = vpack.c.b16 %v2156, %v2155
  %v2295 = vpack.c.b16 %v2158, %v2157
  %v2296 = vpack.c.b16 %v2160, %v2159
  %v2297 = vpack.c.b16 %v2162, %v2161
  %v2298 = vpack.c.b16 %v2164, %v2163
  %v2299 = vpack.c.b16 %v2166, %v2165
  %v2300 = vpack.c.b16 %v2168, %v2167
  %v2301 = vpack.c.b16 %v2170, %v2169
  %v2302 = vpack.c.b16 %v2172, %v2171
  %v2303 = vpack.c.b16 %v2174, %v2173
  %v2304 = vpack.c.b16 %v2176, %v2175
  %v2305 = vpack.c.b16 %v2178, %v2177
  %v2306 = vpack.c.b16 %v2180, %v2179
  %v2307 = vpack.c.b16 %v2182, %v2181
  %v2308 = vpack.c.b16 %v2184, %v2183
  %v2309 = vpack.c.b16 %v2186, %v2185
  %v2310 = vpack.c.b16 %v2188, %v2187
  %v2311 = vpack.c.b16 %v2190, %v2189
  %v2312 = vpack.c.b16 %v2192, %v2191
  %v2313 = vpack.c.b16 %v2194, %v2193
  %v2314 = vpack.c.b16 %v2196, %v2195
  %v2315 = vpack.c.b16 %v2198, %v2197
  %v2316 = vpack.c.b16 %v2200, %v2199
  %v2317 = vpack.c.b16 %v2202, %v2201
  %v2318 = vpack.c.b16 %v2204, %v2203
  %v2319 = vpack.c.b16 %v2206, %v2205
  %v2320 = vpack.c.b16 %v2208, %v2207
  %v2321 = vpack.c.b16 %v2210, %v2209
  %v2322 = vpack.c.b16 %v2212, %v2211
  %v2323 = vpack.c.b16 %v2214, %v2213
  %v2324 = vpack.c.b16 %v2216, %v2215
  %v2325 = vpack.c.b16 %v2218, %v2217
  %v2326 = vpack.c.b16 %v2220, %v2219
  %v2327 = vpack.c.b16 %v2222, %v2221
  %v2328 = vpack.c.b16 %v2224, %v2223
  %v2329 = vpack.c.b16 %v2226, %v2225
  %v2330 = vpack.c.b16 %v2228, %v2227
  %v2331 = vpack.c.b16 %v2230, %v2229
  %v2332 = vpack.c.b16 %v2232, %v2231
  %v2333 = vpack.c.b16 %v2234, %v2233
  %v2334 = vpack.c.b16 %v2236, %v2235
  %v2335 = vpack.c.b16 %v2238, %v2237
  %v2336 = vpack.c.b16 %v2240, %v2239
  %v2337 = vpack.c.b16 %v2242, %v2241
  %v2338 = vpack.c.b16 %v2244, %v2243
  %v2339 = vpack.c.b16 %v2246, %v2245
  %v2340 = vpack.c.b16 %v2248, %v2247
  %v2341 = vpack.c.b16 %v2250, %v2249
  %v2342 = vpack.c.b16 %v2252, %v2251
  %v2343 = vpack.c.b16 %v2254, %v2253
  %v2344 = vpack.c.b16 %v2256, %v2255
  %v2345 = vpack.c.b16 %v2258, %v2257
  %v2346 = vpack.c.b16 %v2260, %v2259
  %v2347 = vpack.c.b16 %v2262, %v2261
  %v2348 = vpack.c.b16 %v2264, %v2263
  %v2349 = vpack.c.b16 %v2266, %v2265
  %v2350 = vpack.c.b16 %v2268, %v2267
  %v2351 = vpack.c.b16 %v2270, %v2269
  %v2352 = vpack.c.b16 %v2272, %v2271
  %2433 = vmatprep.subr.bf16.mxu0 0
  %2434 = vmatpush1.bf16.msra.mxu0 %v2273
  %2435 = vmatprep.subr.bf16.mxu0 0
  %2436 = vmatpush1.bf16.msra.mxu0 %v2274
  %2437 = vmatprep.subr.bf16.mxu0 0
  %2438 = vmatpush1.bf16.msra.mxu0 %v2275
  %2439 = vmatprep.subr.bf16.mxu0 0
  %2440 = vmatpush1.bf16.msra.mxu0 %v2276
  %2441 = vmatprep.subr.bf16.mxu0 0
  %2442 = vmatpush1.bf16.msra.mxu0 %v2277
  %2443 = vmatprep.subr.bf16.mxu0 0
  %2444 = vmatpush1.bf16.msra.mxu0 %v2278
  %2445 = vmatprep.subr.bf16.mxu0 0
  %2446 = vmatpush1.bf16.msra.mxu0 %v2279
  %2447 = vmatprep.subr.bf16.mxu0 0
  %2448 = vmatpush1.bf16.msra.mxu0 %v2280
  %2449 = vmatprep.subr.bf16.mxu0 0
  %2450 = vmatpush1.bf16.msra.mxu0 %v2281
  %2451 = vmatprep.subr.bf16.mxu0 0
  %2452 = vmatpush1.bf16.msra.mxu0 %v2282
  %2453 = vmatprep.subr.bf16.mxu0 0
  %2454 = vmatpush1.bf16.msra.mxu0 %v2283
  %2455 = vmatprep.subr.bf16.mxu0 0
  %2456 = vmatpush1.bf16.msra.mxu0 %v2284
  %2457 = vmatprep.subr.bf16.mxu0 0
  %2458 = vmatpush1.bf16.msra.mxu0 %v2285
  %2459 = vmatprep.subr.bf16.mxu0 0
  %2460 = vmatpush1.bf16.msra.mxu0 %v2286
  %2461 = vmatprep.subr.bf16.mxu0 0
  %2462 = vmatpush1.bf16.msra.mxu0 %v2287
  %2463 = vmatprep.subr.bf16.mxu0 0
  %2464 = vmatpush1.bf16.msra.mxu0 %v2288
  %2465 = vmatprep.mubr.bf16.mxu0 %v1707
  %2466 = vmatmul.mubr.bf16.gmra.mrb[0].mxu0 %v1706
  %v2467 = vpop.f32.mrb[0].mxu0
  %v2468 = vadd.f32 %v1951, %v2467
  %v2469 = vpop.f32.mrb[0].mxu0
  %v2470 = vpop.f32.mrb[0].mxu0
  %v2471 = vadd.f32 %v1951, %v2470
  %v2472 = vpop.f32.mrb[0].mxu0
  %2473 = vmatprep.mubr.bf16.mxu0 %v1717
  %2474 = vmatmul.mubr.bf16.gmra.mrb[0].mxu0 %v1716
  %v2475 = vpop.f32.mrb[0].mxu0
  %v2476 = vadd.f32 %v1951, %v2475
  %v2477 = vpop.f32.mrb[0].mxu0
  %v2478 = vpop.f32.mrb[0].mxu0
  %v2479 = vadd.f32 %v1951, %v2478
  %v2480 = vpop.f32.mrb[0].mxu0
  %2481 = vmatprep.mubr.bf16.mxu0 %v1727
  %2482 = vmatmul.mubr.bf16.gmra.mrb[0].mxu0 %v1726
  %v2483 = vpop.f32.mrb[0].mxu0
  %v2484 = vadd.f32 %v1951, %v2483
  %v2485 = vpop.f32.mrb[0].mxu0
  %v2486 = vpop.f32.mrb[0].mxu0
  %v2487 = vadd.f32 %v1951, %v2486
  %v2488 = vpop.f32.mrb[0].mxu0
  %2489 = vmatprep.mubr.bf16.mxu0 %v1737
  %2490 = vmatmul.mubr.bf16.gmra.mrb[0].mxu0 %v1736
  %v2491 = vpop.f32.mrb[0].mxu0
  %v2492 = vadd.f32 %v1951, %v2491
  %v2493 = vpop.f32.mrb[0].mxu0
  %v2494 = vpop.f32.mrb[0].mxu0
  %v2495 = vadd.f32 %v1951, %v2494
  %v2496 = vpop.f32.mrb[0].mxu0
  %2497 = vmatprep.mubr.bf16.mxu0 %v1747
  %2498 = vmatmul.mubr.bf16.gmra.mrb[0].mxu0 %v1746
  %v2499 = vpop.f32.mrb[0].mxu0
  %v2500 = vadd.f32 %v1951, %v2499
  %v2501 = vpop.f32.mrb[0].mxu0
  %v2502 = vpop.f32.mrb[0].mxu0
  %v2503 = vadd.f32 %v1951, %v2502
  %v2504 = vpop.f32.mrb[0].mxu0
  %2505 = vmatprep.mubr.bf16.mxu0 %v1757
  %2506 = vmatmul.mubr.bf16.gmra.mrb[0].mxu0 %v1756
  %v2507 = vpop.f32.mrb[0].mxu0
  %v2508 = vadd.f32 %v1951, %v2507
  %v2509 = vpop.f32.mrb[0].mxu0
  %v2510 = vpop.f32.mrb[0].mxu0
  %v2511 = vadd.f32 %v1951, %v2510
  %v2512 = vpop.f32.mrb[0].mxu0
  %2513 = vmatprep.mubr.bf16.mxu0 %v1767
  %2514 = vmatmul.mubr.bf16.gmra.mrb[0].mxu0 %v1766
  %v2515 = vpop.f32.mrb[0].mxu0
  %v2516 = vadd.f32 %v1951, %v2515
  %v2517 = vpop.f32.mrb[0].mxu0
  %v2518 = vpop.f32.mrb[0].mxu0
  %v2519 = vadd.f32 %v1951, %v2518
  %v2520 = vpop.f32.mrb[0].mxu0
  %2521 = vmatprep.mubr.bf16.mxu0 %v1777
  %2522 = vmatmul.mubr.bf16.gmra.mrb[0].mxu0 %v1776
  %v2523 = vpop.f32.mrb[0].mxu0
  %v2524 = vadd.f32 %v1951, %v2523
  %v2525 = vpop.f32.mrb[0].mxu0
  %v2526 = vpop.f32.mrb[0].mxu0
  %v2527 = vadd.f32 %v1951, %v2526
  %v2528 = vpop.f32.mrb[0].mxu0
  %2529 = vdwg.mxu0
  %2530 = vmatprep.subr.bf16.mxu0 0
  %2531 = vmatpush1.bf16.msra.mxu0 %v2289
  %2532 = vmatprep.subr.bf16.mxu0 0
  %2533 = vmatpush1.bf16.msra.mxu0 %v2290
  %2534 = vmatprep.subr.bf16.mxu0 0
  %2535 = vmatpush1.bf16.msra.mxu0 %v2291
  %2536 = vmatprep.subr.bf16.mxu0 0
  %2537 = vmatpush1.bf16.msra.mxu0 %v2292
  %2538 = vmatprep.subr.bf16.mxu0 0
  %2539 = vmatpush1.bf16.msra.mxu0 %v2293
  %2540 = vmatprep.subr.bf16.mxu0 0
  %2541 = vmatpush1.bf16.msra.mxu0 %v2294
  %2542 = vmatprep.subr.bf16.mxu0 0
  %2543 = vmatpush1.bf16.msra.mxu0 %v2295
  %2544 = vmatprep.subr.bf16.mxu0 0
  %2545 = vmatpush1.bf16.msra.mxu0 %v2296
  %2546 = vmatprep.subr.bf16.mxu0 0
  %2547 = vmatpush1.bf16.msra.mxu0 %v2297
  %2548 = vmatprep.subr.bf16.mxu0 0
  %2549 = vmatpush1.bf16.msra.mxu0 %v2298
  %2550 = vmatprep.subr.bf16.mxu0 0
  %2551 = vmatpush1.bf16.msra.mxu0 %v2299
  %2552 = vmatprep.subr.bf16.mxu0 0
  %2553 = vmatpush1.bf16.msra.mxu0 %v2300
  %2554 = vmatprep.subr.bf16.mxu0 0
  %2555 = vmatpush1.bf16.msra.mxu0 %v2301
  %2556 = vmatprep.subr.bf16.mxu0 0
  %2557 = vmatpush1.bf16.msra.mxu0 %v2302
  %2558 = vmatprep.subr.bf16.mxu0 0
  %2559 = vmatpush1.bf16.msra.mxu0 %v2303
  %2560 = vmatprep.subr.bf16.mxu0 0
  %2561 = vmatpush1.bf16.msra.mxu0 %v2304
  %2562 = vmatprep.mubr.bf16.mxu0 %v1709
  %2563 = vmatmul.mubr.bf16.gmra.mrb[0].mxu0 %v1708
  %v2564 = vpop.f32.mrb[0].mxu0
  %v2565 = vadd.f32 %v2468, %v2564
  %v2566 = vpop.f32.mrb[0].mxu0
  %v2567 = vpop.f32.mrb[0].mxu0
  %v2568 = vadd.f32 %v2471, %v2567
  %v2569 = vpop.f32.mrb[0].mxu0
  %2570 = vmatprep.mubr.bf16.mxu0 %v1719
  %2571 = vmatmul.mubr.bf16.gmra.mrb[0].mxu0 %v1718
  %v2572 = vpop.f32.mrb[0].mxu0
  %v2573 = vadd.f32 %v2476, %v2572
  %v2574 = vpop.f32.mrb[0].mxu0
  %v2575 = vpop.f32.mrb[0].mxu0
  %v2576 = vadd.f32 %v2479, %v2575
  %v2577 = vpop.f32.mrb[0].mxu0
  %2578 = vmatprep.mubr.bf16.mxu0 %v1729
  %2579 = vmatmul.mubr.bf16.gmra.mrb[0].mxu0 %v1728
  %v2580 = vpop.f32.mrb[0].mxu0
  %v2581 = vadd.f32 %v2484, %v2580
  %v2582 = vpop.f32.mrb[0].mxu0
  %v2583 = vpop.f32.mrb[0].mxu0
  %v2584 = vadd.f32 %v2487, %v2583
  %v2585 = vpop.f32.mrb[0].mxu0
  %2586 = vmatprep.mubr.bf16.mxu0 %v1739
  %2587 = vmatmul.mubr.bf16.gmra.mrb[0].mxu0 %v1738
  %v2588 = vpop.f32.mrb[0].mxu0
  %v2589 = vadd.f32 %v2492, %v2588
  %v2590 = vpop.f32.mrb[0].mxu0
  %v2591 = vpop.f32.mrb[0].mxu0
  %v2592 = vadd.f32 %v2495, %v2591
  %v2593 = vpop.f32.mrb[0].mxu0
  %2594 = vmatprep.mubr.bf16.mxu0 %v1749
  %2595 = vmatmul.mubr.bf16.gmra.mrb[0].mxu0 %v1748
  %v2596 = vpop.f32.mrb[0].mxu0
  %v2597 = vadd.f32 %v2500, %v2596
  %v2598 = vpop.f32.mrb[0].mxu0
  %v2599 = vpop.f32.mrb[0].mxu0
  %v2600 = vadd.f32 %v2503, %v2599
  %v2601 = vpop.f32.mrb[0].mxu0
  %2602 = vmatprep.mubr.bf16.mxu0 %v1759
  %2603 = vmatmul.mubr.bf16.gmra.mrb[0].mxu0 %v1758
  %v2604 = vpop.f32.mrb[0].mxu0
  %v2605 = vadd.f32 %v2508, %v2604
  %v2606 = vpop.f32.mrb[0].mxu0
  %v2607 = vpop.f32.mrb[0].mxu0
  %v2608 = vadd.f32 %v2511, %v2607
  %v2609 = vpop.f32.mrb[0].mxu0
  %2610 = vmatprep.mubr.bf16.mxu0 %v1769
  %2611 = vmatmul.mubr.bf16.gmra.mrb[0].mxu0 %v1768
  %v2612 = vpop.f32.mrb[0].mxu0
  %v2613 = vadd.f32 %v2516, %v2612
  %v2614 = vpop.f32.mrb[0].mxu0
  %v2615 = vpop.f32.mrb[0].mxu0
  %v2616 = vadd.f32 %v2519, %v2615
  %v2617 = vpop.f32.mrb[0].mxu0
  %2618 = vmatprep.mubr.bf16.mxu0 %v1779
  %2619 = vmatmul.mubr.bf16.gmra.mrb[0].mxu0 %v1778
  %v2620 = vpop.f32.mrb[0].mxu0
  %v2621 = vadd.f32 %v2524, %v2620
  %v2622 = vpop.f32.mrb[0].mxu0
  %v2623 = vpop.f32.mrb[0].mxu0
  %v2624 = vadd.f32 %v2527, %v2623
  %v2625 = vpop.f32.mrb[0].mxu0
  %2626 = vdwg.mxu0
  %2627 = vmatprep.subr.bf16.mxu0 0
  %2628 = vmatpush1.bf16.msra.mxu0 %v2305
  %2629 = vmatprep.subr.bf16.mxu0 0
  %2630 = vmatpush1.bf16.msra.mxu0 %v2306
  %2631 = vmatprep.subr.bf16.mxu0 0
  %2632 = vmatpush1.bf16.msra.mxu0 %v2307
  %2633 = vmatprep.subr.bf16.mxu0 0
  %2634 = vmatpush1.bf16.msra.mxu0 %v2308
  %2635 = vmatprep.subr.bf16.mxu0 0
  %2636 = vmatpush1.bf16.msra.mxu0 %v2309
  %2637 = vmatprep.subr.bf16.mxu0 0
  %2638 = vmatpush1.bf16.msra.mxu0 %v2310
  %2639 = vmatprep.subr.bf16.mxu0 0
  %2640 = vmatpush1.bf16.msra.mxu0 %v2311
  %2641 = vmatprep.subr.bf16.mxu0 0
  %2642 = vmatpush1.bf16.msra.mxu0 %v2312
  %2643 = vmatprep.subr.bf16.mxu0 0
  %2644 = vmatpush1.bf16.msra.mxu0 %v2313
  %2645 = vmatprep.subr.bf16.mxu0 0
  %2646 = vmatpush1.bf16.msra.mxu0 %v2314
  %2647 = vmatprep.subr.bf16.mxu0 0
  %2648 = vmatpush1.bf16.msra.mxu0 %v2315
  %2649 = vmatprep.subr.bf16.mxu0 0
  %2650 = vmatpush1.bf16.msra.mxu0 %v2316
  %2651 = vmatprep.subr.bf16.mxu0 0
  %2652 = vmatpush1.bf16.msra.mxu0 %v2317
  %2653 = vmatprep.subr.bf16.mxu0 0
  %2654 = vmatpush1.bf16.msra.mxu0 %v2318
  %2655 = vmatprep.subr.bf16.mxu0 0
  %2656 = vmatpush1.bf16.msra.mxu0 %v2319
  %2657 = vmatprep.subr.bf16.mxu0 0
  %2658 = vmatpush1.bf16.msra.mxu0 %v2320
  %2659 = vmatprep.mubr.bf16.mxu0 %v1711
  %2660 = vmatmul.mubr.bf16.gmra.mrb[0].mxu0 %v1710
  %v2661 = vpop.f32.mrb[0].mxu0
  %v2662 = vadd.f32 %v2565, %v2661
  %v2663 = vpop.f32.mrb[0].mxu0
  %v2664 = vpop.f32.mrb[0].mxu0
  %v2665 = vadd.f32 %v2568, %v2664
  %v2666 = vpop.f32.mrb[0].mxu0
  %2667 = vmatprep.mubr.bf16.mxu0 %v1721
  %2668 = vmatmul.mubr.bf16.gmra.mrb[0].mxu0 %v1720
  %v2669 = vpop.f32.mrb[0].mxu0
  %v2670 = vadd.f32 %v2573, %v2669
  %v2671 = vpop.f32.mrb[0].mxu0
  %v2672 = vpop.f32.mrb[0].mxu0
  %v2673 = vadd.f32 %v2576, %v2672
  %v2674 = vpop.f32.mrb[0].mxu0
  %2675 = vmatprep.mubr.bf16.mxu0 %v1731
  %2676 = vmatmul.mubr.bf16.gmra.mrb[0].mxu0 %v1730
  %v2677 = vpop.f32.mrb[0].mxu0
  %v2678 = vadd.f32 %v2581, %v2677
  %v2679 = vpop.f32.mrb[0].mxu0
  %v2680 = vpop.f32.mrb[0].mxu0
  %v2681 = vadd.f32 %v2584, %v2680
  %v2682 = vpop.f32.mrb[0].mxu0
  %2683 = vmatprep.mubr.bf16.mxu0 %v1741
  %2684 = vmatmul.mubr.bf16.gmra.mrb[0].mxu0 %v1740
  %v2685 = vpop.f32.mrb[0].mxu0
  %v2686 = vadd.f32 %v2589, %v2685
  %v2687 = vpop.f32.mrb[0].mxu0
  %v2688 = vpop.f32.mrb[0].mxu0
  %v2689 = vadd.f32 %v2592, %v2688
  %v2690 = vpop.f32.mrb[0].mxu0
  %2691 = vmatprep.mubr.bf16.mxu0 %v1751
  %2692 = vmatmul.mubr.bf16.gmra.mrb[0].mxu0 %v1750
  %v2693 = vpop.f32.mrb[0].mxu0
  %v2694 = vadd.f32 %v2597, %v2693
  %v2695 = vpop.f32.mrb[0].mxu0
  %v2696 = vpop.f32.mrb[0].mxu0
  %v2697 = vadd.f32 %v2600, %v2696
  %v2698 = vpop.f32.mrb[0].mxu0
  %2699 = vmatprep.mubr.bf16.mxu0 %v1761
  %2700 = vmatmul.mubr.bf16.gmra.mrb[0].mxu0 %v1760
  %v2701 = vpop.f32.mrb[0].mxu0
  %v2702 = vadd.f32 %v2605, %v2701
  %v2703 = vpop.f32.mrb[0].mxu0
  %v2704 = vpop.f32.mrb[0].mxu0
  %v2705 = vadd.f32 %v2608, %v2704
  %v2706 = vpop.f32.mrb[0].mxu0
  %2707 = vmatprep.mubr.bf16.mxu0 %v1771
  %2708 = vmatmul.mubr.bf16.gmra.mrb[0].mxu0 %v1770
  %v2709 = vpop.f32.mrb[0].mxu0
  %v2710 = vadd.f32 %v2613, %v2709
  %v2711 = vpop.f32.mrb[0].mxu0
  %v2712 = vpop.f32.mrb[0].mxu0
  %v2713 = vadd.f32 %v2616, %v2712
  %v2714 = vpop.f32.mrb[0].mxu0
  %2715 = vmatprep.mubr.bf16.mxu0 %v1781
  %2716 = vmatmul.mubr.bf16.gmra.mrb[0].mxu0 %v1780
  %v2717 = vpop.f32.mrb[0].mxu0
  %v2718 = vadd.f32 %v2621, %v2717
  %v2719 = vpop.f32.mrb[0].mxu0
  %v2720 = vpop.f32.mrb[0].mxu0
  %v2721 = vadd.f32 %v2624, %v2720
  %v2722 = vpop.f32.mrb[0].mxu0
  %2723 = vdwg.mxu0
  %2724 = vmatprep.subr.bf16.mxu0 0
  %2725 = vmatpush1.bf16.msra.mxu0 %v2321
  %2726 = vmatprep.subr.bf16.mxu0 0
  %2727 = vmatpush1.bf16.msra.mxu0 %v2322
  %2728 = vmatprep.subr.bf16.mxu0 0
  %2729 = vmatpush1.bf16.msra.mxu0 %v2323
  %2730 = vmatprep.subr.bf16.mxu0 0
  %2731 = vmatpush1.bf16.msra.mxu0 %v2324
  %2732 = vmatprep.subr.bf16.mxu0 0
  %2733 = vmatpush1.bf16.msra.mxu0 %v2325
  %2734 = vmatprep.subr.bf16.mxu0 0
  %2735 = vmatpush1.bf16.msra.mxu0 %v2326
  %2736 = vmatprep.subr.bf16.mxu0 0
  %2737 = vmatpush1.bf16.msra.mxu0 %v2327
  %2738 = vmatprep.subr.bf16.mxu0 0
  %2739 = vmatpush1.bf16.msra.mxu0 %v2328
  %2740 = vmatprep.subr.bf16.mxu0 0
  %2741 = vmatpush1.bf16.msra.mxu0 %v2329
  %2742 = vmatprep.subr.bf16.mxu0 0
  %2743 = vmatpush1.bf16.msra.mxu0 %v2330
  %2744 = vmatprep.subr.bf16.mxu0 0
  %2745 = vmatpush1.bf16.msra.mxu0 %v2331
  %2746 = vmatprep.subr.bf16.mxu0 0
  %2747 = vmatpush1.bf16.msra.mxu0 %v2332
  %2748 = vmatprep.subr.bf16.mxu0 0
  %2749 = vmatpush1.bf16.msra.mxu0 %v2333
  %2750 = vmatprep.subr.bf16.mxu0 0
  %2751 = vmatpush1.bf16.msra.mxu0 %v2334
  %2752 = vmatprep.subr.bf16.mxu0 0
  %2753 = vmatpush1.bf16.msra.mxu0 %v2335
  %2754 = vmatprep.subr.bf16.mxu0 0
  %2755 = vmatpush1.bf16.msra.mxu0 %v2336
  %2756 = vmatprep.mubr.bf16.mxu0 %v1713
  %2757 = vmatmul.mubr.bf16.gmra.mrb[0].mxu0 %v1712
  %v2758 = vpop.f32.mrb[0].mxu0
  %v2759 = vadd.f32 %v2662, %v2758
  %v2760 = vpop.f32.mrb[0].mxu0
  %v2761 = vpop.f32.mrb[0].mxu0
  %v2762 = vadd.f32 %v2665, %v2761
  %v2763 = vpop.f32.mrb[0].mxu0
  %2764 = vmatprep.mubr.bf16.mxu0 %v1723
  %2765 = vmatmul.mubr.bf16.gmra.mrb[0].mxu0 %v1722
  %v2766 = vpop.f32.mrb[0].mxu0
  %v2767 = vadd.f32 %v2670, %v2766
  %v2768 = vpop.f32.mrb[0].mxu0
  %v2769 = vpop.f32.mrb[0].mxu0
  %v2770 = vadd.f32 %v2673, %v2769
  %v2771 = vpop.f32.mrb[0].mxu0
  %2772 = vmatprep.mubr.bf16.mxu0 %v1733
  %2773 = vmatmul.mubr.bf16.gmra.mrb[0].mxu0 %v1732
  %v2774 = vpop.f32.mrb[0].mxu0
  %v2775 = vadd.f32 %v2678, %v2774
  %v2776 = vpop.f32.mrb[0].mxu0
  %v2777 = vpop.f32.mrb[0].mxu0
  %v2778 = vadd.f32 %v2681, %v2777
  %v2779 = vpop.f32.mrb[0].mxu0
  %2780 = vmatprep.mubr.bf16.mxu0 %v1743
  %2781 = vmatmul.mubr.bf16.gmra.mrb[0].mxu0 %v1742
  %v2782 = vpop.f32.mrb[0].mxu0
  %v2783 = vadd.f32 %v2686, %v2782
  %v2784 = vpop.f32.mrb[0].mxu0
  %v2785 = vpop.f32.mrb[0].mxu0
  %v2786 = vadd.f32 %v2689, %v2785
  %v2787 = vpop.f32.mrb[0].mxu0
  %2788 = vmatprep.mubr.bf16.mxu0 %v1753
  %2789 = vmatmul.mubr.bf16.gmra.mrb[0].mxu0 %v1752
  %v2790 = vpop.f32.mrb[0].mxu0
  %v2791 = vadd.f32 %v2694, %v2790
  %v2792 = vpop.f32.mrb[0].mxu0
  %v2793 = vpop.f32.mrb[0].mxu0
  %v2794 = vadd.f32 %v2697, %v2793
  %v2795 = vpop.f32.mrb[0].mxu0
  %2796 = vmatprep.mubr.bf16.mxu0 %v1763
  %2797 = vmatmul.mubr.bf16.gmra.mrb[0].mxu0 %v1762
  %v2798 = vpop.f32.mrb[0].mxu0
  %v2799 = vadd.f32 %v2702, %v2798
  %v2800 = vpop.f32.mrb[0].mxu0
  %v2801 = vpop.f32.mrb[0].mxu0
  %v2802 = vadd.f32 %v2705, %v2801
  %v2803 = vpop.f32.mrb[0].mxu0
  %2804 = vmatprep.mubr.bf16.mxu0 %v1773
  %2805 = vmatmul.mubr.bf16.gmra.mrb[0].mxu0 %v1772
  %v2806 = vpop.f32.mrb[0].mxu0
  %v2807 = vadd.f32 %v2710, %v2806
  %v2808 = vpop.f32.mrb[0].mxu0
  %v2809 = vpop.f32.mrb[0].mxu0
  %v2810 = vadd.f32 %v2713, %v2809
  %v2811 = vpop.f32.mrb[0].mxu0
  %2812 = vmatprep.mubr.bf16.mxu0 %v1783
  %2813 = vmatmul.mubr.bf16.gmra.mrb[0].mxu0 %v1782
  %v2814 = vpop.f32.mrb[0].mxu0
  %v2815 = vadd.f32 %v2718, %v2814
  %v2816 = vpop.f32.mrb[0].mxu0
  %v2817 = vpop.f32.mrb[0].mxu0
  %v2818 = vadd.f32 %v2721, %v2817
  %v2819 = vpop.f32.mrb[0].mxu0
  %2820 = vdwg.mxu0
  %2821 = vmatprep.subr.bf16.mxu0 0
  %2822 = vmatpush1.bf16.msra.mxu0 %v2337
  %2823 = vmatprep.subr.bf16.mxu0 0
  %2824 = vmatpush1.bf16.msra.mxu0 %v2338
  %2825 = vmatprep.subr.bf16.mxu0 0
  %2826 = vmatpush1.bf16.msra.mxu0 %v2339
  %2827 = vmatprep.subr.bf16.mxu0 0
  %2828 = vmatpush1.bf16.msra.mxu0 %v2340
  %2829 = vmatprep.subr.bf16.mxu0 0
  %2830 = vmatpush1.bf16.msra.mxu0 %v2341
  %2831 = vmatprep.subr.bf16.mxu0 0
  %2832 = vmatpush1.bf16.msra.mxu0 %v2342
  %2833 = vmatprep.subr.bf16.mxu0 0
  %2834 = vmatpush1.bf16.msra.mxu0 %v2343
  %2835 = vmatprep.subr.bf16.mxu0 0
  %2836 = vmatpush1.bf16.msra.mxu0 %v2344
  %2837 = vmatprep.subr.bf16.mxu0 0
  %2838 = vmatpush1.bf16.msra.mxu0 %v2345
  %2839 = vmatprep.subr.bf16.mxu0 0
  %2840 = vmatpush1.bf16.msra.mxu0 %v2346
  %2841 = vmatprep.subr.bf16.mxu0 0
  %2842 = vmatpush1.bf16.msra.mxu0 %v2347
  %2843 = vmatprep.subr.bf16.mxu0 0
  %2844 = vmatpush1.bf16.msra.mxu0 %v2348
  %2845 = vmatprep.subr.bf16.mxu0 0
  %2846 = vmatpush1.bf16.msra.mxu0 %v2349
  %2847 = vmatprep.subr.bf16.mxu0 0
  %2848 = vmatpush1.bf16.msra.mxu0 %v2350
  %2849 = vmatprep.subr.bf16.mxu0 0
  %2850 = vmatpush1.bf16.msra.mxu0 %v2351
  %2851 = vmatprep.subr.bf16.mxu0 0
  %2852 = vmatpush1.bf16.msra.mxu0 %v2352
  %2853 = vmatprep.mubr.bf16.mxu0 %v1715
  %2854 = vmatmul.mubr.bf16.gmra.mrb[0].mxu0 %v1714
  %v2855 = vpop.f32.mrb[0].mxu0
  %v2856 = vadd.f32 %v2759, %v2855
  %v2857 = vpop.f32.mrb[0].mxu0
  %v2858 = vpop.f32.mrb[0].mxu0
  %v2859 = vadd.f32 %v2762, %v2858
  %v2860 = vpop.f32.mrb[0].mxu0
  %2861 = vmatprep.mubr.bf16.mxu0 %v1725
  %2862 = vmatmul.mubr.bf16.gmra.mrb[0].mxu0 %v1724
  %v2863 = vpop.f32.mrb[0].mxu0
  %v2864 = vadd.f32 %v2767, %v2863
  %v2865 = vpop.f32.mrb[0].mxu0
  %v2866 = vpop.f32.mrb[0].mxu0
  %v2867 = vadd.f32 %v2770, %v2866
  %v2868 = vpop.f32.mrb[0].mxu0
  %2869 = vmatprep.mubr.bf16.mxu0 %v1735
  %2870 = vmatmul.mubr.bf16.gmra.mrb[0].mxu0 %v1734
  %v2871 = vpop.f32.mrb[0].mxu0
  %v2872 = vadd.f32 %v2775, %v2871
  %v2873 = vpop.f32.mrb[0].mxu0
  %v2874 = vpop.f32.mrb[0].mxu0
  %v2875 = vadd.f32 %v2778, %v2874
  %v2876 = vpop.f32.mrb[0].mxu0
  %2877 = vmatprep.mubr.bf16.mxu0 %v1745
  %2878 = vmatmul.mubr.bf16.gmra.mrb[0].mxu0 %v1744
  %v2879 = vpop.f32.mrb[0].mxu0
  %v2880 = vadd.f32 %v2783, %v2879
  %v2881 = vpop.f32.mrb[0].mxu0
  %v2882 = vpop.f32.mrb[0].mxu0
  %v2883 = vadd.f32 %v2786, %v2882
  %v2884 = vpop.f32.mrb[0].mxu0
  %2885 = vmatprep.mubr.bf16.mxu0 %v1755
  %2886 = vmatmul.mubr.bf16.gmra.mrb[0].mxu0 %v1754
  %v2887 = vpop.f32.mrb[0].mxu0
  %v2888 = vadd.f32 %v2791, %v2887
  %v2889 = vpop.f32.mrb[0].mxu0
  %v2890 = vpop.f32.mrb[0].mxu0
  %v2891 = vadd.f32 %v2794, %v2890
  %v2892 = vpop.f32.mrb[0].mxu0
  %2893 = vmatprep.mubr.bf16.mxu0 %v1765
  %2894 = vmatmul.mubr.bf16.gmra.mrb[0].mxu0 %v1764
  %v2895 = vpop.f32.mrb[0].mxu0
  %v2896 = vadd.f32 %v2799, %v2895
  %v2897 = vpop.f32.mrb[0].mxu0
  %v2898 = vpop.f32.mrb[0].mxu0
  %v2899 = vadd.f32 %v2802, %v2898
  %v2900 = vpop.f32.mrb[0].mxu0
  %2901 = vmatprep.mubr.bf16.mxu0 %v1775
  %2902 = vmatmul.mubr.bf16.gmra.mrb[0].mxu0 %v1774
  %v2903 = vpop.f32.mrb[0].mxu0
  %v2904 = vadd.f32 %v2807, %v2903
  %v2905 = vpop.f32.mrb[0].mxu0
  %v2906 = vpop.f32.mrb[0].mxu0
  %v2907 = vadd.f32 %v2810, %v2906
  %v2908 = vpop.f32.mrb[0].mxu0
  %2909 = vmatprep.mubr.bf16.mxu0 %v1785
  %2910 = vmatmul.mubr.bf16.gmra.mrb[0].mxu0 %v1784
  %v2911 = vpop.f32.mrb[0].mxu0
  %v2912 = vadd.f32 %v2815, %v2911
  %v2913 = vpop.f32.mrb[0].mxu0
  %v2914 = vpop.f32.mrb[0].mxu0
  %v2915 = vadd.f32 %v2818, %v2914
  %v2916 = vpop.f32.mrb[0].mxu0
  %2917 = vdwg.mxu0
  %v2918 = vmax.f32 %v2856, 0.0
  %v2919 = vmax.f32 %v2859, 0.0
  %v2920 = vmax.f32 %v2864, 0.0
  %v2921 = vmax.f32 %v2867, 0.0
  %v2922 = vmax.f32 %v2872, 0.0
  %v2923 = vmax.f32 %v2875, 0.0
  %v2924 = vmax.f32 %v2880, 0.0
  %v2925 = vmax.f32 %v2883, 0.0
  %v2926 = vmax.f32 %v2888, 0.0
  %v2927 = vmax.f32 %v2891, 0.0
  %v2928 = vmax.f32 %v2896, 0.0
  %v2929 = vmax.f32 %v2899, 0.0
  %v2930 = vmax.f32 %v2904, 0.0
  %v2931 = vmax.f32 %v2907, 0.0
  %v2932 = vmax.f32 %v2912, 0.0
  %v2933 = vmax.f32 %v2915, 0.0
  %v2934 = vpack.c.bf16 %v2919, %v2918
  %v2935 = vpack.c.bf16 %v2921, %v2920
  %v2936 = vpack.c.bf16 %v2923, %v2922
  %v2937 = vpack.c.bf16 %v2925, %v2924
  %v2938 = vpack.c.bf16 %v2927, %v2926
  %v2939 = vpack.c.bf16 %v2929, %v2928
  %v2940 = vpack.c.bf16 %v2931, %v2930
  %v2941 = vpack.c.bf16 %v2933, %v2932
  %v2950 = vunpack.c.l.b16 %v2934
  %v2951 = vunpack.c.h.b16 %v2934
  %v2952 = vunpack.c.l.b16 %v2935
  %v2953 = vunpack.c.h.b16 %v2935
  %v2954 = vunpack.c.l.b16 %v2936
  %v2955 = vunpack.c.h.b16 %v2936
  %v2956 = vunpack.c.l.b16 %v2937
  %v2957 = vunpack.c.h.b16 %v2937
  %v2958 = vunpack.c.l.b16 %v2938
  %v2959 = vunpack.c.h.b16 %v2938
  %v2960 = vunpack.c.l.b16 %v2939
  %v2961 = vunpack.c.h.b16 %v2939
  %v2962 = vunpack.c.l.b16 %v2940
  %v2963 = vunpack.c.h.b16 %v2940
  %v2964 = vunpack.c.l.b16 %v2941
  %v2965 = vunpack.c.h.b16 %v2941
  %v2966 = vpack.c.b16 %v2950, %v2950
  %v2967 = vpack.c.b16 %v2951, %v2951
  %v2968 = vpack.c.b16 %v2952, %v2952
  %v2969 = vpack.c.b16 %v2953, %v2953
  %v2970 = vpack.c.b16 %v2954, %v2954
  %v2971 = vpack.c.b16 %v2955, %v2955
  %v2972 = vpack.c.b16 %v2956, %v2956
  %v2973 = vpack.c.b16 %v2957, %v2957
  %v2974 = vpack.c.b16 %v2958, %v2958
  %v2975 = vpack.c.b16 %v2959, %v2959
  %v2976 = vpack.c.b16 %v2960, %v2960
  %v2977 = vpack.c.b16 %v2961, %v2961
  %v2978 = vpack.c.b16 %v2962, %v2962
  %v2979 = vpack.c.b16 %v2963, %v2963
  %v2980 = vpack.c.b16 %v2964, %v2964
  %v2981 = vpack.c.b16 %v2965, %v2965
  %2998 = vst [vmem:[%s4] sm:$0xf] %v2966
  %2999 = vst [vmem:[%s4 + $0x4] sm:$0xf] %v2967
  %3000 = vst [vmem:[%s4 + $0x8] sm:$0xf] %v2968
  %3001 = vst [vmem:[%s4 + $0xc] sm:$0xf] %v2969
  %3002 = vst [vmem:[%s4 + $0x10] sm:$0xf] %v2970
  %3003 = vst [vmem:[%s4 + $0x14] sm:$0xf] %v2971
  %3004 = vst [vmem:[%s4 + $0x18] sm:$0xf] %v2972
  %3005 = vst [vmem:[%s4 + $0x1c] sm:$0xf] %v2973
  %3006 = vst [vmem:[%s4 + $0x20] sm:$0xf] %v2974
  %3007 = vst [vmem:[%s4 + $0x24] sm:$0xf] %v2975
  %3008 = vst [vmem:[%s4 + $0x28] sm:$0xf] %v2976
  %3009 = vst [vmem:[%s4 + $0x2c] sm:$0xf] %v2977
  %3010 = vst [vmem:[%s4 + $0x30] sm:$0xf] %v2978
  %3011 = vst [vmem:[%s4 + $0x34] sm:$0xf] %v2979
  %3012 = vst [vmem:[%s4 + $0x38] sm:$0xf] %v2980
  %3013 = vst [vmem:[%s4 + $0x3c] sm:$0xf] %v2981
  // Predicated region
  $region18: #{_lambda_.5} parent=0 // pred_check
    _
  $region19: #{_lambda_.5} parent=0 // pred_check_branch
    %3015 = sbr.rel (0) target = $region21
  $region20: #{_lambda_.5} parent=0 // pred_region
    _
  $region21: #{_lambda_.5} parent=0 // pred_fallthru
    _
  // Predicated region
  $region22: #{_lambda_.5} parent=0 // pred_check
    _
  $region23: #{_lambda_.5} parent=0 // pred_check_branch
    %3017 = sbr.rel (0) target = $region25
  $region24: #{_lambda_.5} parent=0 // pred_region
    _
  $region25: #{_lambda_.5} parent=0 // pred_fallthru
    _

// kernel: _lambda_.7
$region0: #{_lambda_.7}
  #allocation0 [shape = 'u32[]', space=smem, size = 0x4, offset = 0x4, fixed_abs, tag = 'smem constant byte address 0x4 - core index']
  #allocation1 [shape = 'u32[144,128]{1,0:T(1,128)}', space=vmem, size = 0x12000, scoped, tag = 'internal scratch']
  #allocation2 [shape = 'bf16[128,1152]{1,0:T(16,128)(2,1)}', space=vmem, size = 0x48000, scoped, tag = 'scratch operand']
  %s0 = inlined_call_operand.vmem [shape: bf16[2,10,10,128], index: 0, kind: input, shape index: {}]
  %s1 = inlined_call_operand.vmem [shape: bf16[1152,128], index: 1, kind: input, shape index: {}]
  %s2 = inlined_call_operand.vmem [shape: f32[1,128], index: 2, kind: input, shape index: {}]
  %s3 = inlined_call_operand.vmem [shape: bf16[2,10,10,128], index: 3, kind: input, shape index: {}]
  %s4 = inlined_call_operand.vmem [shape: bf16[128,128], index: 4, kind: output, shape index: {}]
  %s5 = sld [smem:[#allocation0]]
  $region26: #{_lambda_.7} parent=0
    _
  %s7 = ssub.s32 1, %s5
  %s8 = scalar_select 0, %s7, %s5
  // Predicated region
  $region2: #{_lambda_.7} parent=0 // pred_check
    _
  $region3: #{_lambda_.7} parent=0 // pred_check_branch
    %10 = sbr.rel (0) target = $region5
  $region4: #{_lambda_.7} parent=0 // pred_region
    _
  $region5: #{_lambda_.7} parent=0 // pred_fallthru
    _
  // Predicated region
  $region6: #{_lambda_.7} parent=0 // pred_check
    _
  $region7: #{_lambda_.7} parent=0 // pred_check_branch
    %12 = sbr.rel (0) target = $region9
  $region8: #{_lambda_.7} parent=0 // pred_region
    _
  $region9: #{_lambda_.7} parent=0 // pred_fallthru
    _
  // Predicated region
  $region10: #{_lambda_.7} parent=0 // pred_check
    _
  $region11: #{_lambda_.7} parent=0 // pred_check_branch
    %14 = sbr.rel (0) target = $region13
  $region12: #{_lambda_.7} parent=0 // pred_region
    _
  $region13: #{_lambda_.7} parent=0 // pred_fallthru
    _
  // Predicated region
  $region14: #{_lambda_.7} parent=0 // pred_check
    _
  $region15: #{_lambda_.7} parent=0 // pred_check_branch
    %16 = sbr.rel (0) target = $region17
  $region16: #{_lambda_.7} parent=0 // pred_region
    _
  $region17: #{_lambda_.7} parent=0 // pred_fallthru
    _
  %v18 = vld [vmem:[%s0] sm:$0xf]
  %v19 = vld [vmem:[%s0 + $0x8] sm:$0xf]
  %v20 = vld [vmem:[%s0 + $0x10] sm:$0xf]
  %v21 = vld [vmem:[%s0 + $0x18] sm:$0xf]
  %v22 = vld [vmem:[%s0 + $0x20] sm:$0xf]
  %v23 = vld [vmem:[%s0 + $0x28] sm:$0xf]
  %v24 = vld [vmem:[%s0 + $0x30] sm:$0xf]
  %v25 = vld [vmem:[%s0 + $0x38] sm:$0xf]
  %v26 = vld [vmem:[%s0 + $0x50] sm:$0xf]
  %v27 = vld [vmem:[%s0 + $0x58] sm:$0xf]
  %v28 = vld [vmem:[%s0 + $0x60] sm:$0xf]
  %v29 = vld [vmem:[%s0 + $0x68] sm:$0xf]
  %v30 = vld [vmem:[%s0 + $0x70] sm:$0xf]
  %v31 = vld [vmem:[%s0 + $0x78] sm:$0xf]
  %v32 = vld [vmem:[%s0 + $0x80] sm:$0xf]
  %v33 = vld [vmem:[%s0 + $0x88] sm:$0xf]
  %v50 = vunpack.c.l.b16 %v18
  %v51 = vunpack.c.l.b16 %v19
  %v52 = vunpack.c.l.b16 %v20
  %v53 = vunpack.c.l.b16 %v21
  %v54 = vunpack.c.l.b16 %v22
  %v55 = vunpack.c.l.b16 %v23
  %v56 = vunpack.c.l.b16 %v24
  %v57 = vunpack.c.l.b16 %v25
  %v58 = vunpack.c.l.b16 %v26
  %v59 = vunpack.c.l.b16 %v27
  %v60 = vunpack.c.l.b16 %v28
  %v61 = vunpack.c.l.b16 %v29
  %v62 = vunpack.c.l.b16 %v30
  %v63 = vunpack.c.l.b16 %v31
  %v64 = vunpack.c.l.b16 %v32
  %v65 = vunpack.c.l.b16 %v33
  %v66 = vpack.c.b16 %v51, %v50
  %v67 = vpack.c.b16 %v53, %v52
  %v68 = vpack.c.b16 %v55, %v54
  %v69 = vpack.c.b16 %v57, %v56
  %v70 = vpack.c.b16 %v59, %v58
  %v71 = vpack.c.b16 %v61, %v60
  %v72 = vpack.c.b16 %v63, %v62
  %v73 = vpack.c.b16 %v65, %v64
  %82 = vst [vmem:[#allocation2] sm:$0xff] %v66
  %83 = vst [vmem:[#allocation2 + $0x48] sm:$0xff] %v67
  %84 = vst [vmem:[#allocation2 + $0x90] sm:$0xff] %v68
  %85 = vst [vmem:[#allocation2 + $0xd8] sm:$0xff] %v69
  %86 = vst [vmem:[#allocation2 + $0x120] sm:$0xff] %v70
  %87 = vst [vmem:[#allocation2 + $0x168] sm:$0xff] %v71
  %88 = vst [vmem:[#allocation2 + $0x1b0] sm:$0xff] %v72
  %89 = vst [vmem:[#allocation2 + $0x1f8] sm:$0xff] %v73
  %v90 = vld [vmem:[%s0] sm:$0xf]
  %v91 = vld [vmem:[%s0 + $0x4] sm:$0x1]
  %v92 = vld [vmem:[%s0 + $0x8] sm:$0xf]
  %v93 = vld [vmem:[%s0 + $0xc] sm:$0x1]
  %v94 = vld [vmem:[%s0 + $0x10] sm:$0xf]
  %v95 = vld [vmem:[%s0 + $0x14] sm:$0x1]
  %v96 = vld [vmem:[%s0 + $0x18] sm:$0xf]
  %v97 = vld [vmem:[%s0 + $0x1c] sm:$0x1]
  %v98 = vld [vmem:[%s0 + $0x20] sm:$0xf]
  %v99 = vld [vmem:[%s0 + $0x24] sm:$0x1]
  %v100 = vld [vmem:[%s0 + $0x28] sm:$0xf]
  %v101 = vld [vmem:[%s0 + $0x2c] sm:$0x1]
  %v102 = vld [vmem:[%s0 + $0x30] sm:$0xf]
  %v103 = vld [vmem:[%s0 + $0x34] sm:$0x1]
  %v104 = vld [vmem:[%s0 + $0x38] sm:$0xf]
  %v105 = vld [vmem:[%s0 + $0x3c] sm:$0x1]
  %v106 = vld [vmem:[%s0 + $0x50] sm:$0xf]
  %v107 = vld [vmem:[%s0 + $0x54] sm:$0x1]
  %v108 = vld [vmem:[%s0 + $0x58] sm:$0xf]
  %v109 = vld [vmem:[%s0 + $0x5c] sm:$0x1]
  %v110 = vld [vmem:[%s0 + $0x60] sm:$0xf]
  %v111 = vld [vmem:[%s0 + $0x64] sm:$0x1]
  %v112 = vld [vmem:[%s0 + $0x68] sm:$0xf]
  %v113 = vld [vmem:[%s0 + $0x6c] sm:$0x1]
  %v114 = vld [vmem:[%s0 + $0x70] sm:$0xf]
  %v115 = vld [vmem:[%s0 + $0x74] sm:$0x1]
  %v116 = vld [vmem:[%s0 + $0x78] sm:$0xf]
  %v117 = vld [vmem:[%s0 + $0x7c] sm:$0x1]
  %v118 = vld [vmem:[%s0 + $0x80] sm:$0xf]
  %v119 = vld [vmem:[%s0 + $0x84] sm:$0x1]
  %v120 = vld [vmem:[%s0 + $0x88] sm:$0xf]
  %v121 = vld [vmem:[%s0 + $0x8c] sm:$0x1]
  %vm122 = vsmask.f32 3328
  %vm123 = vsmask.f32 7440
  %vm124 = vmor %vm122, %vm123
  %v126 = vshrl.u32 %v90, 16
  %v128 = vrot.slane %v126, 4
  %v129 = vshll.u32 %v90, 16
  %v131 = vrot.slane %v129, 5
  %v132 = vor.u32 %v128, %v131
  %v133 = vrot.slane %v132, 4
  %v135 = vshll.u32 %v91, 16
  %v137 = vrot.slane %v135, 5
  %v138 = vsel %vm124, %v133, %v137
  %v140 = vshrl.u32 %v92, 16
  %v142 = vrot.slane %v140, 4
  %v143 = vshll.u32 %v92, 16
  %v145 = vrot.slane %v143, 5
  %v146 = vor.u32 %v142, %v145
  %v147 = vrot.slane %v146, 4
  %v149 = vshll.u32 %v93, 16
  %v151 = vrot.slane %v149, 5
  %v152 = vsel %vm124, %v147, %v151
  %v154 = vshrl.u32 %v94, 16
  %v156 = vrot.slane %v154, 4
  %v157 = vshll.u32 %v94, 16
  %v159 = vrot.slane %v157, 5
  %v160 = vor.u32 %v156, %v159
  %v161 = vrot.slane %v160, 4
  %v163 = vshll.u32 %v95, 16
  %v165 = vrot.slane %v163, 5
  %v166 = vsel %vm124, %v161, %v165
  %v168 = vshrl.u32 %v96, 16
  %v170 = vrot.slane %v168, 4
  %v171 = vshll.u32 %v96, 16
  %v173 = vrot.slane %v171, 5
  %v174 = vor.u32 %v170, %v173
  %v175 = vrot.slane %v174, 4
  %v177 = vshll.u32 %v97, 16
  %v179 = vrot.slane %v177, 5
  %v180 = vsel %vm124, %v175, %v179
  %v182 = vshrl.u32 %v98, 16
  %v184 = vrot.slane %v182, 4
  %v185 = vshll.u32 %v98, 16
  %v187 = vrot.slane %v185, 5
  %v188 = vor.u32 %v184, %v187
  %v189 = vrot.slane %v188, 4
  %v191 = vshll.u32 %v99, 16
  %v193 = vrot.slane %v191, 5
  %v194 = vsel %vm124, %v189, %v193
  %v196 = vshrl.u32 %v100, 16
  %v198 = vrot.slane %v196, 4
  %v199 = vshll.u32 %v100, 16
  %v201 = vrot.slane %v199, 5
  %v202 = vor.u32 %v198, %v201
  %v203 = vrot.slane %v202, 4
  %v205 = vshll.u32 %v101, 16
  %v207 = vrot.slane %v205, 5
  %v208 = vsel %vm124, %v203, %v207
  %v210 = vshrl.u32 %v102, 16
  %v212 = vrot.slane %v210, 4
  %v213 = vshll.u32 %v102, 16
  %v215 = vrot.slane %v213, 5
  %v216 = vor.u32 %v212, %v215
  %v217 = vrot.slane %v216, 4
  %v219 = vshll.u32 %v103, 16
  %v221 = vrot.slane %v219, 5
  %v222 = vsel %vm124, %v217, %v221
  %v224 = vshrl.u32 %v104, 16
  %v226 = vrot.slane %v224, 4
  %v227 = vshll.u32 %v104, 16
  %v229 = vrot.slane %v227, 5
  %v230 = vor.u32 %v226, %v229
  %v231 = vrot.slane %v230, 4
  %v233 = vshll.u32 %v105, 16
  %v235 = vrot.slane %v233, 5
  %v236 = vsel %vm124, %v231, %v235
  %v238 = vshrl.u32 %v106, 16
  %v240 = vrot.slane %v238, 4
  %v241 = vshll.u32 %v106, 16
  %v243 = vrot.slane %v241, 5
  %v244 = vor.u32 %v240, %v243
  %v245 = vrot.slane %v244, 4
  %v247 = vshll.u32 %v107, 16
  %v249 = vrot.slane %v247, 5
  %v250 = vsel %vm124, %v245, %v249
  %v252 = vshrl.u32 %v108, 16
  %v254 = vrot.slane %v252, 4
  %v255 = vshll.u32 %v108, 16
  %v257 = vrot.slane %v255, 5
  %v258 = vor.u32 %v254, %v257
  %v259 = vrot.slane %v258, 4
  %v261 = vshll.u32 %v109, 16
  %v263 = vrot.slane %v261, 5
  %v264 = vsel %vm124, %v259, %v263
  %v266 = vshrl.u32 %v110, 16
  %v268 = vrot.slane %v266, 4
  %v269 = vshll.u32 %v110, 16
  %v271 = vrot.slane %v269, 5
  %v272 = vor.u32 %v268, %v271
  %v273 = vrot.slane %v272, 4
  %v275 = vshll.u32 %v111, 16
  %v277 = vrot.slane %v275, 5
  %v278 = vsel %vm124, %v273, %v277
  %v280 = vshrl.u32 %v112, 16
  %v282 = vrot.slane %v280, 4
  %v283 = vshll.u32 %v112, 16
  %v285 = vrot.slane %v283, 5
  %v286 = vor.u32 %v282, %v285
  %v287 = vrot.slane %v286, 4
  %v289 = vshll.u32 %v113, 16
  %v291 = vrot.slane %v289, 5
  %v292 = vsel %vm124, %v287, %v291
  %v294 = vshrl.u32 %v114, 16
  %v296 = vrot.slane %v294, 4
  %v297 = vshll.u32 %v114, 16
  %v299 = vrot.slane %v297, 5
  %v300 = vor.u32 %v296, %v299
  %v301 = vrot.slane %v300, 4
  %v303 = vshll.u32 %v115, 16
  %v305 = vrot.slane %v303, 5
  %v306 = vsel %vm124, %v301, %v305
  %v308 = vshrl.u32 %v116, 16
  %v310 = vrot.slane %v308, 4
  %v311 = vshll.u32 %v116, 16
  %v313 = vrot.slane %v311, 5
  %v314 = vor.u32 %v310, %v313
  %v315 = vrot.slane %v314, 4
  %v317 = vshll.u32 %v117, 16
  %v319 = vrot.slane %v317, 5
  %v320 = vsel %vm124, %v315, %v319
  %v322 = vshrl.u32 %v118, 16
  %v324 = vrot.slane %v322, 4
  %v325 = vshll.u32 %v118, 16
  %v327 = vrot.slane %v325, 5
  %v328 = vor.u32 %v324, %v327
  %v329 = vrot.slane %v328, 4
  %v331 = vshll.u32 %v119, 16
  %v333 = vrot.slane %v331, 5
  %v334 = vsel %vm124, %v329, %v333
  %v336 = vshrl.u32 %v120, 16
  %v338 = vrot.slane %v336, 4
  %v339 = vshll.u32 %v120, 16
  %v341 = vrot.slane %v339, 5
  %v342 = vor.u32 %v338, %v341
  %v343 = vrot.slane %v342, 4
  %v345 = vshll.u32 %v121, 16
  %v347 = vrot.slane %v345, 5
  %v348 = vsel %vm124, %v343, %v347
  %v349 = vunpack.c.l.b16 %v138
  %v350 = vunpack.c.l.b16 %v152
  %v351 = vunpack.c.l.b16 %v166
  %v352 = vunpack.c.l.b16 %v180
  %v353 = vunpack.c.l.b16 %v194
  %v354 = vunpack.c.l.b16 %v208
  %v355 = vunpack.c.l.b16 %v222
  %v356 = vunpack.c.l.b16 %v236
  %v357 = vunpack.c.l.b16 %v250
  %v358 = vunpack.c.l.b16 %v264
  %v359 = vunpack.c.l.b16 %v278
  %v360 = vunpack.c.l.b16 %v292
  %v361 = vunpack.c.l.b16 %v306
  %v362 = vunpack.c.l.b16 %v320
  %v363 = vunpack.c.l.b16 %v334
  %v364 = vunpack.c.l.b16 %v348
  %v365 = vpack.c.b16 %v350, %v349
  %v366 = vpack.c.b16 %v352, %v351
  %v367 = vpack.c.b16 %v354, %v353
  %v368 = vpack.c.b16 %v356, %v355
  %v369 = vpack.c.b16 %v358, %v357
  %v370 = vpack.c.b16 %v360, %v359
  %v371 = vpack.c.b16 %v362, %v361
  %v372 = vpack.c.b16 %v364, %v363
  %381 = vst [vmem:[#allocation2 + $0x8] sm:$0xff] %v365
  %382 = vst [vmem:[#allocation2 + $0x50] sm:$0xff] %v366
  %383 = vst [vmem:[#allocation2 + $0x98] sm:$0xff] %v367
  %384 = vst [vmem:[#allocation2 + $0xe0] sm:$0xff] %v368
  %385 = vst [vmem:[#allocation2 + $0x128] sm:$0xff] %v369
  %386 = vst [vmem:[#allocation2 + $0x170] sm:$0xff] %v370
  %387 = vst [vmem:[#allocation2 + $0x1b8] sm:$0xff] %v371
  %388 = vst [vmem:[#allocation2 + $0x200] sm:$0xff] %v372
  %v389 = vld [vmem:[%s0] sm:$0xe]
  %v390 = vld [vmem:[%s0 + $0x4] sm:$0x1]
  %v391 = vld [vmem:[%s0 + $0x8] sm:$0xe]
  %v392 = vld [vmem:[%s0 + $0xc] sm:$0x1]
  %v393 = vld [vmem:[%s0 + $0x10] sm:$0xe]
  %v394 = vld [vmem:[%s0 + $0x14] sm:$0x1]
  %v395 = vld [vmem:[%s0 + $0x18] sm:$0xe]
  %v396 = vld [vmem:[%s0 + $0x1c] sm:$0x1]
  %v397 = vld [vmem:[%s0 + $0x20] sm:$0xe]
  %v398 = vld [vmem:[%s0 + $0x24] sm:$0x1]
  %v399 = vld [vmem:[%s0 + $0x28] sm:$0xe]
  %v400 = vld [vmem:[%s0 + $0x2c] sm:$0x1]
  %v401 = vld [vmem:[%s0 + $0x30] sm:$0xe]
  %v402 = vld [vmem:[%s0 + $0x34] sm:$0x1]
  %v403 = vld [vmem:[%s0 + $0x38] sm:$0xe]
  %v404 = vld [vmem:[%s0 + $0x3c] sm:$0x1]
  %v405 = vld [vmem:[%s0 + $0x50] sm:$0xe]
  %v406 = vld [vmem:[%s0 + $0x54] sm:$0x1]
  %v407 = vld [vmem:[%s0 + $0x58] sm:$0xe]
  %v408 = vld [vmem:[%s0 + $0x5c] sm:$0x1]
  %v409 = vld [vmem:[%s0 + $0x60] sm:$0xe]
  %v410 = vld [vmem:[%s0 + $0x64] sm:$0x1]
  %v411 = vld [vmem:[%s0 + $0x68] sm:$0xe]
  %v412 = vld [vmem:[%s0 + $0x6c] sm:$0x1]
  %v413 = vld [vmem:[%s0 + $0x70] sm:$0xe]
  %v414 = vld [vmem:[%s0 + $0x74] sm:$0x1]
  %v415 = vld [vmem:[%s0 + $0x78] sm:$0xe]
  %v416 = vld [vmem:[%s0 + $0x7c] sm:$0x1]
  %v417 = vld [vmem:[%s0 + $0x80] sm:$0xe]
  %v418 = vld [vmem:[%s0 + $0x84] sm:$0x1]
  %v419 = vld [vmem:[%s0 + $0x88] sm:$0xe]
  %v420 = vld [vmem:[%s0 + $0x8c] sm:$0x1]
  %vm453 = vcmask 1042432
  %vm454 = vcmask 1046532
  %vm455 = vmor %vm453, %vm454
  %v456 = vrot.slane %v389, 5
  %v457 = vrot.slane %v456, 4
  %v458 = vrot.slane %v390, 5
  %v459 = vsel %vm455, %v457, %v458
  %v460 = vrot.slane %v391, 5
  %v461 = vrot.slane %v460, 4
  %v462 = vrot.slane %v392, 5
  %v463 = vsel %vm455, %v461, %v462
  %v464 = vrot.slane %v393, 5
  %v465 = vrot.slane %v464, 4
  %v466 = vrot.slane %v394, 5
  %v467 = vsel %vm455, %v465, %v466
  %v468 = vrot.slane %v395, 5
  %v469 = vrot.slane %v468, 4
  %v470 = vrot.slane %v396, 5
  %v471 = vsel %vm455, %v469, %v470
  %v472 = vrot.slane %v397, 5
  %v473 = vrot.slane %v472, 4
  %v474 = vrot.slane %v398, 5
  %v475 = vsel %vm455, %v473, %v474
  %v476 = vrot.slane %v399, 5
  %v477 = vrot.slane %v476, 4
  %v478 = vrot.slane %v400, 5
  %v479 = vsel %vm455, %v477, %v478
  %v480 = vrot.slane %v401, 5
  %v481 = vrot.slane %v480, 4
  %v482 = vrot.slane %v402, 5
  %v483 = vsel %vm455, %v481, %v482
  %v484 = vrot.slane %v403, 5
  %v485 = vrot.slane %v484, 4
  %v486 = vrot.slane %v404, 5
  %v487 = vsel %vm455, %v485, %v486
  %v488 = vrot.slane %v405, 5
  %v489 = vrot.slane %v488, 4
  %v490 = vrot.slane %v406, 5
  %v491 = vsel %vm455, %v489, %v490
  %v492 = vrot.slane %v407, 5
  %v493 = vrot.slane %v492, 4
  %v494 = vrot.slane %v408, 5
  %v495 = vsel %vm455, %v493, %v494
  %v496 = vrot.slane %v409, 5
  %v497 = vrot.slane %v496, 4
  %v498 = vrot.slane %v410, 5
  %v499 = vsel %vm455, %v497, %v498
  %v500 = vrot.slane %v411, 5
  %v501 = vrot.slane %v500, 4
  %v502 = vrot.slane %v412, 5
  %v503 = vsel %vm455, %v501, %v502
  %v504 = vrot.slane %v413, 5
  %v505 = vrot.slane %v504, 4
  %v506 = vrot.slane %v414, 5
  %v507 = vsel %vm455, %v505, %v506
  %v508 = vrot.slane %v415, 5
  %v509 = vrot.slane %v508, 4
  %v510 = vrot.slane %v416, 5
  %v511 = vsel %vm455, %v509, %v510
  %v512 = vrot.slane %v417, 5
  %v513 = vrot.slane %v512, 4
  %v514 = vrot.slane %v418, 5
  %v515 = vsel %vm455, %v513, %v514
  %v516 = vrot.slane %v419, 5
  %v517 = vrot.slane %v516, 4
  %v518 = vrot.slane %v420, 5
  %v519 = vsel %vm455, %v517, %v518
  %v520 = vunpack.c.l.b16 %v459
  %v521 = vunpack.c.l.b16 %v463
  %v522 = vunpack.c.l.b16 %v467
  %v523 = vunpack.c.l.b16 %v471
  %v524 = vunpack.c.l.b16 %v475
  %v525 = vunpack.c.l.b16 %v479
  %v526 = vunpack.c.l.b16 %v483
  %v527 = vunpack.c.l.b16 %v487
  %v528 = vunpack.c.l.b16 %v491
  %v529 = vunpack.c.l.b16 %v495
  %v530 = vunpack.c.l.b16 %v499
  %v531 = vunpack.c.l.b16 %v503
  %v532 = vunpack.c.l.b16 %v507
  %v533 = vunpack.c.l.b16 %v511
  %v534 = vunpack.c.l.b16 %v515
  %v535 = vunpack.c.l.b16 %v519
  %v536 = vpack.c.b16 %v521, %v520
  %v537 = vpack.c.b16 %v523, %v522
  %v538 = vpack.c.b16 %v525, %v524
  %v539 = vpack.c.b16 %v527, %v526
  %v540 = vpack.c.b16 %v529, %v528
  %v541 = vpack.c.b16 %v531, %v530
  %v542 = vpack.c.b16 %v533, %v532
  %v543 = vpack.c.b16 %v535, %v534
  %552 = vst [vmem:[#allocation2 + $0x10] sm:$0xff] %v536
  %553 = vst [vmem:[#allocation2 + $0x58] sm:$0xff] %v537
  %554 = vst [vmem:[#allocation2 + $0xa0] sm:$0xff] %v538
  %555 = vst [vmem:[#allocation2 + $0xe8] sm:$0xff] %v539
  %556 = vst [vmem:[#allocation2 + $0x130] sm:$0xff] %v540
  %557 = vst [vmem:[#allocation2 + $0x178] sm:$0xff] %v541
  %558 = vst [vmem:[#allocation2 + $0x1c0] sm:$0xff] %v542
  %559 = vst [vmem:[#allocation2 + $0x208] sm:$0xff] %v543
  %s560 = scalar_lea.vmem %s0, 8
  %v561 = vld [vmem:[%s560] sm:$0xf]
  %v562 = vld [vmem:[%s560 + $0x8] sm:$0xf]
  %v563 = vld [vmem:[%s560 + $0x10] sm:$0xf]
  %v564 = vld [vmem:[%s560 + $0x18] sm:$0xf]
  %v565 = vld [vmem:[%s560 + $0x20] sm:$0xf]
  %v566 = vld [vmem:[%s560 + $0x28] sm:$0xf]
  %v567 = vld [vmem:[%s560 + $0x30] sm:$0xf]
  %v568 = vld [vmem:[%s560 + $0x38] sm:$0xf]
  %v569 = vld [vmem:[%s560 + $0x50] sm:$0xf]
  %v570 = vld [vmem:[%s560 + $0x58] sm:$0xf]
  %v571 = vld [vmem:[%s560 + $0x60] sm:$0xf]
  %v572 = vld [vmem:[%s560 + $0x68] sm:$0xf]
  %v573 = vld [vmem:[%s560 + $0x70] sm:$0xf]
  %v574 = vld [vmem:[%s560 + $0x78] sm:$0xf]
  %v575 = vld [vmem:[%s560 + $0x80] sm:$0xf]
  %v576 = vld [vmem:[%s560 + $0x88] sm:$0xf]
  %v593 = vunpack.c.l.b16 %v561
  %v594 = vunpack.c.l.b16 %v562
  %v595 = vunpack.c.l.b16 %v563
  %v596 = vunpack.c.l.b16 %v564
  %v597 = vunpack.c.l.b16 %v565
  %v598 = vunpack.c.l.b16 %v566
  %v599 = vunpack.c.l.b16 %v567
  %v600 = vunpack.c.l.b16 %v568
  %v601 = vunpack.c.l.b16 %v569
  %v602 = vunpack.c.l.b16 %v570
  %v603 = vunpack.c.l.b16 %v571
  %v604 = vunpack.c.l.b16 %v572
  %v605 = vunpack.c.l.b16 %v573
  %v606 = vunpack.c.l.b16 %v574
  %v607 = vunpack.c.l.b16 %v575
  %v608 = vunpack.c.l.b16 %v576
  %v609 = vpack.c.b16 %v594, %v593
  %v610 = vpack.c.b16 %v596, %v595
  %v611 = vpack.c.b16 %v598, %v597
  %v612 = vpack.c.b16 %v600, %v599
  %v613 = vpack.c.b16 %v602, %v601
  %v614 = vpack.c.b16 %v604, %v603
  %v615 = vpack.c.b16 %v606, %v605
  %v616 = vpack.c.b16 %v608, %v607
  %625 = vst [vmem:[#allocation2 + $0x18] sm:$0xff] %v609
  %626 = vst [vmem:[#allocation2 + $0x60] sm:$0xff] %v610
  %627 = vst [vmem:[#allocation2 + $0xa8] sm:$0xff] %v611
  %628 = vst [vmem:[#allocation2 + $0xf0] sm:$0xff] %v612
  %629 = vst [vmem:[#allocation2 + $0x138] sm:$0xff] %v613
  %630 = vst [vmem:[#allocation2 + $0x180] sm:$0xff] %v614
  %631 = vst [vmem:[#allocation2 + $0x1c8] sm:$0xff] %v615
  %632 = vst [vmem:[#allocation2 + $0x210] sm:$0xff] %v616
  %v633 = vld [vmem:[%s560] sm:$0xf]
  %v634 = vld [vmem:[%s560 + $0x4] sm:$0x1]
  %v635 = vld [vmem:[%s560 + $0x8] sm:$0xf]
  %v636 = vld [vmem:[%s560 + $0xc] sm:$0x1]
  %v637 = vld [vmem:[%s560 + $0x10] sm:$0xf]
  %v638 = vld [vmem:[%s560 + $0x14] sm:$0x1]
  %v639 = vld [vmem:[%s560 + $0x18] sm:$0xf]
  %v640 = vld [vmem:[%s560 + $0x1c] sm:$0x1]
  %v641 = vld [vmem:[%s560 + $0x20] sm:$0xf]
  %v642 = vld [vmem:[%s560 + $0x24] sm:$0x1]
  %v643 = vld [vmem:[%s560 + $0x28] sm:$0xf]
  %v644 = vld [vmem:[%s560 + $0x2c] sm:$0x1]
  %v645 = vld [vmem:[%s560 + $0x30] sm:$0xf]
  %v646 = vld [vmem:[%s560 + $0x34] sm:$0x1]
  %v647 = vld [vmem:[%s560 + $0x38] sm:$0xf]
  %v648 = vld [vmem:[%s560 + $0x3c] sm:$0x1]
  %v649 = vld [vmem:[%s560 + $0x50] sm:$0xf]
  %v650 = vld [vmem:[%s560 + $0x54] sm:$0x1]
  %v651 = vld [vmem:[%s560 + $0x58] sm:$0xf]
  %v652 = vld [vmem:[%s560 + $0x5c] sm:$0x1]
  %v653 = vld [vmem:[%s560 + $0x60] sm:$0xf]
  %v654 = vld [vmem:[%s560 + $0x64] sm:$0x1]
  %v655 = vld [vmem:[%s560 + $0x68] sm:$0xf]
  %v656 = vld [vmem:[%s560 + $0x6c] sm:$0x1]
  %v657 = vld [vmem:[%s560 + $0x70] sm:$0xf]
  %v658 = vld [vmem:[%s560 + $0x74] sm:$0x1]
  %v659 = vld [vmem:[%s560 + $0x78] sm:$0xf]
  %v660 = vld [vmem:[%s560 + $0x7c] sm:$0x1]
  %v661 = vld [vmem:[%s560 + $0x80] sm:$0xf]
  %v662 = vld [vmem:[%s560 + $0x84] sm:$0x1]
  %v663 = vld [vmem:[%s560 + $0x88] sm:$0xf]
  %v664 = vld [vmem:[%s560 + $0x8c] sm:$0x1]
  %v666 = vshrl.u32 %v633, 16
  %v668 = vrot.slane %v666, 4
  %v669 = vshll.u32 %v633, 16
  %v671 = vrot.slane %v669, 5
  %v672 = vor.u32 %v668, %v671
  %v673 = vrot.slane %v672, 4
  %v675 = vshll.u32 %v634, 16
  %v677 = vrot.slane %v675, 5
  %v678 = vsel %vm124, %v673, %v677
  %v680 = vshrl.u32 %v635, 16
  %v682 = vrot.slane %v680, 4
  %v683 = vshll.u32 %v635, 16
  %v685 = vrot.slane %v683, 5
  %v686 = vor.u32 %v682, %v685
  %v687 = vrot.slane %v686, 4
  %v689 = vshll.u32 %v636, 16
  %v691 = vrot.slane %v689, 5
  %v692 = vsel %vm124, %v687, %v691
  %v694 = vshrl.u32 %v637, 16
  %v696 = vrot.slane %v694, 4
  %v697 = vshll.u32 %v637, 16
  %v699 = vrot.slane %v697, 5
  %v700 = vor.u32 %v696, %v699
  %v701 = vrot.slane %v700, 4
  %v703 = vshll.u32 %v638, 16
  %v705 = vrot.slane %v703, 5
  %v706 = vsel %vm124, %v701, %v705
  %v708 = vshrl.u32 %v639, 16
  %v710 = vrot.slane %v708, 4
  %v711 = vshll.u32 %v639, 16
  %v713 = vrot.slane %v711, 5
  %v714 = vor.u32 %v710, %v713
  %v715 = vrot.slane %v714, 4
  %v717 = vshll.u32 %v640, 16
  %v719 = vrot.slane %v717, 5
  %v720 = vsel %vm124, %v715, %v719
  %v722 = vshrl.u32 %v641, 16
  %v724 = vrot.slane %v722, 4
  %v725 = vshll.u32 %v641, 16
  %v727 = vrot.slane %v725, 5
  %v728 = vor.u32 %v724, %v727
  %v729 = vrot.slane %v728, 4
  %v731 = vshll.u32 %v642, 16
  %v733 = vrot.slane %v731, 5
  %v734 = vsel %vm124, %v729, %v733
  %v736 = vshrl.u32 %v643, 16
  %v738 = vrot.slane %v736, 4
  %v739 = vshll.u32 %v643, 16
  %v741 = vrot.slane %v739, 5
  %v742 = vor.u32 %v738, %v741
  %v743 = vrot.slane %v742, 4
  %v745 = vshll.u32 %v644, 16
  %v747 = vrot.slane %v745, 5
  %v748 = vsel %vm124, %v743, %v747
  %v750 = vshrl.u32 %v645, 16
  %v752 = vrot.slane %v750, 4
  %v753 = vshll.u32 %v645, 16
  %v755 = vrot.slane %v753, 5
  %v756 = vor.u32 %v752, %v755
  %v757 = vrot.slane %v756, 4
  %v759 = vshll.u32 %v646, 16
  %v761 = vrot.slane %v759, 5
  %v762 = vsel %vm124, %v757, %v761
  %v764 = vshrl.u32 %v647, 16
  %v766 = vrot.slane %v764, 4
  %v767 = vshll.u32 %v647, 16
  %v769 = vrot.slane %v767, 5
  %v770 = vor.u32 %v766, %v769
  %v771 = vrot.slane %v770, 4
  %v773 = vshll.u32 %v648, 16
  %v775 = vrot.slane %v773, 5
  %v776 = vsel %vm124, %v771, %v775
  %v778 = vshrl.u32 %v649, 16
  %v780 = vrot.slane %v778, 4
  %v781 = vshll.u32 %v649, 16
  %v783 = vrot.slane %v781, 5
  %v784 = vor.u32 %v780, %v783
  %v785 = vrot.slane %v784, 4
  %v787 = vshll.u32 %v650, 16
  %v789 = vrot.slane %v787, 5
  %v790 = vsel %vm124, %v785, %v789
  %v792 = vshrl.u32 %v651, 16
  %v794 = vrot.slane %v792, 4
  %v795 = vshll.u32 %v651, 16
  %v797 = vrot.slane %v795, 5
  %v798 = vor.u32 %v794, %v797
  %v799 = vrot.slane %v798, 4
  %v801 = vshll.u32 %v652, 16
  %v803 = vrot.slane %v801, 5
  %v804 = vsel %vm124, %v799, %v803
  %v806 = vshrl.u32 %v653, 16
  %v808 = vrot.slane %v806, 4
  %v809 = vshll.u32 %v653, 16
  %v811 = vrot.slane %v809, 5
  %v812 = vor.u32 %v808, %v811
  %v813 = vrot.slane %v812, 4
  %v815 = vshll.u32 %v654, 16
  %v817 = vrot.slane %v815, 5
  %v818 = vsel %vm124, %v813, %v817
  %v820 = vshrl.u32 %v655, 16
  %v822 = vrot.slane %v820, 4
  %v823 = vshll.u32 %v655, 16
  %v825 = vrot.slane %v823, 5
  %v826 = vor.u32 %v822, %v825
  %v827 = vrot.slane %v826, 4
  %v829 = vshll.u32 %v656, 16
  %v831 = vrot.slane %v829, 5
  %v832 = vsel %vm124, %v827, %v831
  %v834 = vshrl.u32 %v657, 16
  %v836 = vrot.slane %v834, 4
  %v837 = vshll.u32 %v657, 16
  %v839 = vrot.slane %v837, 5
  %v840 = vor.u32 %v836, %v839
  %v841 = vrot.slane %v840, 4
  %v843 = vshll.u32 %v658, 16
  %v845 = vrot.slane %v843, 5
  %v846 = vsel %vm124, %v841, %v845
  %v848 = vshrl.u32 %v659, 16
  %v850 = vrot.slane %v848, 4
  %v851 = vshll.u32 %v659, 16
  %v853 = vrot.slane %v851, 5
  %v854 = vor.u32 %v850, %v853
  %v855 = vrot.slane %v854, 4
  %v857 = vshll.u32 %v660, 16
  %v859 = vrot.slane %v857, 5
  %v860 = vsel %vm124, %v855, %v859
  %v862 = vshrl.u32 %v661, 16
  %v864 = vrot.slane %v862, 4
  %v865 = vshll.u32 %v661, 16
  %v867 = vrot.slane %v865, 5
  %v868 = vor.u32 %v864, %v867
  %v869 = vrot.slane %v868, 4
  %v871 = vshll.u32 %v662, 16
  %v873 = vrot.slane %v871, 5
  %v874 = vsel %vm124, %v869, %v873
  %v876 = vshrl.u32 %v663, 16
  %v878 = vrot.slane %v876, 4
  %v879 = vshll.u32 %v663, 16
  %v881 = vrot.slane %v879, 5
  %v882 = vor.u32 %v878, %v881
  %v883 = vrot.slane %v882, 4
  %v885 = vshll.u32 %v664, 16
  %v887 = vrot.slane %v885, 5
  %v888 = vsel %vm124, %v883, %v887
  %v889 = vunpack.c.l.b16 %v678
  %v890 = vunpack.c.l.b16 %v692
  %v891 = vunpack.c.l.b16 %v706
  %v892 = vunpack.c.l.b16 %v720
  %v893 = vunpack.c.l.b16 %v734
  %v894 = vunpack.c.l.b16 %v748
  %v895 = vunpack.c.l.b16 %v762
  %v896 = vunpack.c.l.b16 %v776
  %v897 = vunpack.c.l.b16 %v790
  %v898 = vunpack.c.l.b16 %v804
  %v899 = vunpack.c.l.b16 %v818
  %v900 = vunpack.c.l.b16 %v832
  %v901 = vunpack.c.l.b16 %v846
  %v902 = vunpack.c.l.b16 %v860
  %v903 = vunpack.c.l.b16 %v874
  %v904 = vunpack.c.l.b16 %v888
  %v905 = vpack.c.b16 %v890, %v889
  %v906 = vpack.c.b16 %v892, %v891
  %v907 = vpack.c.b16 %v894, %v893
  %v908 = vpack.c.b16 %v896, %v895
  %v909 = vpack.c.b16 %v898, %v897
  %v910 = vpack.c.b16 %v900, %v899
  %v911 = vpack.c.b16 %v902, %v901
  %v912 = vpack.c.b16 %v904, %v903
  %921 = vst [vmem:[#allocation2 + $0x20] sm:$0xff] %v905
  %922 = vst [vmem:[#allocation2 + $0x68] sm:$0xff] %v906
  %923 = vst [vmem:[#allocation2 + $0xb0] sm:$0xff] %v907
  %924 = vst [vmem:[#allocation2 + $0xf8] sm:$0xff] %v908
  %925 = vst [vmem:[#allocation2 + $0x140] sm:$0xff] %v909
  %926 = vst [vmem:[#allocation2 + $0x188] sm:$0xff] %v910
  %927 = vst [vmem:[#allocation2 + $0x1d0] sm:$0xff] %v911
  %928 = vst [vmem:[#allocation2 + $0x218] sm:$0xff] %v912
  %v929 = vld [vmem:[%s560] sm:$0xe]
  %v930 = vld [vmem:[%s560 + $0x4] sm:$0x1]
  %v931 = vld [vmem:[%s560 + $0x8] sm:$0xe]
  %v932 = vld [vmem:[%s560 + $0xc] sm:$0x1]
  %v933 = vld [vmem:[%s560 + $0x10] sm:$0xe]
  %v934 = vld [vmem:[%s560 + $0x14] sm:$0x1]
  %v935 = vld [vmem:[%s560 + $0x18] sm:$0xe]
  %v936 = vld [vmem:[%s560 + $0x1c] sm:$0x1]
  %v937 = vld [vmem:[%s560 + $0x20] sm:$0xe]
  %v938 = vld [vmem:[%s560 + $0x24] sm:$0x1]
  %v939 = vld [vmem:[%s560 + $0x28] sm:$0xe]
  %v940 = vld [vmem:[%s560 + $0x2c] sm:$0x1]
  %v941 = vld [vmem:[%s560 + $0x30] sm:$0xe]
  %v942 = vld [vmem:[%s560 + $0x34] sm:$0x1]
  %v943 = vld [vmem:[%s560 + $0x38] sm:$0xe]
  %v944 = vld [vmem:[%s560 + $0x3c] sm:$0x1]
  %v945 = vld [vmem:[%s560 + $0x50] sm:$0xe]
  %v946 = vld [vmem:[%s560 + $0x54] sm:$0x1]
  %v947 = vld [vmem:[%s560 + $0x58] sm:$0xe]
  %v948 = vld [vmem:[%s560 + $0x5c] sm:$0x1]
  %v949 = vld [vmem:[%s560 + $0x60] sm:$0xe]
  %v950 = vld [vmem:[%s560 + $0x64] sm:$0x1]
  %v951 = vld [vmem:[%s560 + $0x68] sm:$0xe]
  %v952 = vld [vmem:[%s560 + $0x6c] sm:$0x1]
  %v953 = vld [vmem:[%s560 + $0x70] sm:$0xe]
  %v954 = vld [vmem:[%s560 + $0x74] sm:$0x1]
  %v955 = vld [vmem:[%s560 + $0x78] sm:$0xe]
  %v956 = vld [vmem:[%s560 + $0x7c] sm:$0x1]
  %v957 = vld [vmem:[%s560 + $0x80] sm:$0xe]
  %v958 = vld [vmem:[%s560 + $0x84] sm:$0x1]
  %v959 = vld [vmem:[%s560 + $0x88] sm:$0xe]
  %v960 = vld [vmem:[%s560 + $0x8c] sm:$0x1]
  %v993 = vrot.slane %v929, 5
  %v994 = vrot.slane %v993, 4
  %v995 = vrot.slane %v930, 5
  %v996 = vsel %vm455, %v994, %v995
  %v997 = vrot.slane %v931, 5
  %v998 = vrot.slane %v997, 4
  %v999 = vrot.slane %v932, 5
  %v1000 = vsel %vm455, %v998, %v999
  %v1001 = vrot.slane %v933, 5
  %v1002 = vrot.slane %v1001, 4
  %v1003 = vrot.slane %v934, 5
  %v1004 = vsel %vm455, %v1002, %v1003
  %v1005 = vrot.slane %v935, 5
  %v1006 = vrot.slane %v1005, 4
  %v1007 = vrot.slane %v936, 5
  %v1008 = vsel %vm455, %v1006, %v1007
  %v1009 = vrot.slane %v937, 5
  %v1010 = vrot.slane %v1009, 4
  %v1011 = vrot.slane %v938, 5
  %v1012 = vsel %vm455, %v1010, %v1011
  %v1013 = vrot.slane %v939, 5
  %v1014 = vrot.slane %v1013, 4
  %v1015 = vrot.slane %v940, 5
  %v1016 = vsel %vm455, %v1014, %v1015
  %v1017 = vrot.slane %v941, 5
  %v1018 = vrot.slane %v1017, 4
  %v1019 = vrot.slane %v942, 5
  %v1020 = vsel %vm455, %v1018, %v1019
  %v1021 = vrot.slane %v943, 5
  %v1022 = vrot.slane %v1021, 4
  %v1023 = vrot.slane %v944, 5
  %v1024 = vsel %vm455, %v1022, %v1023
  %v1025 = vrot.slane %v945, 5
  %v1026 = vrot.slane %v1025, 4
  %v1027 = vrot.slane %v946, 5
  %v1028 = vsel %vm455, %v1026, %v1027
  %v1029 = vrot.slane %v947, 5
  %v1030 = vrot.slane %v1029, 4
  %v1031 = vrot.slane %v948, 5
  %v1032 = vsel %vm455, %v1030, %v1031
  %v1033 = vrot.slane %v949, 5
  %v1034 = vrot.slane %v1033, 4
  %v1035 = vrot.slane %v950, 5
  %v1036 = vsel %vm455, %v1034, %v1035
  %v1037 = vrot.slane %v951, 5
  %v1038 = vrot.slane %v1037, 4
  %v1039 = vrot.slane %v952, 5
  %v1040 = vsel %vm455, %v1038, %v1039
  %v1041 = vrot.slane %v953, 5
  %v1042 = vrot.slane %v1041, 4
  %v1043 = vrot.slane %v954, 5
  %v1044 = vsel %vm455, %v1042, %v1043
  %v1045 = vrot.slane %v955, 5
  %v1046 = vrot.slane %v1045, 4
  %v1047 = vrot.slane %v956, 5
  %v1048 = vsel %vm455, %v1046, %v1047
  %v1049 = vrot.slane %v957, 5
  %v1050 = vrot.slane %v1049, 4
  %v1051 = vrot.slane %v958, 5
  %v1052 = vsel %vm455, %v1050, %v1051
  %v1053 = vrot.slane %v959, 5
  %v1054 = vrot.slane %v1053, 4
  %v1055 = vrot.slane %v960, 5
  %v1056 = vsel %vm455, %v1054, %v1055
  %v1057 = vunpack.c.l.b16 %v996
  %v1058 = vunpack.c.l.b16 %v1000
  %v1059 = vunpack.c.l.b16 %v1004
  %v1060 = vunpack.c.l.b16 %v1008
  %v1061 = vunpack.c.l.b16 %v1012
  %v1062 = vunpack.c.l.b16 %v1016
  %v1063 = vunpack.c.l.b16 %v1020
  %v1064 = vunpack.c.l.b16 %v1024
  %v1065 = vunpack.c.l.b16 %v1028
  %v1066 = vunpack.c.l.b16 %v1032
  %v1067 = vunpack.c.l.b16 %v1036
  %v1068 = vunpack.c.l.b16 %v1040
  %v1069 = vunpack.c.l.b16 %v1044
  %v1070 = vunpack.c.l.b16 %v1048
  %v1071 = vunpack.c.l.b16 %v1052
  %v1072 = vunpack.c.l.b16 %v1056
  %v1073 = vpack.c.b16 %v1058, %v1057
  %v1074 = vpack.c.b16 %v1060, %v1059
  %v1075 = vpack.c.b16 %v1062, %v1061
  %v1076 = vpack.c.b16 %v1064, %v1063
  %v1077 = vpack.c.b16 %v1066, %v1065
  %v1078 = vpack.c.b16 %v1068, %v1067
  %v1079 = vpack.c.b16 %v1070, %v1069
  %v1080 = vpack.c.b16 %v1072, %v1071
  %1089 = vst [vmem:[#allocation2 + $0x28] sm:$0xff] %v1073
  %1090 = vst [vmem:[#allocation2 + $0x70] sm:$0xff] %v1074
  %1091 = vst [vmem:[#allocation2 + $0xb8] sm:$0xff] %v1075
  %1092 = vst [vmem:[#allocation2 + $0x100] sm:$0xff] %v1076
  %1093 = vst [vmem:[#allocation2 + $0x148] sm:$0xff] %v1077
  %1094 = vst [vmem:[#allocation2 + $0x190] sm:$0xff] %v1078
  %1095 = vst [vmem:[#allocation2 + $0x1d8] sm:$0xff] %v1079
  %1096 = vst [vmem:[#allocation2 + $0x220] sm:$0xff] %v1080
  %s1097 = scalar_lea.vmem %s0, 16
  %v1098 = vld [vmem:[%s1097] sm:$0xf]
  %v1099 = vld [vmem:[%s1097 + $0x8] sm:$0xf]
  %v1100 = vld [vmem:[%s1097 + $0x10] sm:$0xf]
  %v1101 = vld [vmem:[%s1097 + $0x18] sm:$0xf]
  %v1102 = vld [vmem:[%s1097 + $0x20] sm:$0xf]
  %v1103 = vld [vmem:[%s1097 + $0x28] sm:$0xf]
  %v1104 = vld [vmem:[%s1097 + $0x30] sm:$0xf]
  %v1105 = vld [vmem:[%s1097 + $0x38] sm:$0xf]
  %v1106 = vld [vmem:[%s1097 + $0x50] sm:$0xf]
  %v1107 = vld [vmem:[%s1097 + $0x58] sm:$0xf]
  %v1108 = vld [vmem:[%s1097 + $0x60] sm:$0xf]
  %v1109 = vld [vmem:[%s1097 + $0x68] sm:$0xf]
  %v1110 = vld [vmem:[%s1097 + $0x70] sm:$0xf]
  %v1111 = vld [vmem:[%s1097 + $0x78] sm:$0xf]
  %v1112 = vld [vmem:[%s1097 + $0x80] sm:$0xf]
  %v1113 = vld [vmem:[%s1097 + $0x88] sm:$0xf]
  %v1130 = vunpack.c.l.b16 %v1098
  %v1131 = vunpack.c.l.b16 %v1099
  %v1132 = vunpack.c.l.b16 %v1100
  %v1133 = vunpack.c.l.b16 %v1101
  %v1134 = vunpack.c.l.b16 %v1102
  %v1135 = vunpack.c.l.b16 %v1103
  %v1136 = vunpack.c.l.b16 %v1104
  %v1137 = vunpack.c.l.b16 %v1105
  %v1138 = vunpack.c.l.b16 %v1106
  %v1139 = vunpack.c.l.b16 %v1107
  %v1140 = vunpack.c.l.b16 %v1108
  %v1141 = vunpack.c.l.b16 %v1109
  %v1142 = vunpack.c.l.b16 %v1110
  %v1143 = vunpack.c.l.b16 %v1111
  %v1144 = vunpack.c.l.b16 %v1112
  %v1145 = vunpack.c.l.b16 %v1113
  %v1146 = vpack.c.b16 %v1131, %v1130
  %v1147 = vpack.c.b16 %v1133, %v1132
  %v1148 = vpack.c.b16 %v1135, %v1134
  %v1149 = vpack.c.b16 %v1137, %v1136
  %v1150 = vpack.c.b16 %v1139, %v1138
  %v1151 = vpack.c.b16 %v1141, %v1140
  %v1152 = vpack.c.b16 %v1143, %v1142
  %v1153 = vpack.c.b16 %v1145, %v1144
  %1162 = vst [vmem:[#allocation2 + $0x30] sm:$0xff] %v1146
  %1163 = vst [vmem:[#allocation2 + $0x78] sm:$0xff] %v1147
  %1164 = vst [vmem:[#allocation2 + $0xc0] sm:$0xff] %v1148
  %1165 = vst [vmem:[#allocation2 + $0x108] sm:$0xff] %v1149
  %1166 = vst [vmem:[#allocation2 + $0x150] sm:$0xff] %v1150
  %1167 = vst [vmem:[#allocation2 + $0x198] sm:$0xff] %v1151
  %1168 = vst [vmem:[#allocation2 + $0x1e0] sm:$0xff] %v1152
  %1169 = vst [vmem:[#allocation2 + $0x228] sm:$0xff] %v1153
  %v1170 = vld [vmem:[%s1097] sm:$0xf]
  %v1171 = vld [vmem:[%s1097 + $0x4] sm:$0x1]
  %v1172 = vld [vmem:[%s1097 + $0x8] sm:$0xf]
  %v1173 = vld [vmem:[%s1097 + $0xc] sm:$0x1]
  %v1174 = vld [vmem:[%s1097 + $0x10] sm:$0xf]
  %v1175 = vld [vmem:[%s1097 + $0x14] sm:$0x1]
  %v1176 = vld [vmem:[%s1097 + $0x18] sm:$0xf]
  %v1177 = vld [vmem:[%s1097 + $0x1c] sm:$0x1]
  %v1178 = vld [vmem:[%s1097 + $0x20] sm:$0xf]
  %v1179 = vld [vmem:[%s1097 + $0x24] sm:$0x1]
  %v1180 = vld [vmem:[%s1097 + $0x28] sm:$0xf]
  %v1181 = vld [vmem:[%s1097 + $0x2c] sm:$0x1]
  %v1182 = vld [vmem:[%s1097 + $0x30] sm:$0xf]
  %v1183 = vld [vmem:[%s1097 + $0x34] sm:$0x1]
  %v1184 = vld [vmem:[%s1097 + $0x38] sm:$0xf]
  %v1185 = vld [vmem:[%s1097 + $0x3c] sm:$0x1]
  %v1186 = vld [vmem:[%s1097 + $0x50] sm:$0xf]
  %v1187 = vld [vmem:[%s1097 + $0x54] sm:$0x1]
  %v1188 = vld [vmem:[%s1097 + $0x58] sm:$0xf]
  %v1189 = vld [vmem:[%s1097 + $0x5c] sm:$0x1]
  %v1190 = vld [vmem:[%s1097 + $0x60] sm:$0xf]
  %v1191 = vld [vmem:[%s1097 + $0x64] sm:$0x1]
  %v1192 = vld [vmem:[%s1097 + $0x68] sm:$0xf]
  %v1193 = vld [vmem:[%s1097 + $0x6c] sm:$0x1]
  %v1194 = vld [vmem:[%s1097 + $0x70] sm:$0xf]
  %v1195 = vld [vmem:[%s1097 + $0x74] sm:$0x1]
  %v1196 = vld [vmem:[%s1097 + $0x78] sm:$0xf]
  %v1197 = vld [vmem:[%s1097 + $0x7c] sm:$0x1]
  %v1198 = vld [vmem:[%s1097 + $0x80] sm:$0xf]
  %v1199 = vld [vmem:[%s1097 + $0x84] sm:$0x1]
  %v1200 = vld [vmem:[%s1097 + $0x88] sm:$0xf]
  %v1201 = vld [vmem:[%s1097 + $0x8c] sm:$0x1]
  %v1203 = vshrl.u32 %v1170, 16
  %v1205 = vrot.slane %v1203, 4
  %v1206 = vshll.u32 %v1170, 16
  %v1208 = vrot.slane %v1206, 5
  %v1209 = vor.u32 %v1205, %v1208
  %v1210 = vrot.slane %v1209, 4
  %v1212 = vshll.u32 %v1171, 16
  %v1214 = vrot.slane %v1212, 5
  %v1215 = vsel %vm124, %v1210, %v1214
  %v1217 = vshrl.u32 %v1172, 16
  %v1219 = vrot.slane %v1217, 4
  %v1220 = vshll.u32 %v1172, 16
  %v1222 = vrot.slane %v1220, 5
  %v1223 = vor.u32 %v1219, %v1222
  %v1224 = vrot.slane %v1223, 4
  %v1226 = vshll.u32 %v1173, 16
  %v1228 = vrot.slane %v1226, 5
  %v1229 = vsel %vm124, %v1224, %v1228
  %v1231 = vshrl.u32 %v1174, 16
  %v1233 = vrot.slane %v1231, 4
  %v1234 = vshll.u32 %v1174, 16
  %v1236 = vrot.slane %v1234, 5
  %v1237 = vor.u32 %v1233, %v1236
  %v1238 = vrot.slane %v1237, 4
  %v1240 = vshll.u32 %v1175, 16
  %v1242 = vrot.slane %v1240, 5
  %v1243 = vsel %vm124, %v1238, %v1242
  %v1245 = vshrl.u32 %v1176, 16
  %v1247 = vrot.slane %v1245, 4
  %v1248 = vshll.u32 %v1176, 16
  %v1250 = vrot.slane %v1248, 5
  %v1251 = vor.u32 %v1247, %v1250
  %v1252 = vrot.slane %v1251, 4
  %v1254 = vshll.u32 %v1177, 16
  %v1256 = vrot.slane %v1254, 5
  %v1257 = vsel %vm124, %v1252, %v1256
  %v1259 = vshrl.u32 %v1178, 16
  %v1261 = vrot.slane %v1259, 4
  %v1262 = vshll.u32 %v1178, 16
  %v1264 = vrot.slane %v1262, 5
  %v1265 = vor.u32 %v1261, %v1264
  %v1266 = vrot.slane %v1265, 4
  %v1268 = vshll.u32 %v1179, 16
  %v1270 = vrot.slane %v1268, 5
  %v1271 = vsel %vm124, %v1266, %v1270
  %v1273 = vshrl.u32 %v1180, 16
  %v1275 = vrot.slane %v1273, 4
  %v1276 = vshll.u32 %v1180, 16
  %v1278 = vrot.slane %v1276, 5
  %v1279 = vor.u32 %v1275, %v1278
  %v1280 = vrot.slane %v1279, 4
  %v1282 = vshll.u32 %v1181, 16
  %v1284 = vrot.slane %v1282, 5
  %v1285 = vsel %vm124, %v1280, %v1284
  %v1287 = vshrl.u32 %v1182, 16
  %v1289 = vrot.slane %v1287, 4
  %v1290 = vshll.u32 %v1182, 16
  %v1292 = vrot.slane %v1290, 5
  %v1293 = vor.u32 %v1289, %v1292
  %v1294 = vrot.slane %v1293, 4
  %v1296 = vshll.u32 %v1183, 16
  %v1298 = vrot.slane %v1296, 5
  %v1299 = vsel %vm124, %v1294, %v1298
  %v1301 = vshrl.u32 %v1184, 16
  %v1303 = vrot.slane %v1301, 4
  %v1304 = vshll.u32 %v1184, 16
  %v1306 = vrot.slane %v1304, 5
  %v1307 = vor.u32 %v1303, %v1306
  %v1308 = vrot.slane %v1307, 4
  %v1310 = vshll.u32 %v1185, 16
  %v1312 = vrot.slane %v1310, 5
  %v1313 = vsel %vm124, %v1308, %v1312
  %v1315 = vshrl.u32 %v1186, 16
  %v1317 = vrot.slane %v1315, 4
  %v1318 = vshll.u32 %v1186, 16
  %v1320 = vrot.slane %v1318, 5
  %v1321 = vor.u32 %v1317, %v1320
  %v1322 = vrot.slane %v1321, 4
  %v1324 = vshll.u32 %v1187, 16
  %v1326 = vrot.slane %v1324, 5
  %v1327 = vsel %vm124, %v1322, %v1326
  %v1329 = vshrl.u32 %v1188, 16
  %v1331 = vrot.slane %v1329, 4
  %v1332 = vshll.u32 %v1188, 16
  %v1334 = vrot.slane %v1332, 5
  %v1335 = vor.u32 %v1331, %v1334
  %v1336 = vrot.slane %v1335, 4
  %v1338 = vshll.u32 %v1189, 16
  %v1340 = vrot.slane %v1338, 5
  %v1341 = vsel %vm124, %v1336, %v1340
  %v1343 = vshrl.u32 %v1190, 16
  %v1345 = vrot.slane %v1343, 4
  %v1346 = vshll.u32 %v1190, 16
  %v1348 = vrot.slane %v1346, 5
  %v1349 = vor.u32 %v1345, %v1348
  %v1350 = vrot.slane %v1349, 4
  %v1352 = vshll.u32 %v1191, 16
  %v1354 = vrot.slane %v1352, 5
  %v1355 = vsel %vm124, %v1350, %v1354
  %v1357 = vshrl.u32 %v1192, 16
  %v1359 = vrot.slane %v1357, 4
  %v1360 = vshll.u32 %v1192, 16
  %v1362 = vrot.slane %v1360, 5
  %v1363 = vor.u32 %v1359, %v1362
  %v1364 = vrot.slane %v1363, 4
  %v1366 = vshll.u32 %v1193, 16
  %v1368 = vrot.slane %v1366, 5
  %v1369 = vsel %vm124, %v1364, %v1368
  %v1371 = vshrl.u32 %v1194, 16
  %v1373 = vrot.slane %v1371, 4
  %v1374 = vshll.u32 %v1194, 16
  %v1376 = vrot.slane %v1374, 5
  %v1377 = vor.u32 %v1373, %v1376
  %v1378 = vrot.slane %v1377, 4
  %v1380 = vshll.u32 %v1195, 16
  %v1382 = vrot.slane %v1380, 5
  %v1383 = vsel %vm124, %v1378, %v1382
  %v1385 = vshrl.u32 %v1196, 16
  %v1387 = vrot.slane %v1385, 4
  %v1388 = vshll.u32 %v1196, 16
  %v1390 = vrot.slane %v1388, 5
  %v1391 = vor.u32 %v1387, %v1390
  %v1392 = vrot.slane %v1391, 4
  %v1394 = vshll.u32 %v1197, 16
  %v1396 = vrot.slane %v1394, 5
  %v1397 = vsel %vm124, %v1392, %v1396
  %v1399 = vshrl.u32 %v1198, 16
  %v1401 = vrot.slane %v1399, 4
  %v1402 = vshll.u32 %v1198, 16
  %v1404 = vrot.slane %v1402, 5
  %v1405 = vor.u32 %v1401, %v1404
  %v1406 = vrot.slane %v1405, 4
  %v1408 = vshll.u32 %v1199, 16
  %v1410 = vrot.slane %v1408, 5
  %v1411 = vsel %vm124, %v1406, %v1410
  %v1413 = vshrl.u32 %v1200, 16
  %v1415 = vrot.slane %v1413, 4
  %v1416 = vshll.u32 %v1200, 16
  %v1418 = vrot.slane %v1416, 5
  %v1419 = vor.u32 %v1415, %v1418
  %v1420 = vrot.slane %v1419, 4
  %v1422 = vshll.u32 %v1201, 16
  %v1424 = vrot.slane %v1422, 5
  %v1425 = vsel %vm124, %v1420, %v1424
  %v1426 = vunpack.c.l.b16 %v1215
  %v1427 = vunpack.c.l.b16 %v1229
  %v1428 = vunpack.c.l.b16 %v1243
  %v1429 = vunpack.c.l.b16 %v1257
  %v1430 = vunpack.c.l.b16 %v1271
  %v1431 = vunpack.c.l.b16 %v1285
  %v1432 = vunpack.c.l.b16 %v1299
  %v1433 = vunpack.c.l.b16 %v1313
  %v1434 = vunpack.c.l.b16 %v1327
  %v1435 = vunpack.c.l.b16 %v1341
  %v1436 = vunpack.c.l.b16 %v1355
  %v1437 = vunpack.c.l.b16 %v1369
  %v1438 = vunpack.c.l.b16 %v1383
  %v1439 = vunpack.c.l.b16 %v1397
  %v1440 = vunpack.c.l.b16 %v1411
  %v1441 = vunpack.c.l.b16 %v1425
  %v1442 = vpack.c.b16 %v1427, %v1426
  %v1443 = vpack.c.b16 %v1429, %v1428
  %v1444 = vpack.c.b16 %v1431, %v1430
  %v1445 = vpack.c.b16 %v1433, %v1432
  %v1446 = vpack.c.b16 %v1435, %v1434
  %v1447 = vpack.c.b16 %v1437, %v1436
  %v1448 = vpack.c.b16 %v1439, %v1438
  %v1449 = vpack.c.b16 %v1441, %v1440
  %1458 = vst [vmem:[#allocation2 + $0x38] sm:$0xff] %v1442
  %1459 = vst [vmem:[#allocation2 + $0x80] sm:$0xff] %v1443
  %1460 = vst [vmem:[#allocation2 + $0xc8] sm:$0xff] %v1444
  %1461 = vst [vmem:[#allocation2 + $0x110] sm:$0xff] %v1445
  %1462 = vst [vmem:[#allocation2 + $0x158] sm:$0xff] %v1446
  %1463 = vst [vmem:[#allocation2 + $0x1a0] sm:$0xff] %v1447
  %1464 = vst [vmem:[#allocation2 + $0x1e8] sm:$0xff] %v1448
  %1465 = vst [vmem:[#allocation2 + $0x230] sm:$0xff] %v1449
  %v1466 = vld [vmem:[%s1097] sm:$0xe]
  %v1467 = vld [vmem:[%s1097 + $0x4] sm:$0x1]
  %v1468 = vld [vmem:[%s1097 + $0x8] sm:$0xe]
  %v1469 = vld [vmem:[%s1097 + $0xc] sm:$0x1]
  %v1470 = vld [vmem:[%s1097 + $0x10] sm:$0xe]
  %v1471 = vld [vmem:[%s1097 + $0x14] sm:$0x1]
  %v1472 = vld [vmem:[%s1097 + $0x18] sm:$0xe]
  %v1473 = vld [vmem:[%s1097 + $0x1c] sm:$0x1]
  %v1474 = vld [vmem:[%s1097 + $0x20] sm:$0xe]
  %v1475 = vld [vmem:[%s1097 + $0x24] sm:$0x1]
  %v1476 = vld [vmem:[%s1097 + $0x28] sm:$0xe]
  %v1477 = vld [vmem:[%s1097 + $0x2c] sm:$0x1]
  %v1478 = vld [vmem:[%s1097 + $0x30] sm:$0xe]
  %v1479 = vld [vmem:[%s1097 + $0x34] sm:$0x1]
  %v1480 = vld [vmem:[%s1097 + $0x38] sm:$0xe]
  %v1481 = vld [vmem:[%s1097 + $0x3c] sm:$0x1]
  %v1482 = vld [vmem:[%s1097 + $0x50] sm:$0xe]
  %v1483 = vld [vmem:[%s1097 + $0x54] sm:$0x1]
  %v1484 = vld [vmem:[%s1097 + $0x58] sm:$0xe]
  %v1485 = vld [vmem:[%s1097 + $0x5c] sm:$0x1]
  %v1486 = vld [vmem:[%s1097 + $0x60] sm:$0xe]
  %v1487 = vld [vmem:[%s1097 + $0x64] sm:$0x1]
  %v1488 = vld [vmem:[%s1097 + $0x68] sm:$0xe]
  %v1489 = vld [vmem:[%s1097 + $0x6c] sm:$0x1]
  %v1490 = vld [vmem:[%s1097 + $0x70] sm:$0xe]
  %v1491 = vld [vmem:[%s1097 + $0x74] sm:$0x1]
  %v1492 = vld [vmem:[%s1097 + $0x78] sm:$0xe]
  %v1493 = vld [vmem:[%s1097 + $0x7c] sm:$0x1]
  %v1494 = vld [vmem:[%s1097 + $0x80] sm:$0xe]
  %v1495 = vld [vmem:[%s1097 + $0x84] sm:$0x1]
  %v1496 = vld [vmem:[%s1097 + $0x88] sm:$0xe]
  %v1497 = vld [vmem:[%s1097 + $0x8c] sm:$0x1]
  %v1530 = vrot.slane %v1466, 5
  %v1531 = vrot.slane %v1530, 4
  %v1532 = vrot.slane %v1467, 5
  %v1533 = vsel %vm455, %v1531, %v1532
  %v1534 = vrot.slane %v1468, 5
  %v1535 = vrot.slane %v1534, 4
  %v1536 = vrot.slane %v1469, 5
  %v1537 = vsel %vm455, %v1535, %v1536
  %v1538 = vrot.slane %v1470, 5
  %v1539 = vrot.slane %v1538, 4
  %v1540 = vrot.slane %v1471, 5
  %v1541 = vsel %vm455, %v1539, %v1540
  %v1542 = vrot.slane %v1472, 5
  %v1543 = vrot.slane %v1542, 4
  %v1544 = vrot.slane %v1473, 5
  %v1545 = vsel %vm455, %v1543, %v1544
  %v1546 = vrot.slane %v1474, 5
  %v1547 = vrot.slane %v1546, 4
  %v1548 = vrot.slane %v1475, 5
  %v1549 = vsel %vm455, %v1547, %v1548
  %v1550 = vrot.slane %v1476, 5
  %v1551 = vrot.slane %v1550, 4
  %v1552 = vrot.slane %v1477, 5
  %v1553 = vsel %vm455, %v1551, %v1552
  %v1554 = vrot.slane %v1478, 5
  %v1555 = vrot.slane %v1554, 4
  %v1556 = vrot.slane %v1479, 5
  %v1557 = vsel %vm455, %v1555, %v1556
  %v1558 = vrot.slane %v1480, 5
  %v1559 = vrot.slane %v1558, 4
  %v1560 = vrot.slane %v1481, 5
  %v1561 = vsel %vm455, %v1559, %v1560
  %v1562 = vrot.slane %v1482, 5
  %v1563 = vrot.slane %v1562, 4
  %v1564 = vrot.slane %v1483, 5
  %v1565 = vsel %vm455, %v1563, %v1564
  %v1566 = vrot.slane %v1484, 5
  %v1567 = vrot.slane %v1566, 4
  %v1568 = vrot.slane %v1485, 5
  %v1569 = vsel %vm455, %v1567, %v1568
  %v1570 = vrot.slane %v1486, 5
  %v1571 = vrot.slane %v1570, 4
  %v1572 = vrot.slane %v1487, 5
  %v1573 = vsel %vm455, %v1571, %v1572
  %v1574 = vrot.slane %v1488, 5
  %v1575 = vrot.slane %v1574, 4
  %v1576 = vrot.slane %v1489, 5
  %v1577 = vsel %vm455, %v1575, %v1576
  %v1578 = vrot.slane %v1490, 5
  %v1579 = vrot.slane %v1578, 4
  %v1580 = vrot.slane %v1491, 5
  %v1581 = vsel %vm455, %v1579, %v1580
  %v1582 = vrot.slane %v1492, 5
  %v1583 = vrot.slane %v1582, 4
  %v1584 = vrot.slane %v1493, 5
  %v1585 = vsel %vm455, %v1583, %v1584
  %v1586 = vrot.slane %v1494, 5
  %v1587 = vrot.slane %v1586, 4
  %v1588 = vrot.slane %v1495, 5
  %v1589 = vsel %vm455, %v1587, %v1588
  %v1590 = vrot.slane %v1496, 5
  %v1591 = vrot.slane %v1590, 4
  %v1592 = vrot.slane %v1497, 5
  %v1593 = vsel %vm455, %v1591, %v1592
  %v1594 = vunpack.c.l.b16 %v1533
  %v1595 = vunpack.c.l.b16 %v1537
  %v1596 = vunpack.c.l.b16 %v1541
  %v1597 = vunpack.c.l.b16 %v1545
  %v1598 = vunpack.c.l.b16 %v1549
  %v1599 = vunpack.c.l.b16 %v1553
  %v1600 = vunpack.c.l.b16 %v1557
  %v1601 = vunpack.c.l.b16 %v1561
  %v1602 = vunpack.c.l.b16 %v1565
  %v1603 = vunpack.c.l.b16 %v1569
  %v1604 = vunpack.c.l.b16 %v1573
  %v1605 = vunpack.c.l.b16 %v1577
  %v1606 = vunpack.c.l.b16 %v1581
  %v1607 = vunpack.c.l.b16 %v1585
  %v1608 = vunpack.c.l.b16 %v1589
  %v1609 = vunpack.c.l.b16 %v1593
  %v1610 = vpack.c.b16 %v1595, %v1594
  %v1611 = vpack.c.b16 %v1597, %v1596
  %v1612 = vpack.c.b16 %v1599, %v1598
  %v1613 = vpack.c.b16 %v1601, %v1600
  %v1614 = vpack.c.b16 %v1603, %v1602
  %v1615 = vpack.c.b16 %v1605, %v1604
  %v1616 = vpack.c.b16 %v1607, %v1606
  %v1617 = vpack.c.b16 %v1609, %v1608
  %1626 = vst [vmem:[#allocation2 + $0x40] sm:$0xff] %v1610
  %1627 = vst [vmem:[#allocation2 + $0x88] sm:$0xff] %v1611
  %1628 = vst [vmem:[#allocation2 + $0xd0] sm:$0xff] %v1612
  %1629 = vst [vmem:[#allocation2 + $0x118] sm:$0xff] %v1613
  %1630 = vst [vmem:[#allocation2 + $0x160] sm:$0xff] %v1614
  %1631 = vst [vmem:[#allocation2 + $0x1a8] sm:$0xff] %v1615
  %1632 = vst [vmem:[#allocation2 + $0x1f0] sm:$0xff] %v1616
  %1633 = vst [vmem:[#allocation2 + $0x238] sm:$0xff] %v1617
  %v1634 = vld [vmem:[#allocation2] sm:$0xff]
  %v1635 = vld [vmem:[#allocation2 + $0x8] sm:$0xff]
  %v1636 = vld [vmem:[#allocation2 + $0x10] sm:$0xff]
  %v1637 = vld [vmem:[#allocation2 + $0x18] sm:$0xff]
  %v1638 = vld [vmem:[#allocation2 + $0x20] sm:$0xff]
  %v1639 = vld [vmem:[#allocation2 + $0x28] sm:$0xff]
  %v1640 = vld [vmem:[#allocation2 + $0x30] sm:$0xff]
  %v1641 = vld [vmem:[#allocation2 + $0x38] sm:$0xff]
  %v1642 = vld [vmem:[#allocation2 + $0x40] sm:$0xff]
  %v1643 = vld [vmem:[#allocation2 + $0x48] sm:$0xff]
  %v1644 = vld [vmem:[#allocation2 + $0x50] sm:$0xff]
  %v1645 = vld [vmem:[#allocation2 + $0x58] sm:$0xff]
  %v1646 = vld [vmem:[#allocation2 + $0x60] sm:$0xff]
  %v1647 = vld [vmem:[#allocation2 + $0x68] sm:$0xff]
  %v1648 = vld [vmem:[#allocation2 + $0x70] sm:$0xff]
  %v1649 = vld [vmem:[#allocation2 + $0x78] sm:$0xff]
  %v1650 = vld [vmem:[#allocation2 + $0x80] sm:$0xff]
  %v1651 = vld [vmem:[#allocation2 + $0x88] sm:$0xff]
  %v1652 = vld [vmem:[#allocation2 + $0x90] sm:$0xff]
  %v1653 = vld [vmem:[#allocation2 + $0x98] sm:$0xff]
  %v1654 = vld [vmem:[#allocation2 + $0xa0] sm:$0xff]
  %v1655 = vld [vmem:[#allocation2 + $0xa8] sm:$0xff]
  %v1656 = vld [vmem:[#allocation2 + $0xb0] sm:$0xff]
  %v1657 = vld [vmem:[#allocation2 + $0xb8] sm:$0xff]
  %v1658 = vld [vmem:[#allocation2 + $0xc0] sm:$0xff]
  %v1659 = vld [vmem:[#allocation2 + $0xc8] sm:$0xff]
  %v1660 = vld [vmem:[#allocation2 + $0xd0] sm:$0xff]
  %v1661 = vld [vmem:[#allocation2 + $0xd8] sm:$0xff]
  %v1662 = vld [vmem:[#allocation2 + $0xe0] sm:$0xff]
  %v1663 = vld [vmem:[#allocation2 + $0xe8] sm:$0xff]
  %v1664 = vld [vmem:[#allocation2 + $0xf0] sm:$0xff]
  %v1665 = vld [vmem:[#allocation2 + $0xf8] sm:$0xff]
  %v1666 = vld [vmem:[#allocation2 + $0x100] sm:$0xff]
  %v1667 = vld [vmem:[#allocation2 + $0x108] sm:$0xff]
  %v1668 = vld [vmem:[#allocation2 + $0x110] sm:$0xff]
  %v1669 = vld [vmem:[#allocation2 + $0x118] sm:$0xff]
  %v1670 = vld [vmem:[#allocation2 + $0x120] sm:$0xff]
  %v1671 = vld [vmem:[#allocation2 + $0x128] sm:$0xff]
  %v1672 = vld [vmem:[#allocation2 + $0x130] sm:$0xff]
  %v1673 = vld [vmem:[#allocation2 + $0x138] sm:$0xff]
  %v1674 = vld [vmem:[#allocation2 + $0x140] sm:$0xff]
  %v1675 = vld [vmem:[#allocation2 + $0x148] sm:$0xff]
  %v1676 = vld [vmem:[#allocation2 + $0x150] sm:$0xff]
  %v1677 = vld [vmem:[#allocation2 + $0x158] sm:$0xff]
  %v1678 = vld [vmem:[#allocation2 + $0x160] sm:$0xff]
  %v1679 = vld [vmem:[#allocation2 + $0x168] sm:$0xff]
  %v1680 = vld [vmem:[#allocation2 + $0x170] sm:$0xff]
  %v1681 = vld [vmem:[#allocation2 + $0x178] sm:$0xff]
  %v1682 = vld [vmem:[#allocation2 + $0x180] sm:$0xff]
  %v1683 = vld [vmem:[#allocation2 + $0x188] sm:$0xff]
  %v1684 = vld [vmem:[#allocation2 + $0x190] sm:$0xff]
  %v1685 = vld [vmem:[#allocation2 + $0x198] sm:$0xff]
  %v1686 = vld [vmem:[#allocation2 + $0x1a0] sm:$0xff]
  %v1687 = vld [vmem:[#allocation2 + $0x1a8] sm:$0xff]
  %v1688 = vld [vmem:[#allocation2 + $0x1b0] sm:$0xff]
  %v1689 = vld [vmem:[#allocation2 + $0x1b8] sm:$0xff]
  %v1690 = vld [vmem:[#allocation2 + $0x1c0] sm:$0xff]
  %v1691 = vld [vmem:[#allocation2 + $0x1c8] sm:$0xff]
  %v1692 = vld [vmem:[#allocation2 + $0x1d0] sm:$0xff]
  %v1693 = vld [vmem:[#allocation2 + $0x1d8] sm:$0xff]
  %v1694 = vld [vmem:[#allocation2 + $0x1e0] sm:$0xff]
  %v1695 = vld [vmem:[#allocation2 + $0x1e8] sm:$0xff]
  %v1696 = vld [vmem:[#allocation2 + $0x1f0] sm:$0xff]
  %v1697 = vld [vmem:[#allocation2 + $0x1f8] sm:$0xff]
  %v1698 = vld [vmem:[#allocation2 + $0x200] sm:$0xff]
  %v1699 = vld [vmem:[#allocation2 + $0x208] sm:$0xff]
  %v1700 = vld [vmem:[#allocation2 + $0x210] sm:$0xff]
  %v1701 = vld [vmem:[#allocation2 + $0x218] sm:$0xff]
  %v1702 = vld [vmem:[#allocation2 + $0x220] sm:$0xff]
  %v1703 = vld [vmem:[#allocation2 + $0x228] sm:$0xff]
  %v1704 = vld [vmem:[#allocation2 + $0x230] sm:$0xff]
  %v1705 = vld [vmem:[#allocation2 + $0x238] sm:$0xff]
  %v1706 = vld [vmem:[%s1] sm:$0xf]
  %v1707 = vld [vmem:[%s1 + $0x4] sm:$0xf]
  %v1708 = vld [vmem:[%s1 + $0x8] sm:$0xf]
  %v1709 = vld [vmem:[%s1 + $0xc] sm:$0xf]
  %v1710 = vld [vmem:[%s1 + $0x10] sm:$0xf]
  %v1711 = vld [vmem:[%s1 + $0x14] sm:$0xf]
  %v1712 = vld [vmem:[%s1 + $0x18] sm:$0xf]
  %v1713 = vld [vmem:[%s1 + $0x1c] sm:$0xf]
  %v1714 = vld [vmem:[%s1 + $0x20] sm:$0xf]
  %v1715 = vld [vmem:[%s1 + $0x24] sm:$0xf]
  %v1716 = vld [vmem:[%s1 + $0x28] sm:$0xf]
  %v1717 = vld [vmem:[%s1 + $0x2c] sm:$0xf]
  %v1718 = vld [vmem:[%s1 + $0x30] sm:$0xf]
  %v1719 = vld [vmem:[%s1 + $0x34] sm:$0xf]
  %v1720 = vld [vmem:[%s1 + $0x38] sm:$0xf]
  %v1721 = vld [vmem:[%s1 + $0x3c] sm:$0xf]
  %v1722 = vld [vmem:[%s1 + $0x40] sm:$0xf]
  %v1723 = vld [vmem:[%s1 + $0x44] sm:$0xf]
  %v1724 = vld [vmem:[%s1 + $0x48] sm:$0xf]
  %v1725 = vld [vmem:[%s1 + $0x4c] sm:$0xf]
  %v1726 = vld [vmem:[%s1 + $0x50] sm:$0xf]
  %v1727 = vld [vmem:[%s1 + $0x54] sm:$0xf]
  %v1728 = vld [vmem:[%s1 + $0x58] sm:$0xf]
  %v1729 = vld [vmem:[%s1 + $0x5c] sm:$0xf]
  %v1730 = vld [vmem:[%s1 + $0x60] sm:$0xf]
  %v1731 = vld [vmem:[%s1 + $0x64] sm:$0xf]
  %v1732 = vld [vmem:[%s1 + $0x68] sm:$0xf]
  %v1733 = vld [vmem:[%s1 + $0x6c] sm:$0xf]
  %v1734 = vld [vmem:[%s1 + $0x70] sm:$0xf]
  %v1735 = vld [vmem:[%s1 + $0x74] sm:$0xf]
  %v1736 = vld [vmem:[%s1 + $0x78] sm:$0xf]
  %v1737 = vld [vmem:[%s1 + $0x7c] sm:$0xf]
  %v1738 = vld [vmem:[%s1 + $0x80] sm:$0xf]
  %v1739 = vld [vmem:[%s1 + $0x84] sm:$0xf]
  %v1740 = vld [vmem:[%s1 + $0x88] sm:$0xf]
  %v1741 = vld [vmem:[%s1 + $0x8c] sm:$0xf]
  %v1742 = vld [vmem:[%s1 + $0x90] sm:$0xf]
  %v1743 = vld [vmem:[%s1 + $0x94] sm:$0xf]
  %v1744 = vld [vmem:[%s1 + $0x98] sm:$0xf]
  %v1745 = vld [vmem:[%s1 + $0x9c] sm:$0xf]
  %v1746 = vld [vmem:[%s1 + $0xa0] sm:$0xf]
  %v1747 = vld [vmem:[%s1 + $0xa4] sm:$0xf]
  %v1748 = vld [vmem:[%s1 + $0xa8] sm:$0xf]
  %v1749 = vld [vmem:[%s1 + $0xac] sm:$0xf]
  %v1750 = vld [vmem:[%s1 + $0xb0] sm:$0xf]
  %v1751 = vld [vmem:[%s1 + $0xb4] sm:$0xf]
  %v1752 = vld [vmem:[%s1 + $0xb8] sm:$0xf]
  %v1753 = vld [vmem:[%s1 + $0xbc] sm:$0xf]
  %v1754 = vld [vmem:[%s1 + $0xc0] sm:$0xf]
  %v1755 = vld [vmem:[%s1 + $0xc4] sm:$0xf]
  %v1756 = vld [vmem:[%s1 + $0xc8] sm:$0xf]
  %v1757 = vld [vmem:[%s1 + $0xcc] sm:$0xf]
  %v1758 = vld [vmem:[%s1 + $0xd0] sm:$0xf]
  %v1759 = vld [vmem:[%s1 + $0xd4] sm:$0xf]
  %v1760 = vld [vmem:[%s1 + $0xd8] sm:$0xf]
  %v1761 = vld [vmem:[%s1 + $0xdc] sm:$0xf]
  %v1762 = vld [vmem:[%s1 + $0xe0] sm:$0xf]
  %v1763 = vld [vmem:[%s1 + $0xe4] sm:$0xf]
  %v1764 = vld [vmem:[%s1 + $0xe8] sm:$0xf]
  %v1765 = vld [vmem:[%s1 + $0xec] sm:$0xf]
  %v1766 = vld [vmem:[%s1 + $0xf0] sm:$0xf]
  %v1767 = vld [vmem:[%s1 + $0xf4] sm:$0xf]
  %v1768 = vld [vmem:[%s1 + $0xf8] sm:$0xf]
  %v1769 = vld [vmem:[%s1 + $0xfc] sm:$0xf]
  %v1770 = vld [vmem:[%s1 + $0x100] sm:$0xf]
  %v1771 = vld [vmem:[%s1 + $0x104] sm:$0xf]
  %v1772 = vld [vmem:[%s1 + $0x108] sm:$0xf]
  %v1773 = vld [vmem:[%s1 + $0x10c] sm:$0xf]
  %v1774 = vld [vmem:[%s1 + $0x110] sm:$0xf]
  %v1775 = vld [vmem:[%s1 + $0x114] sm:$0xf]
  %v1776 = vld [vmem:[%s1 + $0x118] sm:$0xf]
  %v1777 = vld [vmem:[%s1 + $0x11c] sm:$0xf]
  %v1778 = vld [vmem:[%s1 + $0x120] sm:$0xf]
  %v1779 = vld [vmem:[%s1 + $0x124] sm:$0xf]
  %v1780 = vld [vmem:[%s1 + $0x128] sm:$0xf]
  %v1781 = vld [vmem:[%s1 + $0x12c] sm:$0xf]
  %v1782 = vld [vmem:[%s1 + $0x130] sm:$0xf]
  %v1783 = vld [vmem:[%s1 + $0x134] sm:$0xf]
  %v1784 = vld [vmem:[%s1 + $0x138] sm:$0xf]
  %v1785 = vld [vmem:[%s1 + $0x13c] sm:$0xf]
  %v1786 = vld [vmem:[%s1 + $0x140] sm:$0xf]
  %v1787 = vld [vmem:[%s1 + $0x144] sm:$0xf]
  %v1788 = vld [vmem:[%s1 + $0x148] sm:$0xf]
  %v1789 = vld [vmem:[%s1 + $0x14c] sm:$0xf]
  %v1790 = vld [vmem:[%s1 + $0x150] sm:$0xf]
  %v1791 = vld [vmem:[%s1 + $0x154] sm:$0xf]
  %v1792 = vld [vmem:[%s1 + $0x158] sm:$0xf]
  %v1793 = vld [vmem:[%s1 + $0x15c] sm:$0xf]
  %v1794 = vld [vmem:[%s1 + $0x160] sm:$0xf]
  %v1795 = vld [vmem:[%s1 + $0x164] sm:$0xf]
  %v1796 = vld [vmem:[%s1 + $0x168] sm:$0xf]
  %v1797 = vld [vmem:[%s1 + $0x16c] sm:$0xf]
  %v1798 = vld [vmem:[%s1 + $0x170] sm:$0xf]
  %v1799 = vld [vmem:[%s1 + $0x174] sm:$0xf]
  %v1800 = vld [vmem:[%s1 + $0x178] sm:$0xf]
  %v1801 = vld [vmem:[%s1 + $0x17c] sm:$0xf]
  %v1802 = vld [vmem:[%s1 + $0x180] sm:$0xf]
  %v1803 = vld [vmem:[%s1 + $0x184] sm:$0xf]
  %v1804 = vld [vmem:[%s1 + $0x188] sm:$0xf]
  %v1805 = vld [vmem:[%s1 + $0x18c] sm:$0xf]
  %v1806 = vld [vmem:[%s1 + $0x190] sm:$0xf]
  %v1807 = vld [vmem:[%s1 + $0x194] sm:$0xf]
  %v1808 = vld [vmem:[%s1 + $0x198] sm:$0xf]
  %v1809 = vld [vmem:[%s1 + $0x19c] sm:$0xf]
  %v1810 = vld [vmem:[%s1 + $0x1a0] sm:$0xf]
  %v1811 = vld [vmem:[%s1 + $0x1a4] sm:$0xf]
  %v1812 = vld [vmem:[%s1 + $0x1a8] sm:$0xf]
  %v1813 = vld [vmem:[%s1 + $0x1ac] sm:$0xf]
  %v1814 = vld [vmem:[%s1 + $0x1b0] sm:$0xf]
  %v1815 = vld [vmem:[%s1 + $0x1b4] sm:$0xf]
  %v1816 = vld [vmem:[%s1 + $0x1b8] sm:$0xf]
  %v1817 = vld [vmem:[%s1 + $0x1bc] sm:$0xf]
  %v1818 = vld [vmem:[%s1 + $0x1c0] sm:$0xf]
  %v1819 = vld [vmem:[%s1 + $0x1c4] sm:$0xf]
  %v1820 = vld [vmem:[%s1 + $0x1c8] sm:$0xf]
  %v1821 = vld [vmem:[%s1 + $0x1cc] sm:$0xf]
  %v1822 = vld [vmem:[%s1 + $0x1d0] sm:$0xf]
  %v1823 = vld [vmem:[%s1 + $0x1d4] sm:$0xf]
  %v1824 = vld [vmem:[%s1 + $0x1d8] sm:$0xf]
  %v1825 = vld [vmem:[%s1 + $0x1dc] sm:$0xf]
  %v1826 = vld [vmem:[%s1 + $0x1e0] sm:$0xf]
  %v1827 = vld [vmem:[%s1 + $0x1e4] sm:$0xf]
  %v1828 = vld [vmem:[%s1 + $0x1e8] sm:$0xf]
  %v1829 = vld [vmem:[%s1 + $0x1ec] sm:$0xf]
  %v1830 = vld [vmem:[%s1 + $0x1f0] sm:$0xf]
  %v1831 = vld [vmem:[%s1 + $0x1f4] sm:$0xf]
  %v1832 = vld [vmem:[%s1 + $0x1f8] sm:$0xf]
  %v1833 = vld [vmem:[%s1 + $0x1fc] sm:$0xf]
  %v1834 = vld [vmem:[%s1 + $0x200] sm:$0xf]
  %v1835 = vld [vmem:[%s1 + $0x204] sm:$0xf]
  %v1836 = vld [vmem:[%s1 + $0x208] sm:$0xf]
  %v1837 = vld [vmem:[%s1 + $0x20c] sm:$0xf]
  %v1838 = vld [vmem:[%s1 + $0x210] sm:$0xf]
  %v1839 = vld [vmem:[%s1 + $0x214] sm:$0xf]
  %v1840 = vld [vmem:[%s1 + $0x218] sm:$0xf]
  %v1841 = vld [vmem:[%s1 + $0x21c] sm:$0xf]
  %v1842 = vld [vmem:[%s1 + $0x220] sm:$0xf]
  %v1843 = vld [vmem:[%s1 + $0x224] sm:$0xf]
  %v1844 = vld [vmem:[%s1 + $0x228] sm:$0xf]
  %v1845 = vld [vmem:[%s1 + $0x22c] sm:$0xf]
  %v1846 = vld [vmem:[%s1 + $0x230] sm:$0xf]
  %v1847 = vld [vmem:[%s1 + $0x234] sm:$0xf]
  %v1848 = vld [vmem:[%s1 + $0x238] sm:$0xf]
  %v1849 = vld [vmem:[%s1 + $0x23c] sm:$0xf]
  %v1850 = vld [vmem:[%s2] sm:$0x1]
  %v1852 = vlaneseq
  %v1853 = vshrl.u32 %v1852, 7
  %v1854 = vsub.s32 0, %v1853
  %v1855 = vrot.slane %v1850, %v1854
  %v2001 = vunpack.c.l.b16 %v1706
  %v2002 = vunpack.c.l.b16 %v1707
  %v2003 = vunpack.c.l.b16 %v1708
  %v2004 = vunpack.c.l.b16 %v1709
  %v2005 = vunpack.c.l.b16 %v1710
  %v2006 = vunpack.c.l.b16 %v1711
  %v2007 = vunpack.c.l.b16 %v1712
  %v2008 = vunpack.c.l.b16 %v1713
  %v2009 = vunpack.c.l.b16 %v1714
  %v2010 = vunpack.c.l.b16 %v1715
  %v2011 = vunpack.c.l.b16 %v1716
  %v2012 = vunpack.c.l.b16 %v1717
  %v2013 = vunpack.c.l.b16 %v1718
  %v2014 = vunpack.c.l.b16 %v1719
  %v2015 = vunpack.c.l.b16 %v1720
  %v2016 = vunpack.c.l.b16 %v1721
  %v2017 = vunpack.c.l.b16 %v1722
  %v2018 = vunpack.c.l.b16 %v1723
  %v2019 = vunpack.c.l.b16 %v1724
  %v2020 = vunpack.c.l.b16 %v1725
  %v2021 = vunpack.c.l.b16 %v1726
  %v2022 = vunpack.c.l.b16 %v1727
  %v2023 = vunpack.c.l.b16 %v1728
  %v2024 = vunpack.c.l.b16 %v1729
  %v2025 = vunpack.c.l.b16 %v1730
  %v2026 = vunpack.c.l.b16 %v1731
  %v2027 = vunpack.c.l.b16 %v1732
  %v2028 = vunpack.c.l.b16 %v1733
  %v2029 = vunpack.c.l.b16 %v1734
  %v2030 = vunpack.c.l.b16 %v1735
  %v2031 = vunpack.c.l.b16 %v1736
  %v2032 = vunpack.c.l.b16 %v1737
  %v2033 = vunpack.c.l.b16 %v1738
  %v2034 = vunpack.c.l.b16 %v1739
  %v2035 = vunpack.c.l.b16 %v1740
  %v2036 = vunpack.c.l.b16 %v1741
  %v2037 = vunpack.c.l.b16 %v1742
  %v2038 = vunpack.c.l.b16 %v1743
  %v2039 = vunpack.c.l.b16 %v1744
  %v2040 = vunpack.c.l.b16 %v1745
  %v2041 = vunpack.c.l.b16 %v1746
  %v2042 = vunpack.c.l.b16 %v1747
  %v2043 = vunpack.c.l.b16 %v1748
  %v2044 = vunpack.c.l.b16 %v1749
  %v2045 = vunpack.c.l.b16 %v1750
  %v2046 = vunpack.c.l.b16 %v1751
  %v2047 = vunpack.c.l.b16 %v1752
  %v2048 = vunpack.c.l.b16 %v1753
  %v2049 = vunpack.c.l.b16 %v1754
  %v2050 = vunpack.c.l.b16 %v1755
  %v2051 = vunpack.c.l.b16 %v1756
  %v2052 = vunpack.c.l.b16 %v1757
  %v2053 = vunpack.c.l.b16 %v1758
  %v2054 = vunpack.c.l.b16 %v1759
  %v2055 = vunpack.c.l.b16 %v1760
  %v2056 = vunpack.c.l.b16 %v1761
  %v2057 = vunpack.c.l.b16 %v1762
  %v2058 = vunpack.c.l.b16 %v1763
  %v2059 = vunpack.c.l.b16 %v1764
  %v2060 = vunpack.c.l.b16 %v1765
  %v2061 = vunpack.c.l.b16 %v1766
  %v2062 = vunpack.c.l.b16 %v1767
  %v2063 = vunpack.c.l.b16 %v1768
  %v2064 = vunpack.c.l.b16 %v1769
  %v2065 = vunpack.c.l.b16 %v1770
  %v2066 = vunpack.c.l.b16 %v1771
  %v2067 = vunpack.c.l.b16 %v1772
  %v2068 = vunpack.c.l.b16 %v1773
  %v2069 = vunpack.c.l.b16 %v1774
  %v2070 = vunpack.c.l.b16 %v1775
  %v2071 = vunpack.c.l.b16 %v1776
  %v2072 = vunpack.c.l.b16 %v1777
  %v2073 = vunpack.c.l.b16 %v1778
  %v2074 = vunpack.c.l.b16 %v1779
  %v2075 = vunpack.c.l.b16 %v1780
  %v2076 = vunpack.c.l.b16 %v1781
  %v2077 = vunpack.c.l.b16 %v1782
  %v2078 = vunpack.c.l.b16 %v1783
  %v2079 = vunpack.c.l.b16 %v1784
  %v2080 = vunpack.c.l.b16 %v1785
  %v2081 = vunpack.c.l.b16 %v1786
  %v2082 = vunpack.c.l.b16 %v1787
  %v2083 = vunpack.c.l.b16 %v1788
  %v2084 = vunpack.c.l.b16 %v1789
  %v2085 = vunpack.c.l.b16 %v1790
  %v2086 = vunpack.c.l.b16 %v1791
  %v2087 = vunpack.c.l.b16 %v1792
  %v2088 = vunpack.c.l.b16 %v1793
  %v2089 = vunpack.c.l.b16 %v1794
  %v2090 = vunpack.c.l.b16 %v1795
  %v2091 = vunpack.c.l.b16 %v1796
  %v2092 = vunpack.c.l.b16 %v1797
  %v2093 = vunpack.c.l.b16 %v1798
  %v2094 = vunpack.c.l.b16 %v1799
  %v2095 = vunpack.c.l.b16 %v1800
  %v2096 = vunpack.c.l.b16 %v1801
  %v2097 = vunpack.c.l.b16 %v1802
  %v2098 = vunpack.c.l.b16 %v1803
  %v2099 = vunpack.c.l.b16 %v1804
  %v2100 = vunpack.c.l.b16 %v1805
  %v2101 = vunpack.c.l.b16 %v1806
  %v2102 = vunpack.c.l.b16 %v1807
  %v2103 = vunpack.c.l.b16 %v1808
  %v2104 = vunpack.c.l.b16 %v1809
  %v2105 = vunpack.c.l.b16 %v1810
  %v2106 = vunpack.c.l.b16 %v1811
  %v2107 = vunpack.c.l.b16 %v1812
  %v2108 = vunpack.c.l.b16 %v1813
  %v2109 = vunpack.c.l.b16 %v1814
  %v2110 = vunpack.c.l.b16 %v1815
  %v2111 = vunpack.c.l.b16 %v1816
  %v2112 = vunpack.c.l.b16 %v1817
  %v2113 = vunpack.c.l.b16 %v1818
  %v2114 = vunpack.c.l.b16 %v1819
  %v2115 = vunpack.c.l.b16 %v1820
  %v2116 = vunpack.c.l.b16 %v1821
  %v2117 = vunpack.c.l.b16 %v1822
  %v2118 = vunpack.c.l.b16 %v1823
  %v2119 = vunpack.c.l.b16 %v1824
  %v2120 = vunpack.c.l.b16 %v1825
  %v2121 = vunpack.c.l.b16 %v1826
  %v2122 = vunpack.c.l.b16 %v1827
  %v2123 = vunpack.c.l.b16 %v1828
  %v2124 = vunpack.c.l.b16 %v1829
  %v2125 = vunpack.c.l.b16 %v1830
  %v2126 = vunpack.c.l.b16 %v1831
  %v2127 = vunpack.c.l.b16 %v1832
  %v2128 = vunpack.c.l.b16 %v1833
  %v2129 = vunpack.c.l.b16 %v1834
  %v2130 = vunpack.c.l.b16 %v1835
  %v2131 = vunpack.c.l.b16 %v1836
  %v2132 = vunpack.c.l.b16 %v1837
  %v2133 = vunpack.c.l.b16 %v1838
  %v2134 = vunpack.c.l.b16 %v1839
  %v2135 = vunpack.c.l.b16 %v1840
  %v2136 = vunpack.c.l.b16 %v1841
  %v2137 = vunpack.c.l.b16 %v1842
  %v2138 = vunpack.c.l.b16 %v1843
  %v2139 = vunpack.c.l.b16 %v1844
  %v2140 = vunpack.c.l.b16 %v1845
  %v2141 = vunpack.c.l.b16 %v1846
  %v2142 = vunpack.c.l.b16 %v1847
  %v2143 = vunpack.c.l.b16 %v1848
  %v2144 = vunpack.c.l.b16 %v1849
  %v2145 = vpack.c.b16 %v2002, %v2001
  %v2146 = vpack.c.b16 %v2004, %v2003
  %v2147 = vpack.c.b16 %v2006, %v2005
  %v2148 = vpack.c.b16 %v2008, %v2007
  %v2149 = vpack.c.b16 %v2010, %v2009
  %v2150 = vpack.c.b16 %v2012, %v2011
  %v2151 = vpack.c.b16 %v2014, %v2013
  %v2152 = vpack.c.b16 %v2016, %v2015
  %v2153 = vpack.c.b16 %v2018, %v2017
  %v2154 = vpack.c.b16 %v2020, %v2019
  %v2155 = vpack.c.b16 %v2022, %v2021
  %v2156 = vpack.c.b16 %v2024, %v2023
  %v2157 = vpack.c.b16 %v2026, %v2025
  %v2158 = vpack.c.b16 %v2028, %v2027
  %v2159 = vpack.c.b16 %v2030, %v2029
  %v2160 = vpack.c.b16 %v2032, %v2031
  %v2161 = vpack.c.b16 %v2034, %v2033
  %v2162 = vpack.c.b16 %v2036, %v2035
  %v2163 = vpack.c.b16 %v2038, %v2037
  %v2164 = vpack.c.b16 %v2040, %v2039
  %v2165 = vpack.c.b16 %v2042, %v2041
  %v2166 = vpack.c.b16 %v2044, %v2043
  %v2167 = vpack.c.b16 %v2046, %v2045
  %v2168 = vpack.c.b16 %v2048, %v2047
  %v2169 = vpack.c.b16 %v2050, %v2049
  %v2170 = vpack.c.b16 %v2052, %v2051
  %v2171 = vpack.c.b16 %v2054, %v2053
  %v2172 = vpack.c.b16 %v2056, %v2055
  %v2173 = vpack.c.b16 %v2058, %v2057
  %v2174 = vpack.c.b16 %v2060, %v2059
  %v2175 = vpack.c.b16 %v2062, %v2061
  %v2176 = vpack.c.b16 %v2064, %v2063
  %v2177 = vpack.c.b16 %v2066, %v2065
  %v2178 = vpack.c.b16 %v2068, %v2067
  %v2179 = vpack.c.b16 %v2070, %v2069
  %v2180 = vpack.c.b16 %v2072, %v2071
  %v2181 = vpack.c.b16 %v2074, %v2073
  %v2182 = vpack.c.b16 %v2076, %v2075
  %v2183 = vpack.c.b16 %v2078, %v2077
  %v2184 = vpack.c.b16 %v2080, %v2079
  %v2185 = vpack.c.b16 %v2082, %v2081
  %v2186 = vpack.c.b16 %v2084, %v2083
  %v2187 = vpack.c.b16 %v2086, %v2085
  %v2188 = vpack.c.b16 %v2088, %v2087
  %v2189 = vpack.c.b16 %v2090, %v2089
  %v2190 = vpack.c.b16 %v2092, %v2091
  %v2191 = vpack.c.b16 %v2094, %v2093
  %v2192 = vpack.c.b16 %v2096, %v2095
  %v2193 = vpack.c.b16 %v2098, %v2097
  %v2194 = vpack.c.b16 %v2100, %v2099
  %v2195 = vpack.c.b16 %v2102, %v2101
  %v2196 = vpack.c.b16 %v2104, %v2103
  %v2197 = vpack.c.b16 %v2106, %v2105
  %v2198 = vpack.c.b16 %v2108, %v2107
  %v2199 = vpack.c.b16 %v2110, %v2109
  %v2200 = vpack.c.b16 %v2112, %v2111
  %v2201 = vpack.c.b16 %v2114, %v2113
  %v2202 = vpack.c.b16 %v2116, %v2115
  %v2203 = vpack.c.b16 %v2118, %v2117
  %v2204 = vpack.c.b16 %v2120, %v2119
  %v2205 = vpack.c.b16 %v2122, %v2121
  %v2206 = vpack.c.b16 %v2124, %v2123
  %v2207 = vpack.c.b16 %v2126, %v2125
  %v2208 = vpack.c.b16 %v2128, %v2127
  %v2209 = vpack.c.b16 %v2130, %v2129
  %v2210 = vpack.c.b16 %v2132, %v2131
  %v2211 = vpack.c.b16 %v2134, %v2133
  %v2212 = vpack.c.b16 %v2136, %v2135
  %v2213 = vpack.c.b16 %v2138, %v2137
  %v2214 = vpack.c.b16 %v2140, %v2139
  %v2215 = vpack.c.b16 %v2142, %v2141
  %v2216 = vpack.c.b16 %v2144, %v2143
  %2289 = vmatprep.subr.bf16.mxu0 0
  %2290 = vmatpush1.bf16.msra.mxu0 %v2145
  %2291 = vmatprep.subr.bf16.mxu0 0
  %2292 = vmatpush1.bf16.msra.mxu0 %v2146
  %2293 = vmatprep.subr.bf16.mxu0 0
  %2294 = vmatpush1.bf16.msra.mxu0 %v2147
  %2295 = vmatprep.subr.bf16.mxu0 0
  %2296 = vmatpush1.bf16.msra.mxu0 %v2148
  %2297 = vmatprep.subr.bf16.mxu0 0
  %2298 = vmatpush1.bf16.msra.mxu0 %v2149
  %2299 = vmatprep.subr.bf16.mxu0 0
  %2300 = vmatpush1.bf16.msra.mxu0 %v2150
  %2301 = vmatprep.subr.bf16.mxu0 0
  %2302 = vmatpush1.bf16.msra.mxu0 %v2151
  %2303 = vmatprep.subr.bf16.mxu0 0
  %2304 = vmatpush1.bf16.msra.mxu0 %v2152
  %2305 = vmatprep.subr.bf16.mxu0 0
  %2306 = vmatpush1.bf16.msra.mxu0 %v2153
  %2307 = vmatprep.subr.bf16.mxu0 0
  %2308 = vmatpush1.bf16.msra.mxu0 %v2154
  %2309 = vmatprep.subr.bf16.mxu0 0
  %2310 = vmatpush1.bf16.msra.mxu0 %v2155
  %2311 = vmatprep.subr.bf16.mxu0 0
  %2312 = vmatpush1.bf16.msra.mxu0 %v2156
  %2313 = vmatprep.subr.bf16.mxu0 0
  %2314 = vmatpush1.bf16.msra.mxu0 %v2157
  %2315 = vmatprep.subr.bf16.mxu0 0
  %2316 = vmatpush1.bf16.msra.mxu0 %v2158
  %2317 = vmatprep.subr.bf16.mxu0 0
  %2318 = vmatpush1.bf16.msra.mxu0 %v2159
  %2319 = vmatprep.subr.bf16.mxu0 0
  %2320 = vmatpush1.bf16.msra.mxu0 %v2160
  %2321 = vmatprep.mubr.bf16.mxu0 %v1635
  %2322 = vmatmul.mubr.bf16.gmra.mrb[0].mxu0 %v1634
  %v2323 = vpop.f32.mrb[0].mxu0
  %v2324 = vadd.f32 %v1855, %v2323
  %v2325 = vpop.f32.mrb[0].mxu0
  %v2326 = vpop.f32.mrb[0].mxu0
  %v2327 = vadd.f32 %v1855, %v2326
  %v2328 = vpop.f32.mrb[0].mxu0
  %2329 = vmatprep.mubr.bf16.mxu0 %v1644
  %2330 = vmatmul.mubr.bf16.gmra.mrb[0].mxu0 %v1643
  %v2331 = vpop.f32.mrb[0].mxu0
  %v2332 = vadd.f32 %v1855, %v2331
  %v2333 = vpop.f32.mrb[0].mxu0
  %v2334 = vpop.f32.mrb[0].mxu0
  %v2335 = vadd.f32 %v1855, %v2334
  %v2336 = vpop.f32.mrb[0].mxu0
  %2337 = vmatprep.mubr.bf16.mxu0 %v1653
  %2338 = vmatmul.mubr.bf16.gmra.mrb[0].mxu0 %v1652
  %v2339 = vpop.f32.mrb[0].mxu0
  %v2340 = vadd.f32 %v1855, %v2339
  %v2341 = vpop.f32.mrb[0].mxu0
  %v2342 = vpop.f32.mrb[0].mxu0
  %v2343 = vadd.f32 %v1855, %v2342
  %v2344 = vpop.f32.mrb[0].mxu0
  %2345 = vmatprep.mubr.bf16.mxu0 %v1662
  %2346 = vmatmul.mubr.bf16.gmra.mrb[0].mxu0 %v1661
  %v2347 = vpop.f32.mrb[0].mxu0
  %v2348 = vadd.f32 %v1855, %v2347
  %v2349 = vpop.f32.mrb[0].mxu0
  %v2350 = vpop.f32.mrb[0].mxu0
  %v2351 = vadd.f32 %v1855, %v2350
  %v2352 = vpop.f32.mrb[0].mxu0
  %2353 = vmatprep.mubr.bf16.mxu0 %v1671
  %2354 = vmatmul.mubr.bf16.gmra.mrb[0].mxu0 %v1670
  %v2355 = vpop.f32.mrb[0].mxu0
  %v2356 = vadd.f32 %v1855, %v2355
  %v2357 = vpop.f32.mrb[0].mxu0
  %v2358 = vpop.f32.mrb[0].mxu0
  %v2359 = vadd.f32 %v1855, %v2358
  %v2360 = vpop.f32.mrb[0].mxu0
  %2361 = vmatprep.mubr.bf16.mxu0 %v1680
  %2362 = vmatmul.mubr.bf16.gmra.mrb[0].mxu0 %v1679
  %v2363 = vpop.f32.mrb[0].mxu0
  %v2364 = vadd.f32 %v1855, %v2363
  %v2365 = vpop.f32.mrb[0].mxu0
  %v2366 = vpop.f32.mrb[0].mxu0
  %v2367 = vadd.f32 %v1855, %v2366
  %v2368 = vpop.f32.mrb[0].mxu0
  %2369 = vmatprep.mubr.bf16.mxu0 %v1689
  %2370 = vmatmul.mubr.bf16.gmra.mrb[0].mxu0 %v1688
  %v2371 = vpop.f32.mrb[0].mxu0
  %v2372 = vadd.f32 %v1855, %v2371
  %v2373 = vpop.f32.mrb[0].mxu0
  %v2374 = vpop.f32.mrb[0].mxu0
  %v2375 = vadd.f32 %v1855, %v2374
  %v2376 = vpop.f32.mrb[0].mxu0
  %2377 = vmatprep.mubr.bf16.mxu0 %v1698
  %2378 = vmatmul.mubr.bf16.gmra.mrb[0].mxu0 %v1697
  %v2379 = vpop.f32.mrb[0].mxu0
  %v2380 = vadd.f32 %v1855, %v2379
  %v2381 = vpop.f32.mrb[0].mxu0
  %v2382 = vpop.f32.mrb[0].mxu0
  %v2383 = vadd.f32 %v1855, %v2382
  %v2384 = vpop.f32.mrb[0].mxu0
  %2385 = vdwg.mxu0
  %2386 = vmatprep.subr.bf16.mxu0 0
  %2387 = vmatpush1.bf16.msra.mxu0 %v2161
  %2388 = vmatprep.subr.bf16.mxu0 0
  %2389 = vmatpush1.bf16.msra.mxu0 %v2162
  %2390 = vmatprep.subr.bf16.mxu0 0
  %2391 = vmatpush1.bf16.msra.mxu0 %v2163
  %2392 = vmatprep.subr.bf16.mxu0 0
  %2393 = vmatpush1.bf16.msra.mxu0 %v2164
  %2394 = vmatprep.subr.bf16.mxu0 0
  %2395 = vmatpush1.bf16.msra.mxu0 %v2165
  %2396 = vmatprep.subr.bf16.mxu0 0
  %2397 = vmatpush1.bf16.msra.mxu0 %v2166
  %2398 = vmatprep.subr.bf16.mxu0 0
  %2399 = vmatpush1.bf16.msra.mxu0 %v2167
  %2400 = vmatprep.subr.bf16.mxu0 0
  %2401 = vmatpush1.bf16.msra.mxu0 %v2168
  %2402 = vmatprep.subr.bf16.mxu0 0
  %2403 = vmatpush1.bf16.msra.mxu0 %v2169
  %2404 = vmatprep.subr.bf16.mxu0 0
  %2405 = vmatpush1.bf16.msra.mxu0 %v2170
  %2406 = vmatprep.subr.bf16.mxu0 0
  %2407 = vmatpush1.bf16.msra.mxu0 %v2171
  %2408 = vmatprep.subr.bf16.mxu0 0
  %2409 = vmatpush1.bf16.msra.mxu0 %v2172
  %2410 = vmatprep.subr.bf16.mxu0 0
  %2411 = vmatpush1.bf16.msra.mxu0 %v2173
  %2412 = vmatprep.subr.bf16.mxu0 0
  %2413 = vmatpush1.bf16.msra.mxu0 %v2174
  %2414 = vmatprep.subr.bf16.mxu0 0
  %2415 = vmatpush1.bf16.msra.mxu0 %v2175
  %2416 = vmatprep.subr.bf16.mxu0 0
  %2417 = vmatpush1.bf16.msra.mxu0 %v2176
  %2418 = vmatprep.mubr.bf16.mxu0 %v1637
  %2419 = vmatmul.mubr.bf16.gmra.mrb[0].mxu0 %v1636
  %v2420 = vpop.f32.mrb[0].mxu0
  %v2421 = vadd.f32 %v2324, %v2420
  %v2422 = vpop.f32.mrb[0].mxu0
  %v2423 = vpop.f32.mrb[0].mxu0
  %v2424 = vadd.f32 %v2327, %v2423
  %v2425 = vpop.f32.mrb[0].mxu0
  %2426 = vmatprep.mubr.bf16.mxu0 %v1646
  %2427 = vmatmul.mubr.bf16.gmra.mrb[0].mxu0 %v1645
  %v2428 = vpop.f32.mrb[0].mxu0
  %v2429 = vadd.f32 %v2332, %v2428
  %v2430 = vpop.f32.mrb[0].mxu0
  %v2431 = vpop.f32.mrb[0].mxu0
  %v2432 = vadd.f32 %v2335, %v2431
  %v2433 = vpop.f32.mrb[0].mxu0
  %2434 = vmatprep.mubr.bf16.mxu0 %v1655
  %2435 = vmatmul.mubr.bf16.gmra.mrb[0].mxu0 %v1654
  %v2436 = vpop.f32.mrb[0].mxu0
  %v2437 = vadd.f32 %v2340, %v2436
  %v2438 = vpop.f32.mrb[0].mxu0
  %v2439 = vpop.f32.mrb[0].mxu0
  %v2440 = vadd.f32 %v2343, %v2439
  %v2441 = vpop.f32.mrb[0].mxu0
  %2442 = vmatprep.mubr.bf16.mxu0 %v1664
  %2443 = vmatmul.mubr.bf16.gmra.mrb[0].mxu0 %v1663
  %v2444 = vpop.f32.mrb[0].mxu0
  %v2445 = vadd.f32 %v2348, %v2444
  %v2446 = vpop.f32.mrb[0].mxu0
  %v2447 = vpop.f32.mrb[0].mxu0
  %v2448 = vadd.f32 %v2351, %v2447
  %v2449 = vpop.f32.mrb[0].mxu0
  %2450 = vmatprep.mubr.bf16.mxu0 %v1673
  %2451 = vmatmul.mubr.bf16.gmra.mrb[0].mxu0 %v1672
  %v2452 = vpop.f32.mrb[0].mxu0
  %v2453 = vadd.f32 %v2356, %v2452
  %v2454 = vpop.f32.mrb[0].mxu0
  %v2455 = vpop.f32.mrb[0].mxu0
  %v2456 = vadd.f32 %v2359, %v2455
  %v2457 = vpop.f32.mrb[0].mxu0
  %2458 = vmatprep.mubr.bf16.mxu0 %v1682
  %2459 = vmatmul.mubr.bf16.gmra.mrb[0].mxu0 %v1681
  %v2460 = vpop.f32.mrb[0].mxu0
  %v2461 = vadd.f32 %v2364, %v2460
  %v2462 = vpop.f32.mrb[0].mxu0
  %v2463 = vpop.f32.mrb[0].mxu0
  %v2464 = vadd.f32 %v2367, %v2463
  %v2465 = vpop.f32.mrb[0].mxu0
  %2466 = vmatprep.mubr.bf16.mxu0 %v1691
  %2467 = vmatmul.mubr.bf16.gmra.mrb[0].mxu0 %v1690
  %v2468 = vpop.f32.mrb[0].mxu0
  %v2469 = vadd.f32 %v2372, %v2468
  %v2470 = vpop.f32.mrb[0].mxu0
  %v2471 = vpop.f32.mrb[0].mxu0
  %v2472 = vadd.f32 %v2375, %v2471
  %v2473 = vpop.f32.mrb[0].mxu0
  %2474 = vmatprep.mubr.bf16.mxu0 %v1700
  %2475 = vmatmul.mubr.bf16.gmra.mrb[0].mxu0 %v1699
  %v2476 = vpop.f32.mrb[0].mxu0
  %v2477 = vadd.f32 %v2380, %v2476
  %v2478 = vpop.f32.mrb[0].mxu0
  %v2479 = vpop.f32.mrb[0].mxu0
  %v2480 = vadd.f32 %v2383, %v2479
  %v2481 = vpop.f32.mrb[0].mxu0
  %2482 = vdwg.mxu0
  %2483 = vmatprep.subr.bf16.mxu0 0
  %2484 = vmatpush1.bf16.msra.mxu0 %v2177
  %2485 = vmatprep.subr.bf16.mxu0 0
  %2486 = vmatpush1.bf16.msra.mxu0 %v2178
  %2487 = vmatprep.subr.bf16.mxu0 0
  %2488 = vmatpush1.bf16.msra.mxu0 %v2179
  %2489 = vmatprep.subr.bf16.mxu0 0
  %2490 = vmatpush1.bf16.msra.mxu0 %v2180
  %2491 = vmatprep.subr.bf16.mxu0 0
  %2492 = vmatpush1.bf16.msra.mxu0 %v2181
  %2493 = vmatprep.subr.bf16.mxu0 0
  %2494 = vmatpush1.bf16.msra.mxu0 %v2182
  %2495 = vmatprep.subr.bf16.mxu0 0
  %2496 = vmatpush1.bf16.msra.mxu0 %v2183
  %2497 = vmatprep.subr.bf16.mxu0 0
  %2498 = vmatpush1.bf16.msra.mxu0 %v2184
  %2499 = vmatprep.subr.bf16.mxu0 0
  %2500 = vmatpush1.bf16.msra.mxu0 %v2185
  %2501 = vmatprep.subr.bf16.mxu0 0
  %2502 = vmatpush1.bf16.msra.mxu0 %v2186
  %2503 = vmatprep.subr.bf16.mxu0 0
  %2504 = vmatpush1.bf16.msra.mxu0 %v2187
  %2505 = vmatprep.subr.bf16.mxu0 0
  %2506 = vmatpush1.bf16.msra.mxu0 %v2188
  %2507 = vmatprep.subr.bf16.mxu0 0
  %2508 = vmatpush1.bf16.msra.mxu0 %v2189
  %2509 = vmatprep.subr.bf16.mxu0 0
  %2510 = vmatpush1.bf16.msra.mxu0 %v2190
  %2511 = vmatprep.subr.bf16.mxu0 0
  %2512 = vmatpush1.bf16.msra.mxu0 %v2191
  %2513 = vmatprep.subr.bf16.mxu0 0
  %2514 = vmatpush1.bf16.msra.mxu0 %v2192
  %2515 = vmatprep.mubr.bf16.mxu0 %v1639
  %2516 = vmatmul.mubr.bf16.gmra.mrb[0].mxu0 %v1638
  %v2517 = vpop.f32.mrb[0].mxu0
  %v2518 = vadd.f32 %v2421, %v2517
  %v2519 = vpop.f32.mrb[0].mxu0
  %v2520 = vpop.f32.mrb[0].mxu0
  %v2521 = vadd.f32 %v2424, %v2520
  %v2522 = vpop.f32.mrb[0].mxu0
  %2523 = vmatprep.mubr.bf16.mxu0 %v1648
  %2524 = vmatmul.mubr.bf16.gmra.mrb[0].mxu0 %v1647
  %v2525 = vpop.f32.mrb[0].mxu0
  %v2526 = vadd.f32 %v2429, %v2525
  %v2527 = vpop.f32.mrb[0].mxu0
  %v2528 = vpop.f32.mrb[0].mxu0
  %v2529 = vadd.f32 %v2432, %v2528
  %v2530 = vpop.f32.mrb[0].mxu0
  %2531 = vmatprep.mubr.bf16.mxu0 %v1657
  %2532 = vmatmul.mubr.bf16.gmra.mrb[0].mxu0 %v1656
  %v2533 = vpop.f32.mrb[0].mxu0
  %v2534 = vadd.f32 %v2437, %v2533
  %v2535 = vpop.f32.mrb[0].mxu0
  %v2536 = vpop.f32.mrb[0].mxu0
  %v2537 = vadd.f32 %v2440, %v2536
  %v2538 = vpop.f32.mrb[0].mxu0
  %2539 = vmatprep.mubr.bf16.mxu0 %v1666
  %2540 = vmatmul.mubr.bf16.gmra.mrb[0].mxu0 %v1665
  %v2541 = vpop.f32.mrb[0].mxu0
  %v2542 = vadd.f32 %v2445, %v2541
  %v2543 = vpop.f32.mrb[0].mxu0
  %v2544 = vpop.f32.mrb[0].mxu0
  %v2545 = vadd.f32 %v2448, %v2544
  %v2546 = vpop.f32.mrb[0].mxu0
  %2547 = vmatprep.mubr.bf16.mxu0 %v1675
  %2548 = vmatmul.mubr.bf16.gmra.mrb[0].mxu0 %v1674
  %v2549 = vpop.f32.mrb[0].mxu0
  %v2550 = vadd.f32 %v2453, %v2549
  %v2551 = vpop.f32.mrb[0].mxu0
  %v2552 = vpop.f32.mrb[0].mxu0
  %v2553 = vadd.f32 %v2456, %v2552
  %v2554 = vpop.f32.mrb[0].mxu0
  %2555 = vmatprep.mubr.bf16.mxu0 %v1684
  %2556 = vmatmul.mubr.bf16.gmra.mrb[0].mxu0 %v1683
  %v2557 = vpop.f32.mrb[0].mxu0
  %v2558 = vadd.f32 %v2461, %v2557
  %v2559 = vpop.f32.mrb[0].mxu0
  %v2560 = vpop.f32.mrb[0].mxu0
  %v2561 = vadd.f32 %v2464, %v2560
  %v2562 = vpop.f32.mrb[0].mxu0
  %2563 = vmatprep.mubr.bf16.mxu0 %v1693
  %2564 = vmatmul.mubr.bf16.gmra.mrb[0].mxu0 %v1692
  %v2565 = vpop.f32.mrb[0].mxu0
  %v2566 = vadd.f32 %v2469, %v2565
  %v2567 = vpop.f32.mrb[0].mxu0
  %v2568 = vpop.f32.mrb[0].mxu0
  %v2569 = vadd.f32 %v2472, %v2568
  %v2570 = vpop.f32.mrb[0].mxu0
  %2571 = vmatprep.mubr.bf16.mxu0 %v1702
  %2572 = vmatmul.mubr.bf16.gmra.mrb[0].mxu0 %v1701
  %v2573 = vpop.f32.mrb[0].mxu0
  %v2574 = vadd.f32 %v2477, %v2573
  %v2575 = vpop.f32.mrb[0].mxu0
  %v2576 = vpop.f32.mrb[0].mxu0
  %v2577 = vadd.f32 %v2480, %v2576
  %v2578 = vpop.f32.mrb[0].mxu0
  %2579 = vdwg.mxu0
  %2580 = vmatprep.subr.bf16.mxu0 0
  %2581 = vmatpush1.bf16.msra.mxu0 %v2193
  %2582 = vmatprep.subr.bf16.mxu0 0
  %2583 = vmatpush1.bf16.msra.mxu0 %v2194
  %2584 = vmatprep.subr.bf16.mxu0 0
  %2585 = vmatpush1.bf16.msra.mxu0 %v2195
  %2586 = vmatprep.subr.bf16.mxu0 0
  %2587 = vmatpush1.bf16.msra.mxu0 %v2196
  %2588 = vmatprep.subr.bf16.mxu0 0
  %2589 = vmatpush1.bf16.msra.mxu0 %v2197
  %2590 = vmatprep.subr.bf16.mxu0 0
  %2591 = vmatpush1.bf16.msra.mxu0 %v2198
  %2592 = vmatprep.subr.bf16.mxu0 0
  %2593 = vmatpush1.bf16.msra.mxu0 %v2199
  %2594 = vmatprep.subr.bf16.mxu0 0
  %2595 = vmatpush1.bf16.msra.mxu0 %v2200
  %2596 = vmatprep.subr.bf16.mxu0 0
  %2597 = vmatpush1.bf16.msra.mxu0 %v2201
  %2598 = vmatprep.subr.bf16.mxu0 0
  %2599 = vmatpush1.bf16.msra.mxu0 %v2202
  %2600 = vmatprep.subr.bf16.mxu0 0
  %2601 = vmatpush1.bf16.msra.mxu0 %v2203
  %2602 = vmatprep.subr.bf16.mxu0 0
  %2603 = vmatpush1.bf16.msra.mxu0 %v2204
  %2604 = vmatprep.subr.bf16.mxu0 0
  %2605 = vmatpush1.bf16.msra.mxu0 %v2205
  %2606 = vmatprep.subr.bf16.mxu0 0
  %2607 = vmatpush1.bf16.msra.mxu0 %v2206
  %2608 = vmatprep.subr.bf16.mxu0 0
  %2609 = vmatpush1.bf16.msra.mxu0 %v2207
  %2610 = vmatprep.subr.bf16.mxu0 0
  %2611 = vmatpush1.bf16.msra.mxu0 %v2208
  %2612 = vmatprep.mubr.bf16.mxu0 %v1641
  %2613 = vmatmul.mubr.bf16.gmra.mrb[0].mxu0 %v1640
  %v2614 = vpop.f32.mrb[0].mxu0
  %v2615 = vadd.f32 %v2518, %v2614
  %v2616 = vpop.f32.mrb[0].mxu0
  %v2617 = vpop.f32.mrb[0].mxu0
  %v2618 = vadd.f32 %v2521, %v2617
  %v2619 = vpop.f32.mrb[0].mxu0
  %2620 = vmatprep.mubr.bf16.mxu0 %v1650
  %2621 = vmatmul.mubr.bf16.gmra.mrb[0].mxu0 %v1649
  %v2622 = vpop.f32.mrb[0].mxu0
  %v2623 = vadd.f32 %v2526, %v2622
  %v2624 = vpop.f32.mrb[0].mxu0
  %v2625 = vpop.f32.mrb[0].mxu0
  %v2626 = vadd.f32 %v2529, %v2625
  %v2627 = vpop.f32.mrb[0].mxu0
  %2628 = vmatprep.mubr.bf16.mxu0 %v1659
  %2629 = vmatmul.mubr.bf16.gmra.mrb[0].mxu0 %v1658
  %v2630 = vpop.f32.mrb[0].mxu0
  %v2631 = vadd.f32 %v2534, %v2630
  %v2632 = vpop.f32.mrb[0].mxu0
  %v2633 = vpop.f32.mrb[0].mxu0
  %v2634 = vadd.f32 %v2537, %v2633
  %v2635 = vpop.f32.mrb[0].mxu0
  %2636 = vmatprep.mubr.bf16.mxu0 %v1668
  %2637 = vmatmul.mubr.bf16.gmra.mrb[0].mxu0 %v1667
  %v2638 = vpop.f32.mrb[0].mxu0
  %v2639 = vadd.f32 %v2542, %v2638
  %v2640 = vpop.f32.mrb[0].mxu0
  %v2641 = vpop.f32.mrb[0].mxu0
  %v2642 = vadd.f32 %v2545, %v2641
  %v2643 = vpop.f32.mrb[0].mxu0
  %2644 = vmatprep.mubr.bf16.mxu0 %v1677
  %2645 = vmatmul.mubr.bf16.gmra.mrb[0].mxu0 %v1676
  %v2646 = vpop.f32.mrb[0].mxu0
  %v2647 = vadd.f32 %v2550, %v2646
  %v2648 = vpop.f32.mrb[0].mxu0
  %v2649 = vpop.f32.mrb[0].mxu0
  %v2650 = vadd.f32 %v2553, %v2649
  %v2651 = vpop.f32.mrb[0].mxu0
  %2652 = vmatprep.mubr.bf16.mxu0 %v1686
  %2653 = vmatmul.mubr.bf16.gmra.mrb[0].mxu0 %v1685
  %v2654 = vpop.f32.mrb[0].mxu0
  %v2655 = vadd.f32 %v2558, %v2654
  %v2656 = vpop.f32.mrb[0].mxu0
  %v2657 = vpop.f32.mrb[0].mxu0
  %v2658 = vadd.f32 %v2561, %v2657
  %v2659 = vpop.f32.mrb[0].mxu0
  %2660 = vmatprep.mubr.bf16.mxu0 %v1695
  %2661 = vmatmul.mubr.bf16.gmra.mrb[0].mxu0 %v1694
  %v2662 = vpop.f32.mrb[0].mxu0
  %v2663 = vadd.f32 %v2566, %v2662
  %v2664 = vpop.f32.mrb[0].mxu0
  %v2665 = vpop.f32.mrb[0].mxu0
  %v2666 = vadd.f32 %v2569, %v2665
  %v2667 = vpop.f32.mrb[0].mxu0
  %2668 = vmatprep.mubr.bf16.mxu0 %v1704
  %2669 = vmatmul.mubr.bf16.gmra.mrb[0].mxu0 %v1703
  %v2670 = vpop.f32.mrb[0].mxu0
  %v2671 = vadd.f32 %v2574, %v2670
  %v2672 = vpop.f32.mrb[0].mxu0
  %v2673 = vpop.f32.mrb[0].mxu0
  %v2674 = vadd.f32 %v2577, %v2673
  %v2675 = vpop.f32.mrb[0].mxu0
  %2676 = vdwg.mxu0
  %2677 = vmatprep.subr.bf16.mxu0 0
  %2678 = vmatpush1.bf16.msra.mxu0 %v2209
  %2679 = vmatprep.subr.bf16.mxu0 0
  %2680 = vmatpush1.bf16.msra.mxu0 %v2210
  %2681 = vmatprep.subr.bf16.mxu0 0
  %2682 = vmatpush1.bf16.msra.mxu0 %v2211
  %2683 = vmatprep.subr.bf16.mxu0 0
  %2684 = vmatpush1.bf16.msra.mxu0 %v2212
  %2685 = vmatprep.subr.bf16.mxu0 0
  %2686 = vmatpush1.bf16.msra.mxu0 %v2213
  %2687 = vmatprep.subr.bf16.mxu0 0
  %2688 = vmatpush1.bf16.msra.mxu0 %v2214
  %2689 = vmatprep.subr.bf16.mxu0 0
  %2690 = vmatpush1.bf16.msra.mxu0 %v2215
  %2691 = vmatprep.subr.bf16.mxu0 0
  %2692 = vmatpush1.bf16.msra.mxu0 %v2216
  %2693 = vmatprep.subr.bf16.mxu0 0
  %2694 = vmatpush1.bf16.msra.mxu0 0
  %2695 = vmatprep.subr.bf16.mxu0 0
  %2696 = vmatpush1.bf16.msra.mxu0 0
  %2697 = vmatprep.subr.bf16.mxu0 0
  %2698 = vmatpush1.bf16.msra.mxu0 0
  %2699 = vmatprep.subr.bf16.mxu0 0
  %2700 = vmatpush1.bf16.msra.mxu0 0
  %2701 = vmatprep.subr.bf16.mxu0 0
  %2702 = vmatpush1.bf16.msra.mxu0 0
  %2703 = vmatprep.subr.bf16.mxu0 0
  %2704 = vmatpush1.bf16.msra.mxu0 0
  %2705 = vmatprep.subr.bf16.mxu0 0
  %2706 = vmatpush1.bf16.msra.mxu0 0
  %2707 = vmatprep.subr.bf16.mxu0 0
  %2708 = vmatpush1.bf16.msra.mxu0 0
  %2709 = vmatprep.mubr.bf16.mxu0 0
  %2710 = vmatmul.mubr.bf16.gmra.mrb[0].mxu0 %v1642
  %v2711 = vpop.f32.mrb[0].mxu0
  %v2712 = vadd.f32 %v2615, %v2711
  %v2713 = vpop.f32.mrb[0].mxu0
  %v2714 = vpop.f32.mrb[0].mxu0
  %v2715 = vadd.f32 %v2618, %v2714
  %v2716 = vpop.f32.mrb[0].mxu0
  %2717 = vmatprep.mubr.bf16.mxu0 0
  %2718 = vmatmul.mubr.bf16.gmra.mrb[0].mxu0 %v1651
  %v2719 = vpop.f32.mrb[0].mxu0
  %v2720 = vadd.f32 %v2623, %v2719
  %v2721 = vpop.f32.mrb[0].mxu0
  %v2722 = vpop.f32.mrb[0].mxu0
  %v2723 = vadd.f32 %v2626, %v2722
  %v2724 = vpop.f32.mrb[0].mxu0
  %2725 = vmatprep.mubr.bf16.mxu0 0
  %2726 = vmatmul.mubr.bf16.gmra.mrb[0].mxu0 %v1660
  %v2727 = vpop.f32.mrb[0].mxu0
  %v2728 = vadd.f32 %v2631, %v2727
  %v2729 = vpop.f32.mrb[0].mxu0
  %v2730 = vpop.f32.mrb[0].mxu0
  %v2731 = vadd.f32 %v2634, %v2730
  %v2732 = vpop.f32.mrb[0].mxu0
  %2733 = vmatprep.mubr.bf16.mxu0 0
  %2734 = vmatmul.mubr.bf16.gmra.mrb[0].mxu0 %v1669
  %v2735 = vpop.f32.mrb[0].mxu0
  %v2736 = vadd.f32 %v2639, %v2735
  %v2737 = vpop.f32.mrb[0].mxu0
  %v2738 = vpop.f32.mrb[0].mxu0
  %v2739 = vadd.f32 %v2642, %v2738
  %v2740 = vpop.f32.mrb[0].mxu0
  %2741 = vmatprep.mubr.bf16.mxu0 0
  %2742 = vmatmul.mubr.bf16.gmra.mrb[0].mxu0 %v1678
  %v2743 = vpop.f32.mrb[0].mxu0
  %v2744 = vadd.f32 %v2647, %v2743
  %v2745 = vpop.f32.mrb[0].mxu0
  %v2746 = vpop.f32.mrb[0].mxu0
  %v2747 = vadd.f32 %v2650, %v2746
  %v2748 = vpop.f32.mrb[0].mxu0
  %2749 = vmatprep.mubr.bf16.mxu0 0
  %2750 = vmatmul.mubr.bf16.gmra.mrb[0].mxu0 %v1687
  %v2751 = vpop.f32.mrb[0].mxu0
  %v2752 = vadd.f32 %v2655, %v2751
  %v2753 = vpop.f32.mrb[0].mxu0
  %v2754 = vpop.f32.mrb[0].mxu0
  %v2755 = vadd.f32 %v2658, %v2754
  %v2756 = vpop.f32.mrb[0].mxu0
  %2757 = vmatprep.mubr.bf16.mxu0 0
  %2758 = vmatmul.mubr.bf16.gmra.mrb[0].mxu0 %v1696
  %v2759 = vpop.f32.mrb[0].mxu0
  %v2760 = vadd.f32 %v2663, %v2759
  %v2761 = vpop.f32.mrb[0].mxu0
  %v2762 = vpop.f32.mrb[0].mxu0
  %v2763 = vadd.f32 %v2666, %v2762
  %v2764 = vpop.f32.mrb[0].mxu0
  %2765 = vmatprep.mubr.bf16.mxu0 0
  %2766 = vmatmul.mubr.bf16.gmra.mrb[0].mxu0 %v1705
  %v2767 = vpop.f32.mrb[0].mxu0
  %v2768 = vadd.f32 %v2671, %v2767
  %v2769 = vpop.f32.mrb[0].mxu0
  %v2770 = vpop.f32.mrb[0].mxu0
  %v2771 = vadd.f32 %v2674, %v2770
  %v2772 = vpop.f32.mrb[0].mxu0
  %2773 = vdwg.mxu0
  %s2774 = scalar_lea.vmem %s3, 8
  %v2775 = vld [vmem:[%s2774] sm:$0xf]
  %v2776 = vld [vmem:[%s2774 + $0x4] sm:$0x1]
  %v2777 = vld [vmem:[%s2774 + $0x8] sm:$0xf]
  %v2778 = vld [vmem:[%s2774 + $0xc] sm:$0x1]
  %v2779 = vld [vmem:[%s2774 + $0x10] sm:$0xf]
  %v2780 = vld [vmem:[%s2774 + $0x14] sm:$0x1]
  %v2781 = vld [vmem:[%s2774 + $0x18] sm:$0xf]
  %v2782 = vld [vmem:[%s2774 + $0x1c] sm:$0x1]
  %v2783 = vld [vmem:[%s2774 + $0x20] sm:$0xf]
  %v2784 = vld [vmem:[%s2774 + $0x24] sm:$0x1]
  %v2785 = vld [vmem:[%s2774 + $0x28] sm:$0xf]
  %v2786 = vld [vmem:[%s2774 + $0x2c] sm:$0x1]
  %v2787 = vld [vmem:[%s2774 + $0x30] sm:$0xf]
  %v2788 = vld [vmem:[%s2774 + $0x34] sm:$0x1]
  %v2789 = vld [vmem:[%s2774 + $0x38] sm:$0xf]
  %v2790 = vld [vmem:[%s2774 + $0x3c] sm:$0x1]
  %v2791 = vld [vmem:[%s2774 + $0x50] sm:$0xf]
  %v2792 = vld [vmem:[%s2774 + $0x54] sm:$0x1]
  %v2793 = vld [vmem:[%s2774 + $0x58] sm:$0xf]
  %v2794 = vld [vmem:[%s2774 + $0x5c] sm:$0x1]
  %v2795 = vld [vmem:[%s2774 + $0x60] sm:$0xf]
  %v2796 = vld [vmem:[%s2774 + $0x64] sm:$0x1]
  %v2797 = vld [vmem:[%s2774 + $0x68] sm:$0xf]
  %v2798 = vld [vmem:[%s2774 + $0x6c] sm:$0x1]
  %v2799 = vld [vmem:[%s2774 + $0x70] sm:$0xf]
  %v2800 = vld [vmem:[%s2774 + $0x74] sm:$0x1]
  %v2801 = vld [vmem:[%s2774 + $0x78] sm:$0xf]
  %v2802 = vld [vmem:[%s2774 + $0x7c] sm:$0x1]
  %v2803 = vld [vmem:[%s2774 + $0x80] sm:$0xf]
  %v2804 = vld [vmem:[%s2774 + $0x84] sm:$0x1]
  %v2805 = vld [vmem:[%s2774 + $0x88] sm:$0xf]
  %v2806 = vld [vmem:[%s2774 + $0x8c] sm:$0x1]
  %v2808 = vshrl.u32 %v2775, 16
  %v2810 = vrot.slane %v2808, 4
  %v2811 = vshll.u32 %v2775, 16
  %v2813 = vrot.slane %v2811, 5
  %v2814 = vor.u32 %v2810, %v2813
  %v2815 = vrot.slane %v2814, 4
  %v2817 = vshll.u32 %v2776, 16
  %v2819 = vrot.slane %v2817, 5
  %v2820 = vsel %vm124, %v2815, %v2819
  %v2822 = vshrl.u32 %v2777, 16
  %v2824 = vrot.slane %v2822, 4
  %v2825 = vshll.u32 %v2777, 16
  %v2827 = vrot.slane %v2825, 5
  %v2828 = vor.u32 %v2824, %v2827
  %v2829 = vrot.slane %v2828, 4
  %v2831 = vshll.u32 %v2778, 16
  %v2833 = vrot.slane %v2831, 5
  %v2834 = vsel %vm124, %v2829, %v2833
  %v2836 = vshrl.u32 %v2779, 16
  %v2838 = vrot.slane %v2836, 4
  %v2839 = vshll.u32 %v2779, 16
  %v2841 = vrot.slane %v2839, 5
  %v2842 = vor.u32 %v2838, %v2841
  %v2843 = vrot.slane %v2842, 4
  %v2845 = vshll.u32 %v2780, 16
  %v2847 = vrot.slane %v2845, 5
  %v2848 = vsel %vm124, %v2843, %v2847
  %v2850 = vshrl.u32 %v2781, 16
  %v2852 = vrot.slane %v2850, 4
  %v2853 = vshll.u32 %v2781, 16
  %v2855 = vrot.slane %v2853, 5
  %v2856 = vor.u32 %v2852, %v2855
  %v2857 = vrot.slane %v2856, 4
  %v2859 = vshll.u32 %v2782, 16
  %v2861 = vrot.slane %v2859, 5
  %v2862 = vsel %vm124, %v2857, %v2861
  %v2864 = vshrl.u32 %v2783, 16
  %v2866 = vrot.slane %v2864, 4
  %v2867 = vshll.u32 %v2783, 16
  %v2869 = vrot.slane %v2867, 5
  %v2870 = vor.u32 %v2866, %v2869
  %v2871 = vrot.slane %v2870, 4
  %v2873 = vshll.u32 %v2784, 16
  %v2875 = vrot.slane %v2873, 5
  %v2876 = vsel %vm124, %v2871, %v2875
  %v2878 = vshrl.u32 %v2785, 16
  %v2880 = vrot.slane %v2878, 4
  %v2881 = vshll.u32 %v2785, 16
  %v2883 = vrot.slane %v2881, 5
  %v2884 = vor.u32 %v2880, %v2883
  %v2885 = vrot.slane %v2884, 4
  %v2887 = vshll.u32 %v2786, 16
  %v2889 = vrot.slane %v2887, 5
  %v2890 = vsel %vm124, %v2885, %v2889
  %v2892 = vshrl.u32 %v2787, 16
  %v2894 = vrot.slane %v2892, 4
  %v2895 = vshll.u32 %v2787, 16
  %v2897 = vrot.slane %v2895, 5
  %v2898 = vor.u32 %v2894, %v2897
  %v2899 = vrot.slane %v2898, 4
  %v2901 = vshll.u32 %v2788, 16
  %v2903 = vrot.slane %v2901, 5
  %v2904 = vsel %vm124, %v2899, %v2903
  %v2906 = vshrl.u32 %v2789, 16
  %v2908 = vrot.slane %v2906, 4
  %v2909 = vshll.u32 %v2789, 16
  %v2911 = vrot.slane %v2909, 5
  %v2912 = vor.u32 %v2908, %v2911
  %v2913 = vrot.slane %v2912, 4
  %v2915 = vshll.u32 %v2790, 16
  %v2917 = vrot.slane %v2915, 5
  %v2918 = vsel %vm124, %v2913, %v2917
  %v2920 = vshrl.u32 %v2791, 16
  %v2922 = vrot.slane %v2920, 4
  %v2923 = vshll.u32 %v2791, 16
  %v2925 = vrot.slane %v2923, 5
  %v2926 = vor.u32 %v2922, %v2925
  %v2927 = vrot.slane %v2926, 4
  %v2929 = vshll.u32 %v2792, 16
  %v2931 = vrot.slane %v2929, 5
  %v2932 = vsel %vm124, %v2927, %v2931
  %v2934 = vshrl.u32 %v2793, 16
  %v2936 = vrot.slane %v2934, 4
  %v2937 = vshll.u32 %v2793, 16
  %v2939 = vrot.slane %v2937, 5
  %v2940 = vor.u32 %v2936, %v2939
  %v2941 = vrot.slane %v2940, 4
  %v2943 = vshll.u32 %v2794, 16
  %v2945 = vrot.slane %v2943, 5
  %v2946 = vsel %vm124, %v2941, %v2945
  %v2948 = vshrl.u32 %v2795, 16
  %v2950 = vrot.slane %v2948, 4
  %v2951 = vshll.u32 %v2795, 16
  %v2953 = vrot.slane %v2951, 5
  %v2954 = vor.u32 %v2950, %v2953
  %v2955 = vrot.slane %v2954, 4
  %v2957 = vshll.u32 %v2796, 16
  %v2959 = vrot.slane %v2957, 5
  %v2960 = vsel %vm124, %v2955, %v2959
  %v2962 = vshrl.u32 %v2797, 16
  %v2964 = vrot.slane %v2962, 4
  %v2965 = vshll.u32 %v2797, 16
  %v2967 = vrot.slane %v2965, 5
  %v2968 = vor.u32 %v2964, %v2967
  %v2969 = vrot.slane %v2968, 4
  %v2971 = vshll.u32 %v2798, 16
  %v2973 = vrot.slane %v2971, 5
  %v2974 = vsel %vm124, %v2969, %v2973
  %v2976 = vshrl.u32 %v2799, 16
  %v2978 = vrot.slane %v2976, 4
  %v2979 = vshll.u32 %v2799, 16
  %v2981 = vrot.slane %v2979, 5
  %v2982 = vor.u32 %v2978, %v2981
  %v2983 = vrot.slane %v2982, 4
  %v2985 = vshll.u32 %v2800, 16
  %v2987 = vrot.slane %v2985, 5
  %v2988 = vsel %vm124, %v2983, %v2987
  %v2990 = vshrl.u32 %v2801, 16
  %v2992 = vrot.slane %v2990, 4
  %v2993 = vshll.u32 %v2801, 16
  %v2995 = vrot.slane %v2993, 5
  %v2996 = vor.u32 %v2992, %v2995
  %v2997 = vrot.slane %v2996, 4
  %v2999 = vshll.u32 %v2802, 16
  %v3001 = vrot.slane %v2999, 5
  %v3002 = vsel %vm124, %v2997, %v3001
  %v3004 = vshrl.u32 %v2803, 16
  %v3006 = vrot.slane %v3004, 4
  %v3007 = vshll.u32 %v2803, 16
  %v3009 = vrot.slane %v3007, 5
  %v3010 = vor.u32 %v3006, %v3009
  %v3011 = vrot.slane %v3010, 4
  %v3013 = vshll.u32 %v2804, 16
  %v3015 = vrot.slane %v3013, 5
  %v3016 = vsel %vm124, %v3011, %v3015
  %v3018 = vshrl.u32 %v2805, 16
  %v3020 = vrot.slane %v3018, 4
  %v3021 = vshll.u32 %v2805, 16
  %v3023 = vrot.slane %v3021, 5
  %v3024 = vor.u32 %v3020, %v3023
  %v3025 = vrot.slane %v3024, 4
  %v3027 = vshll.u32 %v2806, 16
  %v3029 = vrot.slane %v3027, 5
  %v3030 = vsel %vm124, %v3025, %v3029
  %v3047 = vunpack.c.l.bf16 %v2820
  %v3048 = vunpack.c.l.bf16 %v2834
  %v3049 = vunpack.c.l.bf16 %v2848
  %v3050 = vunpack.c.l.bf16 %v2862
  %v3051 = vunpack.c.l.bf16 %v2876
  %v3052 = vunpack.c.l.bf16 %v2890
  %v3053 = vunpack.c.l.bf16 %v2904
  %v3054 = vunpack.c.l.bf16 %v2918
  %v3055 = vunpack.c.l.bf16 %v2932
  %v3056 = vunpack.c.l.bf16 %v2946
  %v3057 = vunpack.c.l.bf16 %v2960
  %v3058 = vunpack.c.l.bf16 %v2974
  %v3059 = vunpack.c.l.bf16 %v2988
  %v3060 = vunpack.c.l.bf16 %v3002
  %v3061 = vunpack.c.l.bf16 %v3016
  %v3062 = vunpack.c.l.bf16 %v3030
  %v3063 = vadd.f32 %v2712, %v3047
  %v3064 = vadd.f32 %v2715, %v3048
  %v3065 = vadd.f32 %v2720, %v3049
  %v3066 = vadd.f32 %v2723, %v3050
  %v3067 = vadd.f32 %v2728, %v3051
  %v3068 = vadd.f32 %v2731, %v3052
  %v3069 = vadd.f32 %v2736, %v3053
  %v3070 = vadd.f32 %v2739, %v3054
  %v3071 = vadd.f32 %v2744, %v3055
  %v3072 = vadd.f32 %v2747, %v3056
  %v3073 = vadd.f32 %v2752, %v3057
  %v3074 = vadd.f32 %v2755, %v3058
  %v3075 = vadd.f32 %v2760, %v3059
  %v3076 = vadd.f32 %v2763, %v3060
  %v3077 = vadd.f32 %v2768, %v3061
  %v3078 = vadd.f32 %v2771, %v3062
  %v3079 = vmax.f32 %v3063, 0.0
  %v3080 = vmax.f32 %v3064, 0.0
  %v3081 = vmax.f32 %v3065, 0.0
  %v3082 = vmax.f32 %v3066, 0.0
  %v3083 = vmax.f32 %v3067, 0.0
  %v3084 = vmax.f32 %v3068, 0.0
  %v3085 = vmax.f32 %v3069, 0.0
  %v3086 = vmax.f32 %v3070, 0.0
  %v3087 = vmax.f32 %v3071, 0.0
  %v3088 = vmax.f32 %v3072, 0.0
  %v3089 = vmax.f32 %v3073, 0.0
  %v3090 = vmax.f32 %v3074, 0.0
  %v3091 = vmax.f32 %v3075, 0.0
  %v3092 = vmax.f32 %v3076, 0.0
  %v3093 = vmax.f32 %v3077, 0.0
  %v3094 = vmax.f32 %v3078, 0.0
  %v3095 = vpack.c.bf16 %v3080, %v3079
  %v3096 = vpack.c.bf16 %v3082, %v3081
  %v3097 = vpack.c.bf16 %v3084, %v3083
  %v3098 = vpack.c.bf16 %v3086, %v3085
  %v3099 = vpack.c.bf16 %v3088, %v3087
  %v3100 = vpack.c.bf16 %v3090, %v3089
  %v3101 = vpack.c.bf16 %v3092, %v3091
  %v3102 = vpack.c.bf16 %v3094, %v3093
  %v3111 = vunpack.c.l.b16 %v3095
  %v3112 = vunpack.c.h.b16 %v3095
  %v3113 = vunpack.c.l.b16 %v3096
  %v3114 = vunpack.c.h.b16 %v3096
  %v3115 = vunpack.c.l.b16 %v3097
  %v3116 = vunpack.c.h.b16 %v3097
  %v3117 = vunpack.c.l.b16 %v3098
  %v3118 = vunpack.c.h.b16 %v3098
  %v3119 = vunpack.c.l.b16 %v3099
  %v3120 = vunpack.c.h.b16 %v3099
  %v3121 = vunpack.c.l.b16 %v3100
  %v3122 = vunpack.c.h.b16 %v3100
  %v3123 = vunpack.c.l.b16 %v3101
  %v3124 = vunpack.c.h.b16 %v3101
  %v3125 = vunpack.c.l.b16 %v3102
  %v3126 = vunpack.c.h.b16 %v3102
  %v3127 = vpack.c.b16 %v3111, %v3111
  %v3128 = vpack.c.b16 %v3112, %v3112
  %v3129 = vpack.c.b16 %v3113, %v3113
  %v3130 = vpack.c.b16 %v3114, %v3114
  %v3131 = vpack.c.b16 %v3115, %v3115
  %v3132 = vpack.c.b16 %v3116, %v3116
  %v3133 = vpack.c.b16 %v3117, %v3117
  %v3134 = vpack.c.b16 %v3118, %v3118
  %v3135 = vpack.c.b16 %v3119, %v3119
  %v3136 = vpack.c.b16 %v3120, %v3120
  %v3137 = vpack.c.b16 %v3121, %v3121
  %v3138 = vpack.c.b16 %v3122, %v3122
  %v3139 = vpack.c.b16 %v3123, %v3123
  %v3140 = vpack.c.b16 %v3124, %v3124
  %v3141 = vpack.c.b16 %v3125, %v3125
  %v3142 = vpack.c.b16 %v3126, %v3126
  %3159 = vst [vmem:[%s4] sm:$0xf] %v3127
  %3160 = vst [vmem:[%s4 + $0x4] sm:$0xf] %v3128
  %3161 = vst [vmem:[%s4 + $0x8] sm:$0xf] %v3129
  %3162 = vst [vmem:[%s4 + $0xc] sm:$0xf] %v3130
  %3163 = vst [vmem:[%s4 + $0x10] sm:$0xf] %v3131
  %3164 = vst [vmem:[%s4 + $0x14] sm:$0xf] %v3132
  %3165 = vst [vmem:[%s4 + $0x18] sm:$0xf] %v3133
  %3166 = vst [vmem:[%s4 + $0x1c] sm:$0xf] %v3134
  %3167 = vst [vmem:[%s4 + $0x20] sm:$0xf] %v3135
  %3168 = vst [vmem:[%s4 + $0x24] sm:$0xf] %v3136
  %3169 = vst [vmem:[%s4 + $0x28] sm:$0xf] %v3137
  %3170 = vst [vmem:[%s4 + $0x2c] sm:$0xf] %v3138
  %3171 = vst [vmem:[%s4 + $0x30] sm:$0xf] %v3139
  %3172 = vst [vmem:[%s4 + $0x34] sm:$0xf] %v3140
  %3173 = vst [vmem:[%s4 + $0x38] sm:$0xf] %v3141
  %3174 = vst [vmem:[%s4 + $0x3c] sm:$0xf] %v3142
  // Predicated region
  $region18: #{_lambda_.7} parent=0 // pred_check
    _
  $region19: #{_lambda_.7} parent=0 // pred_check_branch
    %3176 = sbr.rel (0) target = $region21
  $region20: #{_lambda_.7} parent=0 // pred_region
    _
  $region21: #{_lambda_.7} parent=0 // pred_fallthru
    _
  // Predicated region
  $region22: #{_lambda_.7} parent=0 // pred_check
    _
  $region23: #{_lambda_.7} parent=0 // pred_check_branch
    %3178 = sbr.rel (0) target = $region25
  $region24: #{_lambda_.7} parent=0 // pred_region
    _
  $region25: #{_lambda_.7} parent=0 // pred_fallthru
    _

</llo_original>
